<compile_context>
chip_gen: v6e
topology: v6e:2x2x1
jax: 0.10.0
libtpu: 0.0.40
codegen_flags: <defaults>
</compile_context>

<pallas_src>
import math
import jax
import jax.numpy as jnp
from jax.experimental import pallas as pl
from jax.experimental.pallas import tpu as pltpu

D_MODEL = 512
NUM_HEADS = 8
HEAD_DIM = D_MODEL // NUM_HEADS
FF_DIM = 2048
LN_EPS = 1e-5


def _layernorm(x, gamma, beta):
    # PyTorch LayerNorm: biased variance over the last dim, eps inside sqrt.
    mu = jnp.mean(x, axis=-1, keepdims=True)
    xc = x - mu
    var = jnp.mean(xc * xc, axis=-1, keepdims=True)
    return xc * jax.lax.rsqrt(var + LN_EPS) * gamma + beta


def transformer_block_kernel(
    x_ref,          # (NB, L, E)  f32
    wqkv_ref,       # (E, 3E)     bf16  (1/sqrt(dh) folded into Q columns)
    bqkv_ref,       # (1, 3E)     f32   (scale folded into Q part)
    wo_ref,         # (E, E)      bf16
    bo_ref,         # (1, E)      f32
    g1_ref,         # (1, E)      f32
    be1_ref,        # (1, E)      f32
    w1_ref,         # (E, FF)     bf16
    b1_ref,         # (1, FF)     f32
    w2_ref,         # (FF, E)     bf16
    b2_ref,         # (1, E)      f32
    g2_ref,         # (1, E)      f32
    be2_ref,        # (1, E)      f32
    out_ref,        # (NB, L, E)  f32
):
    NB, L, E = x_ref.shape
    rows = NB * L

    x = x_ref[...].reshape(rows, E)          # f32 residual stream, (rows, E)
    xb = x.astype(jnp.bfloat16)

    # ---- fused QKV projection: one wide bf16 MXU matmul over all rows -------
    qkv = jnp.dot(xb, wqkv_ref[...], preferred_element_type=jnp.float32) + bqkv_ref[...]
    q = qkv[:, :E]
    k = qkv[:, E:2 * E]
    v = qkv[:, 2 * E:]

    # ---- multi-head attention, batched over (head, sequence) ----------------
    def split_heads(t):  # (rows, E) -> (H*NB, L, dh); batch index = (head, seq)
        parts = [t[:, hh * HEAD_DIM:(hh + 1) * HEAD_DIM] for hh in range(NUM_HEADS)]
        st = jnp.stack(parts, axis=0)                       # (H, rows, dh)
        return st.reshape(NUM_HEADS * NB, L, HEAD_DIM)

    qh = split_heads(q).astype(jnp.bfloat16)   # scale already folded into wqkv/bqkv
    kh = split_heads(k).astype(jnp.bfloat16)
    vh = split_heads(v).astype(jnp.bfloat16)

    # Scores: contract last dims directly (no explicit transpose of K).
    s = jnp.einsum("bqd,bkd->bqk", qh, kh, preferred_element_type=jnp.float32)
    s = s - jnp.max(s, axis=-1, keepdims=True)
    p = jnp.exp(s)
    p = p * pl.reciprocal(jnp.sum(p, axis=-1, keepdims=True), approx=True)

    ctx = jnp.einsum("bqk,bkd->bqd", p.astype(jnp.bfloat16), vh,
                     preferred_element_type=jnp.float32)     # (H*NB, L, dh)
    ctx = ctx.reshape(NUM_HEADS, rows, HEAD_DIM)
    attn = jnp.concatenate([ctx[hh] for hh in range(NUM_HEADS)], axis=-1)  # (rows, E)

    attn = jnp.dot(attn.astype(jnp.bfloat16), wo_ref[...],
                   preferred_element_type=jnp.float32) + bo_ref[...]

    # ---- residual + LayerNorm 1 ----------------------------------------------
    x1 = _layernorm(x + attn, g1_ref[...], be1_ref[...])

    # ---- feed-forward ----------------------------------------------------------
    hid = jnp.dot(x1.astype(jnp.bfloat16), w1_ref[...],
                  preferred_element_type=jnp.float32) + b1_ref[...]
    hid = jnp.maximum(hid, 0.0)
    ff = jnp.dot(hid.astype(jnp.bfloat16), w2_ref[...],
                 preferred_element_type=jnp.float32) + b2_ref[...]

    # ---- residual + LayerNorm 2 ------------------------------------------------
    x2 = _layernorm(x1 + ff, g2_ref[...], be2_ref[...])
    out_ref[...] = x2.reshape(NB, L, E).astype(out_ref.dtype)


def _choose_batch_block(n, seq_len, target_rows=256, max_rows=1024):
    """Pick how many sequences to pack per grid step.

    Prefer blocks whose flattened row count gives the MXU >= target_rows rows (better
    amortization of the ~0.35us per-step overhead), but cap the rows so activation
    intermediates (qkv f32 ~6KB/row, FFN hidden f32 ~8KB/row) stay well inside VMEM.
    If the batch is too small for target_rows, keep >= 2 grid steps (megacore)."""
    divisors = [d for d in range(1, n + 1) if n % d == 0]
    for d in divisors:
        if target_rows <= d * seq_len <= max_rows:
            return d
    for d in reversed(divisors):
        if d * seq_len <= max_rows and n // d >= 2:
            return d
    for d in reversed(divisors):
        if d * seq_len <= max_rows:
            return d
    return 1


def _vmem_limit_bytes():
    # v7x only has 64 MiB of VMEM per TensorCore; never request more than fits.
    try:
        cap = int(pltpu.get_tpu_info().vmem_capacity_bytes)
        return min(64 << 20, (3 * cap) // 4)
    except Exception:
        return 48 << 20   # conservative value that fits every generation


def _prep_params(params):
    """Fold the attention scale into the Q projection and cast matmul weights to bf16."""
    scale = 1.0 / math.sqrt(HEAD_DIM)
    col_scale = jnp.concatenate([
        jnp.full((D_MODEL,), scale, jnp.float32),
        jnp.ones((2 * D_MODEL,), jnp.float32),
    ])[None, :]
    return (
        (params["wqkv"] * col_scale).astype(jnp.bfloat16),
        params["bqkv"] * col_scale,
        params["wo"].astype(jnp.bfloat16),
        params["bo"],
        params["g1"], params["be1"],
        params["w1"].astype(jnp.bfloat16),
        params["b1"],
        params["w2"].astype(jnp.bfloat16),
        params["b2"],
        params["g2"], params["be2"],
    )


def transformer_block(x_lne, params):
    """x_lne: (L, N, E) float32, PyTorch nn.MultiheadAttention layout."""
    L, N, E = x_lne.shape
    assert E == D_MODEL

    nb = _choose_batch_block(N, L)
    grid = (N // nb,)

    # One HBM transpose so (batch, seq) flattens into contiguous matmul rows.
    # TODO(synk): fold this transpose into the kernel (sublane<->outer swap) once the
    # Mosaic relayout cost is verified; for now it is a tiny fraction of total traffic.
    x_nle = jnp.transpose(x_lne, (1, 0, 2))   # (N, L, E)

    weight_args = _prep_params(params)

    def _full_spec(arr):
        return pl.BlockSpec(arr.shape, lambda n: (0, 0))   # grid-invariant weight tile

    out_nle = pl.pallas_call(
        transformer_block_kernel,
        out_shape=jax.ShapeDtypeStruct((N, L, E), jnp.float32),
        grid_spec=pltpu.PrefetchScalarGridSpec(
            num_scalar_prefetch=0,
            grid=grid,
            in_specs=[pl.BlockSpec((nb, L, E), lambda n: (n, 0, 0))]
                     + [_full_spec(a) for a in weight_args],
            out_specs=pl.BlockSpec((nb, L, E), lambda n: (n, 0, 0)),
        ),
        compiler_params=pltpu.CompilerParams(
            dimension_semantics=("parallel",),
            vmem_limit_bytes=_vmem_limit_bytes(),
        ),
    )(x_nle, *weight_args)

    return jnp.transpose(out_nle, (1, 0, 2))  # back to (L, N, E)


# ---------------- pure-JAX f32 reference (independent math, for verification) -------
def transformer_block_ref(x_lne, params):
    x = jnp.transpose(x_lne, (1, 0, 2))  # (N, L, E)
    qkv = x @ params["wqkv"] + params["bqkv"]
    q, k, v = qkv[..., :D_MODEL], qkv[..., D_MODEL:2 * D_MODEL], qkv[..., 2 * D_MODEL:]
    scale = 1.0 / math.sqrt(HEAD_DIM)

    def split_heads(t):  # (N, L, E) -> (N, H, L, dh)
        N, L, _ = t.shape
        return t.reshape(N, L, NUM_HEADS, HEAD_DIM).transpose(0, 2, 1, 3)

    qh, kh, vh = split_heads(q) * scale, split_heads(k), split_heads(v)
    s = jnp.einsum("nhld,nhmd->nhlm", qh, kh)
    p = jax.nn.softmax(s, axis=-1)
    a = jnp.einsum("nhlm,nhmd->nhld", p, vh)
    N, H, L, dh = a.shape
    a = a.transpose(0, 2, 1, 3).reshape(N, L, H * dh)
    attn = a @ params["wo"] + params["bo"]
    x1 = _layernorm(x + attn, params["g1"], params["be1"])
    hdn = jnp.maximum(x1 @ params["w1"] + params["b1"], 0.0)
    ff = hdn @ params["w2"] + params["b2"]
    x2 = _layernorm(x1 + ff, params["g2"], params["be2"])
    return jnp.transpose(x2, (1, 0, 2))


def init_params(key):
    ks = jax.random.split(key, 8)
    s = 0.02
    return {
        "wqkv": jax.random.normal(ks[0], (D_MODEL, 3 * D_MODEL), jnp.float32) * s,
        "bqkv": jax.random.normal(ks[1], (1, 3 * D_MODEL), jnp.float32) * s,
        "wo":   jax.random.normal(ks[2], (D_MODEL, D_MODEL), jnp.float32) * s,
        "bo":   jax.random.normal(ks[3], (1, D_MODEL), jnp.float32) * s,
        "g1":   jnp.ones((1, D_MODEL), jnp.float32),
        "be1":  jnp.zeros((1, D_MODEL), jnp.float32),
        "w1":   jax.random.normal(ks[4], (D_MODEL, FF_DIM), jnp.float32) * s,
        "b1":   jax.random.normal(ks[5], (1, FF_DIM), jnp.float32) * s,
        "w2":   jax.random.normal(ks[6], (FF_DIM, D_MODEL), jnp.float32) * s,
        "b2":   jax.random.normal(ks[7], (1, D_MODEL), jnp.float32) * s,
        "g2":   jnp.ones((1, D_MODEL), jnp.float32),
        "be2":  jnp.zeros((1, D_MODEL), jnp.float32),
    }


if __name__ == "__main__":
    key = jax.random.PRNGKey(0)
    kx, kp = jax.random.split(key)
    L, N = 8, 2                      # seq len, batch (PyTorch layout: (L, N, E))
    x = jax.random.normal(kx, (L, N, D_MODEL), jnp.float32)
    params = init_params(kp)

    tb = jax.jit(transformer_block)
    out = jax.block_until_ready(tb(x, params))
    ref = jax.block_until_ready(transformer_block_ref(x, params))

    assert out.shape == (L, N, D_MODEL)
    max_err = float(jnp.max(jnp.abs(out - ref)))
    # bf16 matmul operands (f32 accumulation) vs pure-f32 reference -> loosened tolerance.
    assert jnp.allclose(out, ref, rtol=2e-2, atol=2e-2), f"mismatch vs reference (max abs err {max_err})"

    print("KERNEL_OK")
</pallas_src>

<mosaic_0001>
module attributes {stable_mosaic.version = 11 : i64} {
  func.func @transformer_block_kernel(%arg0: i32, %arg1: memref<1x8x512xf32, #tpu.memory_space<vmem>>, %arg2: memref<512x1536xbf16, #tpu.memory_space<vmem>>, %arg3: memref<1x1536xf32, #tpu.memory_space<vmem>>, %arg4: memref<512x512xbf16, #tpu.memory_space<vmem>>, %arg5: memref<1x512xf32, #tpu.memory_space<vmem>>, %arg6: memref<1x512xf32, #tpu.memory_space<vmem>>, %arg7: memref<1x512xf32, #tpu.memory_space<vmem>>, %arg8: memref<512x2048xbf16, #tpu.memory_space<vmem>>, %arg9: memref<1x2048xf32, #tpu.memory_space<vmem>>, %arg10: memref<2048x512xbf16, #tpu.memory_space<vmem>>, %arg11: memref<1x512xf32, #tpu.memory_space<vmem>>, %arg12: memref<1x512xf32, #tpu.memory_space<vmem>>, %arg13: memref<1x512xf32, #tpu.memory_space<vmem>>, %arg14: memref<1x8x512xf32, #tpu.memory_space<vmem>>) attributes {dimension_semantics = [#tpu.dimension_semantics<parallel>], iteration_bounds = array<i64: 2>, scalar_prefetch = 0 : i64, scratch_operands = 0 : i64, tpu.core_type = #tpu.core_type<tc>, window_params = [{transform_indices = @transform_0, window_bounds = array<i64: 1, 8, 512>}, {pipeline_mode = #tpu.pipeline_mode<synchronous>, transform_indices = @transform_1, window_bounds = array<i64: 512, 1536>}, {pipeline_mode = #tpu.pipeline_mode<synchronous>, transform_indices = @transform_2, window_bounds = array<i64: 1, 1536>}, {pipeline_mode = #tpu.pipeline_mode<synchronous>, transform_indices = @transform_3, window_bounds = array<i64: 512, 512>}, {pipeline_mode = #tpu.pipeline_mode<synchronous>, transform_indices = @transform_4, window_bounds = array<i64: 1, 512>}, {pipeline_mode = #tpu.pipeline_mode<synchronous>, transform_indices = @transform_5, window_bounds = array<i64: 1, 512>}, {pipeline_mode = #tpu.pipeline_mode<synchronous>, transform_indices = @transform_6, window_bounds = array<i64: 1, 512>}, {pipeline_mode = #tpu.pipeline_mode<synchronous>, transform_indices = @transform_7, window_bounds = array<i64: 512, 2048>}, {pipeline_mode = #tpu.pipeline_mode<synchronous>, transform_indices = @transform_8, window_bounds = array<i64: 1, 2048>}, {pipeline_mode = #tpu.pipeline_mode<synchronous>, transform_indices = @transform_9, window_bounds = array<i64: 2048, 512>}, {pipeline_mode = #tpu.pipeline_mode<synchronous>, transform_indices = @transform_10, window_bounds = array<i64: 1, 512>}, {pipeline_mode = #tpu.pipeline_mode<synchronous>, transform_indices = @transform_11, window_bounds = array<i64: 1, 512>}, {pipeline_mode = #tpu.pipeline_mode<synchronous>, transform_indices = @transform_12, window_bounds = array<i64: 1, 512>}, {transform_indices = @transform_13, window_bounds = array<i64: 1, 8, 512>}]} {
    %c0 = arith.constant 0 : index
    %c0_0 = arith.constant 0 : index
    %c0_1 = arith.constant 0 : index
    %0 = vector.load %arg1[%c0, %c0_0, %c0_1] : memref<1x8x512xf32, #tpu.memory_space<vmem>>, vector<1x8x512xf32>
    %1 = vector.shape_cast %0 : vector<1x8x512xf32> to vector<8x512xf32>
    %2 = arith.truncf %1 : vector<8x512xf32> to vector<8x512xbf16>
    %c0_2 = arith.constant 0 : index
    %c0_3 = arith.constant 0 : index
    %3 = vector.load %arg2[%c0_2, %c0_3] : memref<512x1536xbf16, #tpu.memory_space<vmem>>, vector<512x1536xbf16>
    %cst = arith.constant dense<0.000000e+00> : vector<8x1536xf32>
    %4 = tpu.matmul %2, %3, %cst {dimension_numbers = #tpu.dot_dimension_numbers<[1], [0], [0], [1], [0, 0, 1, 1], [], []>} : vector<8x512xbf16>, vector<512x1536xbf16>, vector<8x1536xf32> -> vector<8x1536xf32>
    %c0_4 = arith.constant 0 : index
    %c0_5 = arith.constant 0 : index
    %5 = vector.load %arg3[%c0_4, %c0_5] : memref<1x1536xf32, #tpu.memory_space<vmem>>, vector<1x1536xf32>
    %6 = vector.broadcast %5 : vector<1x1536xf32> to vector<8x1536xf32>
    %7 = arith.addf %4, %6 : vector<8x1536xf32>
    %8 = vector.extract_strided_slice %7 {offsets = [0, 0], sizes = [8, 512], strides = [1, 1]} : vector<8x1536xf32> to vector<8x512xf32>
    %9 = vector.extract_strided_slice %7 {offsets = [0, 512], sizes = [8, 512], strides = [1, 1]} : vector<8x1536xf32> to vector<8x512xf32>
    %10 = vector.extract_strided_slice %7 {offsets = [0, 1024], sizes = [8, 512], strides = [1, 1]} : vector<8x1536xf32> to vector<8x512xf32>
    %11 = vector.extract_strided_slice %8 {offsets = [0, 0], sizes = [8, 64], strides = [1, 1]} : vector<8x512xf32> to vector<8x64xf32>
    %12 = vector.extract_strided_slice %8 {offsets = [0, 64], sizes = [8, 64], strides = [1, 1]} : vector<8x512xf32> to vector<8x64xf32>
    %13 = vector.extract_strided_slice %8 {offsets = [0, 128], sizes = [8, 64], strides = [1, 1]} : vector<8x512xf32> to vector<8x64xf32>
    %14 = vector.extract_strided_slice %8 {offsets = [0, 192], sizes = [8, 64], strides = [1, 1]} : vector<8x512xf32> to vector<8x64xf32>
    %15 = vector.extract_strided_slice %8 {offsets = [0, 256], sizes = [8, 64], strides = [1, 1]} : vector<8x512xf32> to vector<8x64xf32>
    %16 = vector.extract_strided_slice %8 {offsets = [0, 320], sizes = [8, 64], strides = [1, 1]} : vector<8x512xf32> to vector<8x64xf32>
    %17 = vector.extract_strided_slice %8 {offsets = [0, 384], sizes = [8, 64], strides = [1, 1]} : vector<8x512xf32> to vector<8x64xf32>
    %18 = vector.extract_strided_slice %8 {offsets = [0, 448], sizes = [8, 64], strides = [1, 1]} : vector<8x512xf32> to vector<8x64xf32>
    %19 = vector.shape_cast %11 : vector<8x64xf32> to vector<1x8x64xf32>
    %20 = vector.shape_cast %12 : vector<8x64xf32> to vector<1x8x64xf32>
    %21 = vector.shape_cast %13 : vector<8x64xf32> to vector<1x8x64xf32>
    %22 = vector.shape_cast %14 : vector<8x64xf32> to vector<1x8x64xf32>
    %23 = vector.shape_cast %15 : vector<8x64xf32> to vector<1x8x64xf32>
    %24 = vector.shape_cast %16 : vector<8x64xf32> to vector<1x8x64xf32>
    %25 = vector.shape_cast %17 : vector<8x64xf32> to vector<1x8x64xf32>
    %26 = vector.shape_cast %18 : vector<8x64xf32> to vector<1x8x64xf32>
    %27 = tpu.concatenate %19, %20, %21, %22, %23, %24, %25, %26 in 0 : vector<1x8x64xf32>, vector<1x8x64xf32>, vector<1x8x64xf32>, vector<1x8x64xf32>, vector<1x8x64xf32>, vector<1x8x64xf32>, vector<1x8x64xf32>, vector<1x8x64xf32> -> vector<8x8x64xf32>
    %28 = arith.truncf %27 : vector<8x8x64xf32> to vector<8x8x64xbf16>
    %29 = vector.extract_strided_slice %9 {offsets = [0, 0], sizes = [8, 64], strides = [1, 1]} : vector<8x512xf32> to vector<8x64xf32>
    %30 = vector.extract_strided_slice %9 {offsets = [0, 64], sizes = [8, 64], strides = [1, 1]} : vector<8x512xf32> to vector<8x64xf32>
    %31 = vector.extract_strided_slice %9 {offsets = [0, 128], sizes = [8, 64], strides = [1, 1]} : vector<8x512xf32> to vector<8x64xf32>
    %32 = vector.extract_strided_slice %9 {offsets = [0, 192], sizes = [8, 64], strides = [1, 1]} : vector<8x512xf32> to vector<8x64xf32>
    %33 = vector.extract_strided_slice %9 {offsets = [0, 256], sizes = [8, 64], strides = [1, 1]} : vector<8x512xf32> to vector<8x64xf32>
    %34 = vector.extract_strided_slice %9 {offsets = [0, 320], sizes = [8, 64], strides = [1, 1]} : vector<8x512xf32> to vector<8x64xf32>
    %35 = vector.extract_strided_slice %9 {offsets = [0, 384], sizes = [8, 64], strides = [1, 1]} : vector<8x512xf32> to vector<8x64xf32>
    %36 = vector.extract_strided_slice %9 {offsets = [0, 448], sizes = [8, 64], strides = [1, 1]} : vector<8x512xf32> to vector<8x64xf32>
    %37 = vector.shape_cast %29 : vector<8x64xf32> to vector<1x8x64xf32>
    %38 = vector.shape_cast %30 : vector<8x64xf32> to vector<1x8x64xf32>
    %39 = vector.shape_cast %31 : vector<8x64xf32> to vector<1x8x64xf32>
    %40 = vector.shape_cast %32 : vector<8x64xf32> to vector<1x8x64xf32>
    %41 = vector.shape_cast %33 : vector<8x64xf32> to vector<1x8x64xf32>
    %42 = vector.shape_cast %34 : vector<8x64xf32> to vector<1x8x64xf32>
    %43 = vector.shape_cast %35 : vector<8x64xf32> to vector<1x8x64xf32>
    %44 = vector.shape_cast %36 : vector<8x64xf32> to vector<1x8x64xf32>
    %45 = tpu.concatenate %37, %38, %39, %40, %41, %42, %43, %44 in 0 : vector<1x8x64xf32>, vector<1x8x64xf32>, vector<1x8x64xf32>, vector<1x8x64xf32>, vector<1x8x64xf32>, vector<1x8x64xf32>, vector<1x8x64xf32>, vector<1x8x64xf32> -> vector<8x8x64xf32>
    %46 = arith.truncf %45 : vector<8x8x64xf32> to vector<8x8x64xbf16>
    %47 = vector.extract_strided_slice %10 {offsets = [0, 0], sizes = [8, 64], strides = [1, 1]} : vector<8x512xf32> to vector<8x64xf32>
    %48 = vector.extract_strided_slice %10 {offsets = [0, 64], sizes = [8, 64], strides = [1, 1]} : vector<8x512xf32> to vector<8x64xf32>
    %49 = vector.extract_strided_slice %10 {offsets = [0, 128], sizes = [8, 64], strides = [1, 1]} : vector<8x512xf32> to vector<8x64xf32>
    %50 = vector.extract_strided_slice %10 {offsets = [0, 192], sizes = [8, 64], strides = [1, 1]} : vector<8x512xf32> to vector<8x64xf32>
    %51 = vector.extract_strided_slice %10 {offsets = [0, 256], sizes = [8, 64], strides = [1, 1]} : vector<8x512xf32> to vector<8x64xf32>
    %52 = vector.extract_strided_slice %10 {offsets = [0, 320], sizes = [8, 64], strides = [1, 1]} : vector<8x512xf32> to vector<8x64xf32>
    %53 = vector.extract_strided_slice %10 {offsets = [0, 384], sizes = [8, 64], strides = [1, 1]} : vector<8x512xf32> to vector<8x64xf32>
    %54 = vector.extract_strided_slice %10 {offsets = [0, 448], sizes = [8, 64], strides = [1, 1]} : vector<8x512xf32> to vector<8x64xf32>
    %55 = vector.shape_cast %47 : vector<8x64xf32> to vector<1x8x64xf32>
    %56 = vector.shape_cast %48 : vector<8x64xf32> to vector<1x8x64xf32>
    %57 = vector.shape_cast %49 : vector<8x64xf32> to vector<1x8x64xf32>
    %58 = vector.shape_cast %50 : vector<8x64xf32> to vector<1x8x64xf32>
    %59 = vector.shape_cast %51 : vector<8x64xf32> to vector<1x8x64xf32>
    %60 = vector.shape_cast %52 : vector<8x64xf32> to vector<1x8x64xf32>
    %61 = vector.shape_cast %53 : vector<8x64xf32> to vector<1x8x64xf32>
    %62 = vector.shape_cast %54 : vector<8x64xf32> to vector<1x8x64xf32>
    %63 = tpu.concatenate %55, %56, %57, %58, %59, %60, %61, %62 in 0 : vector<1x8x64xf32>, vector<1x8x64xf32>, vector<1x8x64xf32>, vector<1x8x64xf32>, vector<1x8x64xf32>, vector<1x8x64xf32>, vector<1x8x64xf32>, vector<1x8x64xf32> -> vector<8x8x64xf32>
    %64 = arith.truncf %63 : vector<8x8x64xf32> to vector<8x8x64xbf16>
    "tpu.trace_start"() <{level = 10 : i32, message = "bqd,bkd->bqk"}> : () -> ()
    %cst_6 = arith.constant dense<0.000000e+00> : vector<8x8x8xf32>
    %65 = tpu.matmul %28, %46, %cst_6 {dimension_numbers = #tpu.dot_dimension_numbers<[2], [2], [1], [1], [0, 0, 0, 1, 1, 1], [0], [0]>} : vector<8x8x64xbf16>, vector<8x8x64xbf16>, vector<8x8x8xf32> -> vector<8x8x8xf32>
    "tpu.trace_stop"() : () -> ()
    %cst_7 = arith.constant dense<0xFF800000> : vector<8x8xf32>
    %66 = vector.multi_reduction <maximumf>, %65, %cst_7 [2] : vector<8x8x8xf32> to vector<8x8xf32>
    %67 = vector.shape_cast %66 : vector<8x8xf32> to vector<8x8x1xf32>
    %68 = vector.broadcast %67 : vector<8x8x1xf32> to vector<8x8x8xf32>
    %69 = arith.subf %65, %68 : vector<8x8x8xf32>
    %70 = math.exp %69 : vector<8x8x8xf32>
    %cst_8 = arith.constant dense<0.000000e+00> : vector<8x8xf32>
    %71 = vector.multi_reduction <add>, %70, %cst_8 [2] : vector<8x8x8xf32> to vector<8x8xf32>
    %72 = vector.shape_cast %71 : vector<8x8xf32> to vector<8x8x1xf32>
    %73 = tpu.reciprocal %72 {approx = true} : vector<8x8x1xf32> -> vector<8x8x1xf32>
    %74 = vector.broadcast %73 : vector<8x8x1xf32> to vector<8x8x8xf32>
    %75 = arith.mulf %70, %74 : vector<8x8x8xf32>
    %76 = arith.truncf %75 : vector<8x8x8xf32> to vector<8x8x8xbf16>
    "tpu.trace_start"() <{level = 10 : i32, message = "bqk,bkd->bqd"}> : () -> ()
    %cst_9 = arith.constant dense<0.000000e+00> : vector<8x8x64xf32>
    %77 = tpu.matmul %76, %64, %cst_9 {dimension_numbers = #tpu.dot_dimension_numbers<[2], [1], [1], [2], [0, 0, 0, 1, 1, 2], [0], [0]>} : vector<8x8x8xbf16>, vector<8x8x64xbf16>, vector<8x8x64xf32> -> vector<8x8x64xf32>
    "tpu.trace_stop"() : () -> ()
    %78 = vector.extract_strided_slice %77 {offsets = [0, 0, 0], sizes = [1, 8, 64], strides = [1, 1, 1]} : vector<8x8x64xf32> to vector<1x8x64xf32>
    %79 = vector.shape_cast %78 : vector<1x8x64xf32> to vector<8x64xf32>
    %80 = vector.extract_strided_slice %77 {offsets = [1, 0, 0], sizes = [1, 8, 64], strides = [1, 1, 1]} : vector<8x8x64xf32> to vector<1x8x64xf32>
    %81 = vector.shape_cast %80 : vector<1x8x64xf32> to vector<8x64xf32>
    %82 = vector.extract_strided_slice %77 {offsets = [2, 0, 0], sizes = [1, 8, 64], strides = [1, 1, 1]} : vector<8x8x64xf32> to vector<1x8x64xf32>
    %83 = vector.shape_cast %82 : vector<1x8x64xf32> to vector<8x64xf32>
    %84 = vector.extract_strided_slice %77 {offsets = [3, 0, 0], sizes = [1, 8, 64], strides = [1, 1, 1]} : vector<8x8x64xf32> to vector<1x8x64xf32>
    %85 = vector.shape_cast %84 : vector<1x8x64xf32> to vector<8x64xf32>
    %86 = vector.extract_strided_slice %77 {offsets = [4, 0, 0], sizes = [1, 8, 64], strides = [1, 1, 1]} : vector<8x8x64xf32> to vector<1x8x64xf32>
    %87 = vector.shape_cast %86 : vector<1x8x64xf32> to vector<8x64xf32>
    %88 = vector.extract_strided_slice %77 {offsets = [5, 0, 0], sizes = [1, 8, 64], strides = [1, 1, 1]} : vector<8x8x64xf32> to vector<1x8x64xf32>
    %89 = vector.shape_cast %88 : vector<1x8x64xf32> to vector<8x64xf32>
    %90 = vector.extract_strided_slice %77 {offsets = [6, 0, 0], sizes = [1, 8, 64], strides = [1, 1, 1]} : vector<8x8x64xf32> to vector<1x8x64xf32>
    %91 = vector.shape_cast %90 : vector<1x8x64xf32> to vector<8x64xf32>
    %92 = vector.extract_strided_slice %77 {offsets = [7, 0, 0], sizes = [1, 8, 64], strides = [1, 1, 1]} : vector<8x8x64xf32> to vector<1x8x64xf32>
    %93 = vector.shape_cast %92 : vector<1x8x64xf32> to vector<8x64xf32>
    %94 = tpu.concatenate %79, %81, %83, %85, %87, %89, %91, %93 in 1 : vector<8x64xf32>, vector<8x64xf32>, vector<8x64xf32>, vector<8x64xf32>, vector<8x64xf32>, vector<8x64xf32>, vector<8x64xf32>, vector<8x64xf32> -> vector<8x512xf32>
    %95 = arith.truncf %94 : vector<8x512xf32> to vector<8x512xbf16>
    %c0_10 = arith.constant 0 : index
    %c0_11 = arith.constant 0 : index
    %96 = vector.load %arg4[%c0_10, %c0_11] : memref<512x512xbf16, #tpu.memory_space<vmem>>, vector<512x512xbf16>
    %cst_12 = arith.constant dense<0.000000e+00> : vector<8x512xf32>
    %97 = tpu.matmul %95, %96, %cst_12 {dimension_numbers = #tpu.dot_dimension_numbers<[1], [0], [0], [1], [0, 0, 1, 1], [], []>} : vector<8x512xbf16>, vector<512x512xbf16>, vector<8x512xf32> -> vector<8x512xf32>
    %c0_13 = arith.constant 0 : index
    %c0_14 = arith.constant 0 : index
    %98 = vector.load %arg5[%c0_13, %c0_14] : memref<1x512xf32, #tpu.memory_space<vmem>>, vector<1x512xf32>
    %99 = vector.broadcast %98 : vector<1x512xf32> to vector<8x512xf32>
    %100 = arith.addf %97, %99 : vector<8x512xf32>
    %101 = arith.addf %1, %100 : vector<8x512xf32>
    %c0_15 = arith.constant 0 : index
    %c0_16 = arith.constant 0 : index
    %102 = vector.load %arg6[%c0_15, %c0_16] : memref<1x512xf32, #tpu.memory_space<vmem>>, vector<1x512xf32>
    %c0_17 = arith.constant 0 : index
    %c0_18 = arith.constant 0 : index
    %103 = vector.load %arg7[%c0_17, %c0_18] : memref<1x512xf32, #tpu.memory_space<vmem>>, vector<1x512xf32>
    %cst_19 = arith.constant dense<0.000000e+00> : vector<8xf32>
    %104 = vector.multi_reduction <add>, %101, %cst_19 [1] : vector<8x512xf32> to vector<8xf32>
    %105 = vector.shape_cast %104 : vector<8xf32> to vector<8x1xf32>
    %cst_20 = arith.constant 5.120000e+02 : f32
    %106 = vector.broadcast %cst_20 : f32 to vector<8x1xf32>
    %107 = arith.divf %105, %106 : vector<8x1xf32>
    %108 = vector.broadcast %107 : vector<8x1xf32> to vector<8x512xf32>
    %109 = arith.subf %101, %108 : vector<8x512xf32>
    %110 = arith.mulf %109, %109 : vector<8x512xf32>
    %cst_21 = arith.constant dense<0.000000e+00> : vector<8xf32>
    %111 = vector.multi_reduction <add>, %110, %cst_21 [1] : vector<8x512xf32> to vector<8xf32>
    %112 = vector.shape_cast %111 : vector<8xf32> to vector<8x1xf32>
    %cst_22 = arith.constant 5.120000e+02 : f32
    %113 = vector.broadcast %cst_22 : f32 to vector<8x1xf32>
    %114 = arith.divf %112, %113 : vector<8x1xf32>
    %cst_23 = arith.constant 9.99999974E-6 : f32
    %115 = vector.broadcast %cst_23 : f32 to vector<8x1xf32>
    %116 = arith.addf %114, %115 : vector<8x1xf32>
    %117 = math.rsqrt %116 : vector<8x1xf32>
    %118 = vector.broadcast %117 : vector<8x1xf32> to vector<8x512xf32>
    %119 = arith.mulf %109, %118 : vector<8x512xf32>
    %120 = vector.broadcast %102 : vector<1x512xf32> to vector<8x512xf32>
    %121 = arith.mulf %119, %120 : vector<8x512xf32>
    %122 = vector.broadcast %103 : vector<1x512xf32> to vector<8x512xf32>
    %123 = arith.addf %121, %122 : vector<8x512xf32>
    %124 = arith.truncf %123 : vector<8x512xf32> to vector<8x512xbf16>
    %c0_24 = arith.constant 0 : index
    %c0_25 = arith.constant 0 : index
    %125 = vector.load %arg8[%c0_24, %c0_25] : memref<512x2048xbf16, #tpu.memory_space<vmem>>, vector<512x2048xbf16>
    %cst_26 = arith.constant dense<0.000000e+00> : vector<8x2048xf32>
    %126 = tpu.matmul %124, %125, %cst_26 {dimension_numbers = #tpu.dot_dimension_numbers<[1], [0], [0], [1], [0, 0, 1, 1], [], []>} : vector<8x512xbf16>, vector<512x2048xbf16>, vector<8x2048xf32> -> vector<8x2048xf32>
    %c0_27 = arith.constant 0 : index
    %c0_28 = arith.constant 0 : index
    %127 = vector.load %arg9[%c0_27, %c0_28] : memref<1x2048xf32, #tpu.memory_space<vmem>>, vector<1x2048xf32>
    %128 = vector.broadcast %127 : vector<1x2048xf32> to vector<8x2048xf32>
    %129 = arith.addf %126, %128 : vector<8x2048xf32>
    %cst_29 = arith.constant 0.000000e+00 : f32
    %130 = vector.broadcast %cst_29 : f32 to vector<8x2048xf32>
    %131 = arith.maximumf %129, %130 : vector<8x2048xf32>
    %132 = arith.truncf %131 : vector<8x2048xf32> to vector<8x2048xbf16>
    %c0_30 = arith.constant 0 : index
    %c0_31 = arith.constant 0 : index
    %133 = vector.load %arg10[%c0_30, %c0_31] : memref<2048x512xbf16, #tpu.memory_space<vmem>>, vector<2048x512xbf16>
    %cst_32 = arith.constant dense<0.000000e+00> : vector<8x512xf32>
    %134 = tpu.matmul %132, %133, %cst_32 {dimension_numbers = #tpu.dot_dimension_numbers<[1], [0], [0], [1], [0, 0, 1, 1], [], []>} : vector<8x2048xbf16>, vector<2048x512xbf16>, vector<8x512xf32> -> vector<8x512xf32>
    %c0_33 = arith.constant 0 : index
    %c0_34 = arith.constant 0 : index
    %135 = vector.load %arg11[%c0_33, %c0_34] : memref<1x512xf32, #tpu.memory_space<vmem>>, vector<1x512xf32>
    %136 = vector.broadcast %135 : vector<1x512xf32> to vector<8x512xf32>
    %137 = arith.addf %134, %136 : vector<8x512xf32>
    %138 = arith.addf %123, %137 : vector<8x512xf32>
    %c0_35 = arith.constant 0 : index
    %c0_36 = arith.constant 0 : index
    %139 = vector.load %arg12[%c0_35, %c0_36] : memref<1x512xf32, #tpu.memory_space<vmem>>, vector<1x512xf32>
    %c0_37 = arith.constant 0 : index
    %c0_38 = arith.constant 0 : index
    %140 = vector.load %arg13[%c0_37, %c0_38] : memref<1x512xf32, #tpu.memory_space<vmem>>, vector<1x512xf32>
    %cst_39 = arith.constant dense<0.000000e+00> : vector<8xf32>
    %141 = vector.multi_reduction <add>, %138, %cst_39 [1] : vector<8x512xf32> to vector<8xf32>
    %142 = vector.shape_cast %141 : vector<8xf32> to vector<8x1xf32>
    %cst_40 = arith.constant 5.120000e+02 : f32
    %143 = vector.broadcast %cst_40 : f32 to vector<8x1xf32>
    %144 = arith.divf %142, %143 : vector<8x1xf32>
    %145 = vector.broadcast %144 : vector<8x1xf32> to vector<8x512xf32>
    %146 = arith.subf %138, %145 : vector<8x512xf32>
    %147 = arith.mulf %146, %146 : vector<8x512xf32>
    %cst_41 = arith.constant dense<0.000000e+00> : vector<8xf32>
    %148 = vector.multi_reduction <add>, %147, %cst_41 [1] : vector<8x512xf32> to vector<8xf32>
    %149 = vector.shape_cast %148 : vector<8xf32> to vector<8x1xf32>
    %cst_42 = arith.constant 5.120000e+02 : f32
    %150 = vector.broadcast %cst_42 : f32 to vector<8x1xf32>
    %151 = arith.divf %149, %150 : vector<8x1xf32>
    %cst_43 = arith.constant 9.99999974E-6 : f32
    %152 = vector.broadcast %cst_43 : f32 to vector<8x1xf32>
    %153 = arith.addf %151, %152 : vector<8x1xf32>
    %154 = math.rsqrt %153 : vector<8x1xf32>
    %155 = vector.broadcast %154 : vector<8x1xf32> to vector<8x512xf32>
    %156 = arith.mulf %146, %155 : vector<8x512xf32>
    %157 = vector.broadcast %139 : vector<1x512xf32> to vector<8x512xf32>
    %158 = arith.mulf %156, %157 : vector<8x512xf32>
    %159 = vector.broadcast %140 : vector<1x512xf32> to vector<8x512xf32>
    %160 = arith.addf %158, %159 : vector<8x512xf32>
    %161 = vector.shape_cast %160 : vector<8x512xf32> to vector<1x8x512xf32>
    %c0_44 = arith.constant 0 : index
    %c0_45 = arith.constant 0 : index
    %c0_46 = arith.constant 0 : index
    %162 = vector.load %arg14[%c0_44, %c0_45, %c0_46] : memref<1x8x512xf32, #tpu.memory_space<vmem>>, vector<1x8x512xf32>
    tpu.vector_store %arg14[%c0_44, %c0_45, %c0_46], %161 {strides = array<i32>} : memref<1x8x512xf32, #tpu.memory_space<vmem>>, vector<1x8x512xf32>,
    return
  }
  func.func @transform_0(%arg0: i32) -> (i32, i32, i32) {
    %c0_i32 = arith.constant 0 : i32
    %c0_i32_0 = arith.constant 0 : i32
    %c0_i32_1 = arith.constant 0 : i32
    return %arg0, %c0_i32, %c0_i32_0 : i32, i32, i32
  }
  func.func @transform_1(%arg0: i32) -> (i32, i32) {
    %c0_i32 = arith.constant 0 : i32
    %c0_i32_0 = arith.constant 0 : i32
    %c0_i32_1 = arith.constant 0 : i32
    return %c0_i32, %c0_i32_0 : i32, i32
  }
  func.func @transform_2(%arg0: i32) -> (i32, i32) {
    %c0_i32 = arith.constant 0 : i32
    %c0_i32_0 = arith.constant 0 : i32
    %c0_i32_1 = arith.constant 0 : i32
    return %c0_i32, %c0_i32_0 : i32, i32
  }
  func.func @transform_3(%arg0: i32) -> (i32, i32) {
    %c0_i32 = arith.constant 0 : i32
    %c0_i32_0 = arith.constant 0 : i32
    %c0_i32_1 = arith.constant 0 : i32
    return %c0_i32, %c0_i32_0 : i32, i32
  }
  func.func @transform_4(%arg0: i32) -> (i32, i32) {
    %c0_i32 = arith.constant 0 : i32
    %c0_i32_0 = arith.constant 0 : i32
    %c0_i32_1 = arith.constant 0 : i32
    return %c0_i32, %c0_i32_0 : i32, i32
  }
  func.func @transform_5(%arg0: i32) -> (i32, i32) {
    %c0_i32 = arith.constant 0 : i32
    %c0_i32_0 = arith.constant 0 : i32
    %c0_i32_1 = arith.constant 0 : i32
    return %c0_i32, %c0_i32_0 : i32, i32
  }
  func.func @transform_6(%arg0: i32) -> (i32, i32) {
    %c0_i32 = arith.constant 0 : i32
    %c0_i32_0 = arith.constant 0 : i32
    %c0_i32_1 = arith.constant 0 : i32
    return %c0_i32, %c0_i32_0 : i32, i32
  }
  func.func @transform_7(%arg0: i32) -> (i32, i32) {
    %c0_i32 = arith.constant 0 : i32
    %c0_i32_0 = arith.constant 0 : i32
    %c0_i32_1 = arith.constant 0 : i32
    return %c0_i32, %c0_i32_0 : i32, i32
  }
  func.func @transform_8(%arg0: i32) -> (i32, i32) {
    %c0_i32 = arith.constant 0 : i32
    %c0_i32_0 = arith.constant 0 : i32
    %c0_i32_1 = arith.constant 0 : i32
    return %c0_i32, %c0_i32_0 : i32, i32
  }
  func.func @transform_9(%arg0: i32) -> (i32, i32) {
    %c0_i32 = arith.constant 0 : i32
    %c0_i32_0 = arith.constant 0 : i32
    %c0_i32_1 = arith.constant 0 : i32
    return %c0_i32, %c0_i32_0 : i32, i32
  }
  func.func @transform_10(%arg0: i32) -> (i32, i32) {
    %c0_i32 = arith.constant 0 : i32
    %c0_i32_0 = arith.constant 0 : i32
    %c0_i32_1 = arith.constant 0 : i32
    return %c0_i32, %c0_i32_0 : i32, i32
  }
  func.func @transform_11(%arg0: i32) -> (i32, i32) {
    %c0_i32 = arith.constant 0 : i32
    %c0_i32_0 = arith.constant 0 : i32
    %c0_i32_1 = arith.constant 0 : i32
    return %c0_i32, %c0_i32_0 : i32, i32
  }
  func.func @transform_12(%arg0: i32) -> (i32, i32) {
    %c0_i32 = arith.constant 0 : i32
    %c0_i32_0 = arith.constant 0 : i32
    %c0_i32_1 = arith.constant 0 : i32
    return %c0_i32, %c0_i32_0 : i32, i32
  }
  func.func @transform_13(%arg0: i32) -> (i32, i32, i32) {
    %c0_i32 = arith.constant 0 : i32
    %c0_i32_0 = arith.constant 0 : i32
    %c0_i32_1 = arith.constant 0 : i32
    return %arg0, %c0_i32, %c0_i32_0 : i32, i32, i32
  }
}

</mosaic_0001>

<llo_original>
// kernel: mul.9
$region0: #{mul.9}
  #allocation4 [shape = 's32[1]{0}', space=sflag, size = 0x4, scoped, tag = 'scoped memory for mul.9']
  %s0 = inlined_call_operand.hbm [shape: f32[1,1536], index: 0, kind: input, shape index: {}]
  %s1 = inlined_call_operand.hbm [shape: f32[1,1536], index: 1, kind: input, shape index: {}]
  %s2 = inlined_call_operand.vmem [shape: f32[1,1536], index: 2, kind: output, shape index: {}]
  $region1: #{mul.9} parent=0
    #allocation0 [shape = 'u8[6144]{0}', space=vmem, size = 0x1800, scoped, tag = 'operand span for operand 0']
    #allocation1 [shape = 's32[1]{0}', space=sflag, size = 0x4, scoped, tag = 'scoped memory for mul.9']
    #allocation2 [shape = 'u8[6144]{0}', space=vmem, size = 0x1800, scoped, tag = 'operand span for operand 1']
    #allocation3 [shape = 's32[1]{0}', space=sflag, size = 0x4, scoped, tag = 'scoped memory for mul.9']
    %3 = vsyncpa [#allocation1], 0
    %4 = vsyncpa [#allocation3], 0
    %s6 = ssub.s32 192, 192
    %7 = vsyncadd [#allocation1], %s6
    %s9 = sshll.u32 [#allocation0], 4
    %s10 = int_to_ptr.vmem [resolvable:$true] %s9
    %12 = dma.hbm_to_vmem [thread:$0]  %s0, 192, %s10, [#allocation1]
    %s14 = ssub.s32 192, 192
    %15 = vsyncadd [#allocation3], %s14
    %s17 = sshll.u32 [#allocation2], 4
    %s18 = int_to_ptr.vmem [resolvable:$true] %s17
    %20 = dma.hbm_to_vmem [thread:$0]  %s1, 192, %s18, [#allocation3]
    %21 = dma.done [#allocation1], 192
    %22 = dma.done [#allocation3], 192
    %v23 = vld [vmem:[#allocation0] sm:$0x1]
    %v24 = vld [vmem:[#allocation2] sm:$0x1]
    %25 = xla_tuple %v23, %v24
    %26 = xla_tuple %25
    %v27 = vmul.f32 %v23, %v24
    %28 = xla_tuple %v27
    %29 = vst [vmem:[%s2] sm:$0x1] %v27
    %s30 = scalar_lea.vmem [#allocation0], 1
    %v31 = vld [vmem:[%s30] sm:$0x1]
    %s32 = scalar_lea.vmem [#allocation2], 1
    %v33 = vld [vmem:[%s32] sm:$0x1]
    %34 = xla_tuple %v31, %v33
    %35 = xla_tuple %34
    %v36 = vmul.f32 %v31, %v33
    %37 = xla_tuple %v36
    %s38 = scalar_lea.vmem %s2, 1
    %39 = vst [vmem:[%s38] sm:$0x1] %v36
    %s40 = scalar_lea.vmem [#allocation0], 2
    %v41 = vld [vmem:[%s40] sm:$0x1]
    %s42 = scalar_lea.vmem [#allocation2], 2
    %v43 = vld [vmem:[%s42] sm:$0x1]
    %44 = xla_tuple %v41, %v43
    %45 = xla_tuple %44
    %v46 = vmul.f32 %v41, %v43
    %47 = xla_tuple %v46
    %s48 = scalar_lea.vmem %s2, 2
    %49 = vst [vmem:[%s48] sm:$0x1] %v46
    %s50 = scalar_lea.vmem [#allocation0], 3
    %v51 = vld [vmem:[%s50] sm:$0x1]
    %s52 = scalar_lea.vmem [#allocation2], 3
    %v53 = vld [vmem:[%s52] sm:$0x1]
    %54 = xla_tuple %v51, %v53
    %55 = xla_tuple %54
    %v56 = vmul.f32 %v51, %v53
    %57 = xla_tuple %v56
    %s58 = scalar_lea.vmem %s2, 3
    %59 = vst [vmem:[%s58] sm:$0x1] %v56
    %s60 = scalar_lea.vmem [#allocation0], 4
    %v61 = vld [vmem:[%s60] sm:$0x1]
    %s62 = scalar_lea.vmem [#allocation2], 4
    %v63 = vld [vmem:[%s62] sm:$0x1]
    %64 = xla_tuple %v61, %v63
    %65 = xla_tuple %64
    %v66 = vmul.f32 %v61, %v63
    %67 = xla_tuple %v66
    %s68 = scalar_lea.vmem %s2, 4
    %69 = vst [vmem:[%s68] sm:$0x1] %v66
    %s70 = scalar_lea.vmem [#allocation0], 5
    %v71 = vld [vmem:[%s70] sm:$0x1]
    %s72 = scalar_lea.vmem [#allocation2], 5
    %v73 = vld [vmem:[%s72] sm:$0x1]
    %74 = xla_tuple %v71, %v73
    %75 = xla_tuple %74
    %v76 = vmul.f32 %v71, %v73
    %77 = xla_tuple %v76
    %s78 = scalar_lea.vmem %s2, 5
    %79 = vst [vmem:[%s78] sm:$0x1] %v76
    %s80 = scalar_lea.vmem [#allocation0], 6
    %v81 = vld [vmem:[%s80] sm:$0x1]
    %s82 = scalar_lea.vmem [#allocation2], 6
    %v83 = vld [vmem:[%s82] sm:$0x1]
    %84 = xla_tuple %v81, %v83
    %85 = xla_tuple %84
    %v86 = vmul.f32 %v81, %v83
    %87 = xla_tuple %v86
    %s88 = scalar_lea.vmem %s2, 6
    %89 = vst [vmem:[%s88] sm:$0x1] %v86
    %s90 = scalar_lea.vmem [#allocation0], 7
    %v91 = vld [vmem:[%s90] sm:$0x1]
    %s92 = scalar_lea.vmem [#allocation2], 7
    %v93 = vld [vmem:[%s92] sm:$0x1]
    %94 = xla_tuple %v91, %v93
    %95 = xla_tuple %94
    %v96 = vmul.f32 %v91, %v93
    %97 = xla_tuple %v96
    %s98 = scalar_lea.vmem %s2, 7
    %99 = vst [vmem:[%s98] sm:$0x1] %v96
    %s100 = scalar_lea.vmem [#allocation0], 8
    %v101 = vld [vmem:[%s100] sm:$0x1]
    %s102 = scalar_lea.vmem [#allocation2], 8
    %v103 = vld [vmem:[%s102] sm:$0x1]
    %104 = xla_tuple %v101, %v103
    %105 = xla_tuple %104
    %v106 = vmul.f32 %v101, %v103
    %107 = xla_tuple %v106
    %s108 = scalar_lea.vmem %s2, 8
    %109 = vst [vmem:[%s108] sm:$0x1] %v106
    %s110 = scalar_lea.vmem [#allocation0], 9
    %v111 = vld [vmem:[%s110] sm:$0x1]
    %s112 = scalar_lea.vmem [#allocation2], 9
    %v113 = vld [vmem:[%s112] sm:$0x1]
    %114 = xla_tuple %v111, %v113
    %115 = xla_tuple %114
    %v116 = vmul.f32 %v111, %v113
    %117 = xla_tuple %v116
    %s118 = scalar_lea.vmem %s2, 9
    %119 = vst [vmem:[%s118] sm:$0x1] %v116
    %s120 = scalar_lea.vmem [#allocation0], 10
    %v121 = vld [vmem:[%s120] sm:$0x1]
    %s122 = scalar_lea.vmem [#allocation2], 10
    %v123 = vld [vmem:[%s122] sm:$0x1]
    %124 = xla_tuple %v121, %v123
    %125 = xla_tuple %124
    %v126 = vmul.f32 %v121, %v123
    %127 = xla_tuple %v126
    %s128 = scalar_lea.vmem %s2, 10
    %129 = vst [vmem:[%s128] sm:$0x1] %v126
    %s130 = scalar_lea.vmem [#allocation0], 11
    %v131 = vld [vmem:[%s130] sm:$0x1]
    %s132 = scalar_lea.vmem [#allocation2], 11
    %v133 = vld [vmem:[%s132] sm:$0x1]
    %134 = xla_tuple %v131, %v133
    %135 = xla_tuple %134
    %v136 = vmul.f32 %v131, %v133
    %137 = xla_tuple %v136
    %s138 = scalar_lea.vmem %s2, 11
    %139 = vst [vmem:[%s138] sm:$0x1] %v136
    %140 = vsyncpa [#allocation1], 1
    %141 = vsyncpa [#allocation3], 1

// kernel: transformer_block.1
$region0: #{transformer_block.1}
  #allocation0 [shape = 'u32[]', space=smem, size = 0x4, offset = 0x4, fixed_abs, tag = 'smem constant byte address 0x4 - core index']
  #allocation1 [shape = 'u32[144,128]{1,0:T(1,128)}', space=vmem, size = 0x12000, scoped, tag = 'internal scratch']
  %s0 = inlined_call_operand.vmem [shape: f32[2,8,512], index: 0, kind: input, shape index: {}]
  %s1 = inlined_call_operand.vmem [shape: bf16[512,1536], index: 1, kind: input, shape index: {}]
  %s2 = inlined_call_operand.vmem [shape: f32[1,1536], index: 2, kind: input, shape index: {}]
  %s3 = inlined_call_operand.vmem [shape: bf16[512,512], index: 3, kind: input, shape index: {}]
  %s4 = inlined_call_operand.vmem [shape: f32[1,512], index: 4, kind: input, shape index: {}]
  %s5 = inlined_call_operand.vmem [shape: f32[1,512], index: 5, kind: input, shape index: {}]
  %s6 = inlined_call_operand.vmem [shape: f32[1,512], index: 6, kind: input, shape index: {}]
  %s7 = inlined_call_operand.vmem [shape: bf16[512,2048], index: 7, kind: input, shape index: {}]
  %s8 = inlined_call_operand.vmem [shape: f32[1,2048], index: 8, kind: input, shape index: {}]
  %s9 = inlined_call_operand.vmem [shape: bf16[2048,512], index: 9, kind: input, shape index: {}]
  %s10 = inlined_call_operand.vmem [shape: f32[1,512], index: 10, kind: input, shape index: {}]
  %s11 = inlined_call_operand.vmem [shape: f32[1,512], index: 11, kind: input, shape index: {}]
  %s12 = inlined_call_operand.vmem [shape: f32[1,512], index: 12, kind: input, shape index: {}]
  %s13 = inlined_call_operand.vmem [shape: f32[2,8,512], index: 13, kind: output, shape index: {}]
  %s14 = sld [smem:[#allocation0]]
  $region85: #{transformer_block.1} parent=0
    _
  %s16 = ssub.s32 1, %s14
  %s17 = scalar_select 0, %s16, %s14
  loop: start=0, step=1, limit=4
  $region2: #{transformer_block.1} parent=0 // loop_pre_header
    _
  $region3: #{transformer_block.1} parent=0 // loop_header
    %s19 = sphi 0, %s23
    %p20 = scmp.ge.s32.totalorder %s19, 4
    %s29 = sphi 0, %s31
    %s32 = sphi 0, %s29
    %s33 = sphi 0, %s32
    %s49 = sphi 0, %s33
    %s53 = sphi 0, %s53
    %s55 = sphi 0, %s53
    %s56 = sphi 0, %s55
    %s70 = sphi 0, %s56
    %s74 = sphi 0, %s74
    %s76 = sphi 0, %s74
    %s77 = sphi 0, %s76
    %s91 = sphi 0, %s77
    %s95 = sphi 0, %s95
    %s97 = sphi 0, %s95
    %s98 = sphi 0, %s97
    %s112 = sphi 0, %s98
    %s116 = sphi 0, %s116
    %s118 = sphi 0, %s116
    %s119 = sphi 0, %s118
    %s133 = sphi 0, %s119
    %s137 = sphi 0, %s137
    %s139 = sphi 0, %s137
    %s140 = sphi 0, %s139
    %s154 = sphi 0, %s140
    %s158 = sphi 0, %s158
    %s160 = sphi 0, %s158
    %s161 = sphi 0, %s160
    %s175 = sphi 0, %s161
    %s179 = sphi 0, %s179
    %s181 = sphi 0, %s179
    %s182 = sphi 0, %s181
    %s196 = sphi 0, %s182
    %s200 = sphi 0, %s200
    %s202 = sphi 0, %s200
    %s203 = sphi 0, %s202
    %s217 = sphi 0, %s203
    %s221 = sphi 0, %s221
    %s223 = sphi 0, %s221
    %s224 = sphi 0, %s223
    %s238 = sphi 0, %s224
    %s242 = sphi 0, %s242
    %s244 = sphi 0, %s242
    %s245 = sphi 0, %s244
    %s259 = sphi 0, %s245
    %s263 = sphi 0, %s263
    %s265 = sphi 0, %s263
    %s266 = sphi 0, %s265
    %s280 = sphi 0, %s266
    %s284 = sphi 0, %s284
    %s286 = sphi 0, %s284
    %s287 = sphi 0, %s286
    %s301 = sphi 0, %s287
    %s307 = sphi 0, %s309
    %s310 = sphi 0, %s307
    %s311 = sphi 0, %s310
    %s327 = sphi 0, %s311
  $region4: #{transformer_block.1} parent=0 // loop_header_branch
    %22 = sbr.rel (%p20) target = $region8
  $region5: #{transformer_block.1} parent=0 // loop_body
    %s24 = ssub.s32 %s19, 1
    %s25 = ssub.s32 %s19, 2
    %s26 = sadd.s32 %s19, 1
    %s27 = ssub.s32 %s19, %s26
    %p28 = scmp.eq.s32.totalorder %s27, 0
    %s30 = sadd.s32 %s29, 1
    %s31 = scalar_select %p28, %s29, %s30
    %p34 = pneg %p28
    %p35 = scmp.eq.s32.totalorder %s19, 1
    %p36 = por %p34, %p35
    %p37 = scmp.ne.s32.totalorder %s29, %s32
    %p38 = scmp.eq.s32.totalorder %s19, 0
    %p39 = por %p37, %p38
    %p40 = scmp.ne.s32.totalorder %s29, %s32
    %p41 = scmp.eq.s32.totalorder %s24, 1
    %p42 = por %p40, %p41
    %p43 = scmp.ne.s32.totalorder %s32, %s33
    %p44 = scmp.eq.s32.totalorder %s24, 0
    %p45 = por %p43, %p44
    %p46 = scmp.ne.s32.totalorder %s32, %s33
    %p47 = scmp.eq.s32.totalorder %s25, 1
    %p48 = por %p46, %p47
    %p50 = scmp.ne.s32.totalorder %s33, %s49
    %p51 = scmp.eq.s32.totalorder %s25, 0
    %p52 = por %p50, %p51
    %s54 = sadd.s32 %s53, 1
    %p57 = scmp.eq.s32.totalorder %s19, 1
    %p58 = scmp.ne.s32.totalorder %s53, %s55
    %p59 = scmp.eq.s32.totalorder %s19, 0
    %p60 = por %p58, %p59
    %p61 = scmp.ne.s32.totalorder %s53, %s55
    %p62 = scmp.eq.s32.totalorder %s24, 1
    %p63 = por %p61, %p62
    %p64 = scmp.ne.s32.totalorder %s55, %s56
    %p65 = scmp.eq.s32.totalorder %s24, 0
    %p66 = por %p64, %p65
    %p67 = scmp.ne.s32.totalorder %s55, %s56
    %p68 = scmp.eq.s32.totalorder %s25, 1
    %p69 = por %p67, %p68
    %p71 = scmp.ne.s32.totalorder %s56, %s70
    %p72 = scmp.eq.s32.totalorder %s25, 0
    %p73 = por %p71, %p72
    %s75 = sadd.s32 %s74, 1
    %p78 = scmp.eq.s32.totalorder %s19, 1
    %p79 = scmp.ne.s32.totalorder %s74, %s76
    %p80 = scmp.eq.s32.totalorder %s19, 0
    %p81 = por %p79, %p80
    %p82 = scmp.ne.s32.totalorder %s74, %s76
    %p83 = scmp.eq.s32.totalorder %s24, 1
    %p84 = por %p82, %p83
    %p85 = scmp.ne.s32.totalorder %s76, %s77
    %p86 = scmp.eq.s32.totalorder %s24, 0
    %p87 = por %p85, %p86
    %p88 = scmp.ne.s32.totalorder %s76, %s77
    %p89 = scmp.eq.s32.totalorder %s25, 1
    %p90 = por %p88, %p89
    %p92 = scmp.ne.s32.totalorder %s77, %s91
    %p93 = scmp.eq.s32.totalorder %s25, 0
    %p94 = por %p92, %p93
    %s96 = sadd.s32 %s95, 1
    %p99 = scmp.eq.s32.totalorder %s19, 1
    %p100 = scmp.ne.s32.totalorder %s95, %s97
    %p101 = scmp.eq.s32.totalorder %s19, 0
    %p102 = por %p100, %p101
    %p103 = scmp.ne.s32.totalorder %s95, %s97
    %p104 = scmp.eq.s32.totalorder %s24, 1
    %p105 = por %p103, %p104
    %p106 = scmp.ne.s32.totalorder %s97, %s98
    %p107 = scmp.eq.s32.totalorder %s24, 0
    %p108 = por %p106, %p107
    %p109 = scmp.ne.s32.totalorder %s97, %s98
    %p110 = scmp.eq.s32.totalorder %s25, 1
    %p111 = por %p109, %p110
    %p113 = scmp.ne.s32.totalorder %s98, %s112
    %p114 = scmp.eq.s32.totalorder %s25, 0
    %p115 = por %p113, %p114
    %s117 = sadd.s32 %s116, 1
    %p120 = scmp.eq.s32.totalorder %s19, 1
    %p121 = scmp.ne.s32.totalorder %s116, %s118
    %p122 = scmp.eq.s32.totalorder %s19, 0
    %p123 = por %p121, %p122
    %p124 = scmp.ne.s32.totalorder %s116, %s118
    %p125 = scmp.eq.s32.totalorder %s24, 1
    %p126 = por %p124, %p125
    %p127 = scmp.ne.s32.totalorder %s118, %s119
    %p128 = scmp.eq.s32.totalorder %s24, 0
    %p129 = por %p127, %p128
    %p130 = scmp.ne.s32.totalorder %s118, %s119
    %p131 = scmp.eq.s32.totalorder %s25, 1
    %p132 = por %p130, %p131
    %p134 = scmp.ne.s32.totalorder %s119, %s133
    %p135 = scmp.eq.s32.totalorder %s25, 0
    %p136 = por %p134, %p135
    %s138 = sadd.s32 %s137, 1
    %p141 = scmp.eq.s32.totalorder %s19, 1
    %p142 = scmp.ne.s32.totalorder %s137, %s139
    %p143 = scmp.eq.s32.totalorder %s19, 0
    %p144 = por %p142, %p143
    %p145 = scmp.ne.s32.totalorder %s137, %s139
    %p146 = scmp.eq.s32.totalorder %s24, 1
    %p147 = por %p145, %p146
    %p148 = scmp.ne.s32.totalorder %s139, %s140
    %p149 = scmp.eq.s32.totalorder %s24, 0
    %p150 = por %p148, %p149
    %p151 = scmp.ne.s32.totalorder %s139, %s140
    %p152 = scmp.eq.s32.totalorder %s25, 1
    %p153 = por %p151, %p152
    %p155 = scmp.ne.s32.totalorder %s140, %s154
    %p156 = scmp.eq.s32.totalorder %s25, 0
    %p157 = por %p155, %p156
    %s159 = sadd.s32 %s158, 1
    %p162 = scmp.eq.s32.totalorder %s19, 1
    %p163 = scmp.ne.s32.totalorder %s158, %s160
    %p164 = scmp.eq.s32.totalorder %s19, 0
    %p165 = por %p163, %p164
    %p166 = scmp.ne.s32.totalorder %s158, %s160
    %p167 = scmp.eq.s32.totalorder %s24, 1
    %p168 = por %p166, %p167
    %p169 = scmp.ne.s32.totalorder %s160, %s161
    %p170 = scmp.eq.s32.totalorder %s24, 0
    %p171 = por %p169, %p170
    %p172 = scmp.ne.s32.totalorder %s160, %s161
    %p173 = scmp.eq.s32.totalorder %s25, 1
    %p174 = por %p172, %p173
    %p176 = scmp.ne.s32.totalorder %s161, %s175
    %p177 = scmp.eq.s32.totalorder %s25, 0
    %p178 = por %p176, %p177
    %s180 = sadd.s32 %s179, 1
    %p183 = scmp.eq.s32.totalorder %s19, 1
    %p184 = scmp.ne.s32.totalorder %s179, %s181
    %p185 = scmp.eq.s32.totalorder %s19, 0
    %p186 = por %p184, %p185
    %p187 = scmp.ne.s32.totalorder %s179, %s181
    %p188 = scmp.eq.s32.totalorder %s24, 1
    %p189 = por %p187, %p188
    %p190 = scmp.ne.s32.totalorder %s181, %s182
    %p191 = scmp.eq.s32.totalorder %s24, 0
    %p192 = por %p190, %p191
    %p193 = scmp.ne.s32.totalorder %s181, %s182
    %p194 = scmp.eq.s32.totalorder %s25, 1
    %p195 = por %p193, %p194
    %p197 = scmp.ne.s32.totalorder %s182, %s196
    %p198 = scmp.eq.s32.totalorder %s25, 0
    %p199 = por %p197, %p198
    %s201 = sadd.s32 %s200, 1
    %p204 = scmp.eq.s32.totalorder %s19, 1
    %p205 = scmp.ne.s32.totalorder %s200, %s202
    %p206 = scmp.eq.s32.totalorder %s19, 0
    %p207 = por %p205, %p206
    %p208 = scmp.ne.s32.totalorder %s200, %s202
    %p209 = scmp.eq.s32.totalorder %s24, 1
    %p210 = por %p208, %p209
    %p211 = scmp.ne.s32.totalorder %s202, %s203
    %p212 = scmp.eq.s32.totalorder %s24, 0
    %p213 = por %p211, %p212
    %p214 = scmp.ne.s32.totalorder %s202, %s203
    %p215 = scmp.eq.s32.totalorder %s25, 1
    %p216 = por %p214, %p215
    %p218 = scmp.ne.s32.totalorder %s203, %s217
    %p219 = scmp.eq.s32.totalorder %s25, 0
    %p220 = por %p218, %p219
    %s222 = sadd.s32 %s221, 1
    %p225 = scmp.eq.s32.totalorder %s19, 1
    %p226 = scmp.ne.s32.totalorder %s221, %s223
    %p227 = scmp.eq.s32.totalorder %s19, 0
    %p228 = por %p226, %p227
    %p229 = scmp.ne.s32.totalorder %s221, %s223
    %p230 = scmp.eq.s32.totalorder %s24, 1
    %p231 = por %p229, %p230
    %p232 = scmp.ne.s32.totalorder %s223, %s224
    %p233 = scmp.eq.s32.totalorder %s24, 0
    %p234 = por %p232, %p233
    %p235 = scmp.ne.s32.totalorder %s223, %s224
    %p236 = scmp.eq.s32.totalorder %s25, 1
    %p237 = por %p235, %p236
    %p239 = scmp.ne.s32.totalorder %s224, %s238
    %p240 = scmp.eq.s32.totalorder %s25, 0
    %p241 = por %p239, %p240
    %s243 = sadd.s32 %s242, 1
    %p246 = scmp.eq.s32.totalorder %s19, 1
    %p247 = scmp.ne.s32.totalorder %s242, %s244
    %p248 = scmp.eq.s32.totalorder %s19, 0
    %p249 = por %p247, %p248
    %p250 = scmp.ne.s32.totalorder %s242, %s244
    %p251 = scmp.eq.s32.totalorder %s24, 1
    %p252 = por %p250, %p251
    %p253 = scmp.ne.s32.totalorder %s244, %s245
    %p254 = scmp.eq.s32.totalorder %s24, 0
    %p255 = por %p253, %p254
    %p256 = scmp.ne.s32.totalorder %s244, %s245
    %p257 = scmp.eq.s32.totalorder %s25, 1
    %p258 = por %p256, %p257
    %p260 = scmp.ne.s32.totalorder %s245, %s259
    %p261 = scmp.eq.s32.totalorder %s25, 0
    %p262 = por %p260, %p261
    %s264 = sadd.s32 %s263, 1
    %p267 = scmp.eq.s32.totalorder %s19, 1
    %p268 = scmp.ne.s32.totalorder %s263, %s265
    %p269 = scmp.eq.s32.totalorder %s19, 0
    %p270 = por %p268, %p269
    %p271 = scmp.ne.s32.totalorder %s263, %s265
    %p272 = scmp.eq.s32.totalorder %s24, 1
    %p273 = por %p271, %p272
    %p274 = scmp.ne.s32.totalorder %s265, %s266
    %p275 = scmp.eq.s32.totalorder %s24, 0
    %p276 = por %p274, %p275
    %p277 = scmp.ne.s32.totalorder %s265, %s266
    %p278 = scmp.eq.s32.totalorder %s25, 1
    %p279 = por %p277, %p278
    %p281 = scmp.ne.s32.totalorder %s266, %s280
    %p282 = scmp.eq.s32.totalorder %s25, 0
    %p283 = por %p281, %p282
    %s285 = sadd.s32 %s284, 1
    %p288 = scmp.eq.s32.totalorder %s19, 1
    %p289 = scmp.ne.s32.totalorder %s284, %s286
    %p290 = scmp.eq.s32.totalorder %s19, 0
    %p291 = por %p289, %p290
    %p292 = scmp.ne.s32.totalorder %s284, %s286
    %p293 = scmp.eq.s32.totalorder %s24, 1
    %p294 = por %p292, %p293
    %p295 = scmp.ne.s32.totalorder %s286, %s287
    %p296 = scmp.eq.s32.totalorder %s24, 0
    %p297 = por %p295, %p296
    %p298 = scmp.ne.s32.totalorder %s286, %s287
    %p299 = scmp.eq.s32.totalorder %s25, 1
    %p300 = por %p298, %p299
    %p302 = scmp.ne.s32.totalorder %s287, %s301
    %p303 = scmp.eq.s32.totalorder %s25, 0
    %p304 = por %p302, %p303
    %s305 = ssub.s32 %s19, %s26
    %p306 = scmp.eq.s32.totalorder %s305, 0
    %s308 = sadd.s32 %s307, 1
    %s309 = scalar_select %p306, %s307, %s308
    %p312 = pneg %p306
    %p313 = scmp.eq.s32.totalorder %s19, 1
    %p314 = por %p312, %p313
    %p315 = scmp.ne.s32.totalorder %s307, %s310
    %p316 = scmp.eq.s32.totalorder %s19, 0
    %p317 = por %p315, %p316
    %p318 = scmp.ne.s32.totalorder %s307, %s310
    %p319 = scmp.eq.s32.totalorder %s24, 1
    %p320 = por %p318, %p319
    %p321 = scmp.ne.s32.totalorder %s310, %s311
    %p322 = scmp.eq.s32.totalorder %s24, 0
    %p323 = por %p321, %p322
    %p324 = scmp.ne.s32.totalorder %s310, %s311
    %p325 = scmp.eq.s32.totalorder %s25, 1
    %p326 = por %p324, %p325
    %p328 = scmp.ne.s32.totalorder %s311, %s327
    %p329 = scmp.eq.s32.totalorder %s25, 0
    %p330 = por %p328, %p329
    %p331 = scmp.le.s32.totalorder 1, %s19
    %p332 = scmp.lt.s32.totalorder %s19, 3
    %p333 = pnand %p331, %p332
    %p334 = pneg %p333
    // Predicated region
    $region9: #{transformer_block.1} parent=5 // pred_check
      _
    $region10: #{transformer_block.1} parent=5 // pred_check_branch
      %336 = sbr.rel (%p333) target = $region12
    $region11: #{transformer_block.1} parent=5 // pred_region
      %s337 = ssub.s32 %s19, 1
      // Predicated region
      $region13: #{transformer_block.1} parent=11 // pred_check
        %p338 = pneg %p66
      $region14: #{transformer_block.1} parent=11 // pred_check_branch
        %340 = sbr.rel (%p338) target = $region16
      $region15: #{transformer_block.1} parent=11 // pred_region
        _
      $region16: #{transformer_block.1} parent=11 // pred_fallthru
        _
      // Predicated region
      $region17: #{transformer_block.1} parent=11 // pred_check
        %p341 = pneg %p87
      $region18: #{transformer_block.1} parent=11 // pred_check_branch
        %343 = sbr.rel (%p341) target = $region20
      $region19: #{transformer_block.1} parent=11 // pred_region
        _
      $region20: #{transformer_block.1} parent=11 // pred_fallthru
        _
      // Predicated region
      $region21: #{transformer_block.1} parent=11 // pred_check
        %p344 = pneg %p108
      $region22: #{transformer_block.1} parent=11 // pred_check_branch
        %346 = sbr.rel (%p344) target = $region24
      $region23: #{transformer_block.1} parent=11 // pred_region
        _
      $region24: #{transformer_block.1} parent=11 // pred_fallthru
        _
      // Predicated region
      $region25: #{transformer_block.1} parent=11 // pred_check
        %p347 = pneg %p129
      $region26: #{transformer_block.1} parent=11 // pred_check_branch
        %349 = sbr.rel (%p347) target = $region28
      $region27: #{transformer_block.1} parent=11 // pred_region
        _
      $region28: #{transformer_block.1} parent=11 // pred_fallthru
        _
      // Predicated region
      $region29: #{transformer_block.1} parent=11 // pred_check
        %p350 = pneg %p150
      $region30: #{transformer_block.1} parent=11 // pred_check_branch
        %352 = sbr.rel (%p350) target = $region32
      $region31: #{transformer_block.1} parent=11 // pred_region
        _
      $region32: #{transformer_block.1} parent=11 // pred_fallthru
        _
      // Predicated region
      $region33: #{transformer_block.1} parent=11 // pred_check
        %p353 = pneg %p171
      $region34: #{transformer_block.1} parent=11 // pred_check_branch
        %355 = sbr.rel (%p353) target = $region36
      $region35: #{transformer_block.1} parent=11 // pred_region
        _
      $region36: #{transformer_block.1} parent=11 // pred_fallthru
        _
      // Predicated region
      $region37: #{transformer_block.1} parent=11 // pred_check
        %p356 = pneg %p192
      $region38: #{transformer_block.1} parent=11 // pred_check_branch
        %358 = sbr.rel (%p356) target = $region40
      $region39: #{transformer_block.1} parent=11 // pred_region
        _
      $region40: #{transformer_block.1} parent=11 // pred_fallthru
        _
      // Predicated region
      $region41: #{transformer_block.1} parent=11 // pred_check
        %p359 = pneg %p213
      $region42: #{transformer_block.1} parent=11 // pred_check_branch
        %361 = sbr.rel (%p359) target = $region44
      $region43: #{transformer_block.1} parent=11 // pred_region
        _
      $region44: #{transformer_block.1} parent=11 // pred_fallthru
        _
      // Predicated region
      $region45: #{transformer_block.1} parent=11 // pred_check
        %p362 = pneg %p234
      $region46: #{transformer_block.1} parent=11 // pred_check_branch
        %364 = sbr.rel (%p362) target = $region48
      $region47: #{transformer_block.1} parent=11 // pred_region
        _
      $region48: #{transformer_block.1} parent=11 // pred_fallthru
        _
      // Predicated region
      $region49: #{transformer_block.1} parent=11 // pred_check
        %p365 = pneg %p255
      $region50: #{transformer_block.1} parent=11 // pred_check_branch
        %367 = sbr.rel (%p365) target = $region52
      $region51: #{transformer_block.1} parent=11 // pred_region
        _
      $region52: #{transformer_block.1} parent=11 // pred_fallthru
        _
      // Predicated region
      $region53: #{transformer_block.1} parent=11 // pred_check
        %p368 = pneg %p276
      $region54: #{transformer_block.1} parent=11 // pred_check_branch
        %370 = sbr.rel (%p368) target = $region56
      $region55: #{transformer_block.1} parent=11 // pred_region
        _
      $region56: #{transformer_block.1} parent=11 // pred_fallthru
        _
      // Predicated region
      $region57: #{transformer_block.1} parent=11 // pred_check
        %p371 = pneg %p297
      $region58: #{transformer_block.1} parent=11 // pred_check_branch
        %373 = sbr.rel (%p371) target = $region60
      $region59: #{transformer_block.1} parent=11 // pred_region
        _
      $region60: #{transformer_block.1} parent=11 // pred_fallthru
        _
    $region12: #{transformer_block.1} parent=5 // pred_fallthru
      _
    %p374 = scmp.lt.s32.totalorder %s19, 2
    // Predicated region
    $region61: #{transformer_block.1} parent=5 // pred_check
      %p375 = pneg %p374
    $region62: #{transformer_block.1} parent=5 // pred_check_branch
      %377 = sbr.rel (%p375) target = $region64
    $region63: #{transformer_block.1} parent=5 // pred_region
      // Predicated region
      $region65: #{transformer_block.1} parent=63 // pred_check
        %p378 = pneg %p39
      $region66: #{transformer_block.1} parent=63 // pred_check_branch
        %380 = sbr.rel (%p378) target = $region68
      $region67: #{transformer_block.1} parent=63 // pred_region
        %p381 = scmp.lt.s32.totalorder %s19, 1
        %s382 = scalar_select %p381, %s19, 1
        %s383 = smul.addr %s382, 4
        %s384 = smul.addr %s383, 8
        %s385 = scalar_lea.vmem %s0, %s384
      $region68: #{transformer_block.1} parent=63 // pred_fallthru
        _
    $region64: #{transformer_block.1} parent=5 // pred_fallthru
      _
    %p386 = scmp.le.s32.totalorder 1, %s19
    %p387 = scmp.lt.s32.totalorder %s19, 3
    %p388 = pnand %p386, %p387
    %p389 = pneg %p388
    // Predicated region
    $region69: #{transformer_block.1} parent=5 // pred_check
      _
    $region70: #{transformer_block.1} parent=5 // pred_check_branch
      %391 = sbr.rel (%p388) target = $region72
    $region71: #{transformer_block.1} parent=5 // pred_region
      %s392 = ssub.s32 %s19, 1
      %p393 = scmp.lt.s32.totalorder %s24, 1
      %s394 = scalar_select %p393, %s24, 1
      %s395 = smul.addr %s394, 4
      %s396 = smul.addr %s395, 8
      %s397 = scalar_lea.vmem %s0, %s396
      %p398 = pneg %p45
      %p399 = pneg %p42
      %p400 = pneg %p66
      %p401 = pneg %p63
      %p402 = pneg %p87
      %p403 = pneg %p84
      %p404 = pneg %p108
      %p405 = pneg %p105
      %p406 = pneg %p129
      %p407 = pneg %p126
      %p408 = pneg %p150
      %p409 = pneg %p147
      %p410 = pneg %p171
      %p411 = pneg %p168
      %p412 = pneg %p192
      %p413 = pneg %p189
      %p414 = pneg %p213
      %p415 = pneg %p210
      %p416 = pneg %p234
      %p417 = pneg %p231
      %p418 = pneg %p255
      %p419 = pneg %p252
      %p420 = pneg %p276
      %p421 = pneg %p273
      %p422 = pneg %p297
      %p423 = pneg %p294
      %p424 = pneg %p323
      %p425 = pneg %p320
      %p426 = scmp.lt.s32.totalorder %s24, 1
      %s427 = scalar_select %p426, %s24, 1
      %s428 = smul.addr %s427, 4
      %s429 = smul.addr %s428, 8
      %s430 = scalar_lea.vmem %s13, %s429
      %p431 = scmp.lt.s32.totalorder %s24, 1
      %s432 = scalar_select %p431, %s24, 1
      %s433 = smul.addr %s432, 4
      %s434 = smul.addr %s433, 8
      %s435 = scalar_lea.vmem %s0, %s434
      %p436 = scmp.lt.s32.totalorder %s24, 1
      %s437 = scalar_select %p436, %s24, 1
      %s438 = smul.addr %s437, 4
      %s439 = smul.addr %s438, 8
      %s440 = scalar_lea.vmem %s13, %s439
      %v442 = vld [vmem:[%s435] sm:$0xff]
      %v443 = vld [vmem:[%s435 + $0x8] sm:$0xff]
      %v444 = vld [vmem:[%s435 + $0x10] sm:$0xff]
      %v445 = vld [vmem:[%s435 + $0x18] sm:$0xff]
      %v446 = vpack.c.bf16 %v442, %v442
      %v447 = vpack.c.bf16 %v443, %v443
      %v448 = vpack.c.bf16 %v444, %v444
      %v449 = vpack.c.bf16 %v445, %v445
      %v450 = vld [vmem:[%s1] sm:$0xff]
      %v451 = vld [vmem:[%s1 + $0x8] sm:$0xff]
      %v452 = vld [vmem:[%s1 + $0x10] sm:$0xff]
      %v453 = vld [vmem:[%s1 + $0x18] sm:$0xff]
      %v454 = vld [vmem:[%s1 + $0x20] sm:$0xff]
      %v455 = vld [vmem:[%s1 + $0x28] sm:$0xff]
      %v456 = vld [vmem:[%s1 + $0x30] sm:$0xff]
      %v457 = vld [vmem:[%s1 + $0x38] sm:$0xff]
      %v458 = vld [vmem:[%s1 + $0x40] sm:$0xff]
      %v459 = vld [vmem:[%s1 + $0x48] sm:$0xff]
      %v460 = vld [vmem:[%s1 + $0x50] sm:$0xff]
      %v461 = vld [vmem:[%s1 + $0x58] sm:$0xff]
      %v462 = vld [vmem:[%s1 + $0x60] sm:$0xff]
      %v463 = vld [vmem:[%s1 + $0x68] sm:$0xff]
      %v464 = vld [vmem:[%s1 + $0x70] sm:$0xff]
      %v465 = vld [vmem:[%s1 + $0x78] sm:$0xff]
      %v466 = vld [vmem:[%s1 + $0x80] sm:$0xff]
      %v467 = vld [vmem:[%s1 + $0x88] sm:$0xff]
      %v468 = vld [vmem:[%s1 + $0x90] sm:$0xff]
      %v469 = vld [vmem:[%s1 + $0x98] sm:$0xff]
      %v470 = vld [vmem:[%s1 + $0xa0] sm:$0xff]
      %v471 = vld [vmem:[%s1 + $0xa8] sm:$0xff]
      %v472 = vld [vmem:[%s1 + $0xb0] sm:$0xff]
      %v473 = vld [vmem:[%s1 + $0xb8] sm:$0xff]
      %v474 = vld [vmem:[%s1 + $0xc0] sm:$0xff]
      %v475 = vld [vmem:[%s1 + $0xc8] sm:$0xff]
      %v476 = vld [vmem:[%s1 + $0xd0] sm:$0xff]
      %v477 = vld [vmem:[%s1 + $0xd8] sm:$0xff]
      %v478 = vld [vmem:[%s1 + $0xe0] sm:$0xff]
      %v479 = vld [vmem:[%s1 + $0xe8] sm:$0xff]
      %v480 = vld [vmem:[%s1 + $0xf0] sm:$0xff]
      %v481 = vld [vmem:[%s1 + $0xf8] sm:$0xff]
      %v482 = vld [vmem:[%s1 + $0x100] sm:$0xff]
      %v483 = vld [vmem:[%s1 + $0x108] sm:$0xff]
      %v484 = vld [vmem:[%s1 + $0x110] sm:$0xff]
      %v485 = vld [vmem:[%s1 + $0x118] sm:$0xff]
      %v486 = vld [vmem:[%s1 + $0x120] sm:$0xff]
      %v487 = vld [vmem:[%s1 + $0x128] sm:$0xff]
      %v488 = vld [vmem:[%s1 + $0x130] sm:$0xff]
      %v489 = vld [vmem:[%s1 + $0x138] sm:$0xff]
      %v490 = vld [vmem:[%s1 + $0x140] sm:$0xff]
      %v491 = vld [vmem:[%s1 + $0x148] sm:$0xff]
      %v492 = vld [vmem:[%s1 + $0x150] sm:$0xff]
      %v493 = vld [vmem:[%s1 + $0x158] sm:$0xff]
      %v494 = vld [vmem:[%s1 + $0x160] sm:$0xff]
      %v495 = vld [vmem:[%s1 + $0x168] sm:$0xff]
      %v496 = vld [vmem:[%s1 + $0x170] sm:$0xff]
      %v497 = vld [vmem:[%s1 + $0x178] sm:$0xff]
      %v498 = vld [vmem:[%s1 + $0x180] sm:$0xff]
      %v499 = vld [vmem:[%s1 + $0x188] sm:$0xff]
      %v500 = vld [vmem:[%s1 + $0x190] sm:$0xff]
      %v501 = vld [vmem:[%s1 + $0x198] sm:$0xff]
      %v502 = vld [vmem:[%s1 + $0x1a0] sm:$0xff]
      %v503 = vld [vmem:[%s1 + $0x1a8] sm:$0xff]
      %v504 = vld [vmem:[%s1 + $0x1b0] sm:$0xff]
      %v505 = vld [vmem:[%s1 + $0x1b8] sm:$0xff]
      %v506 = vld [vmem:[%s1 + $0x1c0] sm:$0xff]
      %v507 = vld [vmem:[%s1 + $0x1c8] sm:$0xff]
      %v508 = vld [vmem:[%s1 + $0x1d0] sm:$0xff]
      %v509 = vld [vmem:[%s1 + $0x1d8] sm:$0xff]
      %v510 = vld [vmem:[%s1 + $0x1e0] sm:$0xff]
      %v511 = vld [vmem:[%s1 + $0x1e8] sm:$0xff]
      %v512 = vld [vmem:[%s1 + $0x1f0] sm:$0xff]
      %v513 = vld [vmem:[%s1 + $0x1f8] sm:$0xff]
      %v514 = vld [vmem:[%s1 + $0x200] sm:$0xff]
      %v515 = vld [vmem:[%s1 + $0x208] sm:$0xff]
      %v516 = vld [vmem:[%s1 + $0x210] sm:$0xff]
      %v517 = vld [vmem:[%s1 + $0x218] sm:$0xff]
      %v518 = vld [vmem:[%s1 + $0x220] sm:$0xff]
      %v519 = vld [vmem:[%s1 + $0x228] sm:$0xff]
      %v520 = vld [vmem:[%s1 + $0x230] sm:$0xff]
      %v521 = vld [vmem:[%s1 + $0x238] sm:$0xff]
      %v522 = vld [vmem:[%s1 + $0x240] sm:$0xff]
      %v523 = vld [vmem:[%s1 + $0x248] sm:$0xff]
      %v524 = vld [vmem:[%s1 + $0x250] sm:$0xff]
      %v525 = vld [vmem:[%s1 + $0x258] sm:$0xff]
      %v526 = vld [vmem:[%s1 + $0x260] sm:$0xff]
      %v527 = vld [vmem:[%s1 + $0x268] sm:$0xff]
      %v528 = vld [vmem:[%s1 + $0x270] sm:$0xff]
      %v529 = vld [vmem:[%s1 + $0x278] sm:$0xff]
      %v530 = vld [vmem:[%s1 + $0x280] sm:$0xff]
      %v531 = vld [vmem:[%s1 + $0x288] sm:$0xff]
      %v532 = vld [vmem:[%s1 + $0x290] sm:$0xff]
      %v533 = vld [vmem:[%s1 + $0x298] sm:$0xff]
      %v534 = vld [vmem:[%s1 + $0x2a0] sm:$0xff]
      %v535 = vld [vmem:[%s1 + $0x2a8] sm:$0xff]
      %v536 = vld [vmem:[%s1 + $0x2b0] sm:$0xff]
      %v537 = vld [vmem:[%s1 + $0x2b8] sm:$0xff]
      %v538 = vld [vmem:[%s1 + $0x2c0] sm:$0xff]
      %v539 = vld [vmem:[%s1 + $0x2c8] sm:$0xff]
      %v540 = vld [vmem:[%s1 + $0x2d0] sm:$0xff]
      %v541 = vld [vmem:[%s1 + $0x2d8] sm:$0xff]
      %v542 = vld [vmem:[%s1 + $0x2e0] sm:$0xff]
      %v543 = vld [vmem:[%s1 + $0x2e8] sm:$0xff]
      %v544 = vld [vmem:[%s1 + $0x2f0] sm:$0xff]
      %v545 = vld [vmem:[%s1 + $0x2f8] sm:$0xff]
      %v546 = vld [vmem:[%s1 + $0x300] sm:$0xff]
      %v547 = vld [vmem:[%s1 + $0x308] sm:$0xff]
      %v548 = vld [vmem:[%s1 + $0x310] sm:$0xff]
      %v549 = vld [vmem:[%s1 + $0x318] sm:$0xff]
      %v550 = vld [vmem:[%s1 + $0x320] sm:$0xff]
      %v551 = vld [vmem:[%s1 + $0x328] sm:$0xff]
      %v552 = vld [vmem:[%s1 + $0x330] sm:$0xff]
      %v553 = vld [vmem:[%s1 + $0x338] sm:$0xff]
      %v554 = vld [vmem:[%s1 + $0x340] sm:$0xff]
      %v555 = vld [vmem:[%s1 + $0x348] sm:$0xff]
      %v556 = vld [vmem:[%s1 + $0x350] sm:$0xff]
      %v557 = vld [vmem:[%s1 + $0x358] sm:$0xff]
      %v558 = vld [vmem:[%s1 + $0x360] sm:$0xff]
      %v559 = vld [vmem:[%s1 + $0x368] sm:$0xff]
      %v560 = vld [vmem:[%s1 + $0x370] sm:$0xff]
      %v561 = vld [vmem:[%s1 + $0x378] sm:$0xff]
      %v562 = vld [vmem:[%s1 + $0x380] sm:$0xff]
      %v563 = vld [vmem:[%s1 + $0x388] sm:$0xff]
      %v564 = vld [vmem:[%s1 + $0x390] sm:$0xff]
      %v565 = vld [vmem:[%s1 + $0x398] sm:$0xff]
      %v566 = vld [vmem:[%s1 + $0x3a0] sm:$0xff]
      %v567 = vld [vmem:[%s1 + $0x3a8] sm:$0xff]
      %v568 = vld [vmem:[%s1 + $0x3b0] sm:$0xff]
      %v569 = vld [vmem:[%s1 + $0x3b8] sm:$0xff]
      %v570 = vld [vmem:[%s1 + $0x3c0] sm:$0xff]
      %v571 = vld [vmem:[%s1 + $0x3c8] sm:$0xff]
      %v572 = vld [vmem:[%s1 + $0x3d0] sm:$0xff]
      %v573 = vld [vmem:[%s1 + $0x3d8] sm:$0xff]
      %v574 = vld [vmem:[%s1 + $0x3e0] sm:$0xff]
      %v575 = vld [vmem:[%s1 + $0x3e8] sm:$0xff]
      %v576 = vld [vmem:[%s1 + $0x3f0] sm:$0xff]
      %v577 = vld [vmem:[%s1 + $0x3f8] sm:$0xff]
      %v578 = vld [vmem:[%s1 + $0x400] sm:$0xff]
      %v579 = vld [vmem:[%s1 + $0x408] sm:$0xff]
      %v580 = vld [vmem:[%s1 + $0x410] sm:$0xff]
      %v581 = vld [vmem:[%s1 + $0x418] sm:$0xff]
      %v582 = vld [vmem:[%s1 + $0x420] sm:$0xff]
      %v583 = vld [vmem:[%s1 + $0x428] sm:$0xff]
      %v584 = vld [vmem:[%s1 + $0x430] sm:$0xff]
      %v585 = vld [vmem:[%s1 + $0x438] sm:$0xff]
      %v586 = vld [vmem:[%s1 + $0x440] sm:$0xff]
      %v587 = vld [vmem:[%s1 + $0x448] sm:$0xff]
      %v588 = vld [vmem:[%s1 + $0x450] sm:$0xff]
      %v589 = vld [vmem:[%s1 + $0x458] sm:$0xff]
      %v590 = vld [vmem:[%s1 + $0x460] sm:$0xff]
      %v591 = vld [vmem:[%s1 + $0x468] sm:$0xff]
      %v592 = vld [vmem:[%s1 + $0x470] sm:$0xff]
      %v593 = vld [vmem:[%s1 + $0x478] sm:$0xff]
      %v594 = vld [vmem:[%s1 + $0x480] sm:$0xff]
      %v595 = vld [vmem:[%s1 + $0x488] sm:$0xff]
      %v596 = vld [vmem:[%s1 + $0x490] sm:$0xff]
      %v597 = vld [vmem:[%s1 + $0x498] sm:$0xff]
      %v598 = vld [vmem:[%s1 + $0x4a0] sm:$0xff]
      %v599 = vld [vmem:[%s1 + $0x4a8] sm:$0xff]
      %v600 = vld [vmem:[%s1 + $0x4b0] sm:$0xff]
      %v601 = vld [vmem:[%s1 + $0x4b8] sm:$0xff]
      %v602 = vld [vmem:[%s1 + $0x4c0] sm:$0xff]
      %v603 = vld [vmem:[%s1 + $0x4c8] sm:$0xff]
      %v604 = vld [vmem:[%s1 + $0x4d0] sm:$0xff]
      %v605 = vld [vmem:[%s1 + $0x4d8] sm:$0xff]
      %v606 = vld [vmem:[%s1 + $0x4e0] sm:$0xff]
      %v607 = vld [vmem:[%s1 + $0x4e8] sm:$0xff]
      %v608 = vld [vmem:[%s1 + $0x4f0] sm:$0xff]
      %v609 = vld [vmem:[%s1 + $0x4f8] sm:$0xff]
      %v610 = vld [vmem:[%s1 + $0x500] sm:$0xff]
      %v611 = vld [vmem:[%s1 + $0x508] sm:$0xff]
      %v612 = vld [vmem:[%s1 + $0x510] sm:$0xff]
      %v613 = vld [vmem:[%s1 + $0x518] sm:$0xff]
      %v614 = vld [vmem:[%s1 + $0x520] sm:$0xff]
      %v615 = vld [vmem:[%s1 + $0x528] sm:$0xff]
      %v616 = vld [vmem:[%s1 + $0x530] sm:$0xff]
      %v617 = vld [vmem:[%s1 + $0x538] sm:$0xff]
      %v618 = vld [vmem:[%s1 + $0x540] sm:$0xff]
      %v619 = vld [vmem:[%s1 + $0x548] sm:$0xff]
      %v620 = vld [vmem:[%s1 + $0x550] sm:$0xff]
      %v621 = vld [vmem:[%s1 + $0x558] sm:$0xff]
      %v622 = vld [vmem:[%s1 + $0x560] sm:$0xff]
      %v623 = vld [vmem:[%s1 + $0x568] sm:$0xff]
      %v624 = vld [vmem:[%s1 + $0x570] sm:$0xff]
      %v625 = vld [vmem:[%s1 + $0x578] sm:$0xff]
      %v626 = vld [vmem:[%s1 + $0x580] sm:$0xff]
      %v627 = vld [vmem:[%s1 + $0x588] sm:$0xff]
      %v628 = vld [vmem:[%s1 + $0x590] sm:$0xff]
      %v629 = vld [vmem:[%s1 + $0x598] sm:$0xff]
      %v630 = vld [vmem:[%s1 + $0x5a0] sm:$0xff]
      %v631 = vld [vmem:[%s1 + $0x5a8] sm:$0xff]
      %v632 = vld [vmem:[%s1 + $0x5b0] sm:$0xff]
      %v633 = vld [vmem:[%s1 + $0x5b8] sm:$0xff]
      %v634 = vld [vmem:[%s1 + $0x5c0] sm:$0xff]
      %v635 = vld [vmem:[%s1 + $0x5c8] sm:$0xff]
      %v636 = vld [vmem:[%s1 + $0x5d0] sm:$0xff]
      %v637 = vld [vmem:[%s1 + $0x5d8] sm:$0xff]
      %v638 = vld [vmem:[%s1 + $0x5e0] sm:$0xff]
      %v639 = vld [vmem:[%s1 + $0x5e8] sm:$0xff]
      %v640 = vld [vmem:[%s1 + $0x5f0] sm:$0xff]
      %v641 = vld [vmem:[%s1 + $0x5f8] sm:$0xff]
      %v642 = vld [vmem:[%s1 + $0x600] sm:$0xff]
      %v643 = vld [vmem:[%s1 + $0x608] sm:$0xff]
      %v644 = vld [vmem:[%s1 + $0x610] sm:$0xff]
      %v645 = vld [vmem:[%s1 + $0x618] sm:$0xff]
      %v646 = vld [vmem:[%s1 + $0x620] sm:$0xff]
      %v647 = vld [vmem:[%s1 + $0x628] sm:$0xff]
      %v648 = vld [vmem:[%s1 + $0x630] sm:$0xff]
      %v649 = vld [vmem:[%s1 + $0x638] sm:$0xff]
      %v650 = vld [vmem:[%s1 + $0x640] sm:$0xff]
      %v651 = vld [vmem:[%s1 + $0x648] sm:$0xff]
      %v652 = vld [vmem:[%s1 + $0x650] sm:$0xff]
      %v653 = vld [vmem:[%s1 + $0x658] sm:$0xff]
      %v654 = vld [vmem:[%s1 + $0x660] sm:$0xff]
      %v655 = vld [vmem:[%s1 + $0x668] sm:$0xff]
      %v656 = vld [vmem:[%s1 + $0x670] sm:$0xff]
      %v657 = vld [vmem:[%s1 + $0x678] sm:$0xff]
      %v658 = vld [vmem:[%s1 + $0x680] sm:$0xff]
      %v659 = vld [vmem:[%s1 + $0x688] sm:$0xff]
      %v660 = vld [vmem:[%s1 + $0x690] sm:$0xff]
      %v661 = vld [vmem:[%s1 + $0x698] sm:$0xff]
      %v662 = vld [vmem:[%s1 + $0x6a0] sm:$0xff]
      %v663 = vld [vmem:[%s1 + $0x6a8] sm:$0xff]
      %v664 = vld [vmem:[%s1 + $0x6b0] sm:$0xff]
      %v665 = vld [vmem:[%s1 + $0x6b8] sm:$0xff]
      %v666 = vld [vmem:[%s1 + $0x6c0] sm:$0xff]
      %v667 = vld [vmem:[%s1 + $0x6c8] sm:$0xff]
      %v668 = vld [vmem:[%s1 + $0x6d0] sm:$0xff]
      %v669 = vld [vmem:[%s1 + $0x6d8] sm:$0xff]
      %v670 = vld [vmem:[%s1 + $0x6e0] sm:$0xff]
      %v671 = vld [vmem:[%s1 + $0x6e8] sm:$0xff]
      %v672 = vld [vmem:[%s1 + $0x6f0] sm:$0xff]
      %v673 = vld [vmem:[%s1 + $0x6f8] sm:$0xff]
      %v674 = vld [vmem:[%s1 + $0x700] sm:$0xff]
      %v675 = vld [vmem:[%s1 + $0x708] sm:$0xff]
      %v676 = vld [vmem:[%s1 + $0x710] sm:$0xff]
      %v677 = vld [vmem:[%s1 + $0x718] sm:$0xff]
      %v678 = vld [vmem:[%s1 + $0x720] sm:$0xff]
      %v679 = vld [vmem:[%s1 + $0x728] sm:$0xff]
      %v680 = vld [vmem:[%s1 + $0x730] sm:$0xff]
      %v681 = vld [vmem:[%s1 + $0x738] sm:$0xff]
      %v682 = vld [vmem:[%s1 + $0x740] sm:$0xff]
      %v683 = vld [vmem:[%s1 + $0x748] sm:$0xff]
      %v684 = vld [vmem:[%s1 + $0x750] sm:$0xff]
      %v685 = vld [vmem:[%s1 + $0x758] sm:$0xff]
      %v686 = vld [vmem:[%s1 + $0x760] sm:$0xff]
      %v687 = vld [vmem:[%s1 + $0x768] sm:$0xff]
      %v688 = vld [vmem:[%s1 + $0x770] sm:$0xff]
      %v689 = vld [vmem:[%s1 + $0x778] sm:$0xff]
      %v690 = vld [vmem:[%s1 + $0x780] sm:$0xff]
      %v691 = vld [vmem:[%s1 + $0x788] sm:$0xff]
      %v692 = vld [vmem:[%s1 + $0x790] sm:$0xff]
      %v693 = vld [vmem:[%s1 + $0x798] sm:$0xff]
      %v694 = vld [vmem:[%s1 + $0x7a0] sm:$0xff]
      %v695 = vld [vmem:[%s1 + $0x7a8] sm:$0xff]
      %v696 = vld [vmem:[%s1 + $0x7b0] sm:$0xff]
      %v697 = vld [vmem:[%s1 + $0x7b8] sm:$0xff]
      %v698 = vld [vmem:[%s1 + $0x7c0] sm:$0xff]
      %v699 = vld [vmem:[%s1 + $0x7c8] sm:$0xff]
      %v700 = vld [vmem:[%s1 + $0x7d0] sm:$0xff]
      %v701 = vld [vmem:[%s1 + $0x7d8] sm:$0xff]
      %v702 = vld [vmem:[%s1 + $0x7e0] sm:$0xff]
      %v703 = vld [vmem:[%s1 + $0x7e8] sm:$0xff]
      %v704 = vld [vmem:[%s1 + $0x7f0] sm:$0xff]
      %v705 = vld [vmem:[%s1 + $0x7f8] sm:$0xff]
      %v706 = vld [vmem:[%s1 + $0x800] sm:$0xff]
      %v707 = vld [vmem:[%s1 + $0x808] sm:$0xff]
      %v708 = vld [vmem:[%s1 + $0x810] sm:$0xff]
      %v709 = vld [vmem:[%s1 + $0x818] sm:$0xff]
      %v710 = vld [vmem:[%s1 + $0x820] sm:$0xff]
      %v711 = vld [vmem:[%s1 + $0x828] sm:$0xff]
      %v712 = vld [vmem:[%s1 + $0x830] sm:$0xff]
      %v713 = vld [vmem:[%s1 + $0x838] sm:$0xff]
      %v714 = vld [vmem:[%s1 + $0x840] sm:$0xff]
      %v715 = vld [vmem:[%s1 + $0x848] sm:$0xff]
      %v716 = vld [vmem:[%s1 + $0x850] sm:$0xff]
      %v717 = vld [vmem:[%s1 + $0x858] sm:$0xff]
      %v718 = vld [vmem:[%s1 + $0x860] sm:$0xff]
      %v719 = vld [vmem:[%s1 + $0x868] sm:$0xff]
      %v720 = vld [vmem:[%s1 + $0x870] sm:$0xff]
      %v721 = vld [vmem:[%s1 + $0x878] sm:$0xff]
      %v722 = vld [vmem:[%s1 + $0x880] sm:$0xff]
      %v723 = vld [vmem:[%s1 + $0x888] sm:$0xff]
      %v724 = vld [vmem:[%s1 + $0x890] sm:$0xff]
      %v725 = vld [vmem:[%s1 + $0x898] sm:$0xff]
      %v726 = vld [vmem:[%s1 + $0x8a0] sm:$0xff]
      %v727 = vld [vmem:[%s1 + $0x8a8] sm:$0xff]
      %v728 = vld [vmem:[%s1 + $0x8b0] sm:$0xff]
      %v729 = vld [vmem:[%s1 + $0x8b8] sm:$0xff]
      %v730 = vld [vmem:[%s1 + $0x8c0] sm:$0xff]
      %v731 = vld [vmem:[%s1 + $0x8c8] sm:$0xff]
      %v732 = vld [vmem:[%s1 + $0x8d0] sm:$0xff]
      %v733 = vld [vmem:[%s1 + $0x8d8] sm:$0xff]
      %v734 = vld [vmem:[%s1 + $0x8e0] sm:$0xff]
      %v735 = vld [vmem:[%s1 + $0x8e8] sm:$0xff]
      %v736 = vld [vmem:[%s1 + $0x8f0] sm:$0xff]
      %v737 = vld [vmem:[%s1 + $0x8f8] sm:$0xff]
      %v738 = vld [vmem:[%s1 + $0x900] sm:$0xff]
      %v739 = vld [vmem:[%s1 + $0x908] sm:$0xff]
      %v740 = vld [vmem:[%s1 + $0x910] sm:$0xff]
      %v741 = vld [vmem:[%s1 + $0x918] sm:$0xff]
      %v742 = vld [vmem:[%s1 + $0x920] sm:$0xff]
      %v743 = vld [vmem:[%s1 + $0x928] sm:$0xff]
      %v744 = vld [vmem:[%s1 + $0x930] sm:$0xff]
      %v745 = vld [vmem:[%s1 + $0x938] sm:$0xff]
      %v746 = vld [vmem:[%s1 + $0x940] sm:$0xff]
      %v747 = vld [vmem:[%s1 + $0x948] sm:$0xff]
      %v748 = vld [vmem:[%s1 + $0x950] sm:$0xff]
      %v749 = vld [vmem:[%s1 + $0x958] sm:$0xff]
      %v750 = vld [vmem:[%s1 + $0x960] sm:$0xff]
      %v751 = vld [vmem:[%s1 + $0x968] sm:$0xff]
      %v752 = vld [vmem:[%s1 + $0x970] sm:$0xff]
      %v753 = vld [vmem:[%s1 + $0x978] sm:$0xff]
      %v754 = vld [vmem:[%s1 + $0x980] sm:$0xff]
      %v755 = vld [vmem:[%s1 + $0x988] sm:$0xff]
      %v756 = vld [vmem:[%s1 + $0x990] sm:$0xff]
      %v757 = vld [vmem:[%s1 + $0x998] sm:$0xff]
      %v758 = vld [vmem:[%s1 + $0x9a0] sm:$0xff]
      %v759 = vld [vmem:[%s1 + $0x9a8] sm:$0xff]
      %v760 = vld [vmem:[%s1 + $0x9b0] sm:$0xff]
      %v761 = vld [vmem:[%s1 + $0x9b8] sm:$0xff]
      %v762 = vld [vmem:[%s1 + $0x9c0] sm:$0xff]
      %v763 = vld [vmem:[%s1 + $0x9c8] sm:$0xff]
      %v764 = vld [vmem:[%s1 + $0x9d0] sm:$0xff]
      %v765 = vld [vmem:[%s1 + $0x9d8] sm:$0xff]
      %v766 = vld [vmem:[%s1 + $0x9e0] sm:$0xff]
      %v767 = vld [vmem:[%s1 + $0x9e8] sm:$0xff]
      %v768 = vld [vmem:[%s1 + $0x9f0] sm:$0xff]
      %v769 = vld [vmem:[%s1 + $0x9f8] sm:$0xff]
      %v770 = vld [vmem:[%s1 + $0xa00] sm:$0xff]
      %v771 = vld [vmem:[%s1 + $0xa08] sm:$0xff]
      %v772 = vld [vmem:[%s1 + $0xa10] sm:$0xff]
      %v773 = vld [vmem:[%s1 + $0xa18] sm:$0xff]
      %v774 = vld [vmem:[%s1 + $0xa20] sm:$0xff]
      %v775 = vld [vmem:[%s1 + $0xa28] sm:$0xff]
      %v776 = vld [vmem:[%s1 + $0xa30] sm:$0xff]
      %v777 = vld [vmem:[%s1 + $0xa38] sm:$0xff]
      %v778 = vld [vmem:[%s1 + $0xa40] sm:$0xff]
      %v779 = vld [vmem:[%s1 + $0xa48] sm:$0xff]
      %v780 = vld [vmem:[%s1 + $0xa50] sm:$0xff]
      %v781 = vld [vmem:[%s1 + $0xa58] sm:$0xff]
      %v782 = vld [vmem:[%s1 + $0xa60] sm:$0xff]
      %v783 = vld [vmem:[%s1 + $0xa68] sm:$0xff]
      %v784 = vld [vmem:[%s1 + $0xa70] sm:$0xff]
      %v785 = vld [vmem:[%s1 + $0xa78] sm:$0xff]
      %v786 = vld [vmem:[%s1 + $0xa80] sm:$0xff]
      %v787 = vld [vmem:[%s1 + $0xa88] sm:$0xff]
      %v788 = vld [vmem:[%s1 + $0xa90] sm:$0xff]
      %v789 = vld [vmem:[%s1 + $0xa98] sm:$0xff]
      %v790 = vld [vmem:[%s1 + $0xaa0] sm:$0xff]
      %v791 = vld [vmem:[%s1 + $0xaa8] sm:$0xff]
      %v792 = vld [vmem:[%s1 + $0xab0] sm:$0xff]
      %v793 = vld [vmem:[%s1 + $0xab8] sm:$0xff]
      %v794 = vld [vmem:[%s1 + $0xac0] sm:$0xff]
      %v795 = vld [vmem:[%s1 + $0xac8] sm:$0xff]
      %v796 = vld [vmem:[%s1 + $0xad0] sm:$0xff]
      %v797 = vld [vmem:[%s1 + $0xad8] sm:$0xff]
      %v798 = vld [vmem:[%s1 + $0xae0] sm:$0xff]
      %v799 = vld [vmem:[%s1 + $0xae8] sm:$0xff]
      %v800 = vld [vmem:[%s1 + $0xaf0] sm:$0xff]
      %v801 = vld [vmem:[%s1 + $0xaf8] sm:$0xff]
      %v802 = vld [vmem:[%s1 + $0xb00] sm:$0xff]
      %v803 = vld [vmem:[%s1 + $0xb08] sm:$0xff]
      %v804 = vld [vmem:[%s1 + $0xb10] sm:$0xff]
      %v805 = vld [vmem:[%s1 + $0xb18] sm:$0xff]
      %v806 = vld [vmem:[%s1 + $0xb20] sm:$0xff]
      %v807 = vld [vmem:[%s1 + $0xb28] sm:$0xff]
      %v808 = vld [vmem:[%s1 + $0xb30] sm:$0xff]
      %v809 = vld [vmem:[%s1 + $0xb38] sm:$0xff]
      %v810 = vld [vmem:[%s1 + $0xb40] sm:$0xff]
      %v811 = vld [vmem:[%s1 + $0xb48] sm:$0xff]
      %v812 = vld [vmem:[%s1 + $0xb50] sm:$0xff]
      %v813 = vld [vmem:[%s1 + $0xb58] sm:$0xff]
      %v814 = vld [vmem:[%s1 + $0xb60] sm:$0xff]
      %v815 = vld [vmem:[%s1 + $0xb68] sm:$0xff]
      %v816 = vld [vmem:[%s1 + $0xb70] sm:$0xff]
      %v817 = vld [vmem:[%s1 + $0xb78] sm:$0xff]
      %v818 = vld [vmem:[%s1 + $0xb80] sm:$0xff]
      %v819 = vld [vmem:[%s1 + $0xb88] sm:$0xff]
      %v820 = vld [vmem:[%s1 + $0xb90] sm:$0xff]
      %v821 = vld [vmem:[%s1 + $0xb98] sm:$0xff]
      %v822 = vld [vmem:[%s1 + $0xba0] sm:$0xff]
      %v823 = vld [vmem:[%s1 + $0xba8] sm:$0xff]
      %v824 = vld [vmem:[%s1 + $0xbb0] sm:$0xff]
      %v825 = vld [vmem:[%s1 + $0xbb8] sm:$0xff]
      %v826 = vld [vmem:[%s1 + $0xbc0] sm:$0xff]
      %v827 = vld [vmem:[%s1 + $0xbc8] sm:$0xff]
      %v828 = vld [vmem:[%s1 + $0xbd0] sm:$0xff]
      %v829 = vld [vmem:[%s1 + $0xbd8] sm:$0xff]
      %v830 = vld [vmem:[%s1 + $0xbe0] sm:$0xff]
      %v831 = vld [vmem:[%s1 + $0xbe8] sm:$0xff]
      %v832 = vld [vmem:[%s1 + $0xbf0] sm:$0xff]
      %v833 = vld [vmem:[%s1 + $0xbf8] sm:$0xff]
      %v834 = vld [vmem:[%s2] sm:$0xff]
      %v835 = vld [vmem:[%s2 + $0x8] sm:$0xf]
      %v838 = vlaneseq
      %v839 = vshrl.u32 %v838, 7
      %v840 = vsub.s32 0, %v839
      %v841 = vrot.slane %v834, %v840
      %v842 = vlaneseq
      %v843 = vshrl.u32 %v842, 7
      %v844 = vsub.s32 1, %v843
      %v845 = vrot.slane %v834, %v844
      %v846 = vlaneseq
      %v847 = vshrl.u32 %v846, 7
      %v848 = vsub.s32 2, %v847
      %v849 = vrot.slane %v834, %v848
      %v850 = vlaneseq
      %v851 = vshrl.u32 %v850, 7
      %v852 = vsub.s32 3, %v851
      %v853 = vrot.slane %v834, %v852
      %v854 = vlaneseq
      %v855 = vshrl.u32 %v854, 7
      %v856 = vsub.s32 4, %v855
      %v857 = vrot.slane %v834, %v856
      %v858 = vlaneseq
      %v859 = vshrl.u32 %v858, 7
      %v860 = vsub.s32 5, %v859
      %v861 = vrot.slane %v834, %v860
      %v862 = vlaneseq
      %v863 = vshrl.u32 %v862, 7
      %v864 = vsub.s32 6, %v863
      %v865 = vrot.slane %v834, %v864
      %v866 = vlaneseq
      %v867 = vshrl.u32 %v866, 7
      %v868 = vsub.s32 7, %v867
      %v869 = vrot.slane %v834, %v868
      %v870 = vlaneseq
      %v871 = vshrl.u32 %v870, 7
      %v872 = vsub.s32 0, %v871
      %v873 = vrot.slane %v835, %v872
      %v874 = vlaneseq
      %v875 = vshrl.u32 %v874, 7
      %v876 = vsub.s32 1, %v875
      %v877 = vrot.slane %v835, %v876
      %v878 = vlaneseq
      %v879 = vshrl.u32 %v878, 7
      %v880 = vsub.s32 2, %v879
      %v881 = vrot.slane %v835, %v880
      %v882 = vlaneseq
      %v883 = vshrl.u32 %v882, 7
      %v884 = vsub.s32 3, %v883
      %v885 = vrot.slane %v835, %v884
      %v1282 = vunpack.c.l.b16 %v450
      %v1283 = vunpack.c.h.b16 %v450
      %v1284 = vunpack.c.l.b16 %v451
      %v1285 = vunpack.c.h.b16 %v451
      %v1286 = vunpack.c.l.b16 %v452
      %v1287 = vunpack.c.h.b16 %v452
      %v1288 = vunpack.c.l.b16 %v453
      %v1289 = vunpack.c.h.b16 %v453
      %v1290 = vunpack.c.l.b16 %v454
      %v1291 = vunpack.c.h.b16 %v454
      %v1292 = vunpack.c.l.b16 %v455
      %v1293 = vunpack.c.h.b16 %v455
      %v1294 = vunpack.c.l.b16 %v456
      %v1295 = vunpack.c.h.b16 %v456
      %v1296 = vunpack.c.l.b16 %v457
      %v1297 = vunpack.c.h.b16 %v457
      %v1298 = vunpack.c.l.b16 %v458
      %v1299 = vunpack.c.h.b16 %v458
      %v1300 = vunpack.c.l.b16 %v459
      %v1301 = vunpack.c.h.b16 %v459
      %v1302 = vunpack.c.l.b16 %v460
      %v1303 = vunpack.c.h.b16 %v460
      %v1304 = vunpack.c.l.b16 %v461
      %v1305 = vunpack.c.h.b16 %v461
      %v1306 = vunpack.c.l.b16 %v462
      %v1307 = vunpack.c.h.b16 %v462
      %v1308 = vunpack.c.l.b16 %v463
      %v1309 = vunpack.c.h.b16 %v463
      %v1310 = vunpack.c.l.b16 %v464
      %v1311 = vunpack.c.h.b16 %v464
      %v1312 = vunpack.c.l.b16 %v465
      %v1313 = vunpack.c.h.b16 %v465
      %v1314 = vunpack.c.l.b16 %v466
      %v1315 = vunpack.c.h.b16 %v466
      %v1316 = vunpack.c.l.b16 %v467
      %v1317 = vunpack.c.h.b16 %v467
      %v1318 = vunpack.c.l.b16 %v468
      %v1319 = vunpack.c.h.b16 %v468
      %v1320 = vunpack.c.l.b16 %v469
      %v1321 = vunpack.c.h.b16 %v469
      %v1322 = vunpack.c.l.b16 %v470
      %v1323 = vunpack.c.h.b16 %v470
      %v1324 = vunpack.c.l.b16 %v471
      %v1325 = vunpack.c.h.b16 %v471
      %v1326 = vunpack.c.l.b16 %v472
      %v1327 = vunpack.c.h.b16 %v472
      %v1328 = vunpack.c.l.b16 %v473
      %v1329 = vunpack.c.h.b16 %v473
      %v1330 = vunpack.c.l.b16 %v474
      %v1331 = vunpack.c.h.b16 %v474
      %v1332 = vunpack.c.l.b16 %v475
      %v1333 = vunpack.c.h.b16 %v475
      %v1334 = vunpack.c.l.b16 %v476
      %v1335 = vunpack.c.h.b16 %v476
      %v1336 = vunpack.c.l.b16 %v477
      %v1337 = vunpack.c.h.b16 %v477
      %v1338 = vunpack.c.l.b16 %v478
      %v1339 = vunpack.c.h.b16 %v478
      %v1340 = vunpack.c.l.b16 %v479
      %v1341 = vunpack.c.h.b16 %v479
      %v1342 = vunpack.c.l.b16 %v480
      %v1343 = vunpack.c.h.b16 %v480
      %v1344 = vunpack.c.l.b16 %v481
      %v1345 = vunpack.c.h.b16 %v481
      %v1346 = vunpack.c.l.b16 %v482
      %v1347 = vunpack.c.h.b16 %v482
      %v1348 = vunpack.c.l.b16 %v483
      %v1349 = vunpack.c.h.b16 %v483
      %v1350 = vunpack.c.l.b16 %v484
      %v1351 = vunpack.c.h.b16 %v484
      %v1352 = vunpack.c.l.b16 %v485
      %v1353 = vunpack.c.h.b16 %v485
      %v1354 = vunpack.c.l.b16 %v486
      %v1355 = vunpack.c.h.b16 %v486
      %v1356 = vunpack.c.l.b16 %v487
      %v1357 = vunpack.c.h.b16 %v487
      %v1358 = vunpack.c.l.b16 %v488
      %v1359 = vunpack.c.h.b16 %v488
      %v1360 = vunpack.c.l.b16 %v489
      %v1361 = vunpack.c.h.b16 %v489
      %v1362 = vunpack.c.l.b16 %v490
      %v1363 = vunpack.c.h.b16 %v490
      %v1364 = vunpack.c.l.b16 %v491
      %v1365 = vunpack.c.h.b16 %v491
      %v1366 = vunpack.c.l.b16 %v492
      %v1367 = vunpack.c.h.b16 %v492
      %v1368 = vunpack.c.l.b16 %v493
      %v1369 = vunpack.c.h.b16 %v493
      %v1370 = vunpack.c.l.b16 %v494
      %v1371 = vunpack.c.h.b16 %v494
      %v1372 = vunpack.c.l.b16 %v495
      %v1373 = vunpack.c.h.b16 %v495
      %v1374 = vunpack.c.l.b16 %v496
      %v1375 = vunpack.c.h.b16 %v496
      %v1376 = vunpack.c.l.b16 %v497
      %v1377 = vunpack.c.h.b16 %v497
      %v1378 = vunpack.c.l.b16 %v498
      %v1379 = vunpack.c.h.b16 %v498
      %v1380 = vunpack.c.l.b16 %v499
      %v1381 = vunpack.c.h.b16 %v499
      %v1382 = vunpack.c.l.b16 %v500
      %v1383 = vunpack.c.h.b16 %v500
      %v1384 = vunpack.c.l.b16 %v501
      %v1385 = vunpack.c.h.b16 %v501
      %v1386 = vunpack.c.l.b16 %v502
      %v1387 = vunpack.c.h.b16 %v502
      %v1388 = vunpack.c.l.b16 %v503
      %v1389 = vunpack.c.h.b16 %v503
      %v1390 = vunpack.c.l.b16 %v504
      %v1391 = vunpack.c.h.b16 %v504
      %v1392 = vunpack.c.l.b16 %v505
      %v1393 = vunpack.c.h.b16 %v505
      %v1394 = vunpack.c.l.b16 %v506
      %v1395 = vunpack.c.h.b16 %v506
      %v1396 = vunpack.c.l.b16 %v507
      %v1397 = vunpack.c.h.b16 %v507
      %v1398 = vunpack.c.l.b16 %v508
      %v1399 = vunpack.c.h.b16 %v508
      %v1400 = vunpack.c.l.b16 %v509
      %v1401 = vunpack.c.h.b16 %v509
      %v1402 = vunpack.c.l.b16 %v510
      %v1403 = vunpack.c.h.b16 %v510
      %v1404 = vunpack.c.l.b16 %v511
      %v1405 = vunpack.c.h.b16 %v511
      %v1406 = vunpack.c.l.b16 %v512
      %v1407 = vunpack.c.h.b16 %v512
      %v1408 = vunpack.c.l.b16 %v513
      %v1409 = vunpack.c.h.b16 %v513
      %v1410 = vunpack.c.l.b16 %v514
      %v1411 = vunpack.c.h.b16 %v514
      %v1412 = vunpack.c.l.b16 %v515
      %v1413 = vunpack.c.h.b16 %v515
      %v1414 = vunpack.c.l.b16 %v516
      %v1415 = vunpack.c.h.b16 %v516
      %v1416 = vunpack.c.l.b16 %v517
      %v1417 = vunpack.c.h.b16 %v517
      %v1418 = vunpack.c.l.b16 %v518
      %v1419 = vunpack.c.h.b16 %v518
      %v1420 = vunpack.c.l.b16 %v519
      %v1421 = vunpack.c.h.b16 %v519
      %v1422 = vunpack.c.l.b16 %v520
      %v1423 = vunpack.c.h.b16 %v520
      %v1424 = vunpack.c.l.b16 %v521
      %v1425 = vunpack.c.h.b16 %v521
      %v1426 = vunpack.c.l.b16 %v522
      %v1427 = vunpack.c.h.b16 %v522
      %v1428 = vunpack.c.l.b16 %v523
      %v1429 = vunpack.c.h.b16 %v523
      %v1430 = vunpack.c.l.b16 %v524
      %v1431 = vunpack.c.h.b16 %v524
      %v1432 = vunpack.c.l.b16 %v525
      %v1433 = vunpack.c.h.b16 %v525
      %v1434 = vunpack.c.l.b16 %v526
      %v1435 = vunpack.c.h.b16 %v526
      %v1436 = vunpack.c.l.b16 %v527
      %v1437 = vunpack.c.h.b16 %v527
      %v1438 = vunpack.c.l.b16 %v528
      %v1439 = vunpack.c.h.b16 %v528
      %v1440 = vunpack.c.l.b16 %v529
      %v1441 = vunpack.c.h.b16 %v529
      %v1442 = vunpack.c.l.b16 %v530
      %v1443 = vunpack.c.h.b16 %v530
      %v1444 = vunpack.c.l.b16 %v531
      %v1445 = vunpack.c.h.b16 %v531
      %v1446 = vunpack.c.l.b16 %v532
      %v1447 = vunpack.c.h.b16 %v532
      %v1448 = vunpack.c.l.b16 %v533
      %v1449 = vunpack.c.h.b16 %v533
      %v1450 = vunpack.c.l.b16 %v534
      %v1451 = vunpack.c.h.b16 %v534
      %v1452 = vunpack.c.l.b16 %v535
      %v1453 = vunpack.c.h.b16 %v535
      %v1454 = vunpack.c.l.b16 %v536
      %v1455 = vunpack.c.h.b16 %v536
      %v1456 = vunpack.c.l.b16 %v537
      %v1457 = vunpack.c.h.b16 %v537
      %v1458 = vunpack.c.l.b16 %v538
      %v1459 = vunpack.c.h.b16 %v538
      %v1460 = vunpack.c.l.b16 %v539
      %v1461 = vunpack.c.h.b16 %v539
      %v1462 = vunpack.c.l.b16 %v540
      %v1463 = vunpack.c.h.b16 %v540
      %v1464 = vunpack.c.l.b16 %v541
      %v1465 = vunpack.c.h.b16 %v541
      %v1466 = vunpack.c.l.b16 %v542
      %v1467 = vunpack.c.h.b16 %v542
      %v1468 = vunpack.c.l.b16 %v543
      %v1469 = vunpack.c.h.b16 %v543
      %v1470 = vunpack.c.l.b16 %v544
      %v1471 = vunpack.c.h.b16 %v544
      %v1472 = vunpack.c.l.b16 %v545
      %v1473 = vunpack.c.h.b16 %v545
      %v1474 = vunpack.c.l.b16 %v546
      %v1475 = vunpack.c.h.b16 %v546
      %v1476 = vunpack.c.l.b16 %v547
      %v1477 = vunpack.c.h.b16 %v547
      %v1478 = vunpack.c.l.b16 %v548
      %v1479 = vunpack.c.h.b16 %v548
      %v1480 = vunpack.c.l.b16 %v549
      %v1481 = vunpack.c.h.b16 %v549
      %v1482 = vunpack.c.l.b16 %v550
      %v1483 = vunpack.c.h.b16 %v550
      %v1484 = vunpack.c.l.b16 %v551
      %v1485 = vunpack.c.h.b16 %v551
      %v1486 = vunpack.c.l.b16 %v552
      %v1487 = vunpack.c.h.b16 %v552
      %v1488 = vunpack.c.l.b16 %v553
      %v1489 = vunpack.c.h.b16 %v553
      %v1490 = vunpack.c.l.b16 %v554
      %v1491 = vunpack.c.h.b16 %v554
      %v1492 = vunpack.c.l.b16 %v555
      %v1493 = vunpack.c.h.b16 %v555
      %v1494 = vunpack.c.l.b16 %v556
      %v1495 = vunpack.c.h.b16 %v556
      %v1496 = vunpack.c.l.b16 %v557
      %v1497 = vunpack.c.h.b16 %v557
      %v1498 = vunpack.c.l.b16 %v558
      %v1499 = vunpack.c.h.b16 %v558
      %v1500 = vunpack.c.l.b16 %v559
      %v1501 = vunpack.c.h.b16 %v559
      %v1502 = vunpack.c.l.b16 %v560
      %v1503 = vunpack.c.h.b16 %v560
      %v1504 = vunpack.c.l.b16 %v561
      %v1505 = vunpack.c.h.b16 %v561
      %v1506 = vunpack.c.l.b16 %v562
      %v1507 = vunpack.c.h.b16 %v562
      %v1508 = vunpack.c.l.b16 %v563
      %v1509 = vunpack.c.h.b16 %v563
      %v1510 = vunpack.c.l.b16 %v564
      %v1511 = vunpack.c.h.b16 %v564
      %v1512 = vunpack.c.l.b16 %v565
      %v1513 = vunpack.c.h.b16 %v565
      %v1514 = vunpack.c.l.b16 %v566
      %v1515 = vunpack.c.h.b16 %v566
      %v1516 = vunpack.c.l.b16 %v567
      %v1517 = vunpack.c.h.b16 %v567
      %v1518 = vunpack.c.l.b16 %v568
      %v1519 = vunpack.c.h.b16 %v568
      %v1520 = vunpack.c.l.b16 %v569
      %v1521 = vunpack.c.h.b16 %v569
      %v1522 = vunpack.c.l.b16 %v570
      %v1523 = vunpack.c.h.b16 %v570
      %v1524 = vunpack.c.l.b16 %v571
      %v1525 = vunpack.c.h.b16 %v571
      %v1526 = vunpack.c.l.b16 %v572
      %v1527 = vunpack.c.h.b16 %v572
      %v1528 = vunpack.c.l.b16 %v573
      %v1529 = vunpack.c.h.b16 %v573
      %v1530 = vunpack.c.l.b16 %v574
      %v1531 = vunpack.c.h.b16 %v574
      %v1532 = vunpack.c.l.b16 %v575
      %v1533 = vunpack.c.h.b16 %v575
      %v1534 = vunpack.c.l.b16 %v576
      %v1535 = vunpack.c.h.b16 %v576
      %v1536 = vunpack.c.l.b16 %v577
      %v1537 = vunpack.c.h.b16 %v577
      %v1538 = vunpack.c.l.b16 %v578
      %v1539 = vunpack.c.h.b16 %v578
      %v1540 = vunpack.c.l.b16 %v579
      %v1541 = vunpack.c.h.b16 %v579
      %v1542 = vunpack.c.l.b16 %v580
      %v1543 = vunpack.c.h.b16 %v580
      %v1544 = vunpack.c.l.b16 %v581
      %v1545 = vunpack.c.h.b16 %v581
      %v1546 = vunpack.c.l.b16 %v582
      %v1547 = vunpack.c.h.b16 %v582
      %v1548 = vunpack.c.l.b16 %v583
      %v1549 = vunpack.c.h.b16 %v583
      %v1550 = vunpack.c.l.b16 %v584
      %v1551 = vunpack.c.h.b16 %v584
      %v1552 = vunpack.c.l.b16 %v585
      %v1553 = vunpack.c.h.b16 %v585
      %v1554 = vunpack.c.l.b16 %v586
      %v1555 = vunpack.c.h.b16 %v586
      %v1556 = vunpack.c.l.b16 %v587
      %v1557 = vunpack.c.h.b16 %v587
      %v1558 = vunpack.c.l.b16 %v588
      %v1559 = vunpack.c.h.b16 %v588
      %v1560 = vunpack.c.l.b16 %v589
      %v1561 = vunpack.c.h.b16 %v589
      %v1562 = vunpack.c.l.b16 %v590
      %v1563 = vunpack.c.h.b16 %v590
      %v1564 = vunpack.c.l.b16 %v591
      %v1565 = vunpack.c.h.b16 %v591
      %v1566 = vunpack.c.l.b16 %v592
      %v1567 = vunpack.c.h.b16 %v592
      %v1568 = vunpack.c.l.b16 %v593
      %v1569 = vunpack.c.h.b16 %v593
      %v1570 = vunpack.c.l.b16 %v594
      %v1571 = vunpack.c.h.b16 %v594
      %v1572 = vunpack.c.l.b16 %v595
      %v1573 = vunpack.c.h.b16 %v595
      %v1574 = vunpack.c.l.b16 %v596
      %v1575 = vunpack.c.h.b16 %v596
      %v1576 = vunpack.c.l.b16 %v597
      %v1577 = vunpack.c.h.b16 %v597
      %v1578 = vunpack.c.l.b16 %v598
      %v1579 = vunpack.c.h.b16 %v598
      %v1580 = vunpack.c.l.b16 %v599
      %v1581 = vunpack.c.h.b16 %v599
      %v1582 = vunpack.c.l.b16 %v600
      %v1583 = vunpack.c.h.b16 %v600
      %v1584 = vunpack.c.l.b16 %v601
      %v1585 = vunpack.c.h.b16 %v601
      %v1586 = vunpack.c.l.b16 %v602
      %v1587 = vunpack.c.h.b16 %v602
      %v1588 = vunpack.c.l.b16 %v603
      %v1589 = vunpack.c.h.b16 %v603
      %v1590 = vunpack.c.l.b16 %v604
      %v1591 = vunpack.c.h.b16 %v604
      %v1592 = vunpack.c.l.b16 %v605
      %v1593 = vunpack.c.h.b16 %v605
      %v1594 = vunpack.c.l.b16 %v606
      %v1595 = vunpack.c.h.b16 %v606
      %v1596 = vunpack.c.l.b16 %v607
      %v1597 = vunpack.c.h.b16 %v607
      %v1598 = vunpack.c.l.b16 %v608
      %v1599 = vunpack.c.h.b16 %v608
      %v1600 = vunpack.c.l.b16 %v609
      %v1601 = vunpack.c.h.b16 %v609
      %v1602 = vunpack.c.l.b16 %v610
      %v1603 = vunpack.c.h.b16 %v610
      %v1604 = vunpack.c.l.b16 %v611
      %v1605 = vunpack.c.h.b16 %v611
      %v1606 = vunpack.c.l.b16 %v612
      %v1607 = vunpack.c.h.b16 %v612
      %v1608 = vunpack.c.l.b16 %v613
      %v1609 = vunpack.c.h.b16 %v613
      %v1610 = vunpack.c.l.b16 %v614
      %v1611 = vunpack.c.h.b16 %v614
      %v1612 = vunpack.c.l.b16 %v615
      %v1613 = vunpack.c.h.b16 %v615
      %v1614 = vunpack.c.l.b16 %v616
      %v1615 = vunpack.c.h.b16 %v616
      %v1616 = vunpack.c.l.b16 %v617
      %v1617 = vunpack.c.h.b16 %v617
      %v1618 = vunpack.c.l.b16 %v618
      %v1619 = vunpack.c.h.b16 %v618
      %v1620 = vunpack.c.l.b16 %v619
      %v1621 = vunpack.c.h.b16 %v619
      %v1622 = vunpack.c.l.b16 %v620
      %v1623 = vunpack.c.h.b16 %v620
      %v1624 = vunpack.c.l.b16 %v621
      %v1625 = vunpack.c.h.b16 %v621
      %v1626 = vunpack.c.l.b16 %v622
      %v1627 = vunpack.c.h.b16 %v622
      %v1628 = vunpack.c.l.b16 %v623
      %v1629 = vunpack.c.h.b16 %v623
      %v1630 = vunpack.c.l.b16 %v624
      %v1631 = vunpack.c.h.b16 %v624
      %v1632 = vunpack.c.l.b16 %v625
      %v1633 = vunpack.c.h.b16 %v625
      %v1634 = vunpack.c.l.b16 %v626
      %v1635 = vunpack.c.h.b16 %v626
      %v1636 = vunpack.c.l.b16 %v627
      %v1637 = vunpack.c.h.b16 %v627
      %v1638 = vunpack.c.l.b16 %v628
      %v1639 = vunpack.c.h.b16 %v628
      %v1640 = vunpack.c.l.b16 %v629
      %v1641 = vunpack.c.h.b16 %v629
      %v1642 = vunpack.c.l.b16 %v630
      %v1643 = vunpack.c.h.b16 %v630
      %v1644 = vunpack.c.l.b16 %v631
      %v1645 = vunpack.c.h.b16 %v631
      %v1646 = vunpack.c.l.b16 %v632
      %v1647 = vunpack.c.h.b16 %v632
      %v1648 = vunpack.c.l.b16 %v633
      %v1649 = vunpack.c.h.b16 %v633
      %v1650 = vunpack.c.l.b16 %v634
      %v1651 = vunpack.c.h.b16 %v634
      %v1652 = vunpack.c.l.b16 %v635
      %v1653 = vunpack.c.h.b16 %v635
      %v1654 = vunpack.c.l.b16 %v636
      %v1655 = vunpack.c.h.b16 %v636
      %v1656 = vunpack.c.l.b16 %v637
      %v1657 = vunpack.c.h.b16 %v637
      %v1658 = vunpack.c.l.b16 %v638
      %v1659 = vunpack.c.h.b16 %v638
      %v1660 = vunpack.c.l.b16 %v639
      %v1661 = vunpack.c.h.b16 %v639
      %v1662 = vunpack.c.l.b16 %v640
      %v1663 = vunpack.c.h.b16 %v640
      %v1664 = vunpack.c.l.b16 %v641
      %v1665 = vunpack.c.h.b16 %v641
      %v1666 = vunpack.c.l.b16 %v642
      %v1667 = vunpack.c.h.b16 %v642
      %v1668 = vunpack.c.l.b16 %v643
      %v1669 = vunpack.c.h.b16 %v643
      %v1670 = vunpack.c.l.b16 %v644
      %v1671 = vunpack.c.h.b16 %v644
      %v1672 = vunpack.c.l.b16 %v645
      %v1673 = vunpack.c.h.b16 %v645
      %v1674 = vunpack.c.l.b16 %v646
      %v1675 = vunpack.c.h.b16 %v646
      %v1676 = vunpack.c.l.b16 %v647
      %v1677 = vunpack.c.h.b16 %v647
      %v1678 = vunpack.c.l.b16 %v648
      %v1679 = vunpack.c.h.b16 %v648
      %v1680 = vunpack.c.l.b16 %v649
      %v1681 = vunpack.c.h.b16 %v649
      %v1682 = vunpack.c.l.b16 %v650
      %v1683 = vunpack.c.h.b16 %v650
      %v1684 = vunpack.c.l.b16 %v651
      %v1685 = vunpack.c.h.b16 %v651
      %v1686 = vunpack.c.l.b16 %v652
      %v1687 = vunpack.c.h.b16 %v652
      %v1688 = vunpack.c.l.b16 %v653
      %v1689 = vunpack.c.h.b16 %v653
      %v1690 = vunpack.c.l.b16 %v654
      %v1691 = vunpack.c.h.b16 %v654
      %v1692 = vunpack.c.l.b16 %v655
      %v1693 = vunpack.c.h.b16 %v655
      %v1694 = vunpack.c.l.b16 %v656
      %v1695 = vunpack.c.h.b16 %v656
      %v1696 = vunpack.c.l.b16 %v657
      %v1697 = vunpack.c.h.b16 %v657
      %v1698 = vunpack.c.l.b16 %v658
      %v1699 = vunpack.c.h.b16 %v658
      %v1700 = vunpack.c.l.b16 %v659
      %v1701 = vunpack.c.h.b16 %v659
      %v1702 = vunpack.c.l.b16 %v660
      %v1703 = vunpack.c.h.b16 %v660
      %v1704 = vunpack.c.l.b16 %v661
      %v1705 = vunpack.c.h.b16 %v661
      %v1706 = vunpack.c.l.b16 %v662
      %v1707 = vunpack.c.h.b16 %v662
      %v1708 = vunpack.c.l.b16 %v663
      %v1709 = vunpack.c.h.b16 %v663
      %v1710 = vunpack.c.l.b16 %v664
      %v1711 = vunpack.c.h.b16 %v664
      %v1712 = vunpack.c.l.b16 %v665
      %v1713 = vunpack.c.h.b16 %v665
      %v1714 = vunpack.c.l.b16 %v666
      %v1715 = vunpack.c.h.b16 %v666
      %v1716 = vunpack.c.l.b16 %v667
      %v1717 = vunpack.c.h.b16 %v667
      %v1718 = vunpack.c.l.b16 %v668
      %v1719 = vunpack.c.h.b16 %v668
      %v1720 = vunpack.c.l.b16 %v669
      %v1721 = vunpack.c.h.b16 %v669
      %v1722 = vunpack.c.l.b16 %v670
      %v1723 = vunpack.c.h.b16 %v670
      %v1724 = vunpack.c.l.b16 %v671
      %v1725 = vunpack.c.h.b16 %v671
      %v1726 = vunpack.c.l.b16 %v672
      %v1727 = vunpack.c.h.b16 %v672
      %v1728 = vunpack.c.l.b16 %v673
      %v1729 = vunpack.c.h.b16 %v673
      %v1730 = vunpack.c.l.b16 %v674
      %v1731 = vunpack.c.h.b16 %v674
      %v1732 = vunpack.c.l.b16 %v675
      %v1733 = vunpack.c.h.b16 %v675
      %v1734 = vunpack.c.l.b16 %v676
      %v1735 = vunpack.c.h.b16 %v676
      %v1736 = vunpack.c.l.b16 %v677
      %v1737 = vunpack.c.h.b16 %v677
      %v1738 = vunpack.c.l.b16 %v678
      %v1739 = vunpack.c.h.b16 %v678
      %v1740 = vunpack.c.l.b16 %v679
      %v1741 = vunpack.c.h.b16 %v679
      %v1742 = vunpack.c.l.b16 %v680
      %v1743 = vunpack.c.h.b16 %v680
      %v1744 = vunpack.c.l.b16 %v681
      %v1745 = vunpack.c.h.b16 %v681
      %v1746 = vunpack.c.l.b16 %v682
      %v1747 = vunpack.c.h.b16 %v682
      %v1748 = vunpack.c.l.b16 %v683
      %v1749 = vunpack.c.h.b16 %v683
      %v1750 = vunpack.c.l.b16 %v684
      %v1751 = vunpack.c.h.b16 %v684
      %v1752 = vunpack.c.l.b16 %v685
      %v1753 = vunpack.c.h.b16 %v685
      %v1754 = vunpack.c.l.b16 %v686
      %v1755 = vunpack.c.h.b16 %v686
      %v1756 = vunpack.c.l.b16 %v687
      %v1757 = vunpack.c.h.b16 %v687
      %v1758 = vunpack.c.l.b16 %v688
      %v1759 = vunpack.c.h.b16 %v688
      %v1760 = vunpack.c.l.b16 %v689
      %v1761 = vunpack.c.h.b16 %v689
      %v1762 = vunpack.c.l.b16 %v690
      %v1763 = vunpack.c.h.b16 %v690
      %v1764 = vunpack.c.l.b16 %v691
      %v1765 = vunpack.c.h.b16 %v691
      %v1766 = vunpack.c.l.b16 %v692
      %v1767 = vunpack.c.h.b16 %v692
      %v1768 = vunpack.c.l.b16 %v693
      %v1769 = vunpack.c.h.b16 %v693
      %v1770 = vunpack.c.l.b16 %v694
      %v1771 = vunpack.c.h.b16 %v694
      %v1772 = vunpack.c.l.b16 %v695
      %v1773 = vunpack.c.h.b16 %v695
      %v1774 = vunpack.c.l.b16 %v696
      %v1775 = vunpack.c.h.b16 %v696
      %v1776 = vunpack.c.l.b16 %v697
      %v1777 = vunpack.c.h.b16 %v697
      %v1778 = vunpack.c.l.b16 %v698
      %v1779 = vunpack.c.h.b16 %v698
      %v1780 = vunpack.c.l.b16 %v699
      %v1781 = vunpack.c.h.b16 %v699
      %v1782 = vunpack.c.l.b16 %v700
      %v1783 = vunpack.c.h.b16 %v700
      %v1784 = vunpack.c.l.b16 %v701
      %v1785 = vunpack.c.h.b16 %v701
      %v1786 = vunpack.c.l.b16 %v702
      %v1787 = vunpack.c.h.b16 %v702
      %v1788 = vunpack.c.l.b16 %v703
      %v1789 = vunpack.c.h.b16 %v703
      %v1790 = vunpack.c.l.b16 %v704
      %v1791 = vunpack.c.h.b16 %v704
      %v1792 = vunpack.c.l.b16 %v705
      %v1793 = vunpack.c.h.b16 %v705
      %v1794 = vunpack.c.l.b16 %v706
      %v1795 = vunpack.c.h.b16 %v706
      %v1796 = vunpack.c.l.b16 %v707
      %v1797 = vunpack.c.h.b16 %v707
      %v1798 = vunpack.c.l.b16 %v708
      %v1799 = vunpack.c.h.b16 %v708
      %v1800 = vunpack.c.l.b16 %v709
      %v1801 = vunpack.c.h.b16 %v709
      %v1802 = vunpack.c.l.b16 %v710
      %v1803 = vunpack.c.h.b16 %v710
      %v1804 = vunpack.c.l.b16 %v711
      %v1805 = vunpack.c.h.b16 %v711
      %v1806 = vunpack.c.l.b16 %v712
      %v1807 = vunpack.c.h.b16 %v712
      %v1808 = vunpack.c.l.b16 %v713
      %v1809 = vunpack.c.h.b16 %v713
      %v1810 = vunpack.c.l.b16 %v714
      %v1811 = vunpack.c.h.b16 %v714
      %v1812 = vunpack.c.l.b16 %v715
      %v1813 = vunpack.c.h.b16 %v715
      %v1814 = vunpack.c.l.b16 %v716
      %v1815 = vunpack.c.h.b16 %v716
      %v1816 = vunpack.c.l.b16 %v717
      %v1817 = vunpack.c.h.b16 %v717
      %v1818 = vunpack.c.l.b16 %v718
      %v1819 = vunpack.c.h.b16 %v718
      %v1820 = vunpack.c.l.b16 %v719
      %v1821 = vunpack.c.h.b16 %v719
      %v1822 = vunpack.c.l.b16 %v720
      %v1823 = vunpack.c.h.b16 %v720
      %v1824 = vunpack.c.l.b16 %v721
      %v1825 = vunpack.c.h.b16 %v721
      %v1826 = vunpack.c.l.b16 %v722
      %v1827 = vunpack.c.h.b16 %v722
      %v1828 = vunpack.c.l.b16 %v723
      %v1829 = vunpack.c.h.b16 %v723
      %v1830 = vunpack.c.l.b16 %v724
      %v1831 = vunpack.c.h.b16 %v724
      %v1832 = vunpack.c.l.b16 %v725
      %v1833 = vunpack.c.h.b16 %v725
      %v1834 = vunpack.c.l.b16 %v726
      %v1835 = vunpack.c.h.b16 %v726
      %v1836 = vunpack.c.l.b16 %v727
      %v1837 = vunpack.c.h.b16 %v727
      %v1838 = vunpack.c.l.b16 %v728
      %v1839 = vunpack.c.h.b16 %v728
      %v1840 = vunpack.c.l.b16 %v729
      %v1841 = vunpack.c.h.b16 %v729
      %v1842 = vunpack.c.l.b16 %v730
      %v1843 = vunpack.c.h.b16 %v730
      %v1844 = vunpack.c.l.b16 %v731
      %v1845 = vunpack.c.h.b16 %v731
      %v1846 = vunpack.c.l.b16 %v732
      %v1847 = vunpack.c.h.b16 %v732
      %v1848 = vunpack.c.l.b16 %v733
      %v1849 = vunpack.c.h.b16 %v733
      %v1850 = vunpack.c.l.b16 %v734
      %v1851 = vunpack.c.h.b16 %v734
      %v1852 = vunpack.c.l.b16 %v735
      %v1853 = vunpack.c.h.b16 %v735
      %v1854 = vunpack.c.l.b16 %v736
      %v1855 = vunpack.c.h.b16 %v736
      %v1856 = vunpack.c.l.b16 %v737
      %v1857 = vunpack.c.h.b16 %v737
      %v1858 = vunpack.c.l.b16 %v738
      %v1859 = vunpack.c.h.b16 %v738
      %v1860 = vunpack.c.l.b16 %v739
      %v1861 = vunpack.c.h.b16 %v739
      %v1862 = vunpack.c.l.b16 %v740
      %v1863 = vunpack.c.h.b16 %v740
      %v1864 = vunpack.c.l.b16 %v741
      %v1865 = vunpack.c.h.b16 %v741
      %v1866 = vunpack.c.l.b16 %v742
      %v1867 = vunpack.c.h.b16 %v742
      %v1868 = vunpack.c.l.b16 %v743
      %v1869 = vunpack.c.h.b16 %v743
      %v1870 = vunpack.c.l.b16 %v744
      %v1871 = vunpack.c.h.b16 %v744
      %v1872 = vunpack.c.l.b16 %v745
      %v1873 = vunpack.c.h.b16 %v745
      %v1874 = vunpack.c.l.b16 %v746
      %v1875 = vunpack.c.h.b16 %v746
      %v1876 = vunpack.c.l.b16 %v747
      %v1877 = vunpack.c.h.b16 %v747
      %v1878 = vunpack.c.l.b16 %v748
      %v1879 = vunpack.c.h.b16 %v748
      %v1880 = vunpack.c.l.b16 %v749
      %v1881 = vunpack.c.h.b16 %v749
      %v1882 = vunpack.c.l.b16 %v750
      %v1883 = vunpack.c.h.b16 %v750
      %v1884 = vunpack.c.l.b16 %v751
      %v1885 = vunpack.c.h.b16 %v751
      %v1886 = vunpack.c.l.b16 %v752
      %v1887 = vunpack.c.h.b16 %v752
      %v1888 = vunpack.c.l.b16 %v753
      %v1889 = vunpack.c.h.b16 %v753
      %v1890 = vunpack.c.l.b16 %v754
      %v1891 = vunpack.c.h.b16 %v754
      %v1892 = vunpack.c.l.b16 %v755
      %v1893 = vunpack.c.h.b16 %v755
      %v1894 = vunpack.c.l.b16 %v756
      %v1895 = vunpack.c.h.b16 %v756
      %v1896 = vunpack.c.l.b16 %v757
      %v1897 = vunpack.c.h.b16 %v757
      %v1898 = vunpack.c.l.b16 %v758
      %v1899 = vunpack.c.h.b16 %v758
      %v1900 = vunpack.c.l.b16 %v759
      %v1901 = vunpack.c.h.b16 %v759
      %v1902 = vunpack.c.l.b16 %v760
      %v1903 = vunpack.c.h.b16 %v760
      %v1904 = vunpack.c.l.b16 %v761
      %v1905 = vunpack.c.h.b16 %v761
      %v1906 = vunpack.c.l.b16 %v762
      %v1907 = vunpack.c.h.b16 %v762
      %v1908 = vunpack.c.l.b16 %v763
      %v1909 = vunpack.c.h.b16 %v763
      %v1910 = vunpack.c.l.b16 %v764
      %v1911 = vunpack.c.h.b16 %v764
      %v1912 = vunpack.c.l.b16 %v765
      %v1913 = vunpack.c.h.b16 %v765
      %v1914 = vunpack.c.l.b16 %v766
      %v1915 = vunpack.c.h.b16 %v766
      %v1916 = vunpack.c.l.b16 %v767
      %v1917 = vunpack.c.h.b16 %v767
      %v1918 = vunpack.c.l.b16 %v768
      %v1919 = vunpack.c.h.b16 %v768
      %v1920 = vunpack.c.l.b16 %v769
      %v1921 = vunpack.c.h.b16 %v769
      %v1922 = vunpack.c.l.b16 %v770
      %v1923 = vunpack.c.h.b16 %v770
      %v1924 = vunpack.c.l.b16 %v771
      %v1925 = vunpack.c.h.b16 %v771
      %v1926 = vunpack.c.l.b16 %v772
      %v1927 = vunpack.c.h.b16 %v772
      %v1928 = vunpack.c.l.b16 %v773
      %v1929 = vunpack.c.h.b16 %v773
      %v1930 = vunpack.c.l.b16 %v774
      %v1931 = vunpack.c.h.b16 %v774
      %v1932 = vunpack.c.l.b16 %v775
      %v1933 = vunpack.c.h.b16 %v775
      %v1934 = vunpack.c.l.b16 %v776
      %v1935 = vunpack.c.h.b16 %v776
      %v1936 = vunpack.c.l.b16 %v777
      %v1937 = vunpack.c.h.b16 %v777
      %v1938 = vunpack.c.l.b16 %v778
      %v1939 = vunpack.c.h.b16 %v778
      %v1940 = vunpack.c.l.b16 %v779
      %v1941 = vunpack.c.h.b16 %v779
      %v1942 = vunpack.c.l.b16 %v780
      %v1943 = vunpack.c.h.b16 %v780
      %v1944 = vunpack.c.l.b16 %v781
      %v1945 = vunpack.c.h.b16 %v781
      %v1946 = vunpack.c.l.b16 %v782
      %v1947 = vunpack.c.h.b16 %v782
      %v1948 = vunpack.c.l.b16 %v783
      %v1949 = vunpack.c.h.b16 %v783
      %v1950 = vunpack.c.l.b16 %v784
      %v1951 = vunpack.c.h.b16 %v784
      %v1952 = vunpack.c.l.b16 %v785
      %v1953 = vunpack.c.h.b16 %v785
      %v1954 = vunpack.c.l.b16 %v786
      %v1955 = vunpack.c.h.b16 %v786
      %v1956 = vunpack.c.l.b16 %v787
      %v1957 = vunpack.c.h.b16 %v787
      %v1958 = vunpack.c.l.b16 %v788
      %v1959 = vunpack.c.h.b16 %v788
      %v1960 = vunpack.c.l.b16 %v789
      %v1961 = vunpack.c.h.b16 %v789
      %v1962 = vunpack.c.l.b16 %v790
      %v1963 = vunpack.c.h.b16 %v790
      %v1964 = vunpack.c.l.b16 %v791
      %v1965 = vunpack.c.h.b16 %v791
      %v1966 = vunpack.c.l.b16 %v792
      %v1967 = vunpack.c.h.b16 %v792
      %v1968 = vunpack.c.l.b16 %v793
      %v1969 = vunpack.c.h.b16 %v793
      %v1970 = vunpack.c.l.b16 %v794
      %v1971 = vunpack.c.h.b16 %v794
      %v1972 = vunpack.c.l.b16 %v795
      %v1973 = vunpack.c.h.b16 %v795
      %v1974 = vunpack.c.l.b16 %v796
      %v1975 = vunpack.c.h.b16 %v796
      %v1976 = vunpack.c.l.b16 %v797
      %v1977 = vunpack.c.h.b16 %v797
      %v1978 = vunpack.c.l.b16 %v798
      %v1979 = vunpack.c.h.b16 %v798
      %v1980 = vunpack.c.l.b16 %v799
      %v1981 = vunpack.c.h.b16 %v799
      %v1982 = vunpack.c.l.b16 %v800
      %v1983 = vunpack.c.h.b16 %v800
      %v1984 = vunpack.c.l.b16 %v801
      %v1985 = vunpack.c.h.b16 %v801
      %v1986 = vunpack.c.l.b16 %v802
      %v1987 = vunpack.c.h.b16 %v802
      %v1988 = vunpack.c.l.b16 %v803
      %v1989 = vunpack.c.h.b16 %v803
      %v1990 = vunpack.c.l.b16 %v804
      %v1991 = vunpack.c.h.b16 %v804
      %v1992 = vunpack.c.l.b16 %v805
      %v1993 = vunpack.c.h.b16 %v805
      %v1994 = vunpack.c.l.b16 %v806
      %v1995 = vunpack.c.h.b16 %v806
      %v1996 = vunpack.c.l.b16 %v807
      %v1997 = vunpack.c.h.b16 %v807
      %v1998 = vunpack.c.l.b16 %v808
      %v1999 = vunpack.c.h.b16 %v808
      %v2000 = vunpack.c.l.b16 %v809
      %v2001 = vunpack.c.h.b16 %v809
      %v2002 = vunpack.c.l.b16 %v810
      %v2003 = vunpack.c.h.b16 %v810
      %v2004 = vunpack.c.l.b16 %v811
      %v2005 = vunpack.c.h.b16 %v811
      %v2006 = vunpack.c.l.b16 %v812
      %v2007 = vunpack.c.h.b16 %v812
      %v2008 = vunpack.c.l.b16 %v813
      %v2009 = vunpack.c.h.b16 %v813
      %v2010 = vunpack.c.l.b16 %v814
      %v2011 = vunpack.c.h.b16 %v814
      %v2012 = vunpack.c.l.b16 %v815
      %v2013 = vunpack.c.h.b16 %v815
      %v2014 = vunpack.c.l.b16 %v816
      %v2015 = vunpack.c.h.b16 %v816
      %v2016 = vunpack.c.l.b16 %v817
      %v2017 = vunpack.c.h.b16 %v817
      %v2018 = vunpack.c.l.b16 %v818
      %v2019 = vunpack.c.h.b16 %v818
      %v2020 = vunpack.c.l.b16 %v819
      %v2021 = vunpack.c.h.b16 %v819
      %v2022 = vunpack.c.l.b16 %v820
      %v2023 = vunpack.c.h.b16 %v820
      %v2024 = vunpack.c.l.b16 %v821
      %v2025 = vunpack.c.h.b16 %v821
      %v2026 = vunpack.c.l.b16 %v822
      %v2027 = vunpack.c.h.b16 %v822
      %v2028 = vunpack.c.l.b16 %v823
      %v2029 = vunpack.c.h.b16 %v823
      %v2030 = vunpack.c.l.b16 %v824
      %v2031 = vunpack.c.h.b16 %v824
      %v2032 = vunpack.c.l.b16 %v825
      %v2033 = vunpack.c.h.b16 %v825
      %v2034 = vunpack.c.l.b16 %v826
      %v2035 = vunpack.c.h.b16 %v826
      %v2036 = vunpack.c.l.b16 %v827
      %v2037 = vunpack.c.h.b16 %v827
      %v2038 = vunpack.c.l.b16 %v828
      %v2039 = vunpack.c.h.b16 %v828
      %v2040 = vunpack.c.l.b16 %v829
      %v2041 = vunpack.c.h.b16 %v829
      %v2042 = vunpack.c.l.b16 %v830
      %v2043 = vunpack.c.h.b16 %v830
      %v2044 = vunpack.c.l.b16 %v831
      %v2045 = vunpack.c.h.b16 %v831
      %v2046 = vunpack.c.l.b16 %v832
      %v2047 = vunpack.c.h.b16 %v832
      %v2048 = vunpack.c.l.b16 %v833
      %v2049 = vunpack.c.h.b16 %v833
      %v2050 = vpack.c.b16 %v1294, %v1282
      %v2051 = vpack.c.b16 %v1295, %v1283
      %v2052 = vpack.c.b16 %v1296, %v1284
      %v2053 = vpack.c.b16 %v1297, %v1285
      %v2054 = vpack.c.b16 %v1298, %v1286
      %v2055 = vpack.c.b16 %v1299, %v1287
      %v2056 = vpack.c.b16 %v1300, %v1288
      %v2057 = vpack.c.b16 %v1301, %v1289
      %v2058 = vpack.c.b16 %v1302, %v1290
      %v2059 = vpack.c.b16 %v1303, %v1291
      %v2060 = vpack.c.b16 %v1304, %v1292
      %v2061 = vpack.c.b16 %v1305, %v1293
      %v2062 = vpack.c.b16 %v1318, %v1306
      %v2063 = vpack.c.b16 %v1319, %v1307
      %v2064 = vpack.c.b16 %v1320, %v1308
      %v2065 = vpack.c.b16 %v1321, %v1309
      %v2066 = vpack.c.b16 %v1322, %v1310
      %v2067 = vpack.c.b16 %v1323, %v1311
      %v2068 = vpack.c.b16 %v1324, %v1312
      %v2069 = vpack.c.b16 %v1325, %v1313
      %v2070 = vpack.c.b16 %v1326, %v1314
      %v2071 = vpack.c.b16 %v1327, %v1315
      %v2072 = vpack.c.b16 %v1328, %v1316
      %v2073 = vpack.c.b16 %v1329, %v1317
      %v2074 = vpack.c.b16 %v1342, %v1330
      %v2075 = vpack.c.b16 %v1343, %v1331
      %v2076 = vpack.c.b16 %v1344, %v1332
      %v2077 = vpack.c.b16 %v1345, %v1333
      %v2078 = vpack.c.b16 %v1346, %v1334
      %v2079 = vpack.c.b16 %v1347, %v1335
      %v2080 = vpack.c.b16 %v1348, %v1336
      %v2081 = vpack.c.b16 %v1349, %v1337
      %v2082 = vpack.c.b16 %v1350, %v1338
      %v2083 = vpack.c.b16 %v1351, %v1339
      %v2084 = vpack.c.b16 %v1352, %v1340
      %v2085 = vpack.c.b16 %v1353, %v1341
      %v2086 = vpack.c.b16 %v1366, %v1354
      %v2087 = vpack.c.b16 %v1367, %v1355
      %v2088 = vpack.c.b16 %v1368, %v1356
      %v2089 = vpack.c.b16 %v1369, %v1357
      %v2090 = vpack.c.b16 %v1370, %v1358
      %v2091 = vpack.c.b16 %v1371, %v1359
      %v2092 = vpack.c.b16 %v1372, %v1360
      %v2093 = vpack.c.b16 %v1373, %v1361
      %v2094 = vpack.c.b16 %v1374, %v1362
      %v2095 = vpack.c.b16 %v1375, %v1363
      %v2096 = vpack.c.b16 %v1376, %v1364
      %v2097 = vpack.c.b16 %v1377, %v1365
      %v2098 = vpack.c.b16 %v1390, %v1378
      %v2099 = vpack.c.b16 %v1391, %v1379
      %v2100 = vpack.c.b16 %v1392, %v1380
      %v2101 = vpack.c.b16 %v1393, %v1381
      %v2102 = vpack.c.b16 %v1394, %v1382
      %v2103 = vpack.c.b16 %v1395, %v1383
      %v2104 = vpack.c.b16 %v1396, %v1384
      %v2105 = vpack.c.b16 %v1397, %v1385
      %v2106 = vpack.c.b16 %v1398, %v1386
      %v2107 = vpack.c.b16 %v1399, %v1387
      %v2108 = vpack.c.b16 %v1400, %v1388
      %v2109 = vpack.c.b16 %v1401, %v1389
      %v2110 = vpack.c.b16 %v1414, %v1402
      %v2111 = vpack.c.b16 %v1415, %v1403
      %v2112 = vpack.c.b16 %v1416, %v1404
      %v2113 = vpack.c.b16 %v1417, %v1405
      %v2114 = vpack.c.b16 %v1418, %v1406
      %v2115 = vpack.c.b16 %v1419, %v1407
      %v2116 = vpack.c.b16 %v1420, %v1408
      %v2117 = vpack.c.b16 %v1421, %v1409
      %v2118 = vpack.c.b16 %v1422, %v1410
      %v2119 = vpack.c.b16 %v1423, %v1411
      %v2120 = vpack.c.b16 %v1424, %v1412
      %v2121 = vpack.c.b16 %v1425, %v1413
      %v2122 = vpack.c.b16 %v1438, %v1426
      %v2123 = vpack.c.b16 %v1439, %v1427
      %v2124 = vpack.c.b16 %v1440, %v1428
      %v2125 = vpack.c.b16 %v1441, %v1429
      %v2126 = vpack.c.b16 %v1442, %v1430
      %v2127 = vpack.c.b16 %v1443, %v1431
      %v2128 = vpack.c.b16 %v1444, %v1432
      %v2129 = vpack.c.b16 %v1445, %v1433
      %v2130 = vpack.c.b16 %v1446, %v1434
      %v2131 = vpack.c.b16 %v1447, %v1435
      %v2132 = vpack.c.b16 %v1448, %v1436
      %v2133 = vpack.c.b16 %v1449, %v1437
      %v2134 = vpack.c.b16 %v1462, %v1450
      %v2135 = vpack.c.b16 %v1463, %v1451
      %v2136 = vpack.c.b16 %v1464, %v1452
      %v2137 = vpack.c.b16 %v1465, %v1453
      %v2138 = vpack.c.b16 %v1466, %v1454
      %v2139 = vpack.c.b16 %v1467, %v1455
      %v2140 = vpack.c.b16 %v1468, %v1456
      %v2141 = vpack.c.b16 %v1469, %v1457
      %v2142 = vpack.c.b16 %v1470, %v1458
      %v2143 = vpack.c.b16 %v1471, %v1459
      %v2144 = vpack.c.b16 %v1472, %v1460
      %v2145 = vpack.c.b16 %v1473, %v1461
      %v2146 = vpack.c.b16 %v1486, %v1474
      %v2147 = vpack.c.b16 %v1487, %v1475
      %v2148 = vpack.c.b16 %v1488, %v1476
      %v2149 = vpack.c.b16 %v1489, %v1477
      %v2150 = vpack.c.b16 %v1490, %v1478
      %v2151 = vpack.c.b16 %v1491, %v1479
      %v2152 = vpack.c.b16 %v1492, %v1480
      %v2153 = vpack.c.b16 %v1493, %v1481
      %v2154 = vpack.c.b16 %v1494, %v1482
      %v2155 = vpack.c.b16 %v1495, %v1483
      %v2156 = vpack.c.b16 %v1496, %v1484
      %v2157 = vpack.c.b16 %v1497, %v1485
      %v2158 = vpack.c.b16 %v1510, %v1498
      %v2159 = vpack.c.b16 %v1511, %v1499
      %v2160 = vpack.c.b16 %v1512, %v1500
      %v2161 = vpack.c.b16 %v1513, %v1501
      %v2162 = vpack.c.b16 %v1514, %v1502
      %v2163 = vpack.c.b16 %v1515, %v1503
      %v2164 = vpack.c.b16 %v1516, %v1504
      %v2165 = vpack.c.b16 %v1517, %v1505
      %v2166 = vpack.c.b16 %v1518, %v1506
      %v2167 = vpack.c.b16 %v1519, %v1507
      %v2168 = vpack.c.b16 %v1520, %v1508
      %v2169 = vpack.c.b16 %v1521, %v1509
      %v2170 = vpack.c.b16 %v1534, %v1522
      %v2171 = vpack.c.b16 %v1535, %v1523
      %v2172 = vpack.c.b16 %v1536, %v1524
      %v2173 = vpack.c.b16 %v1537, %v1525
      %v2174 = vpack.c.b16 %v1538, %v1526
      %v2175 = vpack.c.b16 %v1539, %v1527
      %v2176 = vpack.c.b16 %v1540, %v1528
      %v2177 = vpack.c.b16 %v1541, %v1529
      %v2178 = vpack.c.b16 %v1542, %v1530
      %v2179 = vpack.c.b16 %v1543, %v1531
      %v2180 = vpack.c.b16 %v1544, %v1532
      %v2181 = vpack.c.b16 %v1545, %v1533
      %v2182 = vpack.c.b16 %v1558, %v1546
      %v2183 = vpack.c.b16 %v1559, %v1547
      %v2184 = vpack.c.b16 %v1560, %v1548
      %v2185 = vpack.c.b16 %v1561, %v1549
      %v2186 = vpack.c.b16 %v1562, %v1550
      %v2187 = vpack.c.b16 %v1563, %v1551
      %v2188 = vpack.c.b16 %v1564, %v1552
      %v2189 = vpack.c.b16 %v1565, %v1553
      %v2190 = vpack.c.b16 %v1566, %v1554
      %v2191 = vpack.c.b16 %v1567, %v1555
      %v2192 = vpack.c.b16 %v1568, %v1556
      %v2193 = vpack.c.b16 %v1569, %v1557
      %v2194 = vpack.c.b16 %v1582, %v1570
      %v2195 = vpack.c.b16 %v1583, %v1571
      %v2196 = vpack.c.b16 %v1584, %v1572
      %v2197 = vpack.c.b16 %v1585, %v1573
      %v2198 = vpack.c.b16 %v1586, %v1574
      %v2199 = vpack.c.b16 %v1587, %v1575
      %v2200 = vpack.c.b16 %v1588, %v1576
      %v2201 = vpack.c.b16 %v1589, %v1577
      %v2202 = vpack.c.b16 %v1590, %v1578
      %v2203 = vpack.c.b16 %v1591, %v1579
      %v2204 = vpack.c.b16 %v1592, %v1580
      %v2205 = vpack.c.b16 %v1593, %v1581
      %v2206 = vpack.c.b16 %v1606, %v1594
      %v2207 = vpack.c.b16 %v1607, %v1595
      %v2208 = vpack.c.b16 %v1608, %v1596
      %v2209 = vpack.c.b16 %v1609, %v1597
      %v2210 = vpack.c.b16 %v1610, %v1598
      %v2211 = vpack.c.b16 %v1611, %v1599
      %v2212 = vpack.c.b16 %v1612, %v1600
      %v2213 = vpack.c.b16 %v1613, %v1601
      %v2214 = vpack.c.b16 %v1614, %v1602
      %v2215 = vpack.c.b16 %v1615, %v1603
      %v2216 = vpack.c.b16 %v1616, %v1604
      %v2217 = vpack.c.b16 %v1617, %v1605
      %v2218 = vpack.c.b16 %v1630, %v1618
      %v2219 = vpack.c.b16 %v1631, %v1619
      %v2220 = vpack.c.b16 %v1632, %v1620
      %v2221 = vpack.c.b16 %v1633, %v1621
      %v2222 = vpack.c.b16 %v1634, %v1622
      %v2223 = vpack.c.b16 %v1635, %v1623
      %v2224 = vpack.c.b16 %v1636, %v1624
      %v2225 = vpack.c.b16 %v1637, %v1625
      %v2226 = vpack.c.b16 %v1638, %v1626
      %v2227 = vpack.c.b16 %v1639, %v1627
      %v2228 = vpack.c.b16 %v1640, %v1628
      %v2229 = vpack.c.b16 %v1641, %v1629
      %v2230 = vpack.c.b16 %v1654, %v1642
      %v2231 = vpack.c.b16 %v1655, %v1643
      %v2232 = vpack.c.b16 %v1656, %v1644
      %v2233 = vpack.c.b16 %v1657, %v1645
      %v2234 = vpack.c.b16 %v1658, %v1646
      %v2235 = vpack.c.b16 %v1659, %v1647
      %v2236 = vpack.c.b16 %v1660, %v1648
      %v2237 = vpack.c.b16 %v1661, %v1649
      %v2238 = vpack.c.b16 %v1662, %v1650
      %v2239 = vpack.c.b16 %v1663, %v1651
      %v2240 = vpack.c.b16 %v1664, %v1652
      %v2241 = vpack.c.b16 %v1665, %v1653
      %v2242 = vpack.c.b16 %v1678, %v1666
      %v2243 = vpack.c.b16 %v1679, %v1667
      %v2244 = vpack.c.b16 %v1680, %v1668
      %v2245 = vpack.c.b16 %v1681, %v1669
      %v2246 = vpack.c.b16 %v1682, %v1670
      %v2247 = vpack.c.b16 %v1683, %v1671
      %v2248 = vpack.c.b16 %v1684, %v1672
      %v2249 = vpack.c.b16 %v1685, %v1673
      %v2250 = vpack.c.b16 %v1686, %v1674
      %v2251 = vpack.c.b16 %v1687, %v1675
      %v2252 = vpack.c.b16 %v1688, %v1676
      %v2253 = vpack.c.b16 %v1689, %v1677
      %v2254 = vpack.c.b16 %v1702, %v1690
      %v2255 = vpack.c.b16 %v1703, %v1691
      %v2256 = vpack.c.b16 %v1704, %v1692
      %v2257 = vpack.c.b16 %v1705, %v1693
      %v2258 = vpack.c.b16 %v1706, %v1694
      %v2259 = vpack.c.b16 %v1707, %v1695
      %v2260 = vpack.c.b16 %v1708, %v1696
      %v2261 = vpack.c.b16 %v1709, %v1697
      %v2262 = vpack.c.b16 %v1710, %v1698
      %v2263 = vpack.c.b16 %v1711, %v1699
      %v2264 = vpack.c.b16 %v1712, %v1700
      %v2265 = vpack.c.b16 %v1713, %v1701
      %v2266 = vpack.c.b16 %v1726, %v1714
      %v2267 = vpack.c.b16 %v1727, %v1715
      %v2268 = vpack.c.b16 %v1728, %v1716
      %v2269 = vpack.c.b16 %v1729, %v1717
      %v2270 = vpack.c.b16 %v1730, %v1718
      %v2271 = vpack.c.b16 %v1731, %v1719
      %v2272 = vpack.c.b16 %v1732, %v1720
      %v2273 = vpack.c.b16 %v1733, %v1721
      %v2274 = vpack.c.b16 %v1734, %v1722
      %v2275 = vpack.c.b16 %v1735, %v1723
      %v2276 = vpack.c.b16 %v1736, %v1724
      %v2277 = vpack.c.b16 %v1737, %v1725
      %v2278 = vpack.c.b16 %v1750, %v1738
      %v2279 = vpack.c.b16 %v1751, %v1739
      %v2280 = vpack.c.b16 %v1752, %v1740
      %v2281 = vpack.c.b16 %v1753, %v1741
      %v2282 = vpack.c.b16 %v1754, %v1742
      %v2283 = vpack.c.b16 %v1755, %v1743
      %v2284 = vpack.c.b16 %v1756, %v1744
      %v2285 = vpack.c.b16 %v1757, %v1745
      %v2286 = vpack.c.b16 %v1758, %v1746
      %v2287 = vpack.c.b16 %v1759, %v1747
      %v2288 = vpack.c.b16 %v1760, %v1748
      %v2289 = vpack.c.b16 %v1761, %v1749
      %v2290 = vpack.c.b16 %v1774, %v1762
      %v2291 = vpack.c.b16 %v1775, %v1763
      %v2292 = vpack.c.b16 %v1776, %v1764
      %v2293 = vpack.c.b16 %v1777, %v1765
      %v2294 = vpack.c.b16 %v1778, %v1766
      %v2295 = vpack.c.b16 %v1779, %v1767
      %v2296 = vpack.c.b16 %v1780, %v1768
      %v2297 = vpack.c.b16 %v1781, %v1769
      %v2298 = vpack.c.b16 %v1782, %v1770
      %v2299 = vpack.c.b16 %v1783, %v1771
      %v2300 = vpack.c.b16 %v1784, %v1772
      %v2301 = vpack.c.b16 %v1785, %v1773
      %v2302 = vpack.c.b16 %v1798, %v1786
      %v2303 = vpack.c.b16 %v1799, %v1787
      %v2304 = vpack.c.b16 %v1800, %v1788
      %v2305 = vpack.c.b16 %v1801, %v1789
      %v2306 = vpack.c.b16 %v1802, %v1790
      %v2307 = vpack.c.b16 %v1803, %v1791
      %v2308 = vpack.c.b16 %v1804, %v1792
      %v2309 = vpack.c.b16 %v1805, %v1793
      %v2310 = vpack.c.b16 %v1806, %v1794
      %v2311 = vpack.c.b16 %v1807, %v1795
      %v2312 = vpack.c.b16 %v1808, %v1796
      %v2313 = vpack.c.b16 %v1809, %v1797
      %v2314 = vpack.c.b16 %v1822, %v1810
      %v2315 = vpack.c.b16 %v1823, %v1811
      %v2316 = vpack.c.b16 %v1824, %v1812
      %v2317 = vpack.c.b16 %v1825, %v1813
      %v2318 = vpack.c.b16 %v1826, %v1814
      %v2319 = vpack.c.b16 %v1827, %v1815
      %v2320 = vpack.c.b16 %v1828, %v1816
      %v2321 = vpack.c.b16 %v1829, %v1817
      %v2322 = vpack.c.b16 %v1830, %v1818
      %v2323 = vpack.c.b16 %v1831, %v1819
      %v2324 = vpack.c.b16 %v1832, %v1820
      %v2325 = vpack.c.b16 %v1833, %v1821
      %v2326 = vpack.c.b16 %v1846, %v1834
      %v2327 = vpack.c.b16 %v1847, %v1835
      %v2328 = vpack.c.b16 %v1848, %v1836
      %v2329 = vpack.c.b16 %v1849, %v1837
      %v2330 = vpack.c.b16 %v1850, %v1838
      %v2331 = vpack.c.b16 %v1851, %v1839
      %v2332 = vpack.c.b16 %v1852, %v1840
      %v2333 = vpack.c.b16 %v1853, %v1841
      %v2334 = vpack.c.b16 %v1854, %v1842
      %v2335 = vpack.c.b16 %v1855, %v1843
      %v2336 = vpack.c.b16 %v1856, %v1844
      %v2337 = vpack.c.b16 %v1857, %v1845
      %v2338 = vpack.c.b16 %v1870, %v1858
      %v2339 = vpack.c.b16 %v1871, %v1859
      %v2340 = vpack.c.b16 %v1872, %v1860
      %v2341 = vpack.c.b16 %v1873, %v1861
      %v2342 = vpack.c.b16 %v1874, %v1862
      %v2343 = vpack.c.b16 %v1875, %v1863
      %v2344 = vpack.c.b16 %v1876, %v1864
      %v2345 = vpack.c.b16 %v1877, %v1865
      %v2346 = vpack.c.b16 %v1878, %v1866
      %v2347 = vpack.c.b16 %v1879, %v1867
      %v2348 = vpack.c.b16 %v1880, %v1868
      %v2349 = vpack.c.b16 %v1881, %v1869
      %v2350 = vpack.c.b16 %v1894, %v1882
      %v2351 = vpack.c.b16 %v1895, %v1883
      %v2352 = vpack.c.b16 %v1896, %v1884
      %v2353 = vpack.c.b16 %v1897, %v1885
      %v2354 = vpack.c.b16 %v1898, %v1886
      %v2355 = vpack.c.b16 %v1899, %v1887
      %v2356 = vpack.c.b16 %v1900, %v1888
      %v2357 = vpack.c.b16 %v1901, %v1889
      %v2358 = vpack.c.b16 %v1902, %v1890
      %v2359 = vpack.c.b16 %v1903, %v1891
      %v2360 = vpack.c.b16 %v1904, %v1892
      %v2361 = vpack.c.b16 %v1905, %v1893
      %v2362 = vpack.c.b16 %v1918, %v1906
      %v2363 = vpack.c.b16 %v1919, %v1907
      %v2364 = vpack.c.b16 %v1920, %v1908
      %v2365 = vpack.c.b16 %v1921, %v1909
      %v2366 = vpack.c.b16 %v1922, %v1910
      %v2367 = vpack.c.b16 %v1923, %v1911
      %v2368 = vpack.c.b16 %v1924, %v1912
      %v2369 = vpack.c.b16 %v1925, %v1913
      %v2370 = vpack.c.b16 %v1926, %v1914
      %v2371 = vpack.c.b16 %v1927, %v1915
      %v2372 = vpack.c.b16 %v1928, %v1916
      %v2373 = vpack.c.b16 %v1929, %v1917
      %v2374 = vpack.c.b16 %v1942, %v1930
      %v2375 = vpack.c.b16 %v1943, %v1931
      %v2376 = vpack.c.b16 %v1944, %v1932
      %v2377 = vpack.c.b16 %v1945, %v1933
      %v2378 = vpack.c.b16 %v1946, %v1934
      %v2379 = vpack.c.b16 %v1947, %v1935
      %v2380 = vpack.c.b16 %v1948, %v1936
      %v2381 = vpack.c.b16 %v1949, %v1937
      %v2382 = vpack.c.b16 %v1950, %v1938
      %v2383 = vpack.c.b16 %v1951, %v1939
      %v2384 = vpack.c.b16 %v1952, %v1940
      %v2385 = vpack.c.b16 %v1953, %v1941
      %v2386 = vpack.c.b16 %v1966, %v1954
      %v2387 = vpack.c.b16 %v1967, %v1955
      %v2388 = vpack.c.b16 %v1968, %v1956
      %v2389 = vpack.c.b16 %v1969, %v1957
      %v2390 = vpack.c.b16 %v1970, %v1958
      %v2391 = vpack.c.b16 %v1971, %v1959
      %v2392 = vpack.c.b16 %v1972, %v1960
      %v2393 = vpack.c.b16 %v1973, %v1961
      %v2394 = vpack.c.b16 %v1974, %v1962
      %v2395 = vpack.c.b16 %v1975, %v1963
      %v2396 = vpack.c.b16 %v1976, %v1964
      %v2397 = vpack.c.b16 %v1977, %v1965
      %v2398 = vpack.c.b16 %v1990, %v1978
      %v2399 = vpack.c.b16 %v1991, %v1979
      %v2400 = vpack.c.b16 %v1992, %v1980
      %v2401 = vpack.c.b16 %v1993, %v1981
      %v2402 = vpack.c.b16 %v1994, %v1982
      %v2403 = vpack.c.b16 %v1995, %v1983
      %v2404 = vpack.c.b16 %v1996, %v1984
      %v2405 = vpack.c.b16 %v1997, %v1985
      %v2406 = vpack.c.b16 %v1998, %v1986
      %v2407 = vpack.c.b16 %v1999, %v1987
      %v2408 = vpack.c.b16 %v2000, %v1988
      %v2409 = vpack.c.b16 %v2001, %v1989
      %v2410 = vpack.c.b16 %v2014, %v2002
      %v2411 = vpack.c.b16 %v2015, %v2003
      %v2412 = vpack.c.b16 %v2016, %v2004
      %v2413 = vpack.c.b16 %v2017, %v2005
      %v2414 = vpack.c.b16 %v2018, %v2006
      %v2415 = vpack.c.b16 %v2019, %v2007
      %v2416 = vpack.c.b16 %v2020, %v2008
      %v2417 = vpack.c.b16 %v2021, %v2009
      %v2418 = vpack.c.b16 %v2022, %v2010
      %v2419 = vpack.c.b16 %v2023, %v2011
      %v2420 = vpack.c.b16 %v2024, %v2012
      %v2421 = vpack.c.b16 %v2025, %v2013
      %v2422 = vpack.c.b16 %v2038, %v2026
      %v2423 = vpack.c.b16 %v2039, %v2027
      %v2424 = vpack.c.b16 %v2040, %v2028
      %v2425 = vpack.c.b16 %v2041, %v2029
      %v2426 = vpack.c.b16 %v2042, %v2030
      %v2427 = vpack.c.b16 %v2043, %v2031
      %v2428 = vpack.c.b16 %v2044, %v2032
      %v2429 = vpack.c.b16 %v2045, %v2033
      %v2430 = vpack.c.b16 %v2046, %v2034
      %v2431 = vpack.c.b16 %v2047, %v2035
      %v2432 = vpack.c.b16 %v2048, %v2036
      %v2433 = vpack.c.b16 %v2049, %v2037
      %2818 = vmatprep.subr.bf16.mxu0 %v2135
      %2819 = vmatpush1.bf16.msra.mxu0 %v2134
      %2820 = vmatprep.subr.bf16.mxu0 %v2123
      %2821 = vmatpush1.bf16.msra.mxu0 %v2122
      %2822 = vmatprep.subr.bf16.mxu0 %v2111
      %2823 = vmatpush1.bf16.msra.mxu0 %v2110
      %2824 = vmatprep.subr.bf16.mxu0 %v2099
      %2825 = vmatpush1.bf16.msra.mxu0 %v2098
      %2826 = vmatprep.subr.bf16.mxu0 %v2087
      %2827 = vmatpush1.bf16.msra.mxu0 %v2086
      %2828 = vmatprep.subr.bf16.mxu0 %v2075
      %2829 = vmatpush1.bf16.msra.mxu0 %v2074
      %2830 = vmatprep.subr.bf16.mxu0 %v2063
      %2831 = vmatpush1.bf16.msra.mxu0 %v2062
      %2832 = vmatprep.subr.bf16.mxu0 %v2051
      %2833 = vmatpush1.bf16.msra.mxu0 %v2050
      %2834 = vmatprep.subr.bf16.mxu0 %v2231
      %2835 = vmatpush2.bf16.msra.mxu0 %v2230
      %2836 = vmatprep.subr.bf16.mxu0 %v2219
      %2837 = vmatpush2.bf16.msra.mxu0 %v2218
      %2838 = vmatprep.subr.bf16.mxu0 %v2207
      %2839 = vmatpush2.bf16.msra.mxu0 %v2206
      %2840 = vmatprep.subr.bf16.mxu0 %v2195
      %2841 = vmatpush2.bf16.msra.mxu0 %v2194
      %2842 = vmatprep.subr.bf16.mxu0 %v2183
      %2843 = vmatpush2.bf16.msra.mxu0 %v2182
      %2844 = vmatprep.subr.bf16.mxu0 %v2171
      %2845 = vmatpush2.bf16.msra.mxu0 %v2170
      %2846 = vmatprep.subr.bf16.mxu0 %v2159
      %2847 = vmatpush2.bf16.msra.mxu0 %v2158
      %2848 = vmatprep.subr.bf16.mxu0 %v2147
      %2849 = vmatpush2.bf16.msra.mxu0 %v2146
      %2850 = vmatprep.mubr.bf16.mxu0 %v447
      %2851 = vmatmul.mubr.bf16.gmra.mxu0 %v446
      %v2852 = vpop.f32.mrf.mxu0
      %v2853 = vadd.f32 %v841, %v2852
      %v2854 = vpop.f32.mrf.mxu0
      %v2855 = vadd.f32 %v845, %v2854
      %v2856 = vpop.f32.mrf.mxu0
      %v2857 = vpop.f32.mrf.mxu0
      %2858 = vdwg.mxu0
      %2859 = vmatprep.subr.bf16.mxu0 %v2327
      %2860 = vmatpush1.bf16.msra.mxu0 %v2326
      %2861 = vmatprep.subr.bf16.mxu0 %v2315
      %2862 = vmatpush1.bf16.msra.mxu0 %v2314
      %2863 = vmatprep.subr.bf16.mxu0 %v2303
      %2864 = vmatpush1.bf16.msra.mxu0 %v2302
      %2865 = vmatprep.subr.bf16.mxu0 %v2291
      %2866 = vmatpush1.bf16.msra.mxu0 %v2290
      %2867 = vmatprep.subr.bf16.mxu0 %v2279
      %2868 = vmatpush1.bf16.msra.mxu0 %v2278
      %2869 = vmatprep.subr.bf16.mxu0 %v2267
      %2870 = vmatpush1.bf16.msra.mxu0 %v2266
      %2871 = vmatprep.subr.bf16.mxu0 %v2255
      %2872 = vmatpush1.bf16.msra.mxu0 %v2254
      %2873 = vmatprep.subr.bf16.mxu0 %v2243
      %2874 = vmatpush1.bf16.msra.mxu0 %v2242
      %2875 = vmatprep.subr.bf16.mxu0 %v2423
      %2876 = vmatpush2.bf16.msra.mxu0 %v2422
      %2877 = vmatprep.subr.bf16.mxu0 %v2411
      %2878 = vmatpush2.bf16.msra.mxu0 %v2410
      %2879 = vmatprep.subr.bf16.mxu0 %v2399
      %2880 = vmatpush2.bf16.msra.mxu0 %v2398
      %2881 = vmatprep.subr.bf16.mxu0 %v2387
      %2882 = vmatpush2.bf16.msra.mxu0 %v2386
      %2883 = vmatprep.subr.bf16.mxu0 %v2375
      %2884 = vmatpush2.bf16.msra.mxu0 %v2374
      %2885 = vmatprep.subr.bf16.mxu0 %v2363
      %2886 = vmatpush2.bf16.msra.mxu0 %v2362
      %2887 = vmatprep.subr.bf16.mxu0 %v2351
      %2888 = vmatpush2.bf16.msra.mxu0 %v2350
      %2889 = vmatprep.subr.bf16.mxu0 %v2339
      %2890 = vmatpush2.bf16.msra.mxu0 %v2338
      %2891 = vmatprep.mubr.bf16.mxu0 %v449
      %2892 = vmatmul.mubr.bf16.gmra.mxu0 %v448
      %v2893 = vpop.f32.mrf.mxu0
      %v2894 = vadd.f32 %v2853, %v2893
      %v2895 = vpop.f32.mrf.mxu0
      %v2896 = vadd.f32 %v2855, %v2895
      %v2897 = vpop.f32.mrf.mxu0
      %v2898 = vpop.f32.mrf.mxu0
      %2899 = vdwg.mxu0
      %2900 = vmatprep.subr.bf16.mxu0 %v2137
      %2901 = vmatpush1.bf16.msra.mxu0 %v2136
      %2902 = vmatprep.subr.bf16.mxu0 %v2125
      %2903 = vmatpush1.bf16.msra.mxu0 %v2124
      %2904 = vmatprep.subr.bf16.mxu0 %v2113
      %2905 = vmatpush1.bf16.msra.mxu0 %v2112
      %2906 = vmatprep.subr.bf16.mxu0 %v2101
      %2907 = vmatpush1.bf16.msra.mxu0 %v2100
      %2908 = vmatprep.subr.bf16.mxu0 %v2089
      %2909 = vmatpush1.bf16.msra.mxu0 %v2088
      %2910 = vmatprep.subr.bf16.mxu0 %v2077
      %2911 = vmatpush1.bf16.msra.mxu0 %v2076
      %2912 = vmatprep.subr.bf16.mxu0 %v2065
      %2913 = vmatpush1.bf16.msra.mxu0 %v2064
      %2914 = vmatprep.subr.bf16.mxu0 %v2053
      %2915 = vmatpush1.bf16.msra.mxu0 %v2052
      %2916 = vmatprep.subr.bf16.mxu0 %v2233
      %2917 = vmatpush2.bf16.msra.mxu0 %v2232
      %2918 = vmatprep.subr.bf16.mxu0 %v2221
      %2919 = vmatpush2.bf16.msra.mxu0 %v2220
      %2920 = vmatprep.subr.bf16.mxu0 %v2209
      %2921 = vmatpush2.bf16.msra.mxu0 %v2208
      %2922 = vmatprep.subr.bf16.mxu0 %v2197
      %2923 = vmatpush2.bf16.msra.mxu0 %v2196
      %2924 = vmatprep.subr.bf16.mxu0 %v2185
      %2925 = vmatpush2.bf16.msra.mxu0 %v2184
      %2926 = vmatprep.subr.bf16.mxu0 %v2173
      %2927 = vmatpush2.bf16.msra.mxu0 %v2172
      %2928 = vmatprep.subr.bf16.mxu0 %v2161
      %2929 = vmatpush2.bf16.msra.mxu0 %v2160
      %2930 = vmatprep.subr.bf16.mxu0 %v2149
      %2931 = vmatpush2.bf16.msra.mxu0 %v2148
      %2932 = vmatprep.mubr.bf16.mxu0 %v447
      %2933 = vmatmul.mubr.bf16.gmra.mxu0 %v446
      %v2934 = vpop.f32.mrf.mxu0
      %v2935 = vadd.f32 %v849, %v2934
      %v2936 = vpop.f32.mrf.mxu0
      %v2937 = vadd.f32 %v853, %v2936
      %v2938 = vpop.f32.mrf.mxu0
      %v2939 = vpop.f32.mrf.mxu0
      %2940 = vdwg.mxu0
      %2941 = vmatprep.subr.bf16.mxu0 %v2329
      %2942 = vmatpush1.bf16.msra.mxu0 %v2328
      %2943 = vmatprep.subr.bf16.mxu0 %v2317
      %2944 = vmatpush1.bf16.msra.mxu0 %v2316
      %2945 = vmatprep.subr.bf16.mxu0 %v2305
      %2946 = vmatpush1.bf16.msra.mxu0 %v2304
      %2947 = vmatprep.subr.bf16.mxu0 %v2293
      %2948 = vmatpush1.bf16.msra.mxu0 %v2292
      %2949 = vmatprep.subr.bf16.mxu0 %v2281
      %2950 = vmatpush1.bf16.msra.mxu0 %v2280
      %2951 = vmatprep.subr.bf16.mxu0 %v2269
      %2952 = vmatpush1.bf16.msra.mxu0 %v2268
      %2953 = vmatprep.subr.bf16.mxu0 %v2257
      %2954 = vmatpush1.bf16.msra.mxu0 %v2256
      %2955 = vmatprep.subr.bf16.mxu0 %v2245
      %2956 = vmatpush1.bf16.msra.mxu0 %v2244
      %2957 = vmatprep.subr.bf16.mxu0 %v2425
      %2958 = vmatpush2.bf16.msra.mxu0 %v2424
      %2959 = vmatprep.subr.bf16.mxu0 %v2413
      %2960 = vmatpush2.bf16.msra.mxu0 %v2412
      %2961 = vmatprep.subr.bf16.mxu0 %v2401
      %2962 = vmatpush2.bf16.msra.mxu0 %v2400
      %2963 = vmatprep.subr.bf16.mxu0 %v2389
      %2964 = vmatpush2.bf16.msra.mxu0 %v2388
      %2965 = vmatprep.subr.bf16.mxu0 %v2377
      %2966 = vmatpush2.bf16.msra.mxu0 %v2376
      %2967 = vmatprep.subr.bf16.mxu0 %v2365
      %2968 = vmatpush2.bf16.msra.mxu0 %v2364
      %2969 = vmatprep.subr.bf16.mxu0 %v2353
      %2970 = vmatpush2.bf16.msra.mxu0 %v2352
      %2971 = vmatprep.subr.bf16.mxu0 %v2341
      %2972 = vmatpush2.bf16.msra.mxu0 %v2340
      %2973 = vmatprep.mubr.bf16.mxu0 %v449
      %2974 = vmatmul.mubr.bf16.gmra.mxu0 %v448
      %v2975 = vpop.f32.mrf.mxu0
      %v2976 = vadd.f32 %v2935, %v2975
      %v2977 = vpop.f32.mrf.mxu0
      %v2978 = vadd.f32 %v2937, %v2977
      %v2979 = vpop.f32.mrf.mxu0
      %v2980 = vpop.f32.mrf.mxu0
      %2981 = vdwg.mxu0
      %2982 = vmatprep.subr.bf16.mxu0 %v2139
      %2983 = vmatpush1.bf16.msra.mxu0 %v2138
      %2984 = vmatprep.subr.bf16.mxu0 %v2127
      %2985 = vmatpush1.bf16.msra.mxu0 %v2126
      %2986 = vmatprep.subr.bf16.mxu0 %v2115
      %2987 = vmatpush1.bf16.msra.mxu0 %v2114
      %2988 = vmatprep.subr.bf16.mxu0 %v2103
      %2989 = vmatpush1.bf16.msra.mxu0 %v2102
      %2990 = vmatprep.subr.bf16.mxu0 %v2091
      %2991 = vmatpush1.bf16.msra.mxu0 %v2090
      %2992 = vmatprep.subr.bf16.mxu0 %v2079
      %2993 = vmatpush1.bf16.msra.mxu0 %v2078
      %2994 = vmatprep.subr.bf16.mxu0 %v2067
      %2995 = vmatpush1.bf16.msra.mxu0 %v2066
      %2996 = vmatprep.subr.bf16.mxu0 %v2055
      %2997 = vmatpush1.bf16.msra.mxu0 %v2054
      %2998 = vmatprep.subr.bf16.mxu0 %v2235
      %2999 = vmatpush2.bf16.msra.mxu0 %v2234
      %3000 = vmatprep.subr.bf16.mxu0 %v2223
      %3001 = vmatpush2.bf16.msra.mxu0 %v2222
      %3002 = vmatprep.subr.bf16.mxu0 %v2211
      %3003 = vmatpush2.bf16.msra.mxu0 %v2210
      %3004 = vmatprep.subr.bf16.mxu0 %v2199
      %3005 = vmatpush2.bf16.msra.mxu0 %v2198
      %3006 = vmatprep.subr.bf16.mxu0 %v2187
      %3007 = vmatpush2.bf16.msra.mxu0 %v2186
      %3008 = vmatprep.subr.bf16.mxu0 %v2175
      %3009 = vmatpush2.bf16.msra.mxu0 %v2174
      %3010 = vmatprep.subr.bf16.mxu0 %v2163
      %3011 = vmatpush2.bf16.msra.mxu0 %v2162
      %3012 = vmatprep.subr.bf16.mxu0 %v2151
      %3013 = vmatpush2.bf16.msra.mxu0 %v2150
      %3014 = vmatprep.mubr.bf16.mxu0 %v447
      %3015 = vmatmul.mubr.bf16.gmra.mxu0 %v446
      %v3016 = vpop.f32.mrf.mxu0
      %v3017 = vadd.f32 %v857, %v3016
      %v3018 = vpop.f32.mrf.mxu0
      %v3019 = vadd.f32 %v861, %v3018
      %v3020 = vpop.f32.mrf.mxu0
      %v3021 = vpop.f32.mrf.mxu0
      %3022 = vdwg.mxu0
      %3023 = vmatprep.subr.bf16.mxu0 %v2331
      %3024 = vmatpush1.bf16.msra.mxu0 %v2330
      %3025 = vmatprep.subr.bf16.mxu0 %v2319
      %3026 = vmatpush1.bf16.msra.mxu0 %v2318
      %3027 = vmatprep.subr.bf16.mxu0 %v2307
      %3028 = vmatpush1.bf16.msra.mxu0 %v2306
      %3029 = vmatprep.subr.bf16.mxu0 %v2295
      %3030 = vmatpush1.bf16.msra.mxu0 %v2294
      %3031 = vmatprep.subr.bf16.mxu0 %v2283
      %3032 = vmatpush1.bf16.msra.mxu0 %v2282
      %3033 = vmatprep.subr.bf16.mxu0 %v2271
      %3034 = vmatpush1.bf16.msra.mxu0 %v2270
      %3035 = vmatprep.subr.bf16.mxu0 %v2259
      %3036 = vmatpush1.bf16.msra.mxu0 %v2258
      %3037 = vmatprep.subr.bf16.mxu0 %v2247
      %3038 = vmatpush1.bf16.msra.mxu0 %v2246
      %3039 = vmatprep.subr.bf16.mxu0 %v2427
      %3040 = vmatpush2.bf16.msra.mxu0 %v2426
      %3041 = vmatprep.subr.bf16.mxu0 %v2415
      %3042 = vmatpush2.bf16.msra.mxu0 %v2414
      %3043 = vmatprep.subr.bf16.mxu0 %v2403
      %3044 = vmatpush2.bf16.msra.mxu0 %v2402
      %3045 = vmatprep.subr.bf16.mxu0 %v2391
      %3046 = vmatpush2.bf16.msra.mxu0 %v2390
      %3047 = vmatprep.subr.bf16.mxu0 %v2379
      %3048 = vmatpush2.bf16.msra.mxu0 %v2378
      %3049 = vmatprep.subr.bf16.mxu0 %v2367
      %3050 = vmatpush2.bf16.msra.mxu0 %v2366
      %3051 = vmatprep.subr.bf16.mxu0 %v2355
      %3052 = vmatpush2.bf16.msra.mxu0 %v2354
      %3053 = vmatprep.subr.bf16.mxu0 %v2343
      %3054 = vmatpush2.bf16.msra.mxu0 %v2342
      %3055 = vmatprep.mubr.bf16.mxu0 %v449
      %3056 = vmatmul.mubr.bf16.gmra.mxu0 %v448
      %v3057 = vpop.f32.mrf.mxu0
      %v3058 = vadd.f32 %v3017, %v3057
      %v3059 = vpop.f32.mrf.mxu0
      %v3060 = vadd.f32 %v3019, %v3059
      %v3061 = vpop.f32.mrf.mxu0
      %v3062 = vpop.f32.mrf.mxu0
      %3063 = vdwg.mxu0
      %3064 = vmatprep.subr.bf16.mxu0 %v2141
      %3065 = vmatpush1.bf16.msra.mxu0 %v2140
      %3066 = vmatprep.subr.bf16.mxu0 %v2129
      %3067 = vmatpush1.bf16.msra.mxu0 %v2128
      %3068 = vmatprep.subr.bf16.mxu0 %v2117
      %3069 = vmatpush1.bf16.msra.mxu0 %v2116
      %3070 = vmatprep.subr.bf16.mxu0 %v2105
      %3071 = vmatpush1.bf16.msra.mxu0 %v2104
      %3072 = vmatprep.subr.bf16.mxu0 %v2093
      %3073 = vmatpush1.bf16.msra.mxu0 %v2092
      %3074 = vmatprep.subr.bf16.mxu0 %v2081
      %3075 = vmatpush1.bf16.msra.mxu0 %v2080
      %3076 = vmatprep.subr.bf16.mxu0 %v2069
      %3077 = vmatpush1.bf16.msra.mxu0 %v2068
      %3078 = vmatprep.subr.bf16.mxu0 %v2057
      %3079 = vmatpush1.bf16.msra.mxu0 %v2056
      %3080 = vmatprep.subr.bf16.mxu0 %v2237
      %3081 = vmatpush2.bf16.msra.mxu0 %v2236
      %3082 = vmatprep.subr.bf16.mxu0 %v2225
      %3083 = vmatpush2.bf16.msra.mxu0 %v2224
      %3084 = vmatprep.subr.bf16.mxu0 %v2213
      %3085 = vmatpush2.bf16.msra.mxu0 %v2212
      %3086 = vmatprep.subr.bf16.mxu0 %v2201
      %3087 = vmatpush2.bf16.msra.mxu0 %v2200
      %3088 = vmatprep.subr.bf16.mxu0 %v2189
      %3089 = vmatpush2.bf16.msra.mxu0 %v2188
      %3090 = vmatprep.subr.bf16.mxu0 %v2177
      %3091 = vmatpush2.bf16.msra.mxu0 %v2176
      %3092 = vmatprep.subr.bf16.mxu0 %v2165
      %3093 = vmatpush2.bf16.msra.mxu0 %v2164
      %3094 = vmatprep.subr.bf16.mxu0 %v2153
      %3095 = vmatpush2.bf16.msra.mxu0 %v2152
      %3096 = vmatprep.mubr.bf16.mxu0 %v447
      %3097 = vmatmul.mubr.bf16.gmra.mxu0 %v446
      %v3098 = vpop.f32.mrf.mxu0
      %v3099 = vadd.f32 %v865, %v3098
      %v3100 = vpop.f32.mrf.mxu0
      %v3101 = vadd.f32 %v869, %v3100
      %v3102 = vpop.f32.mrf.mxu0
      %v3103 = vpop.f32.mrf.mxu0
      %3104 = vdwg.mxu0
      %3105 = vmatprep.subr.bf16.mxu0 %v2333
      %3106 = vmatpush1.bf16.msra.mxu0 %v2332
      %3107 = vmatprep.subr.bf16.mxu0 %v2321
      %3108 = vmatpush1.bf16.msra.mxu0 %v2320
      %3109 = vmatprep.subr.bf16.mxu0 %v2309
      %3110 = vmatpush1.bf16.msra.mxu0 %v2308
      %3111 = vmatprep.subr.bf16.mxu0 %v2297
      %3112 = vmatpush1.bf16.msra.mxu0 %v2296
      %3113 = vmatprep.subr.bf16.mxu0 %v2285
      %3114 = vmatpush1.bf16.msra.mxu0 %v2284
      %3115 = vmatprep.subr.bf16.mxu0 %v2273
      %3116 = vmatpush1.bf16.msra.mxu0 %v2272
      %3117 = vmatprep.subr.bf16.mxu0 %v2261
      %3118 = vmatpush1.bf16.msra.mxu0 %v2260
      %3119 = vmatprep.subr.bf16.mxu0 %v2249
      %3120 = vmatpush1.bf16.msra.mxu0 %v2248
      %3121 = vmatprep.subr.bf16.mxu0 %v2429
      %3122 = vmatpush2.bf16.msra.mxu0 %v2428
      %3123 = vmatprep.subr.bf16.mxu0 %v2417
      %3124 = vmatpush2.bf16.msra.mxu0 %v2416
      %3125 = vmatprep.subr.bf16.mxu0 %v2405
      %3126 = vmatpush2.bf16.msra.mxu0 %v2404
      %3127 = vmatprep.subr.bf16.mxu0 %v2393
      %3128 = vmatpush2.bf16.msra.mxu0 %v2392
      %3129 = vmatprep.subr.bf16.mxu0 %v2381
      %3130 = vmatpush2.bf16.msra.mxu0 %v2380
      %3131 = vmatprep.subr.bf16.mxu0 %v2369
      %3132 = vmatpush2.bf16.msra.mxu0 %v2368
      %3133 = vmatprep.subr.bf16.mxu0 %v2357
      %3134 = vmatpush2.bf16.msra.mxu0 %v2356
      %3135 = vmatprep.subr.bf16.mxu0 %v2345
      %3136 = vmatpush2.bf16.msra.mxu0 %v2344
      %3137 = vmatprep.mubr.bf16.mxu0 %v449
      %3138 = vmatmul.mubr.bf16.gmra.mxu0 %v448
      %v3139 = vpop.f32.mrf.mxu0
      %v3140 = vadd.f32 %v3099, %v3139
      %v3141 = vpop.f32.mrf.mxu0
      %v3142 = vadd.f32 %v3101, %v3141
      %v3143 = vpop.f32.mrf.mxu0
      %v3144 = vpop.f32.mrf.mxu0
      %3145 = vdwg.mxu0
      %3146 = vmatprep.subr.bf16.mxu0 %v2143
      %3147 = vmatpush1.bf16.msra.mxu0 %v2142
      %3148 = vmatprep.subr.bf16.mxu0 %v2131
      %3149 = vmatpush1.bf16.msra.mxu0 %v2130
      %3150 = vmatprep.subr.bf16.mxu0 %v2119
      %3151 = vmatpush1.bf16.msra.mxu0 %v2118
      %3152 = vmatprep.subr.bf16.mxu0 %v2107
      %3153 = vmatpush1.bf16.msra.mxu0 %v2106
      %3154 = vmatprep.subr.bf16.mxu0 %v2095
      %3155 = vmatpush1.bf16.msra.mxu0 %v2094
      %3156 = vmatprep.subr.bf16.mxu0 %v2083
      %3157 = vmatpush1.bf16.msra.mxu0 %v2082
      %3158 = vmatprep.subr.bf16.mxu0 %v2071
      %3159 = vmatpush1.bf16.msra.mxu0 %v2070
      %3160 = vmatprep.subr.bf16.mxu0 %v2059
      %3161 = vmatpush1.bf16.msra.mxu0 %v2058
      %3162 = vmatprep.subr.bf16.mxu0 %v2239
      %3163 = vmatpush2.bf16.msra.mxu0 %v2238
      %3164 = vmatprep.subr.bf16.mxu0 %v2227
      %3165 = vmatpush2.bf16.msra.mxu0 %v2226
      %3166 = vmatprep.subr.bf16.mxu0 %v2215
      %3167 = vmatpush2.bf16.msra.mxu0 %v2214
      %3168 = vmatprep.subr.bf16.mxu0 %v2203
      %3169 = vmatpush2.bf16.msra.mxu0 %v2202
      %3170 = vmatprep.subr.bf16.mxu0 %v2191
      %3171 = vmatpush2.bf16.msra.mxu0 %v2190
      %3172 = vmatprep.subr.bf16.mxu0 %v2179
      %3173 = vmatpush2.bf16.msra.mxu0 %v2178
      %3174 = vmatprep.subr.bf16.mxu0 %v2167
      %3175 = vmatpush2.bf16.msra.mxu0 %v2166
      %3176 = vmatprep.subr.bf16.mxu0 %v2155
      %3177 = vmatpush2.bf16.msra.mxu0 %v2154
      %3178 = vmatprep.mubr.bf16.mxu0 %v447
      %3179 = vmatmul.mubr.bf16.gmra.mxu0 %v446
      %v3180 = vpop.f32.mrf.mxu0
      %v3181 = vadd.f32 %v873, %v3180
      %v3182 = vpop.f32.mrf.mxu0
      %v3183 = vadd.f32 %v877, %v3182
      %v3184 = vpop.f32.mrf.mxu0
      %v3185 = vpop.f32.mrf.mxu0
      %3186 = vdwg.mxu0
      %3187 = vmatprep.subr.bf16.mxu0 %v2335
      %3188 = vmatpush1.bf16.msra.mxu0 %v2334
      %3189 = vmatprep.subr.bf16.mxu0 %v2323
      %3190 = vmatpush1.bf16.msra.mxu0 %v2322
      %3191 = vmatprep.subr.bf16.mxu0 %v2311
      %3192 = vmatpush1.bf16.msra.mxu0 %v2310
      %3193 = vmatprep.subr.bf16.mxu0 %v2299
      %3194 = vmatpush1.bf16.msra.mxu0 %v2298
      %3195 = vmatprep.subr.bf16.mxu0 %v2287
      %3196 = vmatpush1.bf16.msra.mxu0 %v2286
      %3197 = vmatprep.subr.bf16.mxu0 %v2275
      %3198 = vmatpush1.bf16.msra.mxu0 %v2274
      %3199 = vmatprep.subr.bf16.mxu0 %v2263
      %3200 = vmatpush1.bf16.msra.mxu0 %v2262
      %3201 = vmatprep.subr.bf16.mxu0 %v2251
      %3202 = vmatpush1.bf16.msra.mxu0 %v2250
      %3203 = vmatprep.subr.bf16.mxu0 %v2431
      %3204 = vmatpush2.bf16.msra.mxu0 %v2430
      %3205 = vmatprep.subr.bf16.mxu0 %v2419
      %3206 = vmatpush2.bf16.msra.mxu0 %v2418
      %3207 = vmatprep.subr.bf16.mxu0 %v2407
      %3208 = vmatpush2.bf16.msra.mxu0 %v2406
      %3209 = vmatprep.subr.bf16.mxu0 %v2395
      %3210 = vmatpush2.bf16.msra.mxu0 %v2394
      %3211 = vmatprep.subr.bf16.mxu0 %v2383
      %3212 = vmatpush2.bf16.msra.mxu0 %v2382
      %3213 = vmatprep.subr.bf16.mxu0 %v2371
      %3214 = vmatpush2.bf16.msra.mxu0 %v2370
      %3215 = vmatprep.subr.bf16.mxu0 %v2359
      %3216 = vmatpush2.bf16.msra.mxu0 %v2358
      %3217 = vmatprep.subr.bf16.mxu0 %v2347
      %3218 = vmatpush2.bf16.msra.mxu0 %v2346
      %3219 = vmatprep.mubr.bf16.mxu0 %v449
      %3220 = vmatmul.mubr.bf16.gmra.mxu0 %v448
      %v3221 = vpop.f32.mrf.mxu0
      %v3222 = vadd.f32 %v3181, %v3221
      %v3223 = vpop.f32.mrf.mxu0
      %v3224 = vadd.f32 %v3183, %v3223
      %v3225 = vpop.f32.mrf.mxu0
      %v3226 = vpop.f32.mrf.mxu0
      %3227 = vdwg.mxu0
      %3228 = vmatprep.subr.bf16.mxu0 %v2145
      %3229 = vmatpush1.bf16.msra.mxu0 %v2144
      %3230 = vmatprep.subr.bf16.mxu0 %v2133
      %3231 = vmatpush1.bf16.msra.mxu0 %v2132
      %3232 = vmatprep.subr.bf16.mxu0 %v2121
      %3233 = vmatpush1.bf16.msra.mxu0 %v2120
      %3234 = vmatprep.subr.bf16.mxu0 %v2109
      %3235 = vmatpush1.bf16.msra.mxu0 %v2108
      %3236 = vmatprep.subr.bf16.mxu0 %v2097
      %3237 = vmatpush1.bf16.msra.mxu0 %v2096
      %3238 = vmatprep.subr.bf16.mxu0 %v2085
      %3239 = vmatpush1.bf16.msra.mxu0 %v2084
      %3240 = vmatprep.subr.bf16.mxu0 %v2073
      %3241 = vmatpush1.bf16.msra.mxu0 %v2072
      %3242 = vmatprep.subr.bf16.mxu0 %v2061
      %3243 = vmatpush1.bf16.msra.mxu0 %v2060
      %3244 = vmatprep.subr.bf16.mxu0 %v2241
      %3245 = vmatpush2.bf16.msra.mxu0 %v2240
      %3246 = vmatprep.subr.bf16.mxu0 %v2229
      %3247 = vmatpush2.bf16.msra.mxu0 %v2228
      %3248 = vmatprep.subr.bf16.mxu0 %v2217
      %3249 = vmatpush2.bf16.msra.mxu0 %v2216
      %3250 = vmatprep.subr.bf16.mxu0 %v2205
      %3251 = vmatpush2.bf16.msra.mxu0 %v2204
      %3252 = vmatprep.subr.bf16.mxu0 %v2193
      %3253 = vmatpush2.bf16.msra.mxu0 %v2192
      %3254 = vmatprep.subr.bf16.mxu0 %v2181
      %3255 = vmatpush2.bf16.msra.mxu0 %v2180
      %3256 = vmatprep.subr.bf16.mxu0 %v2169
      %3257 = vmatpush2.bf16.msra.mxu0 %v2168
      %3258 = vmatprep.subr.bf16.mxu0 %v2157
      %3259 = vmatpush2.bf16.msra.mxu0 %v2156
      %3260 = vmatprep.mubr.bf16.mxu0 %v447
      %3261 = vmatmul.mubr.bf16.gmra.mxu0 %v446
      %v3262 = vpop.f32.mrf.mxu0
      %v3263 = vadd.f32 %v881, %v3262
      %v3264 = vpop.f32.mrf.mxu0
      %v3265 = vadd.f32 %v885, %v3264
      %v3266 = vpop.f32.mrf.mxu0
      %v3267 = vpop.f32.mrf.mxu0
      %3268 = vdwg.mxu0
      %3269 = vmatprep.subr.bf16.mxu0 %v2337
      %3270 = vmatpush1.bf16.msra.mxu0 %v2336
      %3271 = vmatprep.subr.bf16.mxu0 %v2325
      %3272 = vmatpush1.bf16.msra.mxu0 %v2324
      %3273 = vmatprep.subr.bf16.mxu0 %v2313
      %3274 = vmatpush1.bf16.msra.mxu0 %v2312
      %3275 = vmatprep.subr.bf16.mxu0 %v2301
      %3276 = vmatpush1.bf16.msra.mxu0 %v2300
      %3277 = vmatprep.subr.bf16.mxu0 %v2289
      %3278 = vmatpush1.bf16.msra.mxu0 %v2288
      %3279 = vmatprep.subr.bf16.mxu0 %v2277
      %3280 = vmatpush1.bf16.msra.mxu0 %v2276
      %3281 = vmatprep.subr.bf16.mxu0 %v2265
      %3282 = vmatpush1.bf16.msra.mxu0 %v2264
      %3283 = vmatprep.subr.bf16.mxu0 %v2253
      %3284 = vmatpush1.bf16.msra.mxu0 %v2252
      %3285 = vmatprep.subr.bf16.mxu0 %v2433
      %3286 = vmatpush2.bf16.msra.mxu0 %v2432
      %3287 = vmatprep.subr.bf16.mxu0 %v2421
      %3288 = vmatpush2.bf16.msra.mxu0 %v2420
      %3289 = vmatprep.subr.bf16.mxu0 %v2409
      %3290 = vmatpush2.bf16.msra.mxu0 %v2408
      %3291 = vmatprep.subr.bf16.mxu0 %v2397
      %3292 = vmatpush2.bf16.msra.mxu0 %v2396
      %3293 = vmatprep.subr.bf16.mxu0 %v2385
      %3294 = vmatpush2.bf16.msra.mxu0 %v2384
      %3295 = vmatprep.subr.bf16.mxu0 %v2373
      %3296 = vmatpush2.bf16.msra.mxu0 %v2372
      %3297 = vmatprep.subr.bf16.mxu0 %v2361
      %3298 = vmatpush2.bf16.msra.mxu0 %v2360
      %3299 = vmatprep.subr.bf16.mxu0 %v2349
      %3300 = vmatpush2.bf16.msra.mxu0 %v2348
      %3301 = vmatprep.mubr.bf16.mxu0 %v449
      %3302 = vmatmul.mubr.bf16.gmra.mxu0 %v448
      %v3303 = vpop.f32.mrf.mxu0
      %v3304 = vadd.f32 %v3263, %v3303
      %v3305 = vpop.f32.mrf.mxu0
      %v3306 = vadd.f32 %v3265, %v3305
      %v3307 = vpop.f32.mrf.mxu0
      %v3308 = vpop.f32.mrf.mxu0
      %3309 = vdwg.mxu0
      %3311 = vrot.lane.b32.xlu0 %v2894, 64
      %v3312 = vpop.permute.xlu0 %3311
      %3315 = vrot.lane.b32.xlu0 %v2896, 64
      %v3316 = vpop.permute.xlu0 %3315
      %3319 = vrot.lane.b32.xlu0 %v2976, 64
      %v3320 = vpop.permute.xlu0 %3319
      %3323 = vrot.lane.b32.xlu0 %v2978, 64
      %v3324 = vpop.permute.xlu0 %3323
      %v3326 = vpack.c.bf16 %v2894, %v2894
      %v3327 = vpack.c.bf16 %v3312, %v3312
      %v3328 = vpack.c.bf16 %v2896, %v2896
      %v3329 = vpack.c.bf16 %v3316, %v3316
      %v3330 = vpack.c.bf16 %v2976, %v2976
      %v3331 = vpack.c.bf16 %v3320, %v3320
      %v3332 = vpack.c.bf16 %v2978, %v2978
      %v3333 = vpack.c.bf16 %v3324, %v3324
      %3335 = vrot.lane.b32.xlu0 %v3058, 64
      %v3336 = vpop.permute.xlu0 %3335
      %3339 = vrot.lane.b32.xlu0 %v3060, 64
      %v3340 = vpop.permute.xlu0 %3339
      %3343 = vrot.lane.b32.xlu0 %v3140, 64
      %v3344 = vpop.permute.xlu0 %3343
      %3347 = vrot.lane.b32.xlu0 %v3142, 64
      %v3348 = vpop.permute.xlu0 %3347
      %v3350 = vpack.c.bf16 %v3058, %v3058
      %v3351 = vpack.c.bf16 %v3336, %v3336
      %v3352 = vpack.c.bf16 %v3060, %v3060
      %v3353 = vpack.c.bf16 %v3340, %v3340
      %v3354 = vpack.c.bf16 %v3140, %v3140
      %v3355 = vpack.c.bf16 %v3344, %v3344
      %v3356 = vpack.c.bf16 %v3142, %v3142
      %v3357 = vpack.c.bf16 %v3348, %v3348
      %3359 = vrot.lane.b32.xlu0 %v3222, 64
      %v3360 = vpop.permute.xlu0 %3359
      %3363 = vrot.lane.b32.xlu0 %v3224, 64
      %v3364 = vpop.permute.xlu0 %3363
      %3367 = vrot.lane.b32.xlu0 %v3304, 64
      %v3368 = vpop.permute.xlu0 %3367
      %3371 = vrot.lane.b32.xlu0 %v3306, 64
      %v3372 = vpop.permute.xlu0 %3371
      %v3374 = vpack.c.bf16 %v3222, %v3222
      %v3375 = vpack.c.bf16 %v3360, %v3360
      %v3376 = vpack.c.bf16 %v3224, %v3224
      %v3377 = vpack.c.bf16 %v3364, %v3364
      %v3378 = vpack.c.bf16 %v3304, %v3304
      %v3379 = vpack.c.bf16 %v3368, %v3368
      %v3380 = vpack.c.bf16 %v3306, %v3306
      %v3381 = vpack.c.bf16 %v3372, %v3372
      %vm3382 = vcmask 523264
      %v3384 = vsel %vm3382, %v3326, 0
      %v3387 = vsel %vm3382, %v3350, 0
      %3389 = vmatprep.subr.bf16.mxu0 0
      %3390 = vmatpush1.bf16.xpose.msra.mxu0 0
      %3391 = vmatprep.subr.bf16.mxu0 0
      %3392 = vmatpush1.bf16.xpose.msra.mxu0 0
      %3393 = vmatprep.subr.bf16.mxu0 0
      %3394 = vmatpush1.bf16.xpose.msra.mxu0 0
      %3395 = vmatprep.subr.bf16.mxu0 0
      %3396 = vmatpush1.bf16.xpose.msra.mxu0 0
      %3397 = vmatprep.subr.bf16.mxu0 0
      %3398 = vmatpush1.bf16.xpose.msra.mxu0 0
      %3399 = vmatprep.subr.bf16.mxu0 0
      %3400 = vmatpush1.bf16.xpose.msra.mxu0 0
      %3401 = vmatprep.subr.bf16.mxu0 0
      %3402 = vmatpush1.bf16.xpose.msra.mxu0 0
      %3403 = vmatprep.subr.bf16.mxu0 0
      %3404 = vmatpush1.bf16.xpose.msra.mxu0 %v3387
      %3405 = vmatprep.subr.bf16.mxu0 0
      %3406 = vmatpush2.bf16.xpose.msra.mxu0 0
      %3407 = vmatprep.subr.bf16.mxu0 0
      %3408 = vmatpush2.bf16.xpose.msra.mxu0 0
      %3409 = vmatprep.subr.bf16.mxu0 0
      %3410 = vmatpush2.bf16.xpose.msra.mxu0 0
      %3411 = vmatprep.subr.bf16.mxu0 0
      %3412 = vmatpush2.bf16.xpose.msra.mxu0 0
      %3413 = vmatprep.subr.bf16.mxu0 0
      %3414 = vmatpush2.bf16.xpose.msra.mxu0 0
      %3415 = vmatprep.subr.bf16.mxu0 0
      %3416 = vmatpush2.bf16.xpose.msra.mxu0 0
      %3417 = vmatprep.subr.bf16.mxu0 0
      %3418 = vmatpush2.bf16.xpose.msra.mxu0 0
      %3419 = vmatprep.subr.bf16.mxu0 0
      %3420 = vmatpush2.bf16.xpose.msra.mxu0 0
      %3421 = vmatprep.mubr.bf16.mxu0 0
      %3422 = vmatmul.mubr.bf16.gmra.mxu0 %v3384
      %v3423 = vpop.f32.mrf.mxu0
      %v3424 = vadd.f32 0.0, %v3423
      %v3425 = vpop.f32.mrf.mxu0
      %v3426 = vpop.f32.mrf.mxu0
      %v3427 = vpop.f32.mrf.mxu0
      %3428 = vdwg.mxu0
      %v3430 = vsel %vm3382, %v3327, 0
      %v3433 = vsel %vm3382, %v3351, 0
      %3435 = vmatprep.subr.bf16.mxu0 0
      %3436 = vmatpush1.bf16.xpose.msra.mxu0 0
      %3437 = vmatprep.subr.bf16.mxu0 0
      %3438 = vmatpush1.bf16.xpose.msra.mxu0 0
      %3439 = vmatprep.subr.bf16.mxu0 0
      %3440 = vmatpush1.bf16.xpose.msra.mxu0 0
      %3441 = vmatprep.subr.bf16.mxu0 0
      %3442 = vmatpush1.bf16.xpose.msra.mxu0 0
      %3443 = vmatprep.subr.bf16.mxu0 0
      %3444 = vmatpush1.bf16.xpose.msra.mxu0 0
      %3445 = vmatprep.subr.bf16.mxu0 0
      %3446 = vmatpush1.bf16.xpose.msra.mxu0 0
      %3447 = vmatprep.subr.bf16.mxu0 0
      %3448 = vmatpush1.bf16.xpose.msra.mxu0 0
      %3449 = vmatprep.subr.bf16.mxu0 0
      %3450 = vmatpush1.bf16.xpose.msra.mxu0 %v3433
      %3451 = vmatprep.subr.bf16.mxu0 0
      %3452 = vmatpush2.bf16.xpose.msra.mxu0 0
      %3453 = vmatprep.subr.bf16.mxu0 0
      %3454 = vmatpush2.bf16.xpose.msra.mxu0 0
      %3455 = vmatprep.subr.bf16.mxu0 0
      %3456 = vmatpush2.bf16.xpose.msra.mxu0 0
      %3457 = vmatprep.subr.bf16.mxu0 0
      %3458 = vmatpush2.bf16.xpose.msra.mxu0 0
      %3459 = vmatprep.subr.bf16.mxu0 0
      %3460 = vmatpush2.bf16.xpose.msra.mxu0 0
      %3461 = vmatprep.subr.bf16.mxu0 0
      %3462 = vmatpush2.bf16.xpose.msra.mxu0 0
      %3463 = vmatprep.subr.bf16.mxu0 0
      %3464 = vmatpush2.bf16.xpose.msra.mxu0 0
      %3465 = vmatprep.subr.bf16.mxu0 0
      %3466 = vmatpush2.bf16.xpose.msra.mxu0 0
      %3467 = vmatprep.mubr.bf16.mxu0 0
      %3468 = vmatmul.mubr.bf16.gmra.mxu0 %v3430
      %v3469 = vpop.f32.mrf.mxu0
      %v3470 = vadd.f32 0.0, %v3469
      %v3471 = vpop.f32.mrf.mxu0
      %v3472 = vpop.f32.mrf.mxu0
      %v3473 = vpop.f32.mrf.mxu0
      %3474 = vdwg.mxu0
      %v3476 = vsel %vm3382, %v3328, 0
      %v3479 = vsel %vm3382, %v3352, 0
      %3481 = vmatprep.subr.bf16.mxu0 0
      %3482 = vmatpush1.bf16.xpose.msra.mxu0 0
      %3483 = vmatprep.subr.bf16.mxu0 0
      %3484 = vmatpush1.bf16.xpose.msra.mxu0 0
      %3485 = vmatprep.subr.bf16.mxu0 0
      %3486 = vmatpush1.bf16.xpose.msra.mxu0 0
      %3487 = vmatprep.subr.bf16.mxu0 0
      %3488 = vmatpush1.bf16.xpose.msra.mxu0 0
      %3489 = vmatprep.subr.bf16.mxu0 0
      %3490 = vmatpush1.bf16.xpose.msra.mxu0 0
      %3491 = vmatprep.subr.bf16.mxu0 0
      %3492 = vmatpush1.bf16.xpose.msra.mxu0 0
      %3493 = vmatprep.subr.bf16.mxu0 0
      %3494 = vmatpush1.bf16.xpose.msra.mxu0 0
      %3495 = vmatprep.subr.bf16.mxu0 0
      %3496 = vmatpush1.bf16.xpose.msra.mxu0 %v3479
      %3497 = vmatprep.subr.bf16.mxu0 0
      %3498 = vmatpush2.bf16.xpose.msra.mxu0 0
      %3499 = vmatprep.subr.bf16.mxu0 0
      %3500 = vmatpush2.bf16.xpose.msra.mxu0 0
      %3501 = vmatprep.subr.bf16.mxu0 0
      %3502 = vmatpush2.bf16.xpose.msra.mxu0 0
      %3503 = vmatprep.subr.bf16.mxu0 0
      %3504 = vmatpush2.bf16.xpose.msra.mxu0 0
      %3505 = vmatprep.subr.bf16.mxu0 0
      %3506 = vmatpush2.bf16.xpose.msra.mxu0 0
      %3507 = vmatprep.subr.bf16.mxu0 0
      %3508 = vmatpush2.bf16.xpose.msra.mxu0 0
      %3509 = vmatprep.subr.bf16.mxu0 0
      %3510 = vmatpush2.bf16.xpose.msra.mxu0 0
      %3511 = vmatprep.subr.bf16.mxu0 0
      %3512 = vmatpush2.bf16.xpose.msra.mxu0 0
      %3513 = vmatprep.mubr.bf16.mxu0 0
      %3514 = vmatmul.mubr.bf16.gmra.mxu0 %v3476
      %v3515 = vpop.f32.mrf.mxu0
      %v3516 = vadd.f32 0.0, %v3515
      %v3517 = vpop.f32.mrf.mxu0
      %v3518 = vpop.f32.mrf.mxu0
      %v3519 = vpop.f32.mrf.mxu0
      %3520 = vdwg.mxu0
      %v3522 = vsel %vm3382, %v3329, 0
      %v3525 = vsel %vm3382, %v3353, 0
      %3527 = vmatprep.subr.bf16.mxu0 0
      %3528 = vmatpush1.bf16.xpose.msra.mxu0 0
      %3529 = vmatprep.subr.bf16.mxu0 0
      %3530 = vmatpush1.bf16.xpose.msra.mxu0 0
      %3531 = vmatprep.subr.bf16.mxu0 0
      %3532 = vmatpush1.bf16.xpose.msra.mxu0 0
      %3533 = vmatprep.subr.bf16.mxu0 0
      %3534 = vmatpush1.bf16.xpose.msra.mxu0 0
      %3535 = vmatprep.subr.bf16.mxu0 0
      %3536 = vmatpush1.bf16.xpose.msra.mxu0 0
      %3537 = vmatprep.subr.bf16.mxu0 0
      %3538 = vmatpush1.bf16.xpose.msra.mxu0 0
      %3539 = vmatprep.subr.bf16.mxu0 0
      %3540 = vmatpush1.bf16.xpose.msra.mxu0 0
      %3541 = vmatprep.subr.bf16.mxu0 0
      %3542 = vmatpush1.bf16.xpose.msra.mxu0 %v3525
      %3543 = vmatprep.subr.bf16.mxu0 0
      %3544 = vmatpush2.bf16.xpose.msra.mxu0 0
      %3545 = vmatprep.subr.bf16.mxu0 0
      %3546 = vmatpush2.bf16.xpose.msra.mxu0 0
      %3547 = vmatprep.subr.bf16.mxu0 0
      %3548 = vmatpush2.bf16.xpose.msra.mxu0 0
      %3549 = vmatprep.subr.bf16.mxu0 0
      %3550 = vmatpush2.bf16.xpose.msra.mxu0 0
      %3551 = vmatprep.subr.bf16.mxu0 0
      %3552 = vmatpush2.bf16.xpose.msra.mxu0 0
      %3553 = vmatprep.subr.bf16.mxu0 0
      %3554 = vmatpush2.bf16.xpose.msra.mxu0 0
      %3555 = vmatprep.subr.bf16.mxu0 0
      %3556 = vmatpush2.bf16.xpose.msra.mxu0 0
      %3557 = vmatprep.subr.bf16.mxu0 0
      %3558 = vmatpush2.bf16.xpose.msra.mxu0 0
      %3559 = vmatprep.mubr.bf16.mxu0 0
      %3560 = vmatmul.mubr.bf16.gmra.mxu0 %v3522
      %v3561 = vpop.f32.mrf.mxu0
      %v3562 = vadd.f32 0.0, %v3561
      %v3563 = vpop.f32.mrf.mxu0
      %v3564 = vpop.f32.mrf.mxu0
      %v3565 = vpop.f32.mrf.mxu0
      %3566 = vdwg.mxu0
      %v3568 = vsel %vm3382, %v3330, 0
      %v3571 = vsel %vm3382, %v3354, 0
      %3573 = vmatprep.subr.bf16.mxu0 0
      %3574 = vmatpush1.bf16.xpose.msra.mxu0 0
      %3575 = vmatprep.subr.bf16.mxu0 0
      %3576 = vmatpush1.bf16.xpose.msra.mxu0 0
      %3577 = vmatprep.subr.bf16.mxu0 0
      %3578 = vmatpush1.bf16.xpose.msra.mxu0 0
      %3579 = vmatprep.subr.bf16.mxu0 0
      %3580 = vmatpush1.bf16.xpose.msra.mxu0 0
      %3581 = vmatprep.subr.bf16.mxu0 0
      %3582 = vmatpush1.bf16.xpose.msra.mxu0 0
      %3583 = vmatprep.subr.bf16.mxu0 0
      %3584 = vmatpush1.bf16.xpose.msra.mxu0 0
      %3585 = vmatprep.subr.bf16.mxu0 0
      %3586 = vmatpush1.bf16.xpose.msra.mxu0 0
      %3587 = vmatprep.subr.bf16.mxu0 0
      %3588 = vmatpush1.bf16.xpose.msra.mxu0 %v3571
      %3589 = vmatprep.subr.bf16.mxu0 0
      %3590 = vmatpush2.bf16.xpose.msra.mxu0 0
      %3591 = vmatprep.subr.bf16.mxu0 0
      %3592 = vmatpush2.bf16.xpose.msra.mxu0 0
      %3593 = vmatprep.subr.bf16.mxu0 0
      %3594 = vmatpush2.bf16.xpose.msra.mxu0 0
      %3595 = vmatprep.subr.bf16.mxu0 0
      %3596 = vmatpush2.bf16.xpose.msra.mxu0 0
      %3597 = vmatprep.subr.bf16.mxu0 0
      %3598 = vmatpush2.bf16.xpose.msra.mxu0 0
      %3599 = vmatprep.subr.bf16.mxu0 0
      %3600 = vmatpush2.bf16.xpose.msra.mxu0 0
      %3601 = vmatprep.subr.bf16.mxu0 0
      %3602 = vmatpush2.bf16.xpose.msra.mxu0 0
      %3603 = vmatprep.subr.bf16.mxu0 0
      %3604 = vmatpush2.bf16.xpose.msra.mxu0 0
      %3605 = vmatprep.mubr.bf16.mxu0 0
      %3606 = vmatmul.mubr.bf16.gmra.mxu0 %v3568
      %v3607 = vpop.f32.mrf.mxu0
      %v3608 = vadd.f32 0.0, %v3607
      %v3609 = vpop.f32.mrf.mxu0
      %v3610 = vpop.f32.mrf.mxu0
      %v3611 = vpop.f32.mrf.mxu0
      %3612 = vdwg.mxu0
      %v3614 = vsel %vm3382, %v3331, 0
      %v3617 = vsel %vm3382, %v3355, 0
      %3619 = vmatprep.subr.bf16.mxu0 0
      %3620 = vmatpush1.bf16.xpose.msra.mxu0 0
      %3621 = vmatprep.subr.bf16.mxu0 0
      %3622 = vmatpush1.bf16.xpose.msra.mxu0 0
      %3623 = vmatprep.subr.bf16.mxu0 0
      %3624 = vmatpush1.bf16.xpose.msra.mxu0 0
      %3625 = vmatprep.subr.bf16.mxu0 0
      %3626 = vmatpush1.bf16.xpose.msra.mxu0 0
      %3627 = vmatprep.subr.bf16.mxu0 0
      %3628 = vmatpush1.bf16.xpose.msra.mxu0 0
      %3629 = vmatprep.subr.bf16.mxu0 0
      %3630 = vmatpush1.bf16.xpose.msra.mxu0 0
      %3631 = vmatprep.subr.bf16.mxu0 0
      %3632 = vmatpush1.bf16.xpose.msra.mxu0 0
      %3633 = vmatprep.subr.bf16.mxu0 0
      %3634 = vmatpush1.bf16.xpose.msra.mxu0 %v3617
      %3635 = vmatprep.subr.bf16.mxu0 0
      %3636 = vmatpush2.bf16.xpose.msra.mxu0 0
      %3637 = vmatprep.subr.bf16.mxu0 0
      %3638 = vmatpush2.bf16.xpose.msra.mxu0 0
      %3639 = vmatprep.subr.bf16.mxu0 0
      %3640 = vmatpush2.bf16.xpose.msra.mxu0 0
      %3641 = vmatprep.subr.bf16.mxu0 0
      %3642 = vmatpush2.bf16.xpose.msra.mxu0 0
      %3643 = vmatprep.subr.bf16.mxu0 0
      %3644 = vmatpush2.bf16.xpose.msra.mxu0 0
      %3645 = vmatprep.subr.bf16.mxu0 0
      %3646 = vmatpush2.bf16.xpose.msra.mxu0 0
      %3647 = vmatprep.subr.bf16.mxu0 0
      %3648 = vmatpush2.bf16.xpose.msra.mxu0 0
      %3649 = vmatprep.subr.bf16.mxu0 0
      %3650 = vmatpush2.bf16.xpose.msra.mxu0 0
      %3651 = vmatprep.mubr.bf16.mxu0 0
      %3652 = vmatmul.mubr.bf16.gmra.mxu0 %v3614
      %v3653 = vpop.f32.mrf.mxu0
      %v3654 = vadd.f32 0.0, %v3653
      %v3655 = vpop.f32.mrf.mxu0
      %v3656 = vpop.f32.mrf.mxu0
      %v3657 = vpop.f32.mrf.mxu0
      %3658 = vdwg.mxu0
      %v3660 = vsel %vm3382, %v3332, 0
      %v3663 = vsel %vm3382, %v3356, 0
      %3665 = vmatprep.subr.bf16.mxu0 0
      %3666 = vmatpush1.bf16.xpose.msra.mxu0 0
      %3667 = vmatprep.subr.bf16.mxu0 0
      %3668 = vmatpush1.bf16.xpose.msra.mxu0 0
      %3669 = vmatprep.subr.bf16.mxu0 0
      %3670 = vmatpush1.bf16.xpose.msra.mxu0 0
      %3671 = vmatprep.subr.bf16.mxu0 0
      %3672 = vmatpush1.bf16.xpose.msra.mxu0 0
      %3673 = vmatprep.subr.bf16.mxu0 0
      %3674 = vmatpush1.bf16.xpose.msra.mxu0 0
      %3675 = vmatprep.subr.bf16.mxu0 0
      %3676 = vmatpush1.bf16.xpose.msra.mxu0 0
      %3677 = vmatprep.subr.bf16.mxu0 0
      %3678 = vmatpush1.bf16.xpose.msra.mxu0 0
      %3679 = vmatprep.subr.bf16.mxu0 0
      %3680 = vmatpush1.bf16.xpose.msra.mxu0 %v3663
      %3681 = vmatprep.subr.bf16.mxu0 0
      %3682 = vmatpush2.bf16.xpose.msra.mxu0 0
      %3683 = vmatprep.subr.bf16.mxu0 0
      %3684 = vmatpush2.bf16.xpose.msra.mxu0 0
      %3685 = vmatprep.subr.bf16.mxu0 0
      %3686 = vmatpush2.bf16.xpose.msra.mxu0 0
      %3687 = vmatprep.subr.bf16.mxu0 0
      %3688 = vmatpush2.bf16.xpose.msra.mxu0 0
      %3689 = vmatprep.subr.bf16.mxu0 0
      %3690 = vmatpush2.bf16.xpose.msra.mxu0 0
      %3691 = vmatprep.subr.bf16.mxu0 0
      %3692 = vmatpush2.bf16.xpose.msra.mxu0 0
      %3693 = vmatprep.subr.bf16.mxu0 0
      %3694 = vmatpush2.bf16.xpose.msra.mxu0 0
      %3695 = vmatprep.subr.bf16.mxu0 0
      %3696 = vmatpush2.bf16.xpose.msra.mxu0 0
      %3697 = vmatprep.mubr.bf16.mxu0 0
      %3698 = vmatmul.mubr.bf16.gmra.mxu0 %v3660
      %v3699 = vpop.f32.mrf.mxu0
      %v3700 = vadd.f32 0.0, %v3699
      %v3701 = vpop.f32.mrf.mxu0
      %v3702 = vpop.f32.mrf.mxu0
      %v3703 = vpop.f32.mrf.mxu0
      %3704 = vdwg.mxu0
      %v3706 = vsel %vm3382, %v3333, 0
      %v3709 = vsel %vm3382, %v3357, 0
      %3711 = vmatprep.subr.bf16.mxu0 0
      %3712 = vmatpush1.bf16.xpose.msra.mxu0 0
      %3713 = vmatprep.subr.bf16.mxu0 0
      %3714 = vmatpush1.bf16.xpose.msra.mxu0 0
      %3715 = vmatprep.subr.bf16.mxu0 0
      %3716 = vmatpush1.bf16.xpose.msra.mxu0 0
      %3717 = vmatprep.subr.bf16.mxu0 0
      %3718 = vmatpush1.bf16.xpose.msra.mxu0 0
      %3719 = vmatprep.subr.bf16.mxu0 0
      %3720 = vmatpush1.bf16.xpose.msra.mxu0 0
      %3721 = vmatprep.subr.bf16.mxu0 0
      %3722 = vmatpush1.bf16.xpose.msra.mxu0 0
      %3723 = vmatprep.subr.bf16.mxu0 0
      %3724 = vmatpush1.bf16.xpose.msra.mxu0 0
      %3725 = vmatprep.subr.bf16.mxu0 0
      %3726 = vmatpush1.bf16.xpose.msra.mxu0 %v3709
      %3727 = vmatprep.subr.bf16.mxu0 0
      %3728 = vmatpush2.bf16.xpose.msra.mxu0 0
      %3729 = vmatprep.subr.bf16.mxu0 0
      %3730 = vmatpush2.bf16.xpose.msra.mxu0 0
      %3731 = vmatprep.subr.bf16.mxu0 0
      %3732 = vmatpush2.bf16.xpose.msra.mxu0 0
      %3733 = vmatprep.subr.bf16.mxu0 0
      %3734 = vmatpush2.bf16.xpose.msra.mxu0 0
      %3735 = vmatprep.subr.bf16.mxu0 0
      %3736 = vmatpush2.bf16.xpose.msra.mxu0 0
      %3737 = vmatprep.subr.bf16.mxu0 0
      %3738 = vmatpush2.bf16.xpose.msra.mxu0 0
      %3739 = vmatprep.subr.bf16.mxu0 0
      %3740 = vmatpush2.bf16.xpose.msra.mxu0 0
      %3741 = vmatprep.subr.bf16.mxu0 0
      %3742 = vmatpush2.bf16.xpose.msra.mxu0 0
      %3743 = vmatprep.mubr.bf16.mxu0 0
      %3744 = vmatmul.mubr.bf16.gmra.mxu0 %v3706
      %v3745 = vpop.f32.mrf.mxu0
      %v3746 = vadd.f32 0.0, %v3745
      %v3747 = vpop.f32.mrf.mxu0
      %v3748 = vpop.f32.mrf.mxu0
      %v3749 = vpop.f32.mrf.mxu0
      %3750 = vdwg.mxu0
      %vm3751 = vcmask 64512
      %v3752 = vsel %vm3751, %v3424, -inf
      %3753 = vmax.xlane.f32.xlu0 %v3752
      %v3754 = vpop.xlane.xlu0 %3753
      %v3755 = vsel %vm3751, %v3470, -inf
      %3756 = vmax.xlane.f32.xlu0 %v3755
      %v3757 = vpop.xlane.xlu0 %3756
      %v3758 = vsel %vm3751, %v3516, -inf
      %3759 = vmax.xlane.f32.xlu0 %v3758
      %v3760 = vpop.xlane.xlu0 %3759
      %v3761 = vsel %vm3751, %v3562, -inf
      %3762 = vmax.xlane.f32.xlu0 %v3761
      %v3763 = vpop.xlane.xlu0 %3762
      %v3764 = vsel %vm3751, %v3608, -inf
      %3765 = vmax.xlane.f32.xlu0 %v3764
      %v3766 = vpop.xlane.xlu0 %3765
      %v3767 = vsel %vm3751, %v3654, -inf
      %3768 = vmax.xlane.f32.xlu0 %v3767
      %v3769 = vpop.xlane.xlu0 %3768
      %v3770 = vsel %vm3751, %v3700, -inf
      %3771 = vmax.xlane.f32.xlu0 %v3770
      %v3772 = vpop.xlane.xlu0 %3771
      %v3773 = vsel %vm3751, %v3746, -inf
      %3774 = vmax.xlane.f32.xlu0 %v3773
      %v3775 = vpop.xlane.xlu0 %3774
      %v3776 = vsub.f32 %v3424, %v3754
      %v3777 = vsub.f32 %v3470, %v3757
      %v3778 = vsub.f32 %v3516, %v3760
      %v3779 = vsub.f32 %v3562, %v3763
      %v3780 = vsub.f32 %v3608, %v3766
      %v3781 = vsub.f32 %v3654, %v3769
      %v3782 = vsub.f32 %v3700, %v3772
      %v3783 = vsub.f32 %v3746, %v3775
      %v3784 = vmul.f32 %v3776, 1.442695
      %v3785 = vpow.pop %v3784
      %v3786 = vmul.f32 %v3777, 1.442695
      %v3787 = vpow.pop %v3786
      %v3788 = vmul.f32 %v3778, 1.442695
      %v3789 = vpow.pop %v3788
      %v3790 = vmul.f32 %v3779, 1.442695
      %v3791 = vpow.pop %v3790
      %v3792 = vmul.f32 %v3780, 1.442695
      %v3793 = vpow.pop %v3792
      %v3794 = vmul.f32 %v3781, 1.442695
      %v3795 = vpow.pop %v3794
      %v3796 = vmul.f32 %v3782, 1.442695
      %v3797 = vpow.pop %v3796
      %v3798 = vmul.f32 %v3783, 1.442695
      %v3799 = vpow.pop %v3798
      %v3800 = vsel %vm3751, %v3785, 0.0
      %3801 = vadd.xlane.f32.xlu0 %v3800
      %v3802 = vpop.xlane.xlu0 %3801
      %v3803 = vsel %vm3751, %v3787, 0.0
      %3804 = vadd.xlane.f32.xlu0 %v3803
      %v3805 = vpop.xlane.xlu0 %3804
      %v3806 = vsel %vm3751, %v3789, 0.0
      %3807 = vadd.xlane.f32.xlu0 %v3806
      %v3808 = vpop.xlane.xlu0 %3807
      %v3809 = vsel %vm3751, %v3791, 0.0
      %3810 = vadd.xlane.f32.xlu0 %v3809
      %v3811 = vpop.xlane.xlu0 %3810
      %v3812 = vsel %vm3751, %v3793, 0.0
      %3813 = vadd.xlane.f32.xlu0 %v3812
      %v3814 = vpop.xlane.xlu0 %3813
      %v3815 = vsel %vm3751, %v3795, 0.0
      %3816 = vadd.xlane.f32.xlu0 %v3815
      %v3817 = vpop.xlane.xlu0 %3816
      %v3818 = vsel %vm3751, %v3797, 0.0
      %3819 = vadd.xlane.f32.xlu0 %v3818
      %v3820 = vpop.xlane.xlu0 %3819
      %v3821 = vsel %vm3751, %v3799, 0.0
      %3822 = vadd.xlane.f32.xlu0 %v3821
      %v3823 = vpop.xlane.xlu0 %3822
      %v3824 = vrcp.pop %v3802
      %v3825 = vrcp.pop %v3805
      %v3826 = vrcp.pop %v3808
      %v3827 = vrcp.pop %v3811
      %v3828 = vrcp.pop %v3814
      %v3829 = vrcp.pop %v3817
      %v3830 = vrcp.pop %v3820
      %v3831 = vrcp.pop %v3823
      %v3832 = vmul.f32 %v3785, %v3824
      %v3833 = vmul.f32 %v3787, %v3825
      %v3834 = vmul.f32 %v3789, %v3826
      %v3835 = vmul.f32 %v3791, %v3827
      %v3836 = vmul.f32 %v3793, %v3828
      %v3837 = vmul.f32 %v3795, %v3829
      %v3838 = vmul.f32 %v3797, %v3830
      %v3839 = vmul.f32 %v3799, %v3831
      %v3840 = vpack.c.bf16 %v3832, %v3832
      %v3841 = vpack.c.bf16 %v3833, %v3833
      %v3842 = vpack.c.bf16 %v3834, %v3834
      %v3843 = vpack.c.bf16 %v3835, %v3835
      %v3844 = vpack.c.bf16 %v3836, %v3836
      %v3845 = vpack.c.bf16 %v3837, %v3837
      %v3846 = vpack.c.bf16 %v3838, %v3838
      %v3847 = vpack.c.bf16 %v3839, %v3839
      %v3849 = vsel %vm3751, %v3840, 0
      %vm3851 = vcmask 1043456
      %v3853 = vsel %vm3851, %v3374, 0
      %3855 = vmatprep.subr.bf16.mxu0 0
      %3856 = vmatpush1.bf16.msra.mxu0 0
      %3857 = vmatprep.subr.bf16.mxu0 0
      %3858 = vmatpush1.bf16.msra.mxu0 0
      %3859 = vmatprep.subr.bf16.mxu0 0
      %3860 = vmatpush1.bf16.msra.mxu0 0
      %3861 = vmatprep.subr.bf16.mxu0 0
      %3862 = vmatpush1.bf16.msra.mxu0 0
      %3863 = vmatprep.subr.bf16.mxu0 0
      %3864 = vmatpush1.bf16.msra.mxu0 0
      %3865 = vmatprep.subr.bf16.mxu0 0
      %3866 = vmatpush1.bf16.msra.mxu0 0
      %3867 = vmatprep.subr.bf16.mxu0 0
      %3868 = vmatpush1.bf16.msra.mxu0 0
      %3869 = vmatprep.subr.bf16.mxu0 0
      %3870 = vmatpush1.bf16.msra.mxu0 %v3853
      %3871 = vmatprep.subr.bf16.mxu0 0
      %3872 = vmatpush2.bf16.msra.mxu0 0
      %3873 = vmatprep.subr.bf16.mxu0 0
      %3874 = vmatpush2.bf16.msra.mxu0 0
      %3875 = vmatprep.subr.bf16.mxu0 0
      %3876 = vmatpush2.bf16.msra.mxu0 0
      %3877 = vmatprep.subr.bf16.mxu0 0
      %3878 = vmatpush2.bf16.msra.mxu0 0
      %3879 = vmatprep.subr.bf16.mxu0 0
      %3880 = vmatpush2.bf16.msra.mxu0 0
      %3881 = vmatprep.subr.bf16.mxu0 0
      %3882 = vmatpush2.bf16.msra.mxu0 0
      %3883 = vmatprep.subr.bf16.mxu0 0
      %3884 = vmatpush2.bf16.msra.mxu0 0
      %3885 = vmatprep.subr.bf16.mxu0 0
      %3886 = vmatpush2.bf16.msra.mxu0 0
      %3887 = vmatprep.mubr.bf16.mxu0 0
      %3888 = vmatmul.mubr.bf16.gmra.mxu0 %v3849
      %v3889 = vpop.f32.mrf.mxu0
      %v3890 = vadd.f32 0.0, %v3889
      %v3891 = vpop.f32.mrf.mxu0
      %v3892 = vpop.f32.mrf.mxu0
      %v3893 = vpop.f32.mrf.mxu0
      %3894 = vdwg.mxu0
      %v3896 = vsel %vm3751, %v3841, 0
      %v3899 = vsel %vm3851, %v3375, 0
      %3901 = vmatprep.subr.bf16.mxu0 0
      %3902 = vmatpush1.bf16.msra.mxu0 0
      %3903 = vmatprep.subr.bf16.mxu0 0
      %3904 = vmatpush1.bf16.msra.mxu0 0
      %3905 = vmatprep.subr.bf16.mxu0 0
      %3906 = vmatpush1.bf16.msra.mxu0 0
      %3907 = vmatprep.subr.bf16.mxu0 0
      %3908 = vmatpush1.bf16.msra.mxu0 0
      %3909 = vmatprep.subr.bf16.mxu0 0
      %3910 = vmatpush1.bf16.msra.mxu0 0
      %3911 = vmatprep.subr.bf16.mxu0 0
      %3912 = vmatpush1.bf16.msra.mxu0 0
      %3913 = vmatprep.subr.bf16.mxu0 0
      %3914 = vmatpush1.bf16.msra.mxu0 0
      %3915 = vmatprep.subr.bf16.mxu0 0
      %3916 = vmatpush1.bf16.msra.mxu0 %v3899
      %3917 = vmatprep.subr.bf16.mxu0 0
      %3918 = vmatpush2.bf16.msra.mxu0 0
      %3919 = vmatprep.subr.bf16.mxu0 0
      %3920 = vmatpush2.bf16.msra.mxu0 0
      %3921 = vmatprep.subr.bf16.mxu0 0
      %3922 = vmatpush2.bf16.msra.mxu0 0
      %3923 = vmatprep.subr.bf16.mxu0 0
      %3924 = vmatpush2.bf16.msra.mxu0 0
      %3925 = vmatprep.subr.bf16.mxu0 0
      %3926 = vmatpush2.bf16.msra.mxu0 0
      %3927 = vmatprep.subr.bf16.mxu0 0
      %3928 = vmatpush2.bf16.msra.mxu0 0
      %3929 = vmatprep.subr.bf16.mxu0 0
      %3930 = vmatpush2.bf16.msra.mxu0 0
      %3931 = vmatprep.subr.bf16.mxu0 0
      %3932 = vmatpush2.bf16.msra.mxu0 0
      %3933 = vmatprep.mubr.bf16.mxu0 0
      %3934 = vmatmul.mubr.bf16.gmra.mxu0 %v3896
      %v3935 = vpop.f32.mrf.mxu0
      %v3936 = vadd.f32 0.0, %v3935
      %v3937 = vpop.f32.mrf.mxu0
      %v3938 = vpop.f32.mrf.mxu0
      %v3939 = vpop.f32.mrf.mxu0
      %3940 = vdwg.mxu0
      %v3942 = vsel %vm3751, %v3842, 0
      %v3945 = vsel %vm3851, %v3376, 0
      %3947 = vmatprep.subr.bf16.mxu0 0
      %3948 = vmatpush1.bf16.msra.mxu0 0
      %3949 = vmatprep.subr.bf16.mxu0 0
      %3950 = vmatpush1.bf16.msra.mxu0 0
      %3951 = vmatprep.subr.bf16.mxu0 0
      %3952 = vmatpush1.bf16.msra.mxu0 0
      %3953 = vmatprep.subr.bf16.mxu0 0
      %3954 = vmatpush1.bf16.msra.mxu0 0
      %3955 = vmatprep.subr.bf16.mxu0 0
      %3956 = vmatpush1.bf16.msra.mxu0 0
      %3957 = vmatprep.subr.bf16.mxu0 0
      %3958 = vmatpush1.bf16.msra.mxu0 0
      %3959 = vmatprep.subr.bf16.mxu0 0
      %3960 = vmatpush1.bf16.msra.mxu0 0
      %3961 = vmatprep.subr.bf16.mxu0 0
      %3962 = vmatpush1.bf16.msra.mxu0 %v3945
      %3963 = vmatprep.subr.bf16.mxu0 0
      %3964 = vmatpush2.bf16.msra.mxu0 0
      %3965 = vmatprep.subr.bf16.mxu0 0
      %3966 = vmatpush2.bf16.msra.mxu0 0
      %3967 = vmatprep.subr.bf16.mxu0 0
      %3968 = vmatpush2.bf16.msra.mxu0 0
      %3969 = vmatprep.subr.bf16.mxu0 0
      %3970 = vmatpush2.bf16.msra.mxu0 0
      %3971 = vmatprep.subr.bf16.mxu0 0
      %3972 = vmatpush2.bf16.msra.mxu0 0
      %3973 = vmatprep.subr.bf16.mxu0 0
      %3974 = vmatpush2.bf16.msra.mxu0 0
      %3975 = vmatprep.subr.bf16.mxu0 0
      %3976 = vmatpush2.bf16.msra.mxu0 0
      %3977 = vmatprep.subr.bf16.mxu0 0
      %3978 = vmatpush2.bf16.msra.mxu0 0
      %3979 = vmatprep.mubr.bf16.mxu0 0
      %3980 = vmatmul.mubr.bf16.gmra.mxu0 %v3942
      %v3981 = vpop.f32.mrf.mxu0
      %v3982 = vadd.f32 0.0, %v3981
      %v3983 = vpop.f32.mrf.mxu0
      %v3984 = vpop.f32.mrf.mxu0
      %v3985 = vpop.f32.mrf.mxu0
      %3986 = vdwg.mxu0
      %v3988 = vsel %vm3751, %v3843, 0
      %v3991 = vsel %vm3851, %v3377, 0
      %3993 = vmatprep.subr.bf16.mxu0 0
      %3994 = vmatpush1.bf16.msra.mxu0 0
      %3995 = vmatprep.subr.bf16.mxu0 0
      %3996 = vmatpush1.bf16.msra.mxu0 0
      %3997 = vmatprep.subr.bf16.mxu0 0
      %3998 = vmatpush1.bf16.msra.mxu0 0
      %3999 = vmatprep.subr.bf16.mxu0 0
      %4000 = vmatpush1.bf16.msra.mxu0 0
      %4001 = vmatprep.subr.bf16.mxu0 0
      %4002 = vmatpush1.bf16.msra.mxu0 0
      %4003 = vmatprep.subr.bf16.mxu0 0
      %4004 = vmatpush1.bf16.msra.mxu0 0
      %4005 = vmatprep.subr.bf16.mxu0 0
      %4006 = vmatpush1.bf16.msra.mxu0 0
      %4007 = vmatprep.subr.bf16.mxu0 0
      %4008 = vmatpush1.bf16.msra.mxu0 %v3991
      %4009 = vmatprep.subr.bf16.mxu0 0
      %4010 = vmatpush2.bf16.msra.mxu0 0
      %4011 = vmatprep.subr.bf16.mxu0 0
      %4012 = vmatpush2.bf16.msra.mxu0 0
      %4013 = vmatprep.subr.bf16.mxu0 0
      %4014 = vmatpush2.bf16.msra.mxu0 0
      %4015 = vmatprep.subr.bf16.mxu0 0
      %4016 = vmatpush2.bf16.msra.mxu0 0
      %4017 = vmatprep.subr.bf16.mxu0 0
      %4018 = vmatpush2.bf16.msra.mxu0 0
      %4019 = vmatprep.subr.bf16.mxu0 0
      %4020 = vmatpush2.bf16.msra.mxu0 0
      %4021 = vmatprep.subr.bf16.mxu0 0
      %4022 = vmatpush2.bf16.msra.mxu0 0
      %4023 = vmatprep.subr.bf16.mxu0 0
      %4024 = vmatpush2.bf16.msra.mxu0 0
      %4025 = vmatprep.mubr.bf16.mxu0 0
      %4026 = vmatmul.mubr.bf16.gmra.mxu0 %v3988
      %v4027 = vpop.f32.mrf.mxu0
      %v4028 = vadd.f32 0.0, %v4027
      %v4029 = vpop.f32.mrf.mxu0
      %v4030 = vpop.f32.mrf.mxu0
      %v4031 = vpop.f32.mrf.mxu0
      %4032 = vdwg.mxu0
      %v4034 = vsel %vm3751, %v3844, 0
      %v4037 = vsel %vm3851, %v3378, 0
      %4039 = vmatprep.subr.bf16.mxu0 0
      %4040 = vmatpush1.bf16.msra.mxu0 0
      %4041 = vmatprep.subr.bf16.mxu0 0
      %4042 = vmatpush1.bf16.msra.mxu0 0
      %4043 = vmatprep.subr.bf16.mxu0 0
      %4044 = vmatpush1.bf16.msra.mxu0 0
      %4045 = vmatprep.subr.bf16.mxu0 0
      %4046 = vmatpush1.bf16.msra.mxu0 0
      %4047 = vmatprep.subr.bf16.mxu0 0
      %4048 = vmatpush1.bf16.msra.mxu0 0
      %4049 = vmatprep.subr.bf16.mxu0 0
      %4050 = vmatpush1.bf16.msra.mxu0 0
      %4051 = vmatprep.subr.bf16.mxu0 0
      %4052 = vmatpush1.bf16.msra.mxu0 0
      %4053 = vmatprep.subr.bf16.mxu0 0
      %4054 = vmatpush1.bf16.msra.mxu0 %v4037
      %4055 = vmatprep.subr.bf16.mxu0 0
      %4056 = vmatpush2.bf16.msra.mxu0 0
      %4057 = vmatprep.subr.bf16.mxu0 0
      %4058 = vmatpush2.bf16.msra.mxu0 0
      %4059 = vmatprep.subr.bf16.mxu0 0
      %4060 = vmatpush2.bf16.msra.mxu0 0
      %4061 = vmatprep.subr.bf16.mxu0 0
      %4062 = vmatpush2.bf16.msra.mxu0 0
      %4063 = vmatprep.subr.bf16.mxu0 0
      %4064 = vmatpush2.bf16.msra.mxu0 0
      %4065 = vmatprep.subr.bf16.mxu0 0
      %4066 = vmatpush2.bf16.msra.mxu0 0
      %4067 = vmatprep.subr.bf16.mxu0 0
      %4068 = vmatpush2.bf16.msra.mxu0 0
      %4069 = vmatprep.subr.bf16.mxu0 0
      %4070 = vmatpush2.bf16.msra.mxu0 0
      %4071 = vmatprep.mubr.bf16.mxu0 0
      %4072 = vmatmul.mubr.bf16.gmra.mxu0 %v4034
      %v4073 = vpop.f32.mrf.mxu0
      %v4074 = vadd.f32 0.0, %v4073
      %v4075 = vpop.f32.mrf.mxu0
      %v4076 = vpop.f32.mrf.mxu0
      %v4077 = vpop.f32.mrf.mxu0
      %4078 = vdwg.mxu0
      %v4080 = vsel %vm3751, %v3845, 0
      %v4083 = vsel %vm3851, %v3379, 0
      %4085 = vmatprep.subr.bf16.mxu0 0
      %4086 = vmatpush1.bf16.msra.mxu0 0
      %4087 = vmatprep.subr.bf16.mxu0 0
      %4088 = vmatpush1.bf16.msra.mxu0 0
      %4089 = vmatprep.subr.bf16.mxu0 0
      %4090 = vmatpush1.bf16.msra.mxu0 0
      %4091 = vmatprep.subr.bf16.mxu0 0
      %4092 = vmatpush1.bf16.msra.mxu0 0
      %4093 = vmatprep.subr.bf16.mxu0 0
      %4094 = vmatpush1.bf16.msra.mxu0 0
      %4095 = vmatprep.subr.bf16.mxu0 0
      %4096 = vmatpush1.bf16.msra.mxu0 0
      %4097 = vmatprep.subr.bf16.mxu0 0
      %4098 = vmatpush1.bf16.msra.mxu0 0
      %4099 = vmatprep.subr.bf16.mxu0 0
      %4100 = vmatpush1.bf16.msra.mxu0 %v4083
      %4101 = vmatprep.subr.bf16.mxu0 0
      %4102 = vmatpush2.bf16.msra.mxu0 0
      %4103 = vmatprep.subr.bf16.mxu0 0
      %4104 = vmatpush2.bf16.msra.mxu0 0
      %4105 = vmatprep.subr.bf16.mxu0 0
      %4106 = vmatpush2.bf16.msra.mxu0 0
      %4107 = vmatprep.subr.bf16.mxu0 0
      %4108 = vmatpush2.bf16.msra.mxu0 0
      %4109 = vmatprep.subr.bf16.mxu0 0
      %4110 = vmatpush2.bf16.msra.mxu0 0
      %4111 = vmatprep.subr.bf16.mxu0 0
      %4112 = vmatpush2.bf16.msra.mxu0 0
      %4113 = vmatprep.subr.bf16.mxu0 0
      %4114 = vmatpush2.bf16.msra.mxu0 0
      %4115 = vmatprep.subr.bf16.mxu0 0
      %4116 = vmatpush2.bf16.msra.mxu0 0
      %4117 = vmatprep.mubr.bf16.mxu0 0
      %4118 = vmatmul.mubr.bf16.gmra.mxu0 %v4080
      %v4119 = vpop.f32.mrf.mxu0
      %v4120 = vadd.f32 0.0, %v4119
      %v4121 = vpop.f32.mrf.mxu0
      %v4122 = vpop.f32.mrf.mxu0
      %v4123 = vpop.f32.mrf.mxu0
      %4124 = vdwg.mxu0
      %v4126 = vsel %vm3751, %v3846, 0
      %v4129 = vsel %vm3851, %v3380, 0
      %4131 = vmatprep.subr.bf16.mxu0 0
      %4132 = vmatpush1.bf16.msra.mxu0 0
      %4133 = vmatprep.subr.bf16.mxu0 0
      %4134 = vmatpush1.bf16.msra.mxu0 0
      %4135 = vmatprep.subr.bf16.mxu0 0
      %4136 = vmatpush1.bf16.msra.mxu0 0
      %4137 = vmatprep.subr.bf16.mxu0 0
      %4138 = vmatpush1.bf16.msra.mxu0 0
      %4139 = vmatprep.subr.bf16.mxu0 0
      %4140 = vmatpush1.bf16.msra.mxu0 0
      %4141 = vmatprep.subr.bf16.mxu0 0
      %4142 = vmatpush1.bf16.msra.mxu0 0
      %4143 = vmatprep.subr.bf16.mxu0 0
      %4144 = vmatpush1.bf16.msra.mxu0 0
      %4145 = vmatprep.subr.bf16.mxu0 0
      %4146 = vmatpush1.bf16.msra.mxu0 %v4129
      %4147 = vmatprep.subr.bf16.mxu0 0
      %4148 = vmatpush2.bf16.msra.mxu0 0
      %4149 = vmatprep.subr.bf16.mxu0 0
      %4150 = vmatpush2.bf16.msra.mxu0 0
      %4151 = vmatprep.subr.bf16.mxu0 0
      %4152 = vmatpush2.bf16.msra.mxu0 0
      %4153 = vmatprep.subr.bf16.mxu0 0
      %4154 = vmatpush2.bf16.msra.mxu0 0
      %4155 = vmatprep.subr.bf16.mxu0 0
      %4156 = vmatpush2.bf16.msra.mxu0 0
      %4157 = vmatprep.subr.bf16.mxu0 0
      %4158 = vmatpush2.bf16.msra.mxu0 0
      %4159 = vmatprep.subr.bf16.mxu0 0
      %4160 = vmatpush2.bf16.msra.mxu0 0
      %4161 = vmatprep.subr.bf16.mxu0 0
      %4162 = vmatpush2.bf16.msra.mxu0 0
      %4163 = vmatprep.mubr.bf16.mxu0 0
      %4164 = vmatmul.mubr.bf16.gmra.mxu0 %v4126
      %v4165 = vpop.f32.mrf.mxu0
      %v4166 = vadd.f32 0.0, %v4165
      %v4167 = vpop.f32.mrf.mxu0
      %v4168 = vpop.f32.mrf.mxu0
      %v4169 = vpop.f32.mrf.mxu0
      %4170 = vdwg.mxu0
      %v4172 = vsel %vm3751, %v3847, 0
      %v4175 = vsel %vm3851, %v3381, 0
      %4177 = vmatprep.subr.bf16.mxu0 0
      %4178 = vmatpush1.bf16.msra.mxu0 0
      %4179 = vmatprep.subr.bf16.mxu0 0
      %4180 = vmatpush1.bf16.msra.mxu0 0
      %4181 = vmatprep.subr.bf16.mxu0 0
      %4182 = vmatpush1.bf16.msra.mxu0 0
      %4183 = vmatprep.subr.bf16.mxu0 0
      %4184 = vmatpush1.bf16.msra.mxu0 0
      %4185 = vmatprep.subr.bf16.mxu0 0
      %4186 = vmatpush1.bf16.msra.mxu0 0
      %4187 = vmatprep.subr.bf16.mxu0 0
      %4188 = vmatpush1.bf16.msra.mxu0 0
      %4189 = vmatprep.subr.bf16.mxu0 0
      %4190 = vmatpush1.bf16.msra.mxu0 0
      %4191 = vmatprep.subr.bf16.mxu0 0
      %4192 = vmatpush1.bf16.msra.mxu0 %v4175
      %4193 = vmatprep.subr.bf16.mxu0 0
      %4194 = vmatpush2.bf16.msra.mxu0 0
      %4195 = vmatprep.subr.bf16.mxu0 0
      %4196 = vmatpush2.bf16.msra.mxu0 0
      %4197 = vmatprep.subr.bf16.mxu0 0
      %4198 = vmatpush2.bf16.msra.mxu0 0
      %4199 = vmatprep.subr.bf16.mxu0 0
      %4200 = vmatpush2.bf16.msra.mxu0 0
      %4201 = vmatprep.subr.bf16.mxu0 0
      %4202 = vmatpush2.bf16.msra.mxu0 0
      %4203 = vmatprep.subr.bf16.mxu0 0
      %4204 = vmatpush2.bf16.msra.mxu0 0
      %4205 = vmatprep.subr.bf16.mxu0 0
      %4206 = vmatpush2.bf16.msra.mxu0 0
      %4207 = vmatprep.subr.bf16.mxu0 0
      %4208 = vmatpush2.bf16.msra.mxu0 0
      %4209 = vmatprep.mubr.bf16.mxu0 0
      %4210 = vmatmul.mubr.bf16.gmra.mxu0 %v4172
      %v4211 = vpop.f32.mrf.mxu0
      %v4212 = vadd.f32 0.0, %v4211
      %v4213 = vpop.f32.mrf.mxu0
      %v4214 = vpop.f32.mrf.mxu0
      %v4215 = vpop.f32.mrf.mxu0
      %4216 = vdwg.mxu0
      %4218 = vrot.lane.b32.xlu0 %v3936, 64
      %v4219 = vpop.permute.xlu0 %4218
      %4222 = vrot.lane.b32.xlu0 %v4028, 64
      %v4223 = vpop.permute.xlu0 %4222
      %4226 = vrot.lane.b32.xlu0 %v4120, 64
      %v4227 = vpop.permute.xlu0 %4226
      %4230 = vrot.lane.b32.xlu0 %v4212, 64
      %v4231 = vpop.permute.xlu0 %4230
      %v4233 = vsel %vm3382, %v3890, %v4219
      %v4234 = vsel %vm3382, %v3982, %v4223
      %v4235 = vsel %vm3382, %v4074, %v4227
      %v4236 = vsel %vm3382, %v4166, %v4231
      %v4237 = vpack.c.bf16 %v4233, %v4233
      %v4238 = vpack.c.bf16 %v4234, %v4234
      %v4239 = vpack.c.bf16 %v4235, %v4235
      %v4240 = vpack.c.bf16 %v4236, %v4236
      %v4241 = vld [vmem:[%s3] sm:$0xff]
      %v4242 = vld [vmem:[%s3 + $0x8] sm:$0xff]
      %v4243 = vld [vmem:[%s3 + $0x10] sm:$0xff]
      %v4244 = vld [vmem:[%s3 + $0x18] sm:$0xff]
      %v4245 = vld [vmem:[%s3 + $0x20] sm:$0xff]
      %v4246 = vld [vmem:[%s3 + $0x28] sm:$0xff]
      %v4247 = vld [vmem:[%s3 + $0x30] sm:$0xff]
      %v4248 = vld [vmem:[%s3 + $0x38] sm:$0xff]
      %v4249 = vld [vmem:[%s3 + $0x40] sm:$0xff]
      %v4250 = vld [vmem:[%s3 + $0x48] sm:$0xff]
      %v4251 = vld [vmem:[%s3 + $0x50] sm:$0xff]
      %v4252 = vld [vmem:[%s3 + $0x58] sm:$0xff]
      %v4253 = vld [vmem:[%s3 + $0x60] sm:$0xff]
      %v4254 = vld [vmem:[%s3 + $0x68] sm:$0xff]
      %v4255 = vld [vmem:[%s3 + $0x70] sm:$0xff]
      %v4256 = vld [vmem:[%s3 + $0x78] sm:$0xff]
      %v4257 = vld [vmem:[%s3 + $0x80] sm:$0xff]
      %v4258 = vld [vmem:[%s3 + $0x88] sm:$0xff]
      %v4259 = vld [vmem:[%s3 + $0x90] sm:$0xff]
      %v4260 = vld [vmem:[%s3 + $0x98] sm:$0xff]
      %v4261 = vld [vmem:[%s3 + $0xa0] sm:$0xff]
      %v4262 = vld [vmem:[%s3 + $0xa8] sm:$0xff]
      %v4263 = vld [vmem:[%s3 + $0xb0] sm:$0xff]
      %v4264 = vld [vmem:[%s3 + $0xb8] sm:$0xff]
      %v4265 = vld [vmem:[%s3 + $0xc0] sm:$0xff]
      %v4266 = vld [vmem:[%s3 + $0xc8] sm:$0xff]
      %v4267 = vld [vmem:[%s3 + $0xd0] sm:$0xff]
      %v4268 = vld [vmem:[%s3 + $0xd8] sm:$0xff]
      %v4269 = vld [vmem:[%s3 + $0xe0] sm:$0xff]
      %v4270 = vld [vmem:[%s3 + $0xe8] sm:$0xff]
      %v4271 = vld [vmem:[%s3 + $0xf0] sm:$0xff]
      %v4272 = vld [vmem:[%s3 + $0xf8] sm:$0xff]
      %v4273 = vld [vmem:[%s3 + $0x100] sm:$0xff]
      %v4274 = vld [vmem:[%s3 + $0x108] sm:$0xff]
      %v4275 = vld [vmem:[%s3 + $0x110] sm:$0xff]
      %v4276 = vld [vmem:[%s3 + $0x118] sm:$0xff]
      %v4277 = vld [vmem:[%s3 + $0x120] sm:$0xff]
      %v4278 = vld [vmem:[%s3 + $0x128] sm:$0xff]
      %v4279 = vld [vmem:[%s3 + $0x130] sm:$0xff]
      %v4280 = vld [vmem:[%s3 + $0x138] sm:$0xff]
      %v4281 = vld [vmem:[%s3 + $0x140] sm:$0xff]
      %v4282 = vld [vmem:[%s3 + $0x148] sm:$0xff]
      %v4283 = vld [vmem:[%s3 + $0x150] sm:$0xff]
      %v4284 = vld [vmem:[%s3 + $0x158] sm:$0xff]
      %v4285 = vld [vmem:[%s3 + $0x160] sm:$0xff]
      %v4286 = vld [vmem:[%s3 + $0x168] sm:$0xff]
      %v4287 = vld [vmem:[%s3 + $0x170] sm:$0xff]
      %v4288 = vld [vmem:[%s3 + $0x178] sm:$0xff]
      %v4289 = vld [vmem:[%s3 + $0x180] sm:$0xff]
      %v4290 = vld [vmem:[%s3 + $0x188] sm:$0xff]
      %v4291 = vld [vmem:[%s3 + $0x190] sm:$0xff]
      %v4292 = vld [vmem:[%s3 + $0x198] sm:$0xff]
      %v4293 = vld [vmem:[%s3 + $0x1a0] sm:$0xff]
      %v4294 = vld [vmem:[%s3 + $0x1a8] sm:$0xff]
      %v4295 = vld [vmem:[%s3 + $0x1b0] sm:$0xff]
      %v4296 = vld [vmem:[%s3 + $0x1b8] sm:$0xff]
      %v4297 = vld [vmem:[%s3 + $0x1c0] sm:$0xff]
      %v4298 = vld [vmem:[%s3 + $0x1c8] sm:$0xff]
      %v4299 = vld [vmem:[%s3 + $0x1d0] sm:$0xff]
      %v4300 = vld [vmem:[%s3 + $0x1d8] sm:$0xff]
      %v4301 = vld [vmem:[%s3 + $0x1e0] sm:$0xff]
      %v4302 = vld [vmem:[%s3 + $0x1e8] sm:$0xff]
      %v4303 = vld [vmem:[%s3 + $0x1f0] sm:$0xff]
      %v4304 = vld [vmem:[%s3 + $0x1f8] sm:$0xff]
      %v4305 = vld [vmem:[%s3 + $0x200] sm:$0xff]
      %v4306 = vld [vmem:[%s3 + $0x208] sm:$0xff]
      %v4307 = vld [vmem:[%s3 + $0x210] sm:$0xff]
      %v4308 = vld [vmem:[%s3 + $0x218] sm:$0xff]
      %v4309 = vld [vmem:[%s3 + $0x220] sm:$0xff]
      %v4310 = vld [vmem:[%s3 + $0x228] sm:$0xff]
      %v4311 = vld [vmem:[%s3 + $0x230] sm:$0xff]
      %v4312 = vld [vmem:[%s3 + $0x238] sm:$0xff]
      %v4313 = vld [vmem:[%s3 + $0x240] sm:$0xff]
      %v4314 = vld [vmem:[%s3 + $0x248] sm:$0xff]
      %v4315 = vld [vmem:[%s3 + $0x250] sm:$0xff]
      %v4316 = vld [vmem:[%s3 + $0x258] sm:$0xff]
      %v4317 = vld [vmem:[%s3 + $0x260] sm:$0xff]
      %v4318 = vld [vmem:[%s3 + $0x268] sm:$0xff]
      %v4319 = vld [vmem:[%s3 + $0x270] sm:$0xff]
      %v4320 = vld [vmem:[%s3 + $0x278] sm:$0xff]
      %v4321 = vld [vmem:[%s3 + $0x280] sm:$0xff]
      %v4322 = vld [vmem:[%s3 + $0x288] sm:$0xff]
      %v4323 = vld [vmem:[%s3 + $0x290] sm:$0xff]
      %v4324 = vld [vmem:[%s3 + $0x298] sm:$0xff]
      %v4325 = vld [vmem:[%s3 + $0x2a0] sm:$0xff]
      %v4326 = vld [vmem:[%s3 + $0x2a8] sm:$0xff]
      %v4327 = vld [vmem:[%s3 + $0x2b0] sm:$0xff]
      %v4328 = vld [vmem:[%s3 + $0x2b8] sm:$0xff]
      %v4329 = vld [vmem:[%s3 + $0x2c0] sm:$0xff]
      %v4330 = vld [vmem:[%s3 + $0x2c8] sm:$0xff]
      %v4331 = vld [vmem:[%s3 + $0x2d0] sm:$0xff]
      %v4332 = vld [vmem:[%s3 + $0x2d8] sm:$0xff]
      %v4333 = vld [vmem:[%s3 + $0x2e0] sm:$0xff]
      %v4334 = vld [vmem:[%s3 + $0x2e8] sm:$0xff]
      %v4335 = vld [vmem:[%s3 + $0x2f0] sm:$0xff]
      %v4336 = vld [vmem:[%s3 + $0x2f8] sm:$0xff]
      %v4337 = vld [vmem:[%s3 + $0x300] sm:$0xff]
      %v4338 = vld [vmem:[%s3 + $0x308] sm:$0xff]
      %v4339 = vld [vmem:[%s3 + $0x310] sm:$0xff]
      %v4340 = vld [vmem:[%s3 + $0x318] sm:$0xff]
      %v4341 = vld [vmem:[%s3 + $0x320] sm:$0xff]
      %v4342 = vld [vmem:[%s3 + $0x328] sm:$0xff]
      %v4343 = vld [vmem:[%s3 + $0x330] sm:$0xff]
      %v4344 = vld [vmem:[%s3 + $0x338] sm:$0xff]
      %v4345 = vld [vmem:[%s3 + $0x340] sm:$0xff]
      %v4346 = vld [vmem:[%s3 + $0x348] sm:$0xff]
      %v4347 = vld [vmem:[%s3 + $0x350] sm:$0xff]
      %v4348 = vld [vmem:[%s3 + $0x358] sm:$0xff]
      %v4349 = vld [vmem:[%s3 + $0x360] sm:$0xff]
      %v4350 = vld [vmem:[%s3 + $0x368] sm:$0xff]
      %v4351 = vld [vmem:[%s3 + $0x370] sm:$0xff]
      %v4352 = vld [vmem:[%s3 + $0x378] sm:$0xff]
      %v4353 = vld [vmem:[%s3 + $0x380] sm:$0xff]
      %v4354 = vld [vmem:[%s3 + $0x388] sm:$0xff]
      %v4355 = vld [vmem:[%s3 + $0x390] sm:$0xff]
      %v4356 = vld [vmem:[%s3 + $0x398] sm:$0xff]
      %v4357 = vld [vmem:[%s3 + $0x3a0] sm:$0xff]
      %v4358 = vld [vmem:[%s3 + $0x3a8] sm:$0xff]
      %v4359 = vld [vmem:[%s3 + $0x3b0] sm:$0xff]
      %v4360 = vld [vmem:[%s3 + $0x3b8] sm:$0xff]
      %v4361 = vld [vmem:[%s3 + $0x3c0] sm:$0xff]
      %v4362 = vld [vmem:[%s3 + $0x3c8] sm:$0xff]
      %v4363 = vld [vmem:[%s3 + $0x3d0] sm:$0xff]
      %v4364 = vld [vmem:[%s3 + $0x3d8] sm:$0xff]
      %v4365 = vld [vmem:[%s3 + $0x3e0] sm:$0xff]
      %v4366 = vld [vmem:[%s3 + $0x3e8] sm:$0xff]
      %v4367 = vld [vmem:[%s3 + $0x3f0] sm:$0xff]
      %v4368 = vld [vmem:[%s3 + $0x3f8] sm:$0xff]
      %v4369 = vld [vmem:[%s4] sm:$0xf]
      %v4371 = vlaneseq
      %v4372 = vshrl.u32 %v4371, 7
      %v4373 = vsub.s32 0, %v4372
      %v4374 = vrot.slane %v4369, %v4373
      %v4375 = vlaneseq
      %v4376 = vshrl.u32 %v4375, 7
      %v4377 = vsub.s32 1, %v4376
      %v4378 = vrot.slane %v4369, %v4377
      %v4379 = vlaneseq
      %v4380 = vshrl.u32 %v4379, 7
      %v4381 = vsub.s32 2, %v4380
      %v4382 = vrot.slane %v4369, %v4381
      %v4383 = vlaneseq
      %v4384 = vshrl.u32 %v4383, 7
      %v4385 = vsub.s32 3, %v4384
      %v4386 = vrot.slane %v4369, %v4385
      %v4519 = vunpack.c.l.b16 %v4241
      %v4520 = vunpack.c.h.b16 %v4241
      %v4521 = vunpack.c.l.b16 %v4242
      %v4522 = vunpack.c.h.b16 %v4242
      %v4523 = vunpack.c.l.b16 %v4243
      %v4524 = vunpack.c.h.b16 %v4243
      %v4525 = vunpack.c.l.b16 %v4244
      %v4526 = vunpack.c.h.b16 %v4244
      %v4527 = vunpack.c.l.b16 %v4245
      %v4528 = vunpack.c.h.b16 %v4245
      %v4529 = vunpack.c.l.b16 %v4246
      %v4530 = vunpack.c.h.b16 %v4246
      %v4531 = vunpack.c.l.b16 %v4247
      %v4532 = vunpack.c.h.b16 %v4247
      %v4533 = vunpack.c.l.b16 %v4248
      %v4534 = vunpack.c.h.b16 %v4248
      %v4535 = vunpack.c.l.b16 %v4249
      %v4536 = vunpack.c.h.b16 %v4249
      %v4537 = vunpack.c.l.b16 %v4250
      %v4538 = vunpack.c.h.b16 %v4250
      %v4539 = vunpack.c.l.b16 %v4251
      %v4540 = vunpack.c.h.b16 %v4251
      %v4541 = vunpack.c.l.b16 %v4252
      %v4542 = vunpack.c.h.b16 %v4252
      %v4543 = vunpack.c.l.b16 %v4253
      %v4544 = vunpack.c.h.b16 %v4253
      %v4545 = vunpack.c.l.b16 %v4254
      %v4546 = vunpack.c.h.b16 %v4254
      %v4547 = vunpack.c.l.b16 %v4255
      %v4548 = vunpack.c.h.b16 %v4255
      %v4549 = vunpack.c.l.b16 %v4256
      %v4550 = vunpack.c.h.b16 %v4256
      %v4551 = vunpack.c.l.b16 %v4257
      %v4552 = vunpack.c.h.b16 %v4257
      %v4553 = vunpack.c.l.b16 %v4258
      %v4554 = vunpack.c.h.b16 %v4258
      %v4555 = vunpack.c.l.b16 %v4259
      %v4556 = vunpack.c.h.b16 %v4259
      %v4557 = vunpack.c.l.b16 %v4260
      %v4558 = vunpack.c.h.b16 %v4260
      %v4559 = vunpack.c.l.b16 %v4261
      %v4560 = vunpack.c.h.b16 %v4261
      %v4561 = vunpack.c.l.b16 %v4262
      %v4562 = vunpack.c.h.b16 %v4262
      %v4563 = vunpack.c.l.b16 %v4263
      %v4564 = vunpack.c.h.b16 %v4263
      %v4565 = vunpack.c.l.b16 %v4264
      %v4566 = vunpack.c.h.b16 %v4264
      %v4567 = vunpack.c.l.b16 %v4265
      %v4568 = vunpack.c.h.b16 %v4265
      %v4569 = vunpack.c.l.b16 %v4266
      %v4570 = vunpack.c.h.b16 %v4266
      %v4571 = vunpack.c.l.b16 %v4267
      %v4572 = vunpack.c.h.b16 %v4267
      %v4573 = vunpack.c.l.b16 %v4268
      %v4574 = vunpack.c.h.b16 %v4268
      %v4575 = vunpack.c.l.b16 %v4269
      %v4576 = vunpack.c.h.b16 %v4269
      %v4577 = vunpack.c.l.b16 %v4270
      %v4578 = vunpack.c.h.b16 %v4270
      %v4579 = vunpack.c.l.b16 %v4271
      %v4580 = vunpack.c.h.b16 %v4271
      %v4581 = vunpack.c.l.b16 %v4272
      %v4582 = vunpack.c.h.b16 %v4272
      %v4583 = vunpack.c.l.b16 %v4273
      %v4584 = vunpack.c.h.b16 %v4273
      %v4585 = vunpack.c.l.b16 %v4274
      %v4586 = vunpack.c.h.b16 %v4274
      %v4587 = vunpack.c.l.b16 %v4275
      %v4588 = vunpack.c.h.b16 %v4275
      %v4589 = vunpack.c.l.b16 %v4276
      %v4590 = vunpack.c.h.b16 %v4276
      %v4591 = vunpack.c.l.b16 %v4277
      %v4592 = vunpack.c.h.b16 %v4277
      %v4593 = vunpack.c.l.b16 %v4278
      %v4594 = vunpack.c.h.b16 %v4278
      %v4595 = vunpack.c.l.b16 %v4279
      %v4596 = vunpack.c.h.b16 %v4279
      %v4597 = vunpack.c.l.b16 %v4280
      %v4598 = vunpack.c.h.b16 %v4280
      %v4599 = vunpack.c.l.b16 %v4281
      %v4600 = vunpack.c.h.b16 %v4281
      %v4601 = vunpack.c.l.b16 %v4282
      %v4602 = vunpack.c.h.b16 %v4282
      %v4603 = vunpack.c.l.b16 %v4283
      %v4604 = vunpack.c.h.b16 %v4283
      %v4605 = vunpack.c.l.b16 %v4284
      %v4606 = vunpack.c.h.b16 %v4284
      %v4607 = vunpack.c.l.b16 %v4285
      %v4608 = vunpack.c.h.b16 %v4285
      %v4609 = vunpack.c.l.b16 %v4286
      %v4610 = vunpack.c.h.b16 %v4286
      %v4611 = vunpack.c.l.b16 %v4287
      %v4612 = vunpack.c.h.b16 %v4287
      %v4613 = vunpack.c.l.b16 %v4288
      %v4614 = vunpack.c.h.b16 %v4288
      %v4615 = vunpack.c.l.b16 %v4289
      %v4616 = vunpack.c.h.b16 %v4289
      %v4617 = vunpack.c.l.b16 %v4290
      %v4618 = vunpack.c.h.b16 %v4290
      %v4619 = vunpack.c.l.b16 %v4291
      %v4620 = vunpack.c.h.b16 %v4291
      %v4621 = vunpack.c.l.b16 %v4292
      %v4622 = vunpack.c.h.b16 %v4292
      %v4623 = vunpack.c.l.b16 %v4293
      %v4624 = vunpack.c.h.b16 %v4293
      %v4625 = vunpack.c.l.b16 %v4294
      %v4626 = vunpack.c.h.b16 %v4294
      %v4627 = vunpack.c.l.b16 %v4295
      %v4628 = vunpack.c.h.b16 %v4295
      %v4629 = vunpack.c.l.b16 %v4296
      %v4630 = vunpack.c.h.b16 %v4296
      %v4631 = vunpack.c.l.b16 %v4297
      %v4632 = vunpack.c.h.b16 %v4297
      %v4633 = vunpack.c.l.b16 %v4298
      %v4634 = vunpack.c.h.b16 %v4298
      %v4635 = vunpack.c.l.b16 %v4299
      %v4636 = vunpack.c.h.b16 %v4299
      %v4637 = vunpack.c.l.b16 %v4300
      %v4638 = vunpack.c.h.b16 %v4300
      %v4639 = vunpack.c.l.b16 %v4301
      %v4640 = vunpack.c.h.b16 %v4301
      %v4641 = vunpack.c.l.b16 %v4302
      %v4642 = vunpack.c.h.b16 %v4302
      %v4643 = vunpack.c.l.b16 %v4303
      %v4644 = vunpack.c.h.b16 %v4303
      %v4645 = vunpack.c.l.b16 %v4304
      %v4646 = vunpack.c.h.b16 %v4304
      %v4647 = vunpack.c.l.b16 %v4305
      %v4648 = vunpack.c.h.b16 %v4305
      %v4649 = vunpack.c.l.b16 %v4306
      %v4650 = vunpack.c.h.b16 %v4306
      %v4651 = vunpack.c.l.b16 %v4307
      %v4652 = vunpack.c.h.b16 %v4307
      %v4653 = vunpack.c.l.b16 %v4308
      %v4654 = vunpack.c.h.b16 %v4308
      %v4655 = vunpack.c.l.b16 %v4309
      %v4656 = vunpack.c.h.b16 %v4309
      %v4657 = vunpack.c.l.b16 %v4310
      %v4658 = vunpack.c.h.b16 %v4310
      %v4659 = vunpack.c.l.b16 %v4311
      %v4660 = vunpack.c.h.b16 %v4311
      %v4661 = vunpack.c.l.b16 %v4312
      %v4662 = vunpack.c.h.b16 %v4312
      %v4663 = vunpack.c.l.b16 %v4313
      %v4664 = vunpack.c.h.b16 %v4313
      %v4665 = vunpack.c.l.b16 %v4314
      %v4666 = vunpack.c.h.b16 %v4314
      %v4667 = vunpack.c.l.b16 %v4315
      %v4668 = vunpack.c.h.b16 %v4315
      %v4669 = vunpack.c.l.b16 %v4316
      %v4670 = vunpack.c.h.b16 %v4316
      %v4671 = vunpack.c.l.b16 %v4317
      %v4672 = vunpack.c.h.b16 %v4317
      %v4673 = vunpack.c.l.b16 %v4318
      %v4674 = vunpack.c.h.b16 %v4318
      %v4675 = vunpack.c.l.b16 %v4319
      %v4676 = vunpack.c.h.b16 %v4319
      %v4677 = vunpack.c.l.b16 %v4320
      %v4678 = vunpack.c.h.b16 %v4320
      %v4679 = vunpack.c.l.b16 %v4321
      %v4680 = vunpack.c.h.b16 %v4321
      %v4681 = vunpack.c.l.b16 %v4322
      %v4682 = vunpack.c.h.b16 %v4322
      %v4683 = vunpack.c.l.b16 %v4323
      %v4684 = vunpack.c.h.b16 %v4323
      %v4685 = vunpack.c.l.b16 %v4324
      %v4686 = vunpack.c.h.b16 %v4324
      %v4687 = vunpack.c.l.b16 %v4325
      %v4688 = vunpack.c.h.b16 %v4325
      %v4689 = vunpack.c.l.b16 %v4326
      %v4690 = vunpack.c.h.b16 %v4326
      %v4691 = vunpack.c.l.b16 %v4327
      %v4692 = vunpack.c.h.b16 %v4327
      %v4693 = vunpack.c.l.b16 %v4328
      %v4694 = vunpack.c.h.b16 %v4328
      %v4695 = vunpack.c.l.b16 %v4329
      %v4696 = vunpack.c.h.b16 %v4329
      %v4697 = vunpack.c.l.b16 %v4330
      %v4698 = vunpack.c.h.b16 %v4330
      %v4699 = vunpack.c.l.b16 %v4331
      %v4700 = vunpack.c.h.b16 %v4331
      %v4701 = vunpack.c.l.b16 %v4332
      %v4702 = vunpack.c.h.b16 %v4332
      %v4703 = vunpack.c.l.b16 %v4333
      %v4704 = vunpack.c.h.b16 %v4333
      %v4705 = vunpack.c.l.b16 %v4334
      %v4706 = vunpack.c.h.b16 %v4334
      %v4707 = vunpack.c.l.b16 %v4335
      %v4708 = vunpack.c.h.b16 %v4335
      %v4709 = vunpack.c.l.b16 %v4336
      %v4710 = vunpack.c.h.b16 %v4336
      %v4711 = vunpack.c.l.b16 %v4337
      %v4712 = vunpack.c.h.b16 %v4337
      %v4713 = vunpack.c.l.b16 %v4338
      %v4714 = vunpack.c.h.b16 %v4338
      %v4715 = vunpack.c.l.b16 %v4339
      %v4716 = vunpack.c.h.b16 %v4339
      %v4717 = vunpack.c.l.b16 %v4340
      %v4718 = vunpack.c.h.b16 %v4340
      %v4719 = vunpack.c.l.b16 %v4341
      %v4720 = vunpack.c.h.b16 %v4341
      %v4721 = vunpack.c.l.b16 %v4342
      %v4722 = vunpack.c.h.b16 %v4342
      %v4723 = vunpack.c.l.b16 %v4343
      %v4724 = vunpack.c.h.b16 %v4343
      %v4725 = vunpack.c.l.b16 %v4344
      %v4726 = vunpack.c.h.b16 %v4344
      %v4727 = vunpack.c.l.b16 %v4345
      %v4728 = vunpack.c.h.b16 %v4345
      %v4729 = vunpack.c.l.b16 %v4346
      %v4730 = vunpack.c.h.b16 %v4346
      %v4731 = vunpack.c.l.b16 %v4347
      %v4732 = vunpack.c.h.b16 %v4347
      %v4733 = vunpack.c.l.b16 %v4348
      %v4734 = vunpack.c.h.b16 %v4348
      %v4735 = vunpack.c.l.b16 %v4349
      %v4736 = vunpack.c.h.b16 %v4349
      %v4737 = vunpack.c.l.b16 %v4350
      %v4738 = vunpack.c.h.b16 %v4350
      %v4739 = vunpack.c.l.b16 %v4351
      %v4740 = vunpack.c.h.b16 %v4351
      %v4741 = vunpack.c.l.b16 %v4352
      %v4742 = vunpack.c.h.b16 %v4352
      %v4743 = vunpack.c.l.b16 %v4353
      %v4744 = vunpack.c.h.b16 %v4353
      %v4745 = vunpack.c.l.b16 %v4354
      %v4746 = vunpack.c.h.b16 %v4354
      %v4747 = vunpack.c.l.b16 %v4355
      %v4748 = vunpack.c.h.b16 %v4355
      %v4749 = vunpack.c.l.b16 %v4356
      %v4750 = vunpack.c.h.b16 %v4356
      %v4751 = vunpack.c.l.b16 %v4357
      %v4752 = vunpack.c.h.b16 %v4357
      %v4753 = vunpack.c.l.b16 %v4358
      %v4754 = vunpack.c.h.b16 %v4358
      %v4755 = vunpack.c.l.b16 %v4359
      %v4756 = vunpack.c.h.b16 %v4359
      %v4757 = vunpack.c.l.b16 %v4360
      %v4758 = vunpack.c.h.b16 %v4360
      %v4759 = vunpack.c.l.b16 %v4361
      %v4760 = vunpack.c.h.b16 %v4361
      %v4761 = vunpack.c.l.b16 %v4362
      %v4762 = vunpack.c.h.b16 %v4362
      %v4763 = vunpack.c.l.b16 %v4363
      %v4764 = vunpack.c.h.b16 %v4363
      %v4765 = vunpack.c.l.b16 %v4364
      %v4766 = vunpack.c.h.b16 %v4364
      %v4767 = vunpack.c.l.b16 %v4365
      %v4768 = vunpack.c.h.b16 %v4365
      %v4769 = vunpack.c.l.b16 %v4366
      %v4770 = vunpack.c.h.b16 %v4366
      %v4771 = vunpack.c.l.b16 %v4367
      %v4772 = vunpack.c.h.b16 %v4367
      %v4773 = vunpack.c.l.b16 %v4368
      %v4774 = vunpack.c.h.b16 %v4368
      %v4775 = vpack.c.b16 %v4523, %v4519
      %v4776 = vpack.c.b16 %v4524, %v4520
      %v4777 = vpack.c.b16 %v4525, %v4521
      %v4778 = vpack.c.b16 %v4526, %v4522
      %v4779 = vpack.c.b16 %v4531, %v4527
      %v4780 = vpack.c.b16 %v4532, %v4528
      %v4781 = vpack.c.b16 %v4533, %v4529
      %v4782 = vpack.c.b16 %v4534, %v4530
      %v4783 = vpack.c.b16 %v4539, %v4535
      %v4784 = vpack.c.b16 %v4540, %v4536
      %v4785 = vpack.c.b16 %v4541, %v4537
      %v4786 = vpack.c.b16 %v4542, %v4538
      %v4787 = vpack.c.b16 %v4547, %v4543
      %v4788 = vpack.c.b16 %v4548, %v4544
      %v4789 = vpack.c.b16 %v4549, %v4545
      %v4790 = vpack.c.b16 %v4550, %v4546
      %v4791 = vpack.c.b16 %v4555, %v4551
      %v4792 = vpack.c.b16 %v4556, %v4552
      %v4793 = vpack.c.b16 %v4557, %v4553
      %v4794 = vpack.c.b16 %v4558, %v4554
      %v4795 = vpack.c.b16 %v4563, %v4559
      %v4796 = vpack.c.b16 %v4564, %v4560
      %v4797 = vpack.c.b16 %v4565, %v4561
      %v4798 = vpack.c.b16 %v4566, %v4562
      %v4799 = vpack.c.b16 %v4571, %v4567
      %v4800 = vpack.c.b16 %v4572, %v4568
      %v4801 = vpack.c.b16 %v4573, %v4569
      %v4802 = vpack.c.b16 %v4574, %v4570
      %v4803 = vpack.c.b16 %v4579, %v4575
      %v4804 = vpack.c.b16 %v4580, %v4576
      %v4805 = vpack.c.b16 %v4581, %v4577
      %v4806 = vpack.c.b16 %v4582, %v4578
      %v4807 = vpack.c.b16 %v4587, %v4583
      %v4808 = vpack.c.b16 %v4588, %v4584
      %v4809 = vpack.c.b16 %v4589, %v4585
      %v4810 = vpack.c.b16 %v4590, %v4586
      %v4811 = vpack.c.b16 %v4595, %v4591
      %v4812 = vpack.c.b16 %v4596, %v4592
      %v4813 = vpack.c.b16 %v4597, %v4593
      %v4814 = vpack.c.b16 %v4598, %v4594
      %v4815 = vpack.c.b16 %v4603, %v4599
      %v4816 = vpack.c.b16 %v4604, %v4600
      %v4817 = vpack.c.b16 %v4605, %v4601
      %v4818 = vpack.c.b16 %v4606, %v4602
      %v4819 = vpack.c.b16 %v4611, %v4607
      %v4820 = vpack.c.b16 %v4612, %v4608
      %v4821 = vpack.c.b16 %v4613, %v4609
      %v4822 = vpack.c.b16 %v4614, %v4610
      %v4823 = vpack.c.b16 %v4619, %v4615
      %v4824 = vpack.c.b16 %v4620, %v4616
      %v4825 = vpack.c.b16 %v4621, %v4617
      %v4826 = vpack.c.b16 %v4622, %v4618
      %v4827 = vpack.c.b16 %v4627, %v4623
      %v4828 = vpack.c.b16 %v4628, %v4624
      %v4829 = vpack.c.b16 %v4629, %v4625
      %v4830 = vpack.c.b16 %v4630, %v4626
      %v4831 = vpack.c.b16 %v4635, %v4631
      %v4832 = vpack.c.b16 %v4636, %v4632
      %v4833 = vpack.c.b16 %v4637, %v4633
      %v4834 = vpack.c.b16 %v4638, %v4634
      %v4835 = vpack.c.b16 %v4643, %v4639
      %v4836 = vpack.c.b16 %v4644, %v4640
      %v4837 = vpack.c.b16 %v4645, %v4641
      %v4838 = vpack.c.b16 %v4646, %v4642
      %v4839 = vpack.c.b16 %v4651, %v4647
      %v4840 = vpack.c.b16 %v4652, %v4648
      %v4841 = vpack.c.b16 %v4653, %v4649
      %v4842 = vpack.c.b16 %v4654, %v4650
      %v4843 = vpack.c.b16 %v4659, %v4655
      %v4844 = vpack.c.b16 %v4660, %v4656
      %v4845 = vpack.c.b16 %v4661, %v4657
      %v4846 = vpack.c.b16 %v4662, %v4658
      %v4847 = vpack.c.b16 %v4667, %v4663
      %v4848 = vpack.c.b16 %v4668, %v4664
      %v4849 = vpack.c.b16 %v4669, %v4665
      %v4850 = vpack.c.b16 %v4670, %v4666
      %v4851 = vpack.c.b16 %v4675, %v4671
      %v4852 = vpack.c.b16 %v4676, %v4672
      %v4853 = vpack.c.b16 %v4677, %v4673
      %v4854 = vpack.c.b16 %v4678, %v4674
      %v4855 = vpack.c.b16 %v4683, %v4679
      %v4856 = vpack.c.b16 %v4684, %v4680
      %v4857 = vpack.c.b16 %v4685, %v4681
      %v4858 = vpack.c.b16 %v4686, %v4682
      %v4859 = vpack.c.b16 %v4691, %v4687
      %v4860 = vpack.c.b16 %v4692, %v4688
      %v4861 = vpack.c.b16 %v4693, %v4689
      %v4862 = vpack.c.b16 %v4694, %v4690
      %v4863 = vpack.c.b16 %v4699, %v4695
      %v4864 = vpack.c.b16 %v4700, %v4696
      %v4865 = vpack.c.b16 %v4701, %v4697
      %v4866 = vpack.c.b16 %v4702, %v4698
      %v4867 = vpack.c.b16 %v4707, %v4703
      %v4868 = vpack.c.b16 %v4708, %v4704
      %v4869 = vpack.c.b16 %v4709, %v4705
      %v4870 = vpack.c.b16 %v4710, %v4706
      %v4871 = vpack.c.b16 %v4715, %v4711
      %v4872 = vpack.c.b16 %v4716, %v4712
      %v4873 = vpack.c.b16 %v4717, %v4713
      %v4874 = vpack.c.b16 %v4718, %v4714
      %v4875 = vpack.c.b16 %v4723, %v4719
      %v4876 = vpack.c.b16 %v4724, %v4720
      %v4877 = vpack.c.b16 %v4725, %v4721
      %v4878 = vpack.c.b16 %v4726, %v4722
      %v4879 = vpack.c.b16 %v4731, %v4727
      %v4880 = vpack.c.b16 %v4732, %v4728
      %v4881 = vpack.c.b16 %v4733, %v4729
      %v4882 = vpack.c.b16 %v4734, %v4730
      %v4883 = vpack.c.b16 %v4739, %v4735
      %v4884 = vpack.c.b16 %v4740, %v4736
      %v4885 = vpack.c.b16 %v4741, %v4737
      %v4886 = vpack.c.b16 %v4742, %v4738
      %v4887 = vpack.c.b16 %v4747, %v4743
      %v4888 = vpack.c.b16 %v4748, %v4744
      %v4889 = vpack.c.b16 %v4749, %v4745
      %v4890 = vpack.c.b16 %v4750, %v4746
      %v4891 = vpack.c.b16 %v4755, %v4751
      %v4892 = vpack.c.b16 %v4756, %v4752
      %v4893 = vpack.c.b16 %v4757, %v4753
      %v4894 = vpack.c.b16 %v4758, %v4754
      %v4895 = vpack.c.b16 %v4763, %v4759
      %v4896 = vpack.c.b16 %v4764, %v4760
      %v4897 = vpack.c.b16 %v4765, %v4761
      %v4898 = vpack.c.b16 %v4766, %v4762
      %v4899 = vpack.c.b16 %v4771, %v4767
      %v4900 = vpack.c.b16 %v4772, %v4768
      %v4901 = vpack.c.b16 %v4773, %v4769
      %v4902 = vpack.c.b16 %v4774, %v4770
      %5031 = vmatprep.subr.bf16.mxu0 %v4804
      %5032 = vmatpush1.bf16.msra.mxu0 %v4803
      %5033 = vmatprep.subr.bf16.mxu0 %v4800
      %5034 = vmatpush1.bf16.msra.mxu0 %v4799
      %5035 = vmatprep.subr.bf16.mxu0 %v4796
      %5036 = vmatpush1.bf16.msra.mxu0 %v4795
      %5037 = vmatprep.subr.bf16.mxu0 %v4792
      %5038 = vmatpush1.bf16.msra.mxu0 %v4791
      %5039 = vmatprep.subr.bf16.mxu0 %v4788
      %5040 = vmatpush1.bf16.msra.mxu0 %v4787
      %5041 = vmatprep.subr.bf16.mxu0 %v4784
      %5042 = vmatpush1.bf16.msra.mxu0 %v4783
      %5043 = vmatprep.subr.bf16.mxu0 %v4780
      %5044 = vmatpush1.bf16.msra.mxu0 %v4779
      %5045 = vmatprep.subr.bf16.mxu0 %v4776
      %5046 = vmatpush1.bf16.msra.mxu0 %v4775
      %5047 = vmatprep.subr.bf16.mxu0 %v4836
      %5048 = vmatpush2.bf16.msra.mxu0 %v4835
      %5049 = vmatprep.subr.bf16.mxu0 %v4832
      %5050 = vmatpush2.bf16.msra.mxu0 %v4831
      %5051 = vmatprep.subr.bf16.mxu0 %v4828
      %5052 = vmatpush2.bf16.msra.mxu0 %v4827
      %5053 = vmatprep.subr.bf16.mxu0 %v4824
      %5054 = vmatpush2.bf16.msra.mxu0 %v4823
      %5055 = vmatprep.subr.bf16.mxu0 %v4820
      %5056 = vmatpush2.bf16.msra.mxu0 %v4819
      %5057 = vmatprep.subr.bf16.mxu0 %v4816
      %5058 = vmatpush2.bf16.msra.mxu0 %v4815
      %5059 = vmatprep.subr.bf16.mxu0 %v4812
      %5060 = vmatpush2.bf16.msra.mxu0 %v4811
      %5061 = vmatprep.subr.bf16.mxu0 %v4808
      %5062 = vmatpush2.bf16.msra.mxu0 %v4807
      %5063 = vmatprep.mubr.bf16.mxu0 %v4238
      %5064 = vmatmul.mubr.bf16.gmra.mxu0 %v4237
      %v5065 = vpop.f32.mrf.mxu0
      %v5066 = vadd.f32 %v4374, %v5065
      %v5067 = vpop.f32.mrf.mxu0
      %v5068 = vadd.f32 %v4378, %v5067
      %v5069 = vpop.f32.mrf.mxu0
      %v5070 = vpop.f32.mrf.mxu0
      %5071 = vdwg.mxu0
      %5072 = vmatprep.subr.bf16.mxu0 %v4868
      %5073 = vmatpush1.bf16.msra.mxu0 %v4867
      %5074 = vmatprep.subr.bf16.mxu0 %v4864
      %5075 = vmatpush1.bf16.msra.mxu0 %v4863
      %5076 = vmatprep.subr.bf16.mxu0 %v4860
      %5077 = vmatpush1.bf16.msra.mxu0 %v4859
      %5078 = vmatprep.subr.bf16.mxu0 %v4856
      %5079 = vmatpush1.bf16.msra.mxu0 %v4855
      %5080 = vmatprep.subr.bf16.mxu0 %v4852
      %5081 = vmatpush1.bf16.msra.mxu0 %v4851
      %5082 = vmatprep.subr.bf16.mxu0 %v4848
      %5083 = vmatpush1.bf16.msra.mxu0 %v4847
      %5084 = vmatprep.subr.bf16.mxu0 %v4844
      %5085 = vmatpush1.bf16.msra.mxu0 %v4843
      %5086 = vmatprep.subr.bf16.mxu0 %v4840
      %5087 = vmatpush1.bf16.msra.mxu0 %v4839
      %5088 = vmatprep.subr.bf16.mxu0 %v4900
      %5089 = vmatpush2.bf16.msra.mxu0 %v4899
      %5090 = vmatprep.subr.bf16.mxu0 %v4896
      %5091 = vmatpush2.bf16.msra.mxu0 %v4895
      %5092 = vmatprep.subr.bf16.mxu0 %v4892
      %5093 = vmatpush2.bf16.msra.mxu0 %v4891
      %5094 = vmatprep.subr.bf16.mxu0 %v4888
      %5095 = vmatpush2.bf16.msra.mxu0 %v4887
      %5096 = vmatprep.subr.bf16.mxu0 %v4884
      %5097 = vmatpush2.bf16.msra.mxu0 %v4883
      %5098 = vmatprep.subr.bf16.mxu0 %v4880
      %5099 = vmatpush2.bf16.msra.mxu0 %v4879
      %5100 = vmatprep.subr.bf16.mxu0 %v4876
      %5101 = vmatpush2.bf16.msra.mxu0 %v4875
      %5102 = vmatprep.subr.bf16.mxu0 %v4872
      %5103 = vmatpush2.bf16.msra.mxu0 %v4871
      %5104 = vmatprep.mubr.bf16.mxu0 %v4240
      %5105 = vmatmul.mubr.bf16.gmra.mxu0 %v4239
      %v5106 = vpop.f32.mrf.mxu0
      %v5107 = vadd.f32 %v5066, %v5106
      %v5108 = vpop.f32.mrf.mxu0
      %v5109 = vadd.f32 %v5068, %v5108
      %v5110 = vpop.f32.mrf.mxu0
      %v5111 = vpop.f32.mrf.mxu0
      %5112 = vdwg.mxu0
      %5113 = vmatprep.subr.bf16.mxu0 %v4806
      %5114 = vmatpush1.bf16.msra.mxu0 %v4805
      %5115 = vmatprep.subr.bf16.mxu0 %v4802
      %5116 = vmatpush1.bf16.msra.mxu0 %v4801
      %5117 = vmatprep.subr.bf16.mxu0 %v4798
      %5118 = vmatpush1.bf16.msra.mxu0 %v4797
      %5119 = vmatprep.subr.bf16.mxu0 %v4794
      %5120 = vmatpush1.bf16.msra.mxu0 %v4793
      %5121 = vmatprep.subr.bf16.mxu0 %v4790
      %5122 = vmatpush1.bf16.msra.mxu0 %v4789
      %5123 = vmatprep.subr.bf16.mxu0 %v4786
      %5124 = vmatpush1.bf16.msra.mxu0 %v4785
      %5125 = vmatprep.subr.bf16.mxu0 %v4782
      %5126 = vmatpush1.bf16.msra.mxu0 %v4781
      %5127 = vmatprep.subr.bf16.mxu0 %v4778
      %5128 = vmatpush1.bf16.msra.mxu0 %v4777
      %5129 = vmatprep.subr.bf16.mxu0 %v4838
      %5130 = vmatpush2.bf16.msra.mxu0 %v4837
      %5131 = vmatprep.subr.bf16.mxu0 %v4834
      %5132 = vmatpush2.bf16.msra.mxu0 %v4833
      %5133 = vmatprep.subr.bf16.mxu0 %v4830
      %5134 = vmatpush2.bf16.msra.mxu0 %v4829
      %5135 = vmatprep.subr.bf16.mxu0 %v4826
      %5136 = vmatpush2.bf16.msra.mxu0 %v4825
      %5137 = vmatprep.subr.bf16.mxu0 %v4822
      %5138 = vmatpush2.bf16.msra.mxu0 %v4821
      %5139 = vmatprep.subr.bf16.mxu0 %v4818
      %5140 = vmatpush2.bf16.msra.mxu0 %v4817
      %5141 = vmatprep.subr.bf16.mxu0 %v4814
      %5142 = vmatpush2.bf16.msra.mxu0 %v4813
      %5143 = vmatprep.subr.bf16.mxu0 %v4810
      %5144 = vmatpush2.bf16.msra.mxu0 %v4809
      %5145 = vmatprep.mubr.bf16.mxu0 %v4238
      %5146 = vmatmul.mubr.bf16.gmra.mxu0 %v4237
      %v5147 = vpop.f32.mrf.mxu0
      %v5148 = vadd.f32 %v4382, %v5147
      %v5149 = vpop.f32.mrf.mxu0
      %v5150 = vadd.f32 %v4386, %v5149
      %v5151 = vpop.f32.mrf.mxu0
      %v5152 = vpop.f32.mrf.mxu0
      %5153 = vdwg.mxu0
      %5154 = vmatprep.subr.bf16.mxu0 %v4870
      %5155 = vmatpush1.bf16.msra.mxu0 %v4869
      %5156 = vmatprep.subr.bf16.mxu0 %v4866
      %5157 = vmatpush1.bf16.msra.mxu0 %v4865
      %5158 = vmatprep.subr.bf16.mxu0 %v4862
      %5159 = vmatpush1.bf16.msra.mxu0 %v4861
      %5160 = vmatprep.subr.bf16.mxu0 %v4858
      %5161 = vmatpush1.bf16.msra.mxu0 %v4857
      %5162 = vmatprep.subr.bf16.mxu0 %v4854
      %5163 = vmatpush1.bf16.msra.mxu0 %v4853
      %5164 = vmatprep.subr.bf16.mxu0 %v4850
      %5165 = vmatpush1.bf16.msra.mxu0 %v4849
      %5166 = vmatprep.subr.bf16.mxu0 %v4846
      %5167 = vmatpush1.bf16.msra.mxu0 %v4845
      %5168 = vmatprep.subr.bf16.mxu0 %v4842
      %5169 = vmatpush1.bf16.msra.mxu0 %v4841
      %5170 = vmatprep.subr.bf16.mxu0 %v4902
      %5171 = vmatpush2.bf16.msra.mxu0 %v4901
      %5172 = vmatprep.subr.bf16.mxu0 %v4898
      %5173 = vmatpush2.bf16.msra.mxu0 %v4897
      %5174 = vmatprep.subr.bf16.mxu0 %v4894
      %5175 = vmatpush2.bf16.msra.mxu0 %v4893
      %5176 = vmatprep.subr.bf16.mxu0 %v4890
      %5177 = vmatpush2.bf16.msra.mxu0 %v4889
      %5178 = vmatprep.subr.bf16.mxu0 %v4886
      %5179 = vmatpush2.bf16.msra.mxu0 %v4885
      %5180 = vmatprep.subr.bf16.mxu0 %v4882
      %5181 = vmatpush2.bf16.msra.mxu0 %v4881
      %5182 = vmatprep.subr.bf16.mxu0 %v4878
      %5183 = vmatpush2.bf16.msra.mxu0 %v4877
      %5184 = vmatprep.subr.bf16.mxu0 %v4874
      %5185 = vmatpush2.bf16.msra.mxu0 %v4873
      %5186 = vmatprep.mubr.bf16.mxu0 %v4240
      %5187 = vmatmul.mubr.bf16.gmra.mxu0 %v4239
      %v5188 = vpop.f32.mrf.mxu0
      %v5189 = vadd.f32 %v5148, %v5188
      %v5190 = vpop.f32.mrf.mxu0
      %v5191 = vadd.f32 %v5150, %v5190
      %v5192 = vpop.f32.mrf.mxu0
      %v5193 = vpop.f32.mrf.mxu0
      %5194 = vdwg.mxu0
      %v5195 = vadd.f32 %v442, %v5107
      %v5196 = vadd.f32 %v443, %v5109
      %v5197 = vadd.f32 %v444, %v5189
      %v5198 = vadd.f32 %v445, %v5191
      %v5199 = vld [vmem:[%s5] sm:$0xf]
      %v5200 = vld [vmem:[%s6] sm:$0xf]
      %v5201 = vadd.f32 %v5195, %v5196
      %v5202 = vadd.f32 %v5201, %v5197
      %v5203 = vadd.f32 %v5202, %v5198
      %5204 = vadd.xlane.f32.xlu0 %v5203
      %v5205 = vpop.xlane.xlu0 %5204
      %v5206 = vrcp.pop 512.0
      %v5207 = vmul.f32 %v5205, %v5206
      %v5208 = vsub.f32 %v5195, %v5207
      %v5209 = vsub.f32 %v5196, %v5207
      %v5210 = vsub.f32 %v5197, %v5207
      %v5211 = vsub.f32 %v5198, %v5207
      %v5212 = vmul.f32 %v5208, %v5208
      %v5213 = vmul.f32 %v5209, %v5209
      %v5214 = vmul.f32 %v5210, %v5210
      %v5215 = vmul.f32 %v5211, %v5211
      %v5216 = vadd.f32 %v5212, %v5213
      %v5217 = vadd.f32 %v5216, %v5214
      %v5218 = vadd.f32 %v5217, %v5215
      %5219 = vadd.xlane.f32.xlu0 %v5218
      %v5220 = vpop.xlane.xlu0 %5219
      %v5221 = vmul.f32 %v5220, %v5206
      %v5222 = vadd.f32 %v5221, 1e-05
      %v5223 = vrsqrt.pop %v5222
      %v5224 = vmul.f32 %v5208, %v5223
      %v5225 = vmul.f32 %v5209, %v5223
      %v5226 = vmul.f32 %v5210, %v5223
      %v5227 = vmul.f32 %v5211, %v5223
      %v5229 = vlaneseq
      %v5230 = vshrl.u32 %v5229, 7
      %v5231 = vsub.s32 0, %v5230
      %v5232 = vrot.slane %v5199, %v5231
      %v5233 = vlaneseq
      %v5234 = vshrl.u32 %v5233, 7
      %v5235 = vsub.s32 1, %v5234
      %v5236 = vrot.slane %v5199, %v5235
      %v5237 = vlaneseq
      %v5238 = vshrl.u32 %v5237, 7
      %v5239 = vsub.s32 2, %v5238
      %v5240 = vrot.slane %v5199, %v5239
      %v5241 = vlaneseq
      %v5242 = vshrl.u32 %v5241, 7
      %v5243 = vsub.s32 3, %v5242
      %v5244 = vrot.slane %v5199, %v5243
      %v5249 = vmul.f32 %v5224, %v5232
      %v5250 = vmul.f32 %v5225, %v5236
      %v5251 = vmul.f32 %v5226, %v5240
      %v5252 = vmul.f32 %v5227, %v5244
      %v5254 = vlaneseq
      %v5255 = vshrl.u32 %v5254, 7
      %v5256 = vsub.s32 0, %v5255
      %v5257 = vrot.slane %v5200, %v5256
      %v5258 = vlaneseq
      %v5259 = vshrl.u32 %v5258, 7
      %v5260 = vsub.s32 1, %v5259
      %v5261 = vrot.slane %v5200, %v5260
      %v5262 = vlaneseq
      %v5263 = vshrl.u32 %v5262, 7
      %v5264 = vsub.s32 2, %v5263
      %v5265 = vrot.slane %v5200, %v5264
      %v5266 = vlaneseq
      %v5267 = vshrl.u32 %v5266, 7
      %v5268 = vsub.s32 3, %v5267
      %v5269 = vrot.slane %v5200, %v5268
      %v5274 = vadd.f32 %v5249, %v5257
      %v5275 = vadd.f32 %v5250, %v5261
      %v5276 = vadd.f32 %v5251, %v5265
      %v5277 = vadd.f32 %v5252, %v5269
      %v5278 = vpack.c.bf16 %v5274, %v5274
      %v5279 = vpack.c.bf16 %v5275, %v5275
      %v5280 = vpack.c.bf16 %v5276, %v5276
      %v5281 = vpack.c.bf16 %v5277, %v5277
      %v5282 = vld [vmem:[%s7] sm:$0xff]
      %v5283 = vld [vmem:[%s7 + $0x8] sm:$0xff]
      %v5284 = vld [vmem:[%s7 + $0x10] sm:$0xff]
      %v5285 = vld [vmem:[%s7 + $0x18] sm:$0xff]
      %v5286 = vld [vmem:[%s7 + $0x20] sm:$0xff]
      %v5287 = vld [vmem:[%s7 + $0x28] sm:$0xff]
      %v5288 = vld [vmem:[%s7 + $0x30] sm:$0xff]
      %v5289 = vld [vmem:[%s7 + $0x38] sm:$0xff]
      %v5290 = vld [vmem:[%s7 + $0x40] sm:$0xff]
      %v5291 = vld [vmem:[%s7 + $0x48] sm:$0xff]
      %v5292 = vld [vmem:[%s7 + $0x50] sm:$0xff]
      %v5293 = vld [vmem:[%s7 + $0x58] sm:$0xff]
      %v5294 = vld [vmem:[%s7 + $0x60] sm:$0xff]
      %v5295 = vld [vmem:[%s7 + $0x68] sm:$0xff]
      %v5296 = vld [vmem:[%s7 + $0x70] sm:$0xff]
      %v5297 = vld [vmem:[%s7 + $0x78] sm:$0xff]
      %v5298 = vld [vmem:[%s7 + $0x80] sm:$0xff]
      %v5299 = vld [vmem:[%s7 + $0x88] sm:$0xff]
      %v5300 = vld [vmem:[%s7 + $0x90] sm:$0xff]
      %v5301 = vld [vmem:[%s7 + $0x98] sm:$0xff]
      %v5302 = vld [vmem:[%s7 + $0xa0] sm:$0xff]
      %v5303 = vld [vmem:[%s7 + $0xa8] sm:$0xff]
      %v5304 = vld [vmem:[%s7 + $0xb0] sm:$0xff]
      %v5305 = vld [vmem:[%s7 + $0xb8] sm:$0xff]
      %v5306 = vld [vmem:[%s7 + $0xc0] sm:$0xff]
      %v5307 = vld [vmem:[%s7 + $0xc8] sm:$0xff]
      %v5308 = vld [vmem:[%s7 + $0xd0] sm:$0xff]
      %v5309 = vld [vmem:[%s7 + $0xd8] sm:$0xff]
      %v5310 = vld [vmem:[%s7 + $0xe0] sm:$0xff]
      %v5311 = vld [vmem:[%s7 + $0xe8] sm:$0xff]
      %v5312 = vld [vmem:[%s7 + $0xf0] sm:$0xff]
      %v5313 = vld [vmem:[%s7 + $0xf8] sm:$0xff]
      %v5314 = vld [vmem:[%s7 + $0x100] sm:$0xff]
      %v5315 = vld [vmem:[%s7 + $0x108] sm:$0xff]
      %v5316 = vld [vmem:[%s7 + $0x110] sm:$0xff]
      %v5317 = vld [vmem:[%s7 + $0x118] sm:$0xff]
      %v5318 = vld [vmem:[%s7 + $0x120] sm:$0xff]
      %v5319 = vld [vmem:[%s7 + $0x128] sm:$0xff]
      %v5320 = vld [vmem:[%s7 + $0x130] sm:$0xff]
      %v5321 = vld [vmem:[%s7 + $0x138] sm:$0xff]
      %v5322 = vld [vmem:[%s7 + $0x140] sm:$0xff]
      %v5323 = vld [vmem:[%s7 + $0x148] sm:$0xff]
      %v5324 = vld [vmem:[%s7 + $0x150] sm:$0xff]
      %v5325 = vld [vmem:[%s7 + $0x158] sm:$0xff]
      %v5326 = vld [vmem:[%s7 + $0x160] sm:$0xff]
      %v5327 = vld [vmem:[%s7 + $0x168] sm:$0xff]
      %v5328 = vld [vmem:[%s7 + $0x170] sm:$0xff]
      %v5329 = vld [vmem:[%s7 + $0x178] sm:$0xff]
      %v5330 = vld [vmem:[%s7 + $0x180] sm:$0xff]
      %v5331 = vld [vmem:[%s7 + $0x188] sm:$0xff]
      %v5332 = vld [vmem:[%s7 + $0x190] sm:$0xff]
      %v5333 = vld [vmem:[%s7 + $0x198] sm:$0xff]
      %v5334 = vld [vmem:[%s7 + $0x1a0] sm:$0xff]
      %v5335 = vld [vmem:[%s7 + $0x1a8] sm:$0xff]
      %v5336 = vld [vmem:[%s7 + $0x1b0] sm:$0xff]
      %v5337 = vld [vmem:[%s7 + $0x1b8] sm:$0xff]
      %v5338 = vld [vmem:[%s7 + $0x1c0] sm:$0xff]
      %v5339 = vld [vmem:[%s7 + $0x1c8] sm:$0xff]
      %v5340 = vld [vmem:[%s7 + $0x1d0] sm:$0xff]
      %v5341 = vld [vmem:[%s7 + $0x1d8] sm:$0xff]
      %v5342 = vld [vmem:[%s7 + $0x1e0] sm:$0xff]
      %v5343 = vld [vmem:[%s7 + $0x1e8] sm:$0xff]
      %v5344 = vld [vmem:[%s7 + $0x1f0] sm:$0xff]
      %v5345 = vld [vmem:[%s7 + $0x1f8] sm:$0xff]
      %v5346 = vld [vmem:[%s7 + $0x200] sm:$0xff]
      %v5347 = vld [vmem:[%s7 + $0x208] sm:$0xff]
      %v5348 = vld [vmem:[%s7 + $0x210] sm:$0xff]
      %v5349 = vld [vmem:[%s7 + $0x218] sm:$0xff]
      %v5350 = vld [vmem:[%s7 + $0x220] sm:$0xff]
      %v5351 = vld [vmem:[%s7 + $0x228] sm:$0xff]
      %v5352 = vld [vmem:[%s7 + $0x230] sm:$0xff]
      %v5353 = vld [vmem:[%s7 + $0x238] sm:$0xff]
      %v5354 = vld [vmem:[%s7 + $0x240] sm:$0xff]
      %v5355 = vld [vmem:[%s7 + $0x248] sm:$0xff]
      %v5356 = vld [vmem:[%s7 + $0x250] sm:$0xff]
      %v5357 = vld [vmem:[%s7 + $0x258] sm:$0xff]
      %v5358 = vld [vmem:[%s7 + $0x260] sm:$0xff]
      %v5359 = vld [vmem:[%s7 + $0x268] sm:$0xff]
      %v5360 = vld [vmem:[%s7 + $0x270] sm:$0xff]
      %v5361 = vld [vmem:[%s7 + $0x278] sm:$0xff]
      %v5362 = vld [vmem:[%s7 + $0x280] sm:$0xff]
      %v5363 = vld [vmem:[%s7 + $0x288] sm:$0xff]
      %v5364 = vld [vmem:[%s7 + $0x290] sm:$0xff]
      %v5365 = vld [vmem:[%s7 + $0x298] sm:$0xff]
      %v5366 = vld [vmem:[%s7 + $0x2a0] sm:$0xff]
      %v5367 = vld [vmem:[%s7 + $0x2a8] sm:$0xff]
      %v5368 = vld [vmem:[%s7 + $0x2b0] sm:$0xff]
      %v5369 = vld [vmem:[%s7 + $0x2b8] sm:$0xff]
      %v5370 = vld [vmem:[%s7 + $0x2c0] sm:$0xff]
      %v5371 = vld [vmem:[%s7 + $0x2c8] sm:$0xff]
      %v5372 = vld [vmem:[%s7 + $0x2d0] sm:$0xff]
      %v5373 = vld [vmem:[%s7 + $0x2d8] sm:$0xff]
      %v5374 = vld [vmem:[%s7 + $0x2e0] sm:$0xff]
      %v5375 = vld [vmem:[%s7 + $0x2e8] sm:$0xff]
      %v5376 = vld [vmem:[%s7 + $0x2f0] sm:$0xff]
      %v5377 = vld [vmem:[%s7 + $0x2f8] sm:$0xff]
      %v5378 = vld [vmem:[%s7 + $0x300] sm:$0xff]
      %v5379 = vld [vmem:[%s7 + $0x308] sm:$0xff]
      %v5380 = vld [vmem:[%s7 + $0x310] sm:$0xff]
      %v5381 = vld [vmem:[%s7 + $0x318] sm:$0xff]
      %v5382 = vld [vmem:[%s7 + $0x320] sm:$0xff]
      %v5383 = vld [vmem:[%s7 + $0x328] sm:$0xff]
      %v5384 = vld [vmem:[%s7 + $0x330] sm:$0xff]
      %v5385 = vld [vmem:[%s7 + $0x338] sm:$0xff]
      %v5386 = vld [vmem:[%s7 + $0x340] sm:$0xff]
      %v5387 = vld [vmem:[%s7 + $0x348] sm:$0xff]
      %v5388 = vld [vmem:[%s7 + $0x350] sm:$0xff]
      %v5389 = vld [vmem:[%s7 + $0x358] sm:$0xff]
      %v5390 = vld [vmem:[%s7 + $0x360] sm:$0xff]
      %v5391 = vld [vmem:[%s7 + $0x368] sm:$0xff]
      %v5392 = vld [vmem:[%s7 + $0x370] sm:$0xff]
      %v5393 = vld [vmem:[%s7 + $0x378] sm:$0xff]
      %v5394 = vld [vmem:[%s7 + $0x380] sm:$0xff]
      %v5395 = vld [vmem:[%s7 + $0x388] sm:$0xff]
      %v5396 = vld [vmem:[%s7 + $0x390] sm:$0xff]
      %v5397 = vld [vmem:[%s7 + $0x398] sm:$0xff]
      %v5398 = vld [vmem:[%s7 + $0x3a0] sm:$0xff]
      %v5399 = vld [vmem:[%s7 + $0x3a8] sm:$0xff]
      %v5400 = vld [vmem:[%s7 + $0x3b0] sm:$0xff]
      %v5401 = vld [vmem:[%s7 + $0x3b8] sm:$0xff]
      %v5402 = vld [vmem:[%s7 + $0x3c0] sm:$0xff]
      %v5403 = vld [vmem:[%s7 + $0x3c8] sm:$0xff]
      %v5404 = vld [vmem:[%s7 + $0x3d0] sm:$0xff]
      %v5405 = vld [vmem:[%s7 + $0x3d8] sm:$0xff]
      %v5406 = vld [vmem:[%s7 + $0x3e0] sm:$0xff]
      %v5407 = vld [vmem:[%s7 + $0x3e8] sm:$0xff]
      %v5408 = vld [vmem:[%s7 + $0x3f0] sm:$0xff]
      %v5409 = vld [vmem:[%s7 + $0x3f8] sm:$0xff]
      %v5410 = vld [vmem:[%s7 + $0x400] sm:$0xff]
      %v5411 = vld [vmem:[%s7 + $0x408] sm:$0xff]
      %v5412 = vld [vmem:[%s7 + $0x410] sm:$0xff]
      %v5413 = vld [vmem:[%s7 + $0x418] sm:$0xff]
      %v5414 = vld [vmem:[%s7 + $0x420] sm:$0xff]
      %v5415 = vld [vmem:[%s7 + $0x428] sm:$0xff]
      %v5416 = vld [vmem:[%s7 + $0x430] sm:$0xff]
      %v5417 = vld [vmem:[%s7 + $0x438] sm:$0xff]
      %v5418 = vld [vmem:[%s7 + $0x440] sm:$0xff]
      %v5419 = vld [vmem:[%s7 + $0x448] sm:$0xff]
      %v5420 = vld [vmem:[%s7 + $0x450] sm:$0xff]
      %v5421 = vld [vmem:[%s7 + $0x458] sm:$0xff]
      %v5422 = vld [vmem:[%s7 + $0x460] sm:$0xff]
      %v5423 = vld [vmem:[%s7 + $0x468] sm:$0xff]
      %v5424 = vld [vmem:[%s7 + $0x470] sm:$0xff]
      %v5425 = vld [vmem:[%s7 + $0x478] sm:$0xff]
      %v5426 = vld [vmem:[%s7 + $0x480] sm:$0xff]
      %v5427 = vld [vmem:[%s7 + $0x488] sm:$0xff]
      %v5428 = vld [vmem:[%s7 + $0x490] sm:$0xff]
      %v5429 = vld [vmem:[%s7 + $0x498] sm:$0xff]
      %v5430 = vld [vmem:[%s7 + $0x4a0] sm:$0xff]
      %v5431 = vld [vmem:[%s7 + $0x4a8] sm:$0xff]
      %v5432 = vld [vmem:[%s7 + $0x4b0] sm:$0xff]
      %v5433 = vld [vmem:[%s7 + $0x4b8] sm:$0xff]
      %v5434 = vld [vmem:[%s7 + $0x4c0] sm:$0xff]
      %v5435 = vld [vmem:[%s7 + $0x4c8] sm:$0xff]
      %v5436 = vld [vmem:[%s7 + $0x4d0] sm:$0xff]
      %v5437 = vld [vmem:[%s7 + $0x4d8] sm:$0xff]
      %v5438 = vld [vmem:[%s7 + $0x4e0] sm:$0xff]
      %v5439 = vld [vmem:[%s7 + $0x4e8] sm:$0xff]
      %v5440 = vld [vmem:[%s7 + $0x4f0] sm:$0xff]
      %v5441 = vld [vmem:[%s7 + $0x4f8] sm:$0xff]
      %v5442 = vld [vmem:[%s7 + $0x500] sm:$0xff]
      %v5443 = vld [vmem:[%s7 + $0x508] sm:$0xff]
      %v5444 = vld [vmem:[%s7 + $0x510] sm:$0xff]
      %v5445 = vld [vmem:[%s7 + $0x518] sm:$0xff]
      %v5446 = vld [vmem:[%s7 + $0x520] sm:$0xff]
      %v5447 = vld [vmem:[%s7 + $0x528] sm:$0xff]
      %v5448 = vld [vmem:[%s7 + $0x530] sm:$0xff]
      %v5449 = vld [vmem:[%s7 + $0x538] sm:$0xff]
      %v5450 = vld [vmem:[%s7 + $0x540] sm:$0xff]
      %v5451 = vld [vmem:[%s7 + $0x548] sm:$0xff]
      %v5452 = vld [vmem:[%s7 + $0x550] sm:$0xff]
      %v5453 = vld [vmem:[%s7 + $0x558] sm:$0xff]
      %v5454 = vld [vmem:[%s7 + $0x560] sm:$0xff]
      %v5455 = vld [vmem:[%s7 + $0x568] sm:$0xff]
      %v5456 = vld [vmem:[%s7 + $0x570] sm:$0xff]
      %v5457 = vld [vmem:[%s7 + $0x578] sm:$0xff]
      %v5458 = vld [vmem:[%s7 + $0x580] sm:$0xff]
      %v5459 = vld [vmem:[%s7 + $0x588] sm:$0xff]
      %v5460 = vld [vmem:[%s7 + $0x590] sm:$0xff]
      %v5461 = vld [vmem:[%s7 + $0x598] sm:$0xff]
      %v5462 = vld [vmem:[%s7 + $0x5a0] sm:$0xff]
      %v5463 = vld [vmem:[%s7 + $0x5a8] sm:$0xff]
      %v5464 = vld [vmem:[%s7 + $0x5b0] sm:$0xff]
      %v5465 = vld [vmem:[%s7 + $0x5b8] sm:$0xff]
      %v5466 = vld [vmem:[%s7 + $0x5c0] sm:$0xff]
      %v5467 = vld [vmem:[%s7 + $0x5c8] sm:$0xff]
      %v5468 = vld [vmem:[%s7 + $0x5d0] sm:$0xff]
      %v5469 = vld [vmem:[%s7 + $0x5d8] sm:$0xff]
      %v5470 = vld [vmem:[%s7 + $0x5e0] sm:$0xff]
      %v5471 = vld [vmem:[%s7 + $0x5e8] sm:$0xff]
      %v5472 = vld [vmem:[%s7 + $0x5f0] sm:$0xff]
      %v5473 = vld [vmem:[%s7 + $0x5f8] sm:$0xff]
      %v5474 = vld [vmem:[%s7 + $0x600] sm:$0xff]
      %v5475 = vld [vmem:[%s7 + $0x608] sm:$0xff]
      %v5476 = vld [vmem:[%s7 + $0x610] sm:$0xff]
      %v5477 = vld [vmem:[%s7 + $0x618] sm:$0xff]
      %v5478 = vld [vmem:[%s7 + $0x620] sm:$0xff]
      %v5479 = vld [vmem:[%s7 + $0x628] sm:$0xff]
      %v5480 = vld [vmem:[%s7 + $0x630] sm:$0xff]
      %v5481 = vld [vmem:[%s7 + $0x638] sm:$0xff]
      %v5482 = vld [vmem:[%s7 + $0x640] sm:$0xff]
      %v5483 = vld [vmem:[%s7 + $0x648] sm:$0xff]
      %v5484 = vld [vmem:[%s7 + $0x650] sm:$0xff]
      %v5485 = vld [vmem:[%s7 + $0x658] sm:$0xff]
      %v5486 = vld [vmem:[%s7 + $0x660] sm:$0xff]
      %v5487 = vld [vmem:[%s7 + $0x668] sm:$0xff]
      %v5488 = vld [vmem:[%s7 + $0x670] sm:$0xff]
      %v5489 = vld [vmem:[%s7 + $0x678] sm:$0xff]
      %v5490 = vld [vmem:[%s7 + $0x680] sm:$0xff]
      %v5491 = vld [vmem:[%s7 + $0x688] sm:$0xff]
      %v5492 = vld [vmem:[%s7 + $0x690] sm:$0xff]
      %v5493 = vld [vmem:[%s7 + $0x698] sm:$0xff]
      %v5494 = vld [vmem:[%s7 + $0x6a0] sm:$0xff]
      %v5495 = vld [vmem:[%s7 + $0x6a8] sm:$0xff]
      %v5496 = vld [vmem:[%s7 + $0x6b0] sm:$0xff]
      %v5497 = vld [vmem:[%s7 + $0x6b8] sm:$0xff]
      %v5498 = vld [vmem:[%s7 + $0x6c0] sm:$0xff]
      %v5499 = vld [vmem:[%s7 + $0x6c8] sm:$0xff]
      %v5500 = vld [vmem:[%s7 + $0x6d0] sm:$0xff]
      %v5501 = vld [vmem:[%s7 + $0x6d8] sm:$0xff]
      %v5502 = vld [vmem:[%s7 + $0x6e0] sm:$0xff]
      %v5503 = vld [vmem:[%s7 + $0x6e8] sm:$0xff]
      %v5504 = vld [vmem:[%s7 + $0x6f0] sm:$0xff]
      %v5505 = vld [vmem:[%s7 + $0x6f8] sm:$0xff]
      %v5506 = vld [vmem:[%s7 + $0x700] sm:$0xff]
      %v5507 = vld [vmem:[%s7 + $0x708] sm:$0xff]
      %v5508 = vld [vmem:[%s7 + $0x710] sm:$0xff]
      %v5509 = vld [vmem:[%s7 + $0x718] sm:$0xff]
      %v5510 = vld [vmem:[%s7 + $0x720] sm:$0xff]
      %v5511 = vld [vmem:[%s7 + $0x728] sm:$0xff]
      %v5512 = vld [vmem:[%s7 + $0x730] sm:$0xff]
      %v5513 = vld [vmem:[%s7 + $0x738] sm:$0xff]
      %v5514 = vld [vmem:[%s7 + $0x740] sm:$0xff]
      %v5515 = vld [vmem:[%s7 + $0x748] sm:$0xff]
      %v5516 = vld [vmem:[%s7 + $0x750] sm:$0xff]
      %v5517 = vld [vmem:[%s7 + $0x758] sm:$0xff]
      %v5518 = vld [vmem:[%s7 + $0x760] sm:$0xff]
      %v5519 = vld [vmem:[%s7 + $0x768] sm:$0xff]
      %v5520 = vld [vmem:[%s7 + $0x770] sm:$0xff]
      %v5521 = vld [vmem:[%s7 + $0x778] sm:$0xff]
      %v5522 = vld [vmem:[%s7 + $0x780] sm:$0xff]
      %v5523 = vld [vmem:[%s7 + $0x788] sm:$0xff]
      %v5524 = vld [vmem:[%s7 + $0x790] sm:$0xff]
      %v5525 = vld [vmem:[%s7 + $0x798] sm:$0xff]
      %v5526 = vld [vmem:[%s7 + $0x7a0] sm:$0xff]
      %v5527 = vld [vmem:[%s7 + $0x7a8] sm:$0xff]
      %v5528 = vld [vmem:[%s7 + $0x7b0] sm:$0xff]
      %v5529 = vld [vmem:[%s7 + $0x7b8] sm:$0xff]
      %v5530 = vld [vmem:[%s7 + $0x7c0] sm:$0xff]
      %v5531 = vld [vmem:[%s7 + $0x7c8] sm:$0xff]
      %v5532 = vld [vmem:[%s7 + $0x7d0] sm:$0xff]
      %v5533 = vld [vmem:[%s7 + $0x7d8] sm:$0xff]
      %v5534 = vld [vmem:[%s7 + $0x7e0] sm:$0xff]
      %v5535 = vld [vmem:[%s7 + $0x7e8] sm:$0xff]
      %v5536 = vld [vmem:[%s7 + $0x7f0] sm:$0xff]
      %v5537 = vld [vmem:[%s7 + $0x7f8] sm:$0xff]
      %v5538 = vld [vmem:[%s7 + $0x800] sm:$0xff]
      %v5539 = vld [vmem:[%s7 + $0x808] sm:$0xff]
      %v5540 = vld [vmem:[%s7 + $0x810] sm:$0xff]
      %v5541 = vld [vmem:[%s7 + $0x818] sm:$0xff]
      %v5542 = vld [vmem:[%s7 + $0x820] sm:$0xff]
      %v5543 = vld [vmem:[%s7 + $0x828] sm:$0xff]
      %v5544 = vld [vmem:[%s7 + $0x830] sm:$0xff]
      %v5545 = vld [vmem:[%s7 + $0x838] sm:$0xff]
      %v5546 = vld [vmem:[%s7 + $0x840] sm:$0xff]
      %v5547 = vld [vmem:[%s7 + $0x848] sm:$0xff]
      %v5548 = vld [vmem:[%s7 + $0x850] sm:$0xff]
      %v5549 = vld [vmem:[%s7 + $0x858] sm:$0xff]
      %v5550 = vld [vmem:[%s7 + $0x860] sm:$0xff]
      %v5551 = vld [vmem:[%s7 + $0x868] sm:$0xff]
      %v5552 = vld [vmem:[%s7 + $0x870] sm:$0xff]
      %v5553 = vld [vmem:[%s7 + $0x878] sm:$0xff]
      %v5554 = vld [vmem:[%s7 + $0x880] sm:$0xff]
      %v5555 = vld [vmem:[%s7 + $0x888] sm:$0xff]
      %v5556 = vld [vmem:[%s7 + $0x890] sm:$0xff]
      %v5557 = vld [vmem:[%s7 + $0x898] sm:$0xff]
      %v5558 = vld [vmem:[%s7 + $0x8a0] sm:$0xff]
      %v5559 = vld [vmem:[%s7 + $0x8a8] sm:$0xff]
      %v5560 = vld [vmem:[%s7 + $0x8b0] sm:$0xff]
      %v5561 = vld [vmem:[%s7 + $0x8b8] sm:$0xff]
      %v5562 = vld [vmem:[%s7 + $0x8c0] sm:$0xff]
      %v5563 = vld [vmem:[%s7 + $0x8c8] sm:$0xff]
      %v5564 = vld [vmem:[%s7 + $0x8d0] sm:$0xff]
      %v5565 = vld [vmem:[%s7 + $0x8d8] sm:$0xff]
      %v5566 = vld [vmem:[%s7 + $0x8e0] sm:$0xff]
      %v5567 = vld [vmem:[%s7 + $0x8e8] sm:$0xff]
      %v5568 = vld [vmem:[%s7 + $0x8f0] sm:$0xff]
      %v5569 = vld [vmem:[%s7 + $0x8f8] sm:$0xff]
      %v5570 = vld [vmem:[%s7 + $0x900] sm:$0xff]
      %v5571 = vld [vmem:[%s7 + $0x908] sm:$0xff]
      %v5572 = vld [vmem:[%s7 + $0x910] sm:$0xff]
      %v5573 = vld [vmem:[%s7 + $0x918] sm:$0xff]
      %v5574 = vld [vmem:[%s7 + $0x920] sm:$0xff]
      %v5575 = vld [vmem:[%s7 + $0x928] sm:$0xff]
      %v5576 = vld [vmem:[%s7 + $0x930] sm:$0xff]
      %v5577 = vld [vmem:[%s7 + $0x938] sm:$0xff]
      %v5578 = vld [vmem:[%s7 + $0x940] sm:$0xff]
      %v5579 = vld [vmem:[%s7 + $0x948] sm:$0xff]
      %v5580 = vld [vmem:[%s7 + $0x950] sm:$0xff]
      %v5581 = vld [vmem:[%s7 + $0x958] sm:$0xff]
      %v5582 = vld [vmem:[%s7 + $0x960] sm:$0xff]
      %v5583 = vld [vmem:[%s7 + $0x968] sm:$0xff]
      %v5584 = vld [vmem:[%s7 + $0x970] sm:$0xff]
      %v5585 = vld [vmem:[%s7 + $0x978] sm:$0xff]
      %v5586 = vld [vmem:[%s7 + $0x980] sm:$0xff]
      %v5587 = vld [vmem:[%s7 + $0x988] sm:$0xff]
      %v5588 = vld [vmem:[%s7 + $0x990] sm:$0xff]
      %v5589 = vld [vmem:[%s7 + $0x998] sm:$0xff]
      %v5590 = vld [vmem:[%s7 + $0x9a0] sm:$0xff]
      %v5591 = vld [vmem:[%s7 + $0x9a8] sm:$0xff]
      %v5592 = vld [vmem:[%s7 + $0x9b0] sm:$0xff]
      %v5593 = vld [vmem:[%s7 + $0x9b8] sm:$0xff]
      %v5594 = vld [vmem:[%s7 + $0x9c0] sm:$0xff]
      %v5595 = vld [vmem:[%s7 + $0x9c8] sm:$0xff]
      %v5596 = vld [vmem:[%s7 + $0x9d0] sm:$0xff]
      %v5597 = vld [vmem:[%s7 + $0x9d8] sm:$0xff]
      %v5598 = vld [vmem:[%s7 + $0x9e0] sm:$0xff]
      %v5599 = vld [vmem:[%s7 + $0x9e8] sm:$0xff]
      %v5600 = vld [vmem:[%s7 + $0x9f0] sm:$0xff]
      %v5601 = vld [vmem:[%s7 + $0x9f8] sm:$0xff]
      %v5602 = vld [vmem:[%s7 + $0xa00] sm:$0xff]
      %v5603 = vld [vmem:[%s7 + $0xa08] sm:$0xff]
      %v5604 = vld [vmem:[%s7 + $0xa10] sm:$0xff]
      %v5605 = vld [vmem:[%s7 + $0xa18] sm:$0xff]
      %v5606 = vld [vmem:[%s7 + $0xa20] sm:$0xff]
      %v5607 = vld [vmem:[%s7 + $0xa28] sm:$0xff]
      %v5608 = vld [vmem:[%s7 + $0xa30] sm:$0xff]
      %v5609 = vld [vmem:[%s7 + $0xa38] sm:$0xff]
      %v5610 = vld [vmem:[%s7 + $0xa40] sm:$0xff]
      %v5611 = vld [vmem:[%s7 + $0xa48] sm:$0xff]
      %v5612 = vld [vmem:[%s7 + $0xa50] sm:$0xff]
      %v5613 = vld [vmem:[%s7 + $0xa58] sm:$0xff]
      %v5614 = vld [vmem:[%s7 + $0xa60] sm:$0xff]
      %v5615 = vld [vmem:[%s7 + $0xa68] sm:$0xff]
      %v5616 = vld [vmem:[%s7 + $0xa70] sm:$0xff]
      %v5617 = vld [vmem:[%s7 + $0xa78] sm:$0xff]
      %v5618 = vld [vmem:[%s7 + $0xa80] sm:$0xff]
      %v5619 = vld [vmem:[%s7 + $0xa88] sm:$0xff]
      %v5620 = vld [vmem:[%s7 + $0xa90] sm:$0xff]
      %v5621 = vld [vmem:[%s7 + $0xa98] sm:$0xff]
      %v5622 = vld [vmem:[%s7 + $0xaa0] sm:$0xff]
      %v5623 = vld [vmem:[%s7 + $0xaa8] sm:$0xff]
      %v5624 = vld [vmem:[%s7 + $0xab0] sm:$0xff]
      %v5625 = vld [vmem:[%s7 + $0xab8] sm:$0xff]
      %v5626 = vld [vmem:[%s7 + $0xac0] sm:$0xff]
      %v5627 = vld [vmem:[%s7 + $0xac8] sm:$0xff]
      %v5628 = vld [vmem:[%s7 + $0xad0] sm:$0xff]
      %v5629 = vld [vmem:[%s7 + $0xad8] sm:$0xff]
      %v5630 = vld [vmem:[%s7 + $0xae0] sm:$0xff]
      %v5631 = vld [vmem:[%s7 + $0xae8] sm:$0xff]
      %v5632 = vld [vmem:[%s7 + $0xaf0] sm:$0xff]
      %v5633 = vld [vmem:[%s7 + $0xaf8] sm:$0xff]
      %v5634 = vld [vmem:[%s7 + $0xb00] sm:$0xff]
      %v5635 = vld [vmem:[%s7 + $0xb08] sm:$0xff]
      %v5636 = vld [vmem:[%s7 + $0xb10] sm:$0xff]
      %v5637 = vld [vmem:[%s7 + $0xb18] sm:$0xff]
      %v5638 = vld [vmem:[%s7 + $0xb20] sm:$0xff]
      %v5639 = vld [vmem:[%s7 + $0xb28] sm:$0xff]
      %v5640 = vld [vmem:[%s7 + $0xb30] sm:$0xff]
      %v5641 = vld [vmem:[%s7 + $0xb38] sm:$0xff]
      %v5642 = vld [vmem:[%s7 + $0xb40] sm:$0xff]
      %v5643 = vld [vmem:[%s7 + $0xb48] sm:$0xff]
      %v5644 = vld [vmem:[%s7 + $0xb50] sm:$0xff]
      %v5645 = vld [vmem:[%s7 + $0xb58] sm:$0xff]
      %v5646 = vld [vmem:[%s7 + $0xb60] sm:$0xff]
      %v5647 = vld [vmem:[%s7 + $0xb68] sm:$0xff]
      %v5648 = vld [vmem:[%s7 + $0xb70] sm:$0xff]
      %v5649 = vld [vmem:[%s7 + $0xb78] sm:$0xff]
      %v5650 = vld [vmem:[%s7 + $0xb80] sm:$0xff]
      %v5651 = vld [vmem:[%s7 + $0xb88] sm:$0xff]
      %v5652 = vld [vmem:[%s7 + $0xb90] sm:$0xff]
      %v5653 = vld [vmem:[%s7 + $0xb98] sm:$0xff]
      %v5654 = vld [vmem:[%s7 + $0xba0] sm:$0xff]
      %v5655 = vld [vmem:[%s7 + $0xba8] sm:$0xff]
      %v5656 = vld [vmem:[%s7 + $0xbb0] sm:$0xff]
      %v5657 = vld [vmem:[%s7 + $0xbb8] sm:$0xff]
      %v5658 = vld [vmem:[%s7 + $0xbc0] sm:$0xff]
      %v5659 = vld [vmem:[%s7 + $0xbc8] sm:$0xff]
      %v5660 = vld [vmem:[%s7 + $0xbd0] sm:$0xff]
      %v5661 = vld [vmem:[%s7 + $0xbd8] sm:$0xff]
      %v5662 = vld [vmem:[%s7 + $0xbe0] sm:$0xff]
      %v5663 = vld [vmem:[%s7 + $0xbe8] sm:$0xff]
      %v5664 = vld [vmem:[%s7 + $0xbf0] sm:$0xff]
      %v5665 = vld [vmem:[%s7 + $0xbf8] sm:$0xff]
      %v5666 = vld [vmem:[%s7 + $0xc00] sm:$0xff]
      %v5667 = vld [vmem:[%s7 + $0xc08] sm:$0xff]
      %v5668 = vld [vmem:[%s7 + $0xc10] sm:$0xff]
      %v5669 = vld [vmem:[%s7 + $0xc18] sm:$0xff]
      %v5670 = vld [vmem:[%s7 + $0xc20] sm:$0xff]
      %v5671 = vld [vmem:[%s7 + $0xc28] sm:$0xff]
      %v5672 = vld [vmem:[%s7 + $0xc30] sm:$0xff]
      %v5673 = vld [vmem:[%s7 + $0xc38] sm:$0xff]
      %v5674 = vld [vmem:[%s7 + $0xc40] sm:$0xff]
      %v5675 = vld [vmem:[%s7 + $0xc48] sm:$0xff]
      %v5676 = vld [vmem:[%s7 + $0xc50] sm:$0xff]
      %v5677 = vld [vmem:[%s7 + $0xc58] sm:$0xff]
      %v5678 = vld [vmem:[%s7 + $0xc60] sm:$0xff]
      %v5679 = vld [vmem:[%s7 + $0xc68] sm:$0xff]
      %v5680 = vld [vmem:[%s7 + $0xc70] sm:$0xff]
      %v5681 = vld [vmem:[%s7 + $0xc78] sm:$0xff]
      %v5682 = vld [vmem:[%s7 + $0xc80] sm:$0xff]
      %v5683 = vld [vmem:[%s7 + $0xc88] sm:$0xff]
      %v5684 = vld [vmem:[%s7 + $0xc90] sm:$0xff]
      %v5685 = vld [vmem:[%s7 + $0xc98] sm:$0xff]
      %v5686 = vld [vmem:[%s7 + $0xca0] sm:$0xff]
      %v5687 = vld [vmem:[%s7 + $0xca8] sm:$0xff]
      %v5688 = vld [vmem:[%s7 + $0xcb0] sm:$0xff]
      %v5689 = vld [vmem:[%s7 + $0xcb8] sm:$0xff]
      %v5690 = vld [vmem:[%s7 + $0xcc0] sm:$0xff]
      %v5691 = vld [vmem:[%s7 + $0xcc8] sm:$0xff]
      %v5692 = vld [vmem:[%s7 + $0xcd0] sm:$0xff]
      %v5693 = vld [vmem:[%s7 + $0xcd8] sm:$0xff]
      %v5694 = vld [vmem:[%s7 + $0xce0] sm:$0xff]
      %v5695 = vld [vmem:[%s7 + $0xce8] sm:$0xff]
      %v5696 = vld [vmem:[%s7 + $0xcf0] sm:$0xff]
      %v5697 = vld [vmem:[%s7 + $0xcf8] sm:$0xff]
      %v5698 = vld [vmem:[%s7 + $0xd00] sm:$0xff]
      %v5699 = vld [vmem:[%s7 + $0xd08] sm:$0xff]
      %v5700 = vld [vmem:[%s7 + $0xd10] sm:$0xff]
      %v5701 = vld [vmem:[%s7 + $0xd18] sm:$0xff]
      %v5702 = vld [vmem:[%s7 + $0xd20] sm:$0xff]
      %v5703 = vld [vmem:[%s7 + $0xd28] sm:$0xff]
      %v5704 = vld [vmem:[%s7 + $0xd30] sm:$0xff]
      %v5705 = vld [vmem:[%s7 + $0xd38] sm:$0xff]
      %v5706 = vld [vmem:[%s7 + $0xd40] sm:$0xff]
      %v5707 = vld [vmem:[%s7 + $0xd48] sm:$0xff]
      %v5708 = vld [vmem:[%s7 + $0xd50] sm:$0xff]
      %v5709 = vld [vmem:[%s7 + $0xd58] sm:$0xff]
      %v5710 = vld [vmem:[%s7 + $0xd60] sm:$0xff]
      %v5711 = vld [vmem:[%s7 + $0xd68] sm:$0xff]
      %v5712 = vld [vmem:[%s7 + $0xd70] sm:$0xff]
      %v5713 = vld [vmem:[%s7 + $0xd78] sm:$0xff]
      %v5714 = vld [vmem:[%s7 + $0xd80] sm:$0xff]
      %v5715 = vld [vmem:[%s7 + $0xd88] sm:$0xff]
      %v5716 = vld [vmem:[%s7 + $0xd90] sm:$0xff]
      %v5717 = vld [vmem:[%s7 + $0xd98] sm:$0xff]
      %v5718 = vld [vmem:[%s7 + $0xda0] sm:$0xff]
      %v5719 = vld [vmem:[%s7 + $0xda8] sm:$0xff]
      %v5720 = vld [vmem:[%s7 + $0xdb0] sm:$0xff]
      %v5721 = vld [vmem:[%s7 + $0xdb8] sm:$0xff]
      %v5722 = vld [vmem:[%s7 + $0xdc0] sm:$0xff]
      %v5723 = vld [vmem:[%s7 + $0xdc8] sm:$0xff]
      %v5724 = vld [vmem:[%s7 + $0xdd0] sm:$0xff]
      %v5725 = vld [vmem:[%s7 + $0xdd8] sm:$0xff]
      %v5726 = vld [vmem:[%s7 + $0xde0] sm:$0xff]
      %v5727 = vld [vmem:[%s7 + $0xde8] sm:$0xff]
      %v5728 = vld [vmem:[%s7 + $0xdf0] sm:$0xff]
      %v5729 = vld [vmem:[%s7 + $0xdf8] sm:$0xff]
      %v5730 = vld [vmem:[%s7 + $0xe00] sm:$0xff]
      %v5731 = vld [vmem:[%s7 + $0xe08] sm:$0xff]
      %v5732 = vld [vmem:[%s7 + $0xe10] sm:$0xff]
      %v5733 = vld [vmem:[%s7 + $0xe18] sm:$0xff]
      %v5734 = vld [vmem:[%s7 + $0xe20] sm:$0xff]
      %v5735 = vld [vmem:[%s7 + $0xe28] sm:$0xff]
      %v5736 = vld [vmem:[%s7 + $0xe30] sm:$0xff]
      %v5737 = vld [vmem:[%s7 + $0xe38] sm:$0xff]
      %v5738 = vld [vmem:[%s7 + $0xe40] sm:$0xff]
      %v5739 = vld [vmem:[%s7 + $0xe48] sm:$0xff]
      %v5740 = vld [vmem:[%s7 + $0xe50] sm:$0xff]
      %v5741 = vld [vmem:[%s7 + $0xe58] sm:$0xff]
      %v5742 = vld [vmem:[%s7 + $0xe60] sm:$0xff]
      %v5743 = vld [vmem:[%s7 + $0xe68] sm:$0xff]
      %v5744 = vld [vmem:[%s7 + $0xe70] sm:$0xff]
      %v5745 = vld [vmem:[%s7 + $0xe78] sm:$0xff]
      %v5746 = vld [vmem:[%s7 + $0xe80] sm:$0xff]
      %v5747 = vld [vmem:[%s7 + $0xe88] sm:$0xff]
      %v5748 = vld [vmem:[%s7 + $0xe90] sm:$0xff]
      %v5749 = vld [vmem:[%s7 + $0xe98] sm:$0xff]
      %v5750 = vld [vmem:[%s7 + $0xea0] sm:$0xff]
      %v5751 = vld [vmem:[%s7 + $0xea8] sm:$0xff]
      %v5752 = vld [vmem:[%s7 + $0xeb0] sm:$0xff]
      %v5753 = vld [vmem:[%s7 + $0xeb8] sm:$0xff]
      %v5754 = vld [vmem:[%s7 + $0xec0] sm:$0xff]
      %v5755 = vld [vmem:[%s7 + $0xec8] sm:$0xff]
      %v5756 = vld [vmem:[%s7 + $0xed0] sm:$0xff]
      %v5757 = vld [vmem:[%s7 + $0xed8] sm:$0xff]
      %v5758 = vld [vmem:[%s7 + $0xee0] sm:$0xff]
      %v5759 = vld [vmem:[%s7 + $0xee8] sm:$0xff]
      %v5760 = vld [vmem:[%s7 + $0xef0] sm:$0xff]
      %v5761 = vld [vmem:[%s7 + $0xef8] sm:$0xff]
      %v5762 = vld [vmem:[%s7 + $0xf00] sm:$0xff]
      %v5763 = vld [vmem:[%s7 + $0xf08] sm:$0xff]
      %v5764 = vld [vmem:[%s7 + $0xf10] sm:$0xff]
      %v5765 = vld [vmem:[%s7 + $0xf18] sm:$0xff]
      %v5766 = vld [vmem:[%s7 + $0xf20] sm:$0xff]
      %v5767 = vld [vmem:[%s7 + $0xf28] sm:$0xff]
      %v5768 = vld [vmem:[%s7 + $0xf30] sm:$0xff]
      %v5769 = vld [vmem:[%s7 + $0xf38] sm:$0xff]
      %v5770 = vld [vmem:[%s7 + $0xf40] sm:$0xff]
      %v5771 = vld [vmem:[%s7 + $0xf48] sm:$0xff]
      %v5772 = vld [vmem:[%s7 + $0xf50] sm:$0xff]
      %v5773 = vld [vmem:[%s7 + $0xf58] sm:$0xff]
      %v5774 = vld [vmem:[%s7 + $0xf60] sm:$0xff]
      %v5775 = vld [vmem:[%s7 + $0xf68] sm:$0xff]
      %v5776 = vld [vmem:[%s7 + $0xf70] sm:$0xff]
      %v5777 = vld [vmem:[%s7 + $0xf78] sm:$0xff]
      %v5778 = vld [vmem:[%s7 + $0xf80] sm:$0xff]
      %v5779 = vld [vmem:[%s7 + $0xf88] sm:$0xff]
      %v5780 = vld [vmem:[%s7 + $0xf90] sm:$0xff]
      %v5781 = vld [vmem:[%s7 + $0xf98] sm:$0xff]
      %v5782 = vld [vmem:[%s7 + $0xfa0] sm:$0xff]
      %v5783 = vld [vmem:[%s7 + $0xfa8] sm:$0xff]
      %v5784 = vld [vmem:[%s7 + $0xfb0] sm:$0xff]
      %v5785 = vld [vmem:[%s7 + $0xfb8] sm:$0xff]
      %v5786 = vld [vmem:[%s7 + $0xfc0] sm:$0xff]
      %v5787 = vld [vmem:[%s7 + $0xfc8] sm:$0xff]
      %v5788 = vld [vmem:[%s7 + $0xfd0] sm:$0xff]
      %v5789 = vld [vmem:[%s7 + $0xfd8] sm:$0xff]
      %v5790 = vld [vmem:[%s7 + $0xfe0] sm:$0xff]
      %v5791 = vld [vmem:[%s7 + $0xfe8] sm:$0xff]
      %v5792 = vld [vmem:[%s7 + $0xff0] sm:$0xff]
      %v5793 = vld [vmem:[%s7 + $0xff8] sm:$0xff]
      %v5794 = vld [vmem:[%s8] sm:$0xff]
      %v5795 = vld [vmem:[%s8 + $0x8] sm:$0xff]
      %v5798 = vlaneseq
      %v5799 = vshrl.u32 %v5798, 7
      %v5800 = vsub.s32 0, %v5799
      %v5801 = vrot.slane %v5794, %v5800
      %v5802 = vlaneseq
      %v5803 = vshrl.u32 %v5802, 7
      %v5804 = vsub.s32 1, %v5803
      %v5805 = vrot.slane %v5794, %v5804
      %v5806 = vlaneseq
      %v5807 = vshrl.u32 %v5806, 7
      %v5808 = vsub.s32 2, %v5807
      %v5809 = vrot.slane %v5794, %v5808
      %v5810 = vlaneseq
      %v5811 = vshrl.u32 %v5810, 7
      %v5812 = vsub.s32 3, %v5811
      %v5813 = vrot.slane %v5794, %v5812
      %v5814 = vlaneseq
      %v5815 = vshrl.u32 %v5814, 7
      %v5816 = vsub.s32 4, %v5815
      %v5817 = vrot.slane %v5794, %v5816
      %v5818 = vlaneseq
      %v5819 = vshrl.u32 %v5818, 7
      %v5820 = vsub.s32 5, %v5819
      %v5821 = vrot.slane %v5794, %v5820
      %v5822 = vlaneseq
      %v5823 = vshrl.u32 %v5822, 7
      %v5824 = vsub.s32 6, %v5823
      %v5825 = vrot.slane %v5794, %v5824
      %v5826 = vlaneseq
      %v5827 = vshrl.u32 %v5826, 7
      %v5828 = vsub.s32 7, %v5827
      %v5829 = vrot.slane %v5794, %v5828
      %v5830 = vlaneseq
      %v5831 = vshrl.u32 %v5830, 7
      %v5832 = vsub.s32 0, %v5831
      %v5833 = vrot.slane %v5795, %v5832
      %v5834 = vlaneseq
      %v5835 = vshrl.u32 %v5834, 7
      %v5836 = vsub.s32 1, %v5835
      %v5837 = vrot.slane %v5795, %v5836
      %v5838 = vlaneseq
      %v5839 = vshrl.u32 %v5838, 7
      %v5840 = vsub.s32 2, %v5839
      %v5841 = vrot.slane %v5795, %v5840
      %v5842 = vlaneseq
      %v5843 = vshrl.u32 %v5842, 7
      %v5844 = vsub.s32 3, %v5843
      %v5845 = vrot.slane %v5795, %v5844
      %v5846 = vlaneseq
      %v5847 = vshrl.u32 %v5846, 7
      %v5848 = vsub.s32 4, %v5847
      %v5849 = vrot.slane %v5795, %v5848
      %v5850 = vlaneseq
      %v5851 = vshrl.u32 %v5850, 7
      %v5852 = vsub.s32 5, %v5851
      %v5853 = vrot.slane %v5795, %v5852
      %v5854 = vlaneseq
      %v5855 = vshrl.u32 %v5854, 7
      %v5856 = vsub.s32 6, %v5855
      %v5857 = vrot.slane %v5795, %v5856
      %v5858 = vlaneseq
      %v5859 = vshrl.u32 %v5858, 7
      %v5860 = vsub.s32 7, %v5859
      %v5861 = vrot.slane %v5795, %v5860
      %v6390 = vunpack.c.l.b16 %v5282
      %v6391 = vunpack.c.h.b16 %v5282
      %v6392 = vunpack.c.l.b16 %v5283
      %v6393 = vunpack.c.h.b16 %v5283
      %v6394 = vunpack.c.l.b16 %v5284
      %v6395 = vunpack.c.h.b16 %v5284
      %v6396 = vunpack.c.l.b16 %v5285
      %v6397 = vunpack.c.h.b16 %v5285
      %v6398 = vunpack.c.l.b16 %v5286
      %v6399 = vunpack.c.h.b16 %v5286
      %v6400 = vunpack.c.l.b16 %v5287
      %v6401 = vunpack.c.h.b16 %v5287
      %v6402 = vunpack.c.l.b16 %v5288
      %v6403 = vunpack.c.h.b16 %v5288
      %v6404 = vunpack.c.l.b16 %v5289
      %v6405 = vunpack.c.h.b16 %v5289
      %v6406 = vunpack.c.l.b16 %v5290
      %v6407 = vunpack.c.h.b16 %v5290
      %v6408 = vunpack.c.l.b16 %v5291
      %v6409 = vunpack.c.h.b16 %v5291
      %v6410 = vunpack.c.l.b16 %v5292
      %v6411 = vunpack.c.h.b16 %v5292
      %v6412 = vunpack.c.l.b16 %v5293
      %v6413 = vunpack.c.h.b16 %v5293
      %v6414 = vunpack.c.l.b16 %v5294
      %v6415 = vunpack.c.h.b16 %v5294
      %v6416 = vunpack.c.l.b16 %v5295
      %v6417 = vunpack.c.h.b16 %v5295
      %v6418 = vunpack.c.l.b16 %v5296
      %v6419 = vunpack.c.h.b16 %v5296
      %v6420 = vunpack.c.l.b16 %v5297
      %v6421 = vunpack.c.h.b16 %v5297
      %v6422 = vunpack.c.l.b16 %v5298
      %v6423 = vunpack.c.h.b16 %v5298
      %v6424 = vunpack.c.l.b16 %v5299
      %v6425 = vunpack.c.h.b16 %v5299
      %v6426 = vunpack.c.l.b16 %v5300
      %v6427 = vunpack.c.h.b16 %v5300
      %v6428 = vunpack.c.l.b16 %v5301
      %v6429 = vunpack.c.h.b16 %v5301
      %v6430 = vunpack.c.l.b16 %v5302
      %v6431 = vunpack.c.h.b16 %v5302
      %v6432 = vunpack.c.l.b16 %v5303
      %v6433 = vunpack.c.h.b16 %v5303
      %v6434 = vunpack.c.l.b16 %v5304
      %v6435 = vunpack.c.h.b16 %v5304
      %v6436 = vunpack.c.l.b16 %v5305
      %v6437 = vunpack.c.h.b16 %v5305
      %v6438 = vunpack.c.l.b16 %v5306
      %v6439 = vunpack.c.h.b16 %v5306
      %v6440 = vunpack.c.l.b16 %v5307
      %v6441 = vunpack.c.h.b16 %v5307
      %v6442 = vunpack.c.l.b16 %v5308
      %v6443 = vunpack.c.h.b16 %v5308
      %v6444 = vunpack.c.l.b16 %v5309
      %v6445 = vunpack.c.h.b16 %v5309
      %v6446 = vunpack.c.l.b16 %v5310
      %v6447 = vunpack.c.h.b16 %v5310
      %v6448 = vunpack.c.l.b16 %v5311
      %v6449 = vunpack.c.h.b16 %v5311
      %v6450 = vunpack.c.l.b16 %v5312
      %v6451 = vunpack.c.h.b16 %v5312
      %v6452 = vunpack.c.l.b16 %v5313
      %v6453 = vunpack.c.h.b16 %v5313
      %v6454 = vunpack.c.l.b16 %v5314
      %v6455 = vunpack.c.h.b16 %v5314
      %v6456 = vunpack.c.l.b16 %v5315
      %v6457 = vunpack.c.h.b16 %v5315
      %v6458 = vunpack.c.l.b16 %v5316
      %v6459 = vunpack.c.h.b16 %v5316
      %v6460 = vunpack.c.l.b16 %v5317
      %v6461 = vunpack.c.h.b16 %v5317
      %v6462 = vunpack.c.l.b16 %v5318
      %v6463 = vunpack.c.h.b16 %v5318
      %v6464 = vunpack.c.l.b16 %v5319
      %v6465 = vunpack.c.h.b16 %v5319
      %v6466 = vunpack.c.l.b16 %v5320
      %v6467 = vunpack.c.h.b16 %v5320
      %v6468 = vunpack.c.l.b16 %v5321
      %v6469 = vunpack.c.h.b16 %v5321
      %v6470 = vunpack.c.l.b16 %v5322
      %v6471 = vunpack.c.h.b16 %v5322
      %v6472 = vunpack.c.l.b16 %v5323
      %v6473 = vunpack.c.h.b16 %v5323
      %v6474 = vunpack.c.l.b16 %v5324
      %v6475 = vunpack.c.h.b16 %v5324
      %v6476 = vunpack.c.l.b16 %v5325
      %v6477 = vunpack.c.h.b16 %v5325
      %v6478 = vunpack.c.l.b16 %v5326
      %v6479 = vunpack.c.h.b16 %v5326
      %v6480 = vunpack.c.l.b16 %v5327
      %v6481 = vunpack.c.h.b16 %v5327
      %v6482 = vunpack.c.l.b16 %v5328
      %v6483 = vunpack.c.h.b16 %v5328
      %v6484 = vunpack.c.l.b16 %v5329
      %v6485 = vunpack.c.h.b16 %v5329
      %v6486 = vunpack.c.l.b16 %v5330
      %v6487 = vunpack.c.h.b16 %v5330
      %v6488 = vunpack.c.l.b16 %v5331
      %v6489 = vunpack.c.h.b16 %v5331
      %v6490 = vunpack.c.l.b16 %v5332
      %v6491 = vunpack.c.h.b16 %v5332
      %v6492 = vunpack.c.l.b16 %v5333
      %v6493 = vunpack.c.h.b16 %v5333
      %v6494 = vunpack.c.l.b16 %v5334
      %v6495 = vunpack.c.h.b16 %v5334
      %v6496 = vunpack.c.l.b16 %v5335
      %v6497 = vunpack.c.h.b16 %v5335
      %v6498 = vunpack.c.l.b16 %v5336
      %v6499 = vunpack.c.h.b16 %v5336
      %v6500 = vunpack.c.l.b16 %v5337
      %v6501 = vunpack.c.h.b16 %v5337
      %v6502 = vunpack.c.l.b16 %v5338
      %v6503 = vunpack.c.h.b16 %v5338
      %v6504 = vunpack.c.l.b16 %v5339
      %v6505 = vunpack.c.h.b16 %v5339
      %v6506 = vunpack.c.l.b16 %v5340
      %v6507 = vunpack.c.h.b16 %v5340
      %v6508 = vunpack.c.l.b16 %v5341
      %v6509 = vunpack.c.h.b16 %v5341
      %v6510 = vunpack.c.l.b16 %v5342
      %v6511 = vunpack.c.h.b16 %v5342
      %v6512 = vunpack.c.l.b16 %v5343
      %v6513 = vunpack.c.h.b16 %v5343
      %v6514 = vunpack.c.l.b16 %v5344
      %v6515 = vunpack.c.h.b16 %v5344
      %v6516 = vunpack.c.l.b16 %v5345
      %v6517 = vunpack.c.h.b16 %v5345
      %v6518 = vunpack.c.l.b16 %v5346
      %v6519 = vunpack.c.h.b16 %v5346
      %v6520 = vunpack.c.l.b16 %v5347
      %v6521 = vunpack.c.h.b16 %v5347
      %v6522 = vunpack.c.l.b16 %v5348
      %v6523 = vunpack.c.h.b16 %v5348
      %v6524 = vunpack.c.l.b16 %v5349
      %v6525 = vunpack.c.h.b16 %v5349
      %v6526 = vunpack.c.l.b16 %v5350
      %v6527 = vunpack.c.h.b16 %v5350
      %v6528 = vunpack.c.l.b16 %v5351
      %v6529 = vunpack.c.h.b16 %v5351
      %v6530 = vunpack.c.l.b16 %v5352
      %v6531 = vunpack.c.h.b16 %v5352
      %v6532 = vunpack.c.l.b16 %v5353
      %v6533 = vunpack.c.h.b16 %v5353
      %v6534 = vunpack.c.l.b16 %v5354
      %v6535 = vunpack.c.h.b16 %v5354
      %v6536 = vunpack.c.l.b16 %v5355
      %v6537 = vunpack.c.h.b16 %v5355
      %v6538 = vunpack.c.l.b16 %v5356
      %v6539 = vunpack.c.h.b16 %v5356
      %v6540 = vunpack.c.l.b16 %v5357
      %v6541 = vunpack.c.h.b16 %v5357
      %v6542 = vunpack.c.l.b16 %v5358
      %v6543 = vunpack.c.h.b16 %v5358
      %v6544 = vunpack.c.l.b16 %v5359
      %v6545 = vunpack.c.h.b16 %v5359
      %v6546 = vunpack.c.l.b16 %v5360
      %v6547 = vunpack.c.h.b16 %v5360
      %v6548 = vunpack.c.l.b16 %v5361
      %v6549 = vunpack.c.h.b16 %v5361
      %v6550 = vunpack.c.l.b16 %v5362
      %v6551 = vunpack.c.h.b16 %v5362
      %v6552 = vunpack.c.l.b16 %v5363
      %v6553 = vunpack.c.h.b16 %v5363
      %v6554 = vunpack.c.l.b16 %v5364
      %v6555 = vunpack.c.h.b16 %v5364
      %v6556 = vunpack.c.l.b16 %v5365
      %v6557 = vunpack.c.h.b16 %v5365
      %v6558 = vunpack.c.l.b16 %v5366
      %v6559 = vunpack.c.h.b16 %v5366
      %v6560 = vunpack.c.l.b16 %v5367
      %v6561 = vunpack.c.h.b16 %v5367
      %v6562 = vunpack.c.l.b16 %v5368
      %v6563 = vunpack.c.h.b16 %v5368
      %v6564 = vunpack.c.l.b16 %v5369
      %v6565 = vunpack.c.h.b16 %v5369
      %v6566 = vunpack.c.l.b16 %v5370
      %v6567 = vunpack.c.h.b16 %v5370
      %v6568 = vunpack.c.l.b16 %v5371
      %v6569 = vunpack.c.h.b16 %v5371
      %v6570 = vunpack.c.l.b16 %v5372
      %v6571 = vunpack.c.h.b16 %v5372
      %v6572 = vunpack.c.l.b16 %v5373
      %v6573 = vunpack.c.h.b16 %v5373
      %v6574 = vunpack.c.l.b16 %v5374
      %v6575 = vunpack.c.h.b16 %v5374
      %v6576 = vunpack.c.l.b16 %v5375
      %v6577 = vunpack.c.h.b16 %v5375
      %v6578 = vunpack.c.l.b16 %v5376
      %v6579 = vunpack.c.h.b16 %v5376
      %v6580 = vunpack.c.l.b16 %v5377
      %v6581 = vunpack.c.h.b16 %v5377
      %v6582 = vunpack.c.l.b16 %v5378
      %v6583 = vunpack.c.h.b16 %v5378
      %v6584 = vunpack.c.l.b16 %v5379
      %v6585 = vunpack.c.h.b16 %v5379
      %v6586 = vunpack.c.l.b16 %v5380
      %v6587 = vunpack.c.h.b16 %v5380
      %v6588 = vunpack.c.l.b16 %v5381
      %v6589 = vunpack.c.h.b16 %v5381
      %v6590 = vunpack.c.l.b16 %v5382
      %v6591 = vunpack.c.h.b16 %v5382
      %v6592 = vunpack.c.l.b16 %v5383
      %v6593 = vunpack.c.h.b16 %v5383
      %v6594 = vunpack.c.l.b16 %v5384
      %v6595 = vunpack.c.h.b16 %v5384
      %v6596 = vunpack.c.l.b16 %v5385
      %v6597 = vunpack.c.h.b16 %v5385
      %v6598 = vunpack.c.l.b16 %v5386
      %v6599 = vunpack.c.h.b16 %v5386
      %v6600 = vunpack.c.l.b16 %v5387
      %v6601 = vunpack.c.h.b16 %v5387
      %v6602 = vunpack.c.l.b16 %v5388
      %v6603 = vunpack.c.h.b16 %v5388
      %v6604 = vunpack.c.l.b16 %v5389
      %v6605 = vunpack.c.h.b16 %v5389
      %v6606 = vunpack.c.l.b16 %v5390
      %v6607 = vunpack.c.h.b16 %v5390
      %v6608 = vunpack.c.l.b16 %v5391
      %v6609 = vunpack.c.h.b16 %v5391
      %v6610 = vunpack.c.l.b16 %v5392
      %v6611 = vunpack.c.h.b16 %v5392
      %v6612 = vunpack.c.l.b16 %v5393
      %v6613 = vunpack.c.h.b16 %v5393
      %v6614 = vunpack.c.l.b16 %v5394
      %v6615 = vunpack.c.h.b16 %v5394
      %v6616 = vunpack.c.l.b16 %v5395
      %v6617 = vunpack.c.h.b16 %v5395
      %v6618 = vunpack.c.l.b16 %v5396
      %v6619 = vunpack.c.h.b16 %v5396
      %v6620 = vunpack.c.l.b16 %v5397
      %v6621 = vunpack.c.h.b16 %v5397
      %v6622 = vunpack.c.l.b16 %v5398
      %v6623 = vunpack.c.h.b16 %v5398
      %v6624 = vunpack.c.l.b16 %v5399
      %v6625 = vunpack.c.h.b16 %v5399
      %v6626 = vunpack.c.l.b16 %v5400
      %v6627 = vunpack.c.h.b16 %v5400
      %v6628 = vunpack.c.l.b16 %v5401
      %v6629 = vunpack.c.h.b16 %v5401
      %v6630 = vunpack.c.l.b16 %v5402
      %v6631 = vunpack.c.h.b16 %v5402
      %v6632 = vunpack.c.l.b16 %v5403
      %v6633 = vunpack.c.h.b16 %v5403
      %v6634 = vunpack.c.l.b16 %v5404
      %v6635 = vunpack.c.h.b16 %v5404
      %v6636 = vunpack.c.l.b16 %v5405
      %v6637 = vunpack.c.h.b16 %v5405
      %v6638 = vunpack.c.l.b16 %v5406
      %v6639 = vunpack.c.h.b16 %v5406
      %v6640 = vunpack.c.l.b16 %v5407
      %v6641 = vunpack.c.h.b16 %v5407
      %v6642 = vunpack.c.l.b16 %v5408
      %v6643 = vunpack.c.h.b16 %v5408
      %v6644 = vunpack.c.l.b16 %v5409
      %v6645 = vunpack.c.h.b16 %v5409
      %v6646 = vunpack.c.l.b16 %v5410
      %v6647 = vunpack.c.h.b16 %v5410
      %v6648 = vunpack.c.l.b16 %v5411
      %v6649 = vunpack.c.h.b16 %v5411
      %v6650 = vunpack.c.l.b16 %v5412
      %v6651 = vunpack.c.h.b16 %v5412
      %v6652 = vunpack.c.l.b16 %v5413
      %v6653 = vunpack.c.h.b16 %v5413
      %v6654 = vunpack.c.l.b16 %v5414
      %v6655 = vunpack.c.h.b16 %v5414
      %v6656 = vunpack.c.l.b16 %v5415
      %v6657 = vunpack.c.h.b16 %v5415
      %v6658 = vunpack.c.l.b16 %v5416
      %v6659 = vunpack.c.h.b16 %v5416
      %v6660 = vunpack.c.l.b16 %v5417
      %v6661 = vunpack.c.h.b16 %v5417
      %v6662 = vunpack.c.l.b16 %v5418
      %v6663 = vunpack.c.h.b16 %v5418
      %v6664 = vunpack.c.l.b16 %v5419
      %v6665 = vunpack.c.h.b16 %v5419
      %v6666 = vunpack.c.l.b16 %v5420
      %v6667 = vunpack.c.h.b16 %v5420
      %v6668 = vunpack.c.l.b16 %v5421
      %v6669 = vunpack.c.h.b16 %v5421
      %v6670 = vunpack.c.l.b16 %v5422
      %v6671 = vunpack.c.h.b16 %v5422
      %v6672 = vunpack.c.l.b16 %v5423
      %v6673 = vunpack.c.h.b16 %v5423
      %v6674 = vunpack.c.l.b16 %v5424
      %v6675 = vunpack.c.h.b16 %v5424
      %v6676 = vunpack.c.l.b16 %v5425
      %v6677 = vunpack.c.h.b16 %v5425
      %v6678 = vunpack.c.l.b16 %v5426
      %v6679 = vunpack.c.h.b16 %v5426
      %v6680 = vunpack.c.l.b16 %v5427
      %v6681 = vunpack.c.h.b16 %v5427
      %v6682 = vunpack.c.l.b16 %v5428
      %v6683 = vunpack.c.h.b16 %v5428
      %v6684 = vunpack.c.l.b16 %v5429
      %v6685 = vunpack.c.h.b16 %v5429
      %v6686 = vunpack.c.l.b16 %v5430
      %v6687 = vunpack.c.h.b16 %v5430
      %v6688 = vunpack.c.l.b16 %v5431
      %v6689 = vunpack.c.h.b16 %v5431
      %v6690 = vunpack.c.l.b16 %v5432
      %v6691 = vunpack.c.h.b16 %v5432
      %v6692 = vunpack.c.l.b16 %v5433
      %v6693 = vunpack.c.h.b16 %v5433
      %v6694 = vunpack.c.l.b16 %v5434
      %v6695 = vunpack.c.h.b16 %v5434
      %v6696 = vunpack.c.l.b16 %v5435
      %v6697 = vunpack.c.h.b16 %v5435
      %v6698 = vunpack.c.l.b16 %v5436
      %v6699 = vunpack.c.h.b16 %v5436
      %v6700 = vunpack.c.l.b16 %v5437
      %v6701 = vunpack.c.h.b16 %v5437
      %v6702 = vunpack.c.l.b16 %v5438
      %v6703 = vunpack.c.h.b16 %v5438
      %v6704 = vunpack.c.l.b16 %v5439
      %v6705 = vunpack.c.h.b16 %v5439
      %v6706 = vunpack.c.l.b16 %v5440
      %v6707 = vunpack.c.h.b16 %v5440
      %v6708 = vunpack.c.l.b16 %v5441
      %v6709 = vunpack.c.h.b16 %v5441
      %v6710 = vunpack.c.l.b16 %v5442
      %v6711 = vunpack.c.h.b16 %v5442
      %v6712 = vunpack.c.l.b16 %v5443
      %v6713 = vunpack.c.h.b16 %v5443
      %v6714 = vunpack.c.l.b16 %v5444
      %v6715 = vunpack.c.h.b16 %v5444
      %v6716 = vunpack.c.l.b16 %v5445
      %v6717 = vunpack.c.h.b16 %v5445
      %v6718 = vunpack.c.l.b16 %v5446
      %v6719 = vunpack.c.h.b16 %v5446
      %v6720 = vunpack.c.l.b16 %v5447
      %v6721 = vunpack.c.h.b16 %v5447
      %v6722 = vunpack.c.l.b16 %v5448
      %v6723 = vunpack.c.h.b16 %v5448
      %v6724 = vunpack.c.l.b16 %v5449
      %v6725 = vunpack.c.h.b16 %v5449
      %v6726 = vunpack.c.l.b16 %v5450
      %v6727 = vunpack.c.h.b16 %v5450
      %v6728 = vunpack.c.l.b16 %v5451
      %v6729 = vunpack.c.h.b16 %v5451
      %v6730 = vunpack.c.l.b16 %v5452
      %v6731 = vunpack.c.h.b16 %v5452
      %v6732 = vunpack.c.l.b16 %v5453
      %v6733 = vunpack.c.h.b16 %v5453
      %v6734 = vunpack.c.l.b16 %v5454
      %v6735 = vunpack.c.h.b16 %v5454
      %v6736 = vunpack.c.l.b16 %v5455
      %v6737 = vunpack.c.h.b16 %v5455
      %v6738 = vunpack.c.l.b16 %v5456
      %v6739 = vunpack.c.h.b16 %v5456
      %v6740 = vunpack.c.l.b16 %v5457
      %v6741 = vunpack.c.h.b16 %v5457
      %v6742 = vunpack.c.l.b16 %v5458
      %v6743 = vunpack.c.h.b16 %v5458
      %v6744 = vunpack.c.l.b16 %v5459
      %v6745 = vunpack.c.h.b16 %v5459
      %v6746 = vunpack.c.l.b16 %v5460
      %v6747 = vunpack.c.h.b16 %v5460
      %v6748 = vunpack.c.l.b16 %v5461
      %v6749 = vunpack.c.h.b16 %v5461
      %v6750 = vunpack.c.l.b16 %v5462
      %v6751 = vunpack.c.h.b16 %v5462
      %v6752 = vunpack.c.l.b16 %v5463
      %v6753 = vunpack.c.h.b16 %v5463
      %v6754 = vunpack.c.l.b16 %v5464
      %v6755 = vunpack.c.h.b16 %v5464
      %v6756 = vunpack.c.l.b16 %v5465
      %v6757 = vunpack.c.h.b16 %v5465
      %v6758 = vunpack.c.l.b16 %v5466
      %v6759 = vunpack.c.h.b16 %v5466
      %v6760 = vunpack.c.l.b16 %v5467
      %v6761 = vunpack.c.h.b16 %v5467
      %v6762 = vunpack.c.l.b16 %v5468
      %v6763 = vunpack.c.h.b16 %v5468
      %v6764 = vunpack.c.l.b16 %v5469
      %v6765 = vunpack.c.h.b16 %v5469
      %v6766 = vunpack.c.l.b16 %v5470
      %v6767 = vunpack.c.h.b16 %v5470
      %v6768 = vunpack.c.l.b16 %v5471
      %v6769 = vunpack.c.h.b16 %v5471
      %v6770 = vunpack.c.l.b16 %v5472
      %v6771 = vunpack.c.h.b16 %v5472
      %v6772 = vunpack.c.l.b16 %v5473
      %v6773 = vunpack.c.h.b16 %v5473
      %v6774 = vunpack.c.l.b16 %v5474
      %v6775 = vunpack.c.h.b16 %v5474
      %v6776 = vunpack.c.l.b16 %v5475
      %v6777 = vunpack.c.h.b16 %v5475
      %v6778 = vunpack.c.l.b16 %v5476
      %v6779 = vunpack.c.h.b16 %v5476
      %v6780 = vunpack.c.l.b16 %v5477
      %v6781 = vunpack.c.h.b16 %v5477
      %v6782 = vunpack.c.l.b16 %v5478
      %v6783 = vunpack.c.h.b16 %v5478
      %v6784 = vunpack.c.l.b16 %v5479
      %v6785 = vunpack.c.h.b16 %v5479
      %v6786 = vunpack.c.l.b16 %v5480
      %v6787 = vunpack.c.h.b16 %v5480
      %v6788 = vunpack.c.l.b16 %v5481
      %v6789 = vunpack.c.h.b16 %v5481
      %v6790 = vunpack.c.l.b16 %v5482
      %v6791 = vunpack.c.h.b16 %v5482
      %v6792 = vunpack.c.l.b16 %v5483
      %v6793 = vunpack.c.h.b16 %v5483
      %v6794 = vunpack.c.l.b16 %v5484
      %v6795 = vunpack.c.h.b16 %v5484
      %v6796 = vunpack.c.l.b16 %v5485
      %v6797 = vunpack.c.h.b16 %v5485
      %v6798 = vunpack.c.l.b16 %v5486
      %v6799 = vunpack.c.h.b16 %v5486
      %v6800 = vunpack.c.l.b16 %v5487
      %v6801 = vunpack.c.h.b16 %v5487
      %v6802 = vunpack.c.l.b16 %v5488
      %v6803 = vunpack.c.h.b16 %v5488
      %v6804 = vunpack.c.l.b16 %v5489
      %v6805 = vunpack.c.h.b16 %v5489
      %v6806 = vunpack.c.l.b16 %v5490
      %v6807 = vunpack.c.h.b16 %v5490
      %v6808 = vunpack.c.l.b16 %v5491
      %v6809 = vunpack.c.h.b16 %v5491
      %v6810 = vunpack.c.l.b16 %v5492
      %v6811 = vunpack.c.h.b16 %v5492
      %v6812 = vunpack.c.l.b16 %v5493
      %v6813 = vunpack.c.h.b16 %v5493
      %v6814 = vunpack.c.l.b16 %v5494
      %v6815 = vunpack.c.h.b16 %v5494
      %v6816 = vunpack.c.l.b16 %v5495
      %v6817 = vunpack.c.h.b16 %v5495
      %v6818 = vunpack.c.l.b16 %v5496
      %v6819 = vunpack.c.h.b16 %v5496
      %v6820 = vunpack.c.l.b16 %v5497
      %v6821 = vunpack.c.h.b16 %v5497
      %v6822 = vunpack.c.l.b16 %v5498
      %v6823 = vunpack.c.h.b16 %v5498
      %v6824 = vunpack.c.l.b16 %v5499
      %v6825 = vunpack.c.h.b16 %v5499
      %v6826 = vunpack.c.l.b16 %v5500
      %v6827 = vunpack.c.h.b16 %v5500
      %v6828 = vunpack.c.l.b16 %v5501
      %v6829 = vunpack.c.h.b16 %v5501
      %v6830 = vunpack.c.l.b16 %v5502
      %v6831 = vunpack.c.h.b16 %v5502
      %v6832 = vunpack.c.l.b16 %v5503
      %v6833 = vunpack.c.h.b16 %v5503
      %v6834 = vunpack.c.l.b16 %v5504
      %v6835 = vunpack.c.h.b16 %v5504
      %v6836 = vunpack.c.l.b16 %v5505
      %v6837 = vunpack.c.h.b16 %v5505
      %v6838 = vunpack.c.l.b16 %v5506
      %v6839 = vunpack.c.h.b16 %v5506
      %v6840 = vunpack.c.l.b16 %v5507
      %v6841 = vunpack.c.h.b16 %v5507
      %v6842 = vunpack.c.l.b16 %v5508
      %v6843 = vunpack.c.h.b16 %v5508
      %v6844 = vunpack.c.l.b16 %v5509
      %v6845 = vunpack.c.h.b16 %v5509
      %v6846 = vunpack.c.l.b16 %v5510
      %v6847 = vunpack.c.h.b16 %v5510
      %v6848 = vunpack.c.l.b16 %v5511
      %v6849 = vunpack.c.h.b16 %v5511
      %v6850 = vunpack.c.l.b16 %v5512
      %v6851 = vunpack.c.h.b16 %v5512
      %v6852 = vunpack.c.l.b16 %v5513
      %v6853 = vunpack.c.h.b16 %v5513
      %v6854 = vunpack.c.l.b16 %v5514
      %v6855 = vunpack.c.h.b16 %v5514
      %v6856 = vunpack.c.l.b16 %v5515
      %v6857 = vunpack.c.h.b16 %v5515
      %v6858 = vunpack.c.l.b16 %v5516
      %v6859 = vunpack.c.h.b16 %v5516
      %v6860 = vunpack.c.l.b16 %v5517
      %v6861 = vunpack.c.h.b16 %v5517
      %v6862 = vunpack.c.l.b16 %v5518
      %v6863 = vunpack.c.h.b16 %v5518
      %v6864 = vunpack.c.l.b16 %v5519
      %v6865 = vunpack.c.h.b16 %v5519
      %v6866 = vunpack.c.l.b16 %v5520
      %v6867 = vunpack.c.h.b16 %v5520
      %v6868 = vunpack.c.l.b16 %v5521
      %v6869 = vunpack.c.h.b16 %v5521
      %v6870 = vunpack.c.l.b16 %v5522
      %v6871 = vunpack.c.h.b16 %v5522
      %v6872 = vunpack.c.l.b16 %v5523
      %v6873 = vunpack.c.h.b16 %v5523
      %v6874 = vunpack.c.l.b16 %v5524
      %v6875 = vunpack.c.h.b16 %v5524
      %v6876 = vunpack.c.l.b16 %v5525
      %v6877 = vunpack.c.h.b16 %v5525
      %v6878 = vunpack.c.l.b16 %v5526
      %v6879 = vunpack.c.h.b16 %v5526
      %v6880 = vunpack.c.l.b16 %v5527
      %v6881 = vunpack.c.h.b16 %v5527
      %v6882 = vunpack.c.l.b16 %v5528
      %v6883 = vunpack.c.h.b16 %v5528
      %v6884 = vunpack.c.l.b16 %v5529
      %v6885 = vunpack.c.h.b16 %v5529
      %v6886 = vunpack.c.l.b16 %v5530
      %v6887 = vunpack.c.h.b16 %v5530
      %v6888 = vunpack.c.l.b16 %v5531
      %v6889 = vunpack.c.h.b16 %v5531
      %v6890 = vunpack.c.l.b16 %v5532
      %v6891 = vunpack.c.h.b16 %v5532
      %v6892 = vunpack.c.l.b16 %v5533
      %v6893 = vunpack.c.h.b16 %v5533
      %v6894 = vunpack.c.l.b16 %v5534
      %v6895 = vunpack.c.h.b16 %v5534
      %v6896 = vunpack.c.l.b16 %v5535
      %v6897 = vunpack.c.h.b16 %v5535
      %v6898 = vunpack.c.l.b16 %v5536
      %v6899 = vunpack.c.h.b16 %v5536
      %v6900 = vunpack.c.l.b16 %v5537
      %v6901 = vunpack.c.h.b16 %v5537
      %v6902 = vunpack.c.l.b16 %v5538
      %v6903 = vunpack.c.h.b16 %v5538
      %v6904 = vunpack.c.l.b16 %v5539
      %v6905 = vunpack.c.h.b16 %v5539
      %v6906 = vunpack.c.l.b16 %v5540
      %v6907 = vunpack.c.h.b16 %v5540
      %v6908 = vunpack.c.l.b16 %v5541
      %v6909 = vunpack.c.h.b16 %v5541
      %v6910 = vunpack.c.l.b16 %v5542
      %v6911 = vunpack.c.h.b16 %v5542
      %v6912 = vunpack.c.l.b16 %v5543
      %v6913 = vunpack.c.h.b16 %v5543
      %v6914 = vunpack.c.l.b16 %v5544
      %v6915 = vunpack.c.h.b16 %v5544
      %v6916 = vunpack.c.l.b16 %v5545
      %v6917 = vunpack.c.h.b16 %v5545
      %v6918 = vunpack.c.l.b16 %v5546
      %v6919 = vunpack.c.h.b16 %v5546
      %v6920 = vunpack.c.l.b16 %v5547
      %v6921 = vunpack.c.h.b16 %v5547
      %v6922 = vunpack.c.l.b16 %v5548
      %v6923 = vunpack.c.h.b16 %v5548
      %v6924 = vunpack.c.l.b16 %v5549
      %v6925 = vunpack.c.h.b16 %v5549
      %v6926 = vunpack.c.l.b16 %v5550
      %v6927 = vunpack.c.h.b16 %v5550
      %v6928 = vunpack.c.l.b16 %v5551
      %v6929 = vunpack.c.h.b16 %v5551
      %v6930 = vunpack.c.l.b16 %v5552
      %v6931 = vunpack.c.h.b16 %v5552
      %v6932 = vunpack.c.l.b16 %v5553
      %v6933 = vunpack.c.h.b16 %v5553
      %v6934 = vunpack.c.l.b16 %v5554
      %v6935 = vunpack.c.h.b16 %v5554
      %v6936 = vunpack.c.l.b16 %v5555
      %v6937 = vunpack.c.h.b16 %v5555
      %v6938 = vunpack.c.l.b16 %v5556
      %v6939 = vunpack.c.h.b16 %v5556
      %v6940 = vunpack.c.l.b16 %v5557
      %v6941 = vunpack.c.h.b16 %v5557
      %v6942 = vunpack.c.l.b16 %v5558
      %v6943 = vunpack.c.h.b16 %v5558
      %v6944 = vunpack.c.l.b16 %v5559
      %v6945 = vunpack.c.h.b16 %v5559
      %v6946 = vunpack.c.l.b16 %v5560
      %v6947 = vunpack.c.h.b16 %v5560
      %v6948 = vunpack.c.l.b16 %v5561
      %v6949 = vunpack.c.h.b16 %v5561
      %v6950 = vunpack.c.l.b16 %v5562
      %v6951 = vunpack.c.h.b16 %v5562
      %v6952 = vunpack.c.l.b16 %v5563
      %v6953 = vunpack.c.h.b16 %v5563
      %v6954 = vunpack.c.l.b16 %v5564
      %v6955 = vunpack.c.h.b16 %v5564
      %v6956 = vunpack.c.l.b16 %v5565
      %v6957 = vunpack.c.h.b16 %v5565
      %v6958 = vunpack.c.l.b16 %v5566
      %v6959 = vunpack.c.h.b16 %v5566
      %v6960 = vunpack.c.l.b16 %v5567
      %v6961 = vunpack.c.h.b16 %v5567
      %v6962 = vunpack.c.l.b16 %v5568
      %v6963 = vunpack.c.h.b16 %v5568
      %v6964 = vunpack.c.l.b16 %v5569
      %v6965 = vunpack.c.h.b16 %v5569
      %v6966 = vunpack.c.l.b16 %v5570
      %v6967 = vunpack.c.h.b16 %v5570
      %v6968 = vunpack.c.l.b16 %v5571
      %v6969 = vunpack.c.h.b16 %v5571
      %v6970 = vunpack.c.l.b16 %v5572
      %v6971 = vunpack.c.h.b16 %v5572
      %v6972 = vunpack.c.l.b16 %v5573
      %v6973 = vunpack.c.h.b16 %v5573
      %v6974 = vunpack.c.l.b16 %v5574
      %v6975 = vunpack.c.h.b16 %v5574
      %v6976 = vunpack.c.l.b16 %v5575
      %v6977 = vunpack.c.h.b16 %v5575
      %v6978 = vunpack.c.l.b16 %v5576
      %v6979 = vunpack.c.h.b16 %v5576
      %v6980 = vunpack.c.l.b16 %v5577
      %v6981 = vunpack.c.h.b16 %v5577
      %v6982 = vunpack.c.l.b16 %v5578
      %v6983 = vunpack.c.h.b16 %v5578
      %v6984 = vunpack.c.l.b16 %v5579
      %v6985 = vunpack.c.h.b16 %v5579
      %v6986 = vunpack.c.l.b16 %v5580
      %v6987 = vunpack.c.h.b16 %v5580
      %v6988 = vunpack.c.l.b16 %v5581
      %v6989 = vunpack.c.h.b16 %v5581
      %v6990 = vunpack.c.l.b16 %v5582
      %v6991 = vunpack.c.h.b16 %v5582
      %v6992 = vunpack.c.l.b16 %v5583
      %v6993 = vunpack.c.h.b16 %v5583
      %v6994 = vunpack.c.l.b16 %v5584
      %v6995 = vunpack.c.h.b16 %v5584
      %v6996 = vunpack.c.l.b16 %v5585
      %v6997 = vunpack.c.h.b16 %v5585
      %v6998 = vunpack.c.l.b16 %v5586
      %v6999 = vunpack.c.h.b16 %v5586
      %v7000 = vunpack.c.l.b16 %v5587
      %v7001 = vunpack.c.h.b16 %v5587
      %v7002 = vunpack.c.l.b16 %v5588
      %v7003 = vunpack.c.h.b16 %v5588
      %v7004 = vunpack.c.l.b16 %v5589
      %v7005 = vunpack.c.h.b16 %v5589
      %v7006 = vunpack.c.l.b16 %v5590
      %v7007 = vunpack.c.h.b16 %v5590
      %v7008 = vunpack.c.l.b16 %v5591
      %v7009 = vunpack.c.h.b16 %v5591
      %v7010 = vunpack.c.l.b16 %v5592
      %v7011 = vunpack.c.h.b16 %v5592
      %v7012 = vunpack.c.l.b16 %v5593
      %v7013 = vunpack.c.h.b16 %v5593
      %v7014 = vunpack.c.l.b16 %v5594
      %v7015 = vunpack.c.h.b16 %v5594
      %v7016 = vunpack.c.l.b16 %v5595
      %v7017 = vunpack.c.h.b16 %v5595
      %v7018 = vunpack.c.l.b16 %v5596
      %v7019 = vunpack.c.h.b16 %v5596
      %v7020 = vunpack.c.l.b16 %v5597
      %v7021 = vunpack.c.h.b16 %v5597
      %v7022 = vunpack.c.l.b16 %v5598
      %v7023 = vunpack.c.h.b16 %v5598
      %v7024 = vunpack.c.l.b16 %v5599
      %v7025 = vunpack.c.h.b16 %v5599
      %v7026 = vunpack.c.l.b16 %v5600
      %v7027 = vunpack.c.h.b16 %v5600
      %v7028 = vunpack.c.l.b16 %v5601
      %v7029 = vunpack.c.h.b16 %v5601
      %v7030 = vunpack.c.l.b16 %v5602
      %v7031 = vunpack.c.h.b16 %v5602
      %v7032 = vunpack.c.l.b16 %v5603
      %v7033 = vunpack.c.h.b16 %v5603
      %v7034 = vunpack.c.l.b16 %v5604
      %v7035 = vunpack.c.h.b16 %v5604
      %v7036 = vunpack.c.l.b16 %v5605
      %v7037 = vunpack.c.h.b16 %v5605
      %v7038 = vunpack.c.l.b16 %v5606
      %v7039 = vunpack.c.h.b16 %v5606
      %v7040 = vunpack.c.l.b16 %v5607
      %v7041 = vunpack.c.h.b16 %v5607
      %v7042 = vunpack.c.l.b16 %v5608
      %v7043 = vunpack.c.h.b16 %v5608
      %v7044 = vunpack.c.l.b16 %v5609
      %v7045 = vunpack.c.h.b16 %v5609
      %v7046 = vunpack.c.l.b16 %v5610
      %v7047 = vunpack.c.h.b16 %v5610
      %v7048 = vunpack.c.l.b16 %v5611
      %v7049 = vunpack.c.h.b16 %v5611
      %v7050 = vunpack.c.l.b16 %v5612
      %v7051 = vunpack.c.h.b16 %v5612
      %v7052 = vunpack.c.l.b16 %v5613
      %v7053 = vunpack.c.h.b16 %v5613
      %v7054 = vunpack.c.l.b16 %v5614
      %v7055 = vunpack.c.h.b16 %v5614
      %v7056 = vunpack.c.l.b16 %v5615
      %v7057 = vunpack.c.h.b16 %v5615
      %v7058 = vunpack.c.l.b16 %v5616
      %v7059 = vunpack.c.h.b16 %v5616
      %v7060 = vunpack.c.l.b16 %v5617
      %v7061 = vunpack.c.h.b16 %v5617
      %v7062 = vunpack.c.l.b16 %v5618
      %v7063 = vunpack.c.h.b16 %v5618
      %v7064 = vunpack.c.l.b16 %v5619
      %v7065 = vunpack.c.h.b16 %v5619
      %v7066 = vunpack.c.l.b16 %v5620
      %v7067 = vunpack.c.h.b16 %v5620
      %v7068 = vunpack.c.l.b16 %v5621
      %v7069 = vunpack.c.h.b16 %v5621
      %v7070 = vunpack.c.l.b16 %v5622
      %v7071 = vunpack.c.h.b16 %v5622
      %v7072 = vunpack.c.l.b16 %v5623
      %v7073 = vunpack.c.h.b16 %v5623
      %v7074 = vunpack.c.l.b16 %v5624
      %v7075 = vunpack.c.h.b16 %v5624
      %v7076 = vunpack.c.l.b16 %v5625
      %v7077 = vunpack.c.h.b16 %v5625
      %v7078 = vunpack.c.l.b16 %v5626
      %v7079 = vunpack.c.h.b16 %v5626
      %v7080 = vunpack.c.l.b16 %v5627
      %v7081 = vunpack.c.h.b16 %v5627
      %v7082 = vunpack.c.l.b16 %v5628
      %v7083 = vunpack.c.h.b16 %v5628
      %v7084 = vunpack.c.l.b16 %v5629
      %v7085 = vunpack.c.h.b16 %v5629
      %v7086 = vunpack.c.l.b16 %v5630
      %v7087 = vunpack.c.h.b16 %v5630
      %v7088 = vunpack.c.l.b16 %v5631
      %v7089 = vunpack.c.h.b16 %v5631
      %v7090 = vunpack.c.l.b16 %v5632
      %v7091 = vunpack.c.h.b16 %v5632
      %v7092 = vunpack.c.l.b16 %v5633
      %v7093 = vunpack.c.h.b16 %v5633
      %v7094 = vunpack.c.l.b16 %v5634
      %v7095 = vunpack.c.h.b16 %v5634
      %v7096 = vunpack.c.l.b16 %v5635
      %v7097 = vunpack.c.h.b16 %v5635
      %v7098 = vunpack.c.l.b16 %v5636
      %v7099 = vunpack.c.h.b16 %v5636
      %v7100 = vunpack.c.l.b16 %v5637
      %v7101 = vunpack.c.h.b16 %v5637
      %v7102 = vunpack.c.l.b16 %v5638
      %v7103 = vunpack.c.h.b16 %v5638
      %v7104 = vunpack.c.l.b16 %v5639
      %v7105 = vunpack.c.h.b16 %v5639
      %v7106 = vunpack.c.l.b16 %v5640
      %v7107 = vunpack.c.h.b16 %v5640
      %v7108 = vunpack.c.l.b16 %v5641
      %v7109 = vunpack.c.h.b16 %v5641
      %v7110 = vunpack.c.l.b16 %v5642
      %v7111 = vunpack.c.h.b16 %v5642
      %v7112 = vunpack.c.l.b16 %v5643
      %v7113 = vunpack.c.h.b16 %v5643
      %v7114 = vunpack.c.l.b16 %v5644
      %v7115 = vunpack.c.h.b16 %v5644
      %v7116 = vunpack.c.l.b16 %v5645
      %v7117 = vunpack.c.h.b16 %v5645
      %v7118 = vunpack.c.l.b16 %v5646
      %v7119 = vunpack.c.h.b16 %v5646
      %v7120 = vunpack.c.l.b16 %v5647
      %v7121 = vunpack.c.h.b16 %v5647
      %v7122 = vunpack.c.l.b16 %v5648
      %v7123 = vunpack.c.h.b16 %v5648
      %v7124 = vunpack.c.l.b16 %v5649
      %v7125 = vunpack.c.h.b16 %v5649
      %v7126 = vunpack.c.l.b16 %v5650
      %v7127 = vunpack.c.h.b16 %v5650
      %v7128 = vunpack.c.l.b16 %v5651
      %v7129 = vunpack.c.h.b16 %v5651
      %v7130 = vunpack.c.l.b16 %v5652
      %v7131 = vunpack.c.h.b16 %v5652
      %v7132 = vunpack.c.l.b16 %v5653
      %v7133 = vunpack.c.h.b16 %v5653
      %v7134 = vunpack.c.l.b16 %v5654
      %v7135 = vunpack.c.h.b16 %v5654
      %v7136 = vunpack.c.l.b16 %v5655
      %v7137 = vunpack.c.h.b16 %v5655
      %v7138 = vunpack.c.l.b16 %v5656
      %v7139 = vunpack.c.h.b16 %v5656
      %v7140 = vunpack.c.l.b16 %v5657
      %v7141 = vunpack.c.h.b16 %v5657
      %v7142 = vunpack.c.l.b16 %v5658
      %v7143 = vunpack.c.h.b16 %v5658
      %v7144 = vunpack.c.l.b16 %v5659
      %v7145 = vunpack.c.h.b16 %v5659
      %v7146 = vunpack.c.l.b16 %v5660
      %v7147 = vunpack.c.h.b16 %v5660
      %v7148 = vunpack.c.l.b16 %v5661
      %v7149 = vunpack.c.h.b16 %v5661
      %v7150 = vunpack.c.l.b16 %v5662
      %v7151 = vunpack.c.h.b16 %v5662
      %v7152 = vunpack.c.l.b16 %v5663
      %v7153 = vunpack.c.h.b16 %v5663
      %v7154 = vunpack.c.l.b16 %v5664
      %v7155 = vunpack.c.h.b16 %v5664
      %v7156 = vunpack.c.l.b16 %v5665
      %v7157 = vunpack.c.h.b16 %v5665
      %v7158 = vunpack.c.l.b16 %v5666
      %v7159 = vunpack.c.h.b16 %v5666
      %v7160 = vunpack.c.l.b16 %v5667
      %v7161 = vunpack.c.h.b16 %v5667
      %v7162 = vunpack.c.l.b16 %v5668
      %v7163 = vunpack.c.h.b16 %v5668
      %v7164 = vunpack.c.l.b16 %v5669
      %v7165 = vunpack.c.h.b16 %v5669
      %v7166 = vunpack.c.l.b16 %v5670
      %v7167 = vunpack.c.h.b16 %v5670
      %v7168 = vunpack.c.l.b16 %v5671
      %v7169 = vunpack.c.h.b16 %v5671
      %v7170 = vunpack.c.l.b16 %v5672
      %v7171 = vunpack.c.h.b16 %v5672
      %v7172 = vunpack.c.l.b16 %v5673
      %v7173 = vunpack.c.h.b16 %v5673
      %v7174 = vunpack.c.l.b16 %v5674
      %v7175 = vunpack.c.h.b16 %v5674
      %v7176 = vunpack.c.l.b16 %v5675
      %v7177 = vunpack.c.h.b16 %v5675
      %v7178 = vunpack.c.l.b16 %v5676
      %v7179 = vunpack.c.h.b16 %v5676
      %v7180 = vunpack.c.l.b16 %v5677
      %v7181 = vunpack.c.h.b16 %v5677
      %v7182 = vunpack.c.l.b16 %v5678
      %v7183 = vunpack.c.h.b16 %v5678
      %v7184 = vunpack.c.l.b16 %v5679
      %v7185 = vunpack.c.h.b16 %v5679
      %v7186 = vunpack.c.l.b16 %v5680
      %v7187 = vunpack.c.h.b16 %v5680
      %v7188 = vunpack.c.l.b16 %v5681
      %v7189 = vunpack.c.h.b16 %v5681
      %v7190 = vunpack.c.l.b16 %v5682
      %v7191 = vunpack.c.h.b16 %v5682
      %v7192 = vunpack.c.l.b16 %v5683
      %v7193 = vunpack.c.h.b16 %v5683
      %v7194 = vunpack.c.l.b16 %v5684
      %v7195 = vunpack.c.h.b16 %v5684
      %v7196 = vunpack.c.l.b16 %v5685
      %v7197 = vunpack.c.h.b16 %v5685
      %v7198 = vunpack.c.l.b16 %v5686
      %v7199 = vunpack.c.h.b16 %v5686
      %v7200 = vunpack.c.l.b16 %v5687
      %v7201 = vunpack.c.h.b16 %v5687
      %v7202 = vunpack.c.l.b16 %v5688
      %v7203 = vunpack.c.h.b16 %v5688
      %v7204 = vunpack.c.l.b16 %v5689
      %v7205 = vunpack.c.h.b16 %v5689
      %v7206 = vunpack.c.l.b16 %v5690
      %v7207 = vunpack.c.h.b16 %v5690
      %v7208 = vunpack.c.l.b16 %v5691
      %v7209 = vunpack.c.h.b16 %v5691
      %v7210 = vunpack.c.l.b16 %v5692
      %v7211 = vunpack.c.h.b16 %v5692
      %v7212 = vunpack.c.l.b16 %v5693
      %v7213 = vunpack.c.h.b16 %v5693
      %v7214 = vunpack.c.l.b16 %v5694
      %v7215 = vunpack.c.h.b16 %v5694
      %v7216 = vunpack.c.l.b16 %v5695
      %v7217 = vunpack.c.h.b16 %v5695
      %v7218 = vunpack.c.l.b16 %v5696
      %v7219 = vunpack.c.h.b16 %v5696
      %v7220 = vunpack.c.l.b16 %v5697
      %v7221 = vunpack.c.h.b16 %v5697
      %v7222 = vunpack.c.l.b16 %v5698
      %v7223 = vunpack.c.h.b16 %v5698
      %v7224 = vunpack.c.l.b16 %v5699
      %v7225 = vunpack.c.h.b16 %v5699
      %v7226 = vunpack.c.l.b16 %v5700
      %v7227 = vunpack.c.h.b16 %v5700
      %v7228 = vunpack.c.l.b16 %v5701
      %v7229 = vunpack.c.h.b16 %v5701
      %v7230 = vunpack.c.l.b16 %v5702
      %v7231 = vunpack.c.h.b16 %v5702
      %v7232 = vunpack.c.l.b16 %v5703
      %v7233 = vunpack.c.h.b16 %v5703
      %v7234 = vunpack.c.l.b16 %v5704
      %v7235 = vunpack.c.h.b16 %v5704
      %v7236 = vunpack.c.l.b16 %v5705
      %v7237 = vunpack.c.h.b16 %v5705
      %v7238 = vunpack.c.l.b16 %v5706
      %v7239 = vunpack.c.h.b16 %v5706
      %v7240 = vunpack.c.l.b16 %v5707
      %v7241 = vunpack.c.h.b16 %v5707
      %v7242 = vunpack.c.l.b16 %v5708
      %v7243 = vunpack.c.h.b16 %v5708
      %v7244 = vunpack.c.l.b16 %v5709
      %v7245 = vunpack.c.h.b16 %v5709
      %v7246 = vunpack.c.l.b16 %v5710
      %v7247 = vunpack.c.h.b16 %v5710
      %v7248 = vunpack.c.l.b16 %v5711
      %v7249 = vunpack.c.h.b16 %v5711
      %v7250 = vunpack.c.l.b16 %v5712
      %v7251 = vunpack.c.h.b16 %v5712
      %v7252 = vunpack.c.l.b16 %v5713
      %v7253 = vunpack.c.h.b16 %v5713
      %v7254 = vunpack.c.l.b16 %v5714
      %v7255 = vunpack.c.h.b16 %v5714
      %v7256 = vunpack.c.l.b16 %v5715
      %v7257 = vunpack.c.h.b16 %v5715
      %v7258 = vunpack.c.l.b16 %v5716
      %v7259 = vunpack.c.h.b16 %v5716
      %v7260 = vunpack.c.l.b16 %v5717
      %v7261 = vunpack.c.h.b16 %v5717
      %v7262 = vunpack.c.l.b16 %v5718
      %v7263 = vunpack.c.h.b16 %v5718
      %v7264 = vunpack.c.l.b16 %v5719
      %v7265 = vunpack.c.h.b16 %v5719
      %v7266 = vunpack.c.l.b16 %v5720
      %v7267 = vunpack.c.h.b16 %v5720
      %v7268 = vunpack.c.l.b16 %v5721
      %v7269 = vunpack.c.h.b16 %v5721
      %v7270 = vunpack.c.l.b16 %v5722
      %v7271 = vunpack.c.h.b16 %v5722
      %v7272 = vunpack.c.l.b16 %v5723
      %v7273 = vunpack.c.h.b16 %v5723
      %v7274 = vunpack.c.l.b16 %v5724
      %v7275 = vunpack.c.h.b16 %v5724
      %v7276 = vunpack.c.l.b16 %v5725
      %v7277 = vunpack.c.h.b16 %v5725
      %v7278 = vunpack.c.l.b16 %v5726
      %v7279 = vunpack.c.h.b16 %v5726
      %v7280 = vunpack.c.l.b16 %v5727
      %v7281 = vunpack.c.h.b16 %v5727
      %v7282 = vunpack.c.l.b16 %v5728
      %v7283 = vunpack.c.h.b16 %v5728
      %v7284 = vunpack.c.l.b16 %v5729
      %v7285 = vunpack.c.h.b16 %v5729
      %v7286 = vunpack.c.l.b16 %v5730
      %v7287 = vunpack.c.h.b16 %v5730
      %v7288 = vunpack.c.l.b16 %v5731
      %v7289 = vunpack.c.h.b16 %v5731
      %v7290 = vunpack.c.l.b16 %v5732
      %v7291 = vunpack.c.h.b16 %v5732
      %v7292 = vunpack.c.l.b16 %v5733
      %v7293 = vunpack.c.h.b16 %v5733
      %v7294 = vunpack.c.l.b16 %v5734
      %v7295 = vunpack.c.h.b16 %v5734
      %v7296 = vunpack.c.l.b16 %v5735
      %v7297 = vunpack.c.h.b16 %v5735
      %v7298 = vunpack.c.l.b16 %v5736
      %v7299 = vunpack.c.h.b16 %v5736
      %v7300 = vunpack.c.l.b16 %v5737
      %v7301 = vunpack.c.h.b16 %v5737
      %v7302 = vunpack.c.l.b16 %v5738
      %v7303 = vunpack.c.h.b16 %v5738
      %v7304 = vunpack.c.l.b16 %v5739
      %v7305 = vunpack.c.h.b16 %v5739
      %v7306 = vunpack.c.l.b16 %v5740
      %v7307 = vunpack.c.h.b16 %v5740
      %v7308 = vunpack.c.l.b16 %v5741
      %v7309 = vunpack.c.h.b16 %v5741
      %v7310 = vunpack.c.l.b16 %v5742
      %v7311 = vunpack.c.h.b16 %v5742
      %v7312 = vunpack.c.l.b16 %v5743
      %v7313 = vunpack.c.h.b16 %v5743
      %v7314 = vunpack.c.l.b16 %v5744
      %v7315 = vunpack.c.h.b16 %v5744
      %v7316 = vunpack.c.l.b16 %v5745
      %v7317 = vunpack.c.h.b16 %v5745
      %v7318 = vunpack.c.l.b16 %v5746
      %v7319 = vunpack.c.h.b16 %v5746
      %v7320 = vunpack.c.l.b16 %v5747
      %v7321 = vunpack.c.h.b16 %v5747
      %v7322 = vunpack.c.l.b16 %v5748
      %v7323 = vunpack.c.h.b16 %v5748
      %v7324 = vunpack.c.l.b16 %v5749
      %v7325 = vunpack.c.h.b16 %v5749
      %v7326 = vunpack.c.l.b16 %v5750
      %v7327 = vunpack.c.h.b16 %v5750
      %v7328 = vunpack.c.l.b16 %v5751
      %v7329 = vunpack.c.h.b16 %v5751
      %v7330 = vunpack.c.l.b16 %v5752
      %v7331 = vunpack.c.h.b16 %v5752
      %v7332 = vunpack.c.l.b16 %v5753
      %v7333 = vunpack.c.h.b16 %v5753
      %v7334 = vunpack.c.l.b16 %v5754
      %v7335 = vunpack.c.h.b16 %v5754
      %v7336 = vunpack.c.l.b16 %v5755
      %v7337 = vunpack.c.h.b16 %v5755
      %v7338 = vunpack.c.l.b16 %v5756
      %v7339 = vunpack.c.h.b16 %v5756
      %v7340 = vunpack.c.l.b16 %v5757
      %v7341 = vunpack.c.h.b16 %v5757
      %v7342 = vunpack.c.l.b16 %v5758
      %v7343 = vunpack.c.h.b16 %v5758
      %v7344 = vunpack.c.l.b16 %v5759
      %v7345 = vunpack.c.h.b16 %v5759
      %v7346 = vunpack.c.l.b16 %v5760
      %v7347 = vunpack.c.h.b16 %v5760
      %v7348 = vunpack.c.l.b16 %v5761
      %v7349 = vunpack.c.h.b16 %v5761
      %v7350 = vunpack.c.l.b16 %v5762
      %v7351 = vunpack.c.h.b16 %v5762
      %v7352 = vunpack.c.l.b16 %v5763
      %v7353 = vunpack.c.h.b16 %v5763
      %v7354 = vunpack.c.l.b16 %v5764
      %v7355 = vunpack.c.h.b16 %v5764
      %v7356 = vunpack.c.l.b16 %v5765
      %v7357 = vunpack.c.h.b16 %v5765
      %v7358 = vunpack.c.l.b16 %v5766
      %v7359 = vunpack.c.h.b16 %v5766
      %v7360 = vunpack.c.l.b16 %v5767
      %v7361 = vunpack.c.h.b16 %v5767
      %v7362 = vunpack.c.l.b16 %v5768
      %v7363 = vunpack.c.h.b16 %v5768
      %v7364 = vunpack.c.l.b16 %v5769
      %v7365 = vunpack.c.h.b16 %v5769
      %v7366 = vunpack.c.l.b16 %v5770
      %v7367 = vunpack.c.h.b16 %v5770
      %v7368 = vunpack.c.l.b16 %v5771
      %v7369 = vunpack.c.h.b16 %v5771
      %v7370 = vunpack.c.l.b16 %v5772
      %v7371 = vunpack.c.h.b16 %v5772
      %v7372 = vunpack.c.l.b16 %v5773
      %v7373 = vunpack.c.h.b16 %v5773
      %v7374 = vunpack.c.l.b16 %v5774
      %v7375 = vunpack.c.h.b16 %v5774
      %v7376 = vunpack.c.l.b16 %v5775
      %v7377 = vunpack.c.h.b16 %v5775
      %v7378 = vunpack.c.l.b16 %v5776
      %v7379 = vunpack.c.h.b16 %v5776
      %v7380 = vunpack.c.l.b16 %v5777
      %v7381 = vunpack.c.h.b16 %v5777
      %v7382 = vunpack.c.l.b16 %v5778
      %v7383 = vunpack.c.h.b16 %v5778
      %v7384 = vunpack.c.l.b16 %v5779
      %v7385 = vunpack.c.h.b16 %v5779
      %v7386 = vunpack.c.l.b16 %v5780
      %v7387 = vunpack.c.h.b16 %v5780
      %v7388 = vunpack.c.l.b16 %v5781
      %v7389 = vunpack.c.h.b16 %v5781
      %v7390 = vunpack.c.l.b16 %v5782
      %v7391 = vunpack.c.h.b16 %v5782
      %v7392 = vunpack.c.l.b16 %v5783
      %v7393 = vunpack.c.h.b16 %v5783
      %v7394 = vunpack.c.l.b16 %v5784
      %v7395 = vunpack.c.h.b16 %v5784
      %v7396 = vunpack.c.l.b16 %v5785
      %v7397 = vunpack.c.h.b16 %v5785
      %v7398 = vunpack.c.l.b16 %v5786
      %v7399 = vunpack.c.h.b16 %v5786
      %v7400 = vunpack.c.l.b16 %v5787
      %v7401 = vunpack.c.h.b16 %v5787
      %v7402 = vunpack.c.l.b16 %v5788
      %v7403 = vunpack.c.h.b16 %v5788
      %v7404 = vunpack.c.l.b16 %v5789
      %v7405 = vunpack.c.h.b16 %v5789
      %v7406 = vunpack.c.l.b16 %v5790
      %v7407 = vunpack.c.h.b16 %v5790
      %v7408 = vunpack.c.l.b16 %v5791
      %v7409 = vunpack.c.h.b16 %v5791
      %v7410 = vunpack.c.l.b16 %v5792
      %v7411 = vunpack.c.h.b16 %v5792
      %v7412 = vunpack.c.l.b16 %v5793
      %v7413 = vunpack.c.h.b16 %v5793
      %v7414 = vpack.c.b16 %v6406, %v6390
      %v7415 = vpack.c.b16 %v6407, %v6391
      %v7416 = vpack.c.b16 %v6408, %v6392
      %v7417 = vpack.c.b16 %v6409, %v6393
      %v7418 = vpack.c.b16 %v6410, %v6394
      %v7419 = vpack.c.b16 %v6411, %v6395
      %v7420 = vpack.c.b16 %v6412, %v6396
      %v7421 = vpack.c.b16 %v6413, %v6397
      %v7422 = vpack.c.b16 %v6414, %v6398
      %v7423 = vpack.c.b16 %v6415, %v6399
      %v7424 = vpack.c.b16 %v6416, %v6400
      %v7425 = vpack.c.b16 %v6417, %v6401
      %v7426 = vpack.c.b16 %v6418, %v6402
      %v7427 = vpack.c.b16 %v6419, %v6403
      %v7428 = vpack.c.b16 %v6420, %v6404
      %v7429 = vpack.c.b16 %v6421, %v6405
      %v7430 = vpack.c.b16 %v6438, %v6422
      %v7431 = vpack.c.b16 %v6439, %v6423
      %v7432 = vpack.c.b16 %v6440, %v6424
      %v7433 = vpack.c.b16 %v6441, %v6425
      %v7434 = vpack.c.b16 %v6442, %v6426
      %v7435 = vpack.c.b16 %v6443, %v6427
      %v7436 = vpack.c.b16 %v6444, %v6428
      %v7437 = vpack.c.b16 %v6445, %v6429
      %v7438 = vpack.c.b16 %v6446, %v6430
      %v7439 = vpack.c.b16 %v6447, %v6431
      %v7440 = vpack.c.b16 %v6448, %v6432
      %v7441 = vpack.c.b16 %v6449, %v6433
      %v7442 = vpack.c.b16 %v6450, %v6434
      %v7443 = vpack.c.b16 %v6451, %v6435
      %v7444 = vpack.c.b16 %v6452, %v6436
      %v7445 = vpack.c.b16 %v6453, %v6437
      %v7446 = vpack.c.b16 %v6470, %v6454
      %v7447 = vpack.c.b16 %v6471, %v6455
      %v7448 = vpack.c.b16 %v6472, %v6456
      %v7449 = vpack.c.b16 %v6473, %v6457
      %v7450 = vpack.c.b16 %v6474, %v6458
      %v7451 = vpack.c.b16 %v6475, %v6459
      %v7452 = vpack.c.b16 %v6476, %v6460
      %v7453 = vpack.c.b16 %v6477, %v6461
      %v7454 = vpack.c.b16 %v6478, %v6462
      %v7455 = vpack.c.b16 %v6479, %v6463
      %v7456 = vpack.c.b16 %v6480, %v6464
      %v7457 = vpack.c.b16 %v6481, %v6465
      %v7458 = vpack.c.b16 %v6482, %v6466
      %v7459 = vpack.c.b16 %v6483, %v6467
      %v7460 = vpack.c.b16 %v6484, %v6468
      %v7461 = vpack.c.b16 %v6485, %v6469
      %v7462 = vpack.c.b16 %v6502, %v6486
      %v7463 = vpack.c.b16 %v6503, %v6487
      %v7464 = vpack.c.b16 %v6504, %v6488
      %v7465 = vpack.c.b16 %v6505, %v6489
      %v7466 = vpack.c.b16 %v6506, %v6490
      %v7467 = vpack.c.b16 %v6507, %v6491
      %v7468 = vpack.c.b16 %v6508, %v6492
      %v7469 = vpack.c.b16 %v6509, %v6493
      %v7470 = vpack.c.b16 %v6510, %v6494
      %v7471 = vpack.c.b16 %v6511, %v6495
      %v7472 = vpack.c.b16 %v6512, %v6496
      %v7473 = vpack.c.b16 %v6513, %v6497
      %v7474 = vpack.c.b16 %v6514, %v6498
      %v7475 = vpack.c.b16 %v6515, %v6499
      %v7476 = vpack.c.b16 %v6516, %v6500
      %v7477 = vpack.c.b16 %v6517, %v6501
      %v7478 = vpack.c.b16 %v6534, %v6518
      %v7479 = vpack.c.b16 %v6535, %v6519
      %v7480 = vpack.c.b16 %v6536, %v6520
      %v7481 = vpack.c.b16 %v6537, %v6521
      %v7482 = vpack.c.b16 %v6538, %v6522
      %v7483 = vpack.c.b16 %v6539, %v6523
      %v7484 = vpack.c.b16 %v6540, %v6524
      %v7485 = vpack.c.b16 %v6541, %v6525
      %v7486 = vpack.c.b16 %v6542, %v6526
      %v7487 = vpack.c.b16 %v6543, %v6527
      %v7488 = vpack.c.b16 %v6544, %v6528
      %v7489 = vpack.c.b16 %v6545, %v6529
      %v7490 = vpack.c.b16 %v6546, %v6530
      %v7491 = vpack.c.b16 %v6547, %v6531
      %v7492 = vpack.c.b16 %v6548, %v6532
      %v7493 = vpack.c.b16 %v6549, %v6533
      %v7494 = vpack.c.b16 %v6566, %v6550
      %v7495 = vpack.c.b16 %v6567, %v6551
      %v7496 = vpack.c.b16 %v6568, %v6552
      %v7497 = vpack.c.b16 %v6569, %v6553
      %v7498 = vpack.c.b16 %v6570, %v6554
      %v7499 = vpack.c.b16 %v6571, %v6555
      %v7500 = vpack.c.b16 %v6572, %v6556
      %v7501 = vpack.c.b16 %v6573, %v6557
      %v7502 = vpack.c.b16 %v6574, %v6558
      %v7503 = vpack.c.b16 %v6575, %v6559
      %v7504 = vpack.c.b16 %v6576, %v6560
      %v7505 = vpack.c.b16 %v6577, %v6561
      %v7506 = vpack.c.b16 %v6578, %v6562
      %v7507 = vpack.c.b16 %v6579, %v6563
      %v7508 = vpack.c.b16 %v6580, %v6564
      %v7509 = vpack.c.b16 %v6581, %v6565
      %v7510 = vpack.c.b16 %v6598, %v6582
      %v7511 = vpack.c.b16 %v6599, %v6583
      %v7512 = vpack.c.b16 %v6600, %v6584
      %v7513 = vpack.c.b16 %v6601, %v6585
      %v7514 = vpack.c.b16 %v6602, %v6586
      %v7515 = vpack.c.b16 %v6603, %v6587
      %v7516 = vpack.c.b16 %v6604, %v6588
      %v7517 = vpack.c.b16 %v6605, %v6589
      %v7518 = vpack.c.b16 %v6606, %v6590
      %v7519 = vpack.c.b16 %v6607, %v6591
      %v7520 = vpack.c.b16 %v6608, %v6592
      %v7521 = vpack.c.b16 %v6609, %v6593
      %v7522 = vpack.c.b16 %v6610, %v6594
      %v7523 = vpack.c.b16 %v6611, %v6595
      %v7524 = vpack.c.b16 %v6612, %v6596
      %v7525 = vpack.c.b16 %v6613, %v6597
      %v7526 = vpack.c.b16 %v6630, %v6614
      %v7527 = vpack.c.b16 %v6631, %v6615
      %v7528 = vpack.c.b16 %v6632, %v6616
      %v7529 = vpack.c.b16 %v6633, %v6617
      %v7530 = vpack.c.b16 %v6634, %v6618
      %v7531 = vpack.c.b16 %v6635, %v6619
      %v7532 = vpack.c.b16 %v6636, %v6620
      %v7533 = vpack.c.b16 %v6637, %v6621
      %v7534 = vpack.c.b16 %v6638, %v6622
      %v7535 = vpack.c.b16 %v6639, %v6623
      %v7536 = vpack.c.b16 %v6640, %v6624
      %v7537 = vpack.c.b16 %v6641, %v6625
      %v7538 = vpack.c.b16 %v6642, %v6626
      %v7539 = vpack.c.b16 %v6643, %v6627
      %v7540 = vpack.c.b16 %v6644, %v6628
      %v7541 = vpack.c.b16 %v6645, %v6629
      %v7542 = vpack.c.b16 %v6662, %v6646
      %v7543 = vpack.c.b16 %v6663, %v6647
      %v7544 = vpack.c.b16 %v6664, %v6648
      %v7545 = vpack.c.b16 %v6665, %v6649
      %v7546 = vpack.c.b16 %v6666, %v6650
      %v7547 = vpack.c.b16 %v6667, %v6651
      %v7548 = vpack.c.b16 %v6668, %v6652
      %v7549 = vpack.c.b16 %v6669, %v6653
      %v7550 = vpack.c.b16 %v6670, %v6654
      %v7551 = vpack.c.b16 %v6671, %v6655
      %v7552 = vpack.c.b16 %v6672, %v6656
      %v7553 = vpack.c.b16 %v6673, %v6657
      %v7554 = vpack.c.b16 %v6674, %v6658
      %v7555 = vpack.c.b16 %v6675, %v6659
      %v7556 = vpack.c.b16 %v6676, %v6660
      %v7557 = vpack.c.b16 %v6677, %v6661
      %v7558 = vpack.c.b16 %v6694, %v6678
      %v7559 = vpack.c.b16 %v6695, %v6679
      %v7560 = vpack.c.b16 %v6696, %v6680
      %v7561 = vpack.c.b16 %v6697, %v6681
      %v7562 = vpack.c.b16 %v6698, %v6682
      %v7563 = vpack.c.b16 %v6699, %v6683
      %v7564 = vpack.c.b16 %v6700, %v6684
      %v7565 = vpack.c.b16 %v6701, %v6685
      %v7566 = vpack.c.b16 %v6702, %v6686
      %v7567 = vpack.c.b16 %v6703, %v6687
      %v7568 = vpack.c.b16 %v6704, %v6688
      %v7569 = vpack.c.b16 %v6705, %v6689
      %v7570 = vpack.c.b16 %v6706, %v6690
      %v7571 = vpack.c.b16 %v6707, %v6691
      %v7572 = vpack.c.b16 %v6708, %v6692
      %v7573 = vpack.c.b16 %v6709, %v6693
      %v7574 = vpack.c.b16 %v6726, %v6710
      %v7575 = vpack.c.b16 %v6727, %v6711
      %v7576 = vpack.c.b16 %v6728, %v6712
      %v7577 = vpack.c.b16 %v6729, %v6713
      %v7578 = vpack.c.b16 %v6730, %v6714
      %v7579 = vpack.c.b16 %v6731, %v6715
      %v7580 = vpack.c.b16 %v6732, %v6716
      %v7581 = vpack.c.b16 %v6733, %v6717
      %v7582 = vpack.c.b16 %v6734, %v6718
      %v7583 = vpack.c.b16 %v6735, %v6719
      %v7584 = vpack.c.b16 %v6736, %v6720
      %v7585 = vpack.c.b16 %v6737, %v6721
      %v7586 = vpack.c.b16 %v6738, %v6722
      %v7587 = vpack.c.b16 %v6739, %v6723
      %v7588 = vpack.c.b16 %v6740, %v6724
      %v7589 = vpack.c.b16 %v6741, %v6725
      %v7590 = vpack.c.b16 %v6758, %v6742
      %v7591 = vpack.c.b16 %v6759, %v6743
      %v7592 = vpack.c.b16 %v6760, %v6744
      %v7593 = vpack.c.b16 %v6761, %v6745
      %v7594 = vpack.c.b16 %v6762, %v6746
      %v7595 = vpack.c.b16 %v6763, %v6747
      %v7596 = vpack.c.b16 %v6764, %v6748
      %v7597 = vpack.c.b16 %v6765, %v6749
      %v7598 = vpack.c.b16 %v6766, %v6750
      %v7599 = vpack.c.b16 %v6767, %v6751
      %v7600 = vpack.c.b16 %v6768, %v6752
      %v7601 = vpack.c.b16 %v6769, %v6753
      %v7602 = vpack.c.b16 %v6770, %v6754
      %v7603 = vpack.c.b16 %v6771, %v6755
      %v7604 = vpack.c.b16 %v6772, %v6756
      %v7605 = vpack.c.b16 %v6773, %v6757
      %v7606 = vpack.c.b16 %v6790, %v6774
      %v7607 = vpack.c.b16 %v6791, %v6775
      %v7608 = vpack.c.b16 %v6792, %v6776
      %v7609 = vpack.c.b16 %v6793, %v6777
      %v7610 = vpack.c.b16 %v6794, %v6778
      %v7611 = vpack.c.b16 %v6795, %v6779
      %v7612 = vpack.c.b16 %v6796, %v6780
      %v7613 = vpack.c.b16 %v6797, %v6781
      %v7614 = vpack.c.b16 %v6798, %v6782
      %v7615 = vpack.c.b16 %v6799, %v6783
      %v7616 = vpack.c.b16 %v6800, %v6784
      %v7617 = vpack.c.b16 %v6801, %v6785
      %v7618 = vpack.c.b16 %v6802, %v6786
      %v7619 = vpack.c.b16 %v6803, %v6787
      %v7620 = vpack.c.b16 %v6804, %v6788
      %v7621 = vpack.c.b16 %v6805, %v6789
      %v7622 = vpack.c.b16 %v6822, %v6806
      %v7623 = vpack.c.b16 %v6823, %v6807
      %v7624 = vpack.c.b16 %v6824, %v6808
      %v7625 = vpack.c.b16 %v6825, %v6809
      %v7626 = vpack.c.b16 %v6826, %v6810
      %v7627 = vpack.c.b16 %v6827, %v6811
      %v7628 = vpack.c.b16 %v6828, %v6812
      %v7629 = vpack.c.b16 %v6829, %v6813
      %v7630 = vpack.c.b16 %v6830, %v6814
      %v7631 = vpack.c.b16 %v6831, %v6815
      %v7632 = vpack.c.b16 %v6832, %v6816
      %v7633 = vpack.c.b16 %v6833, %v6817
      %v7634 = vpack.c.b16 %v6834, %v6818
      %v7635 = vpack.c.b16 %v6835, %v6819
      %v7636 = vpack.c.b16 %v6836, %v6820
      %v7637 = vpack.c.b16 %v6837, %v6821
      %v7638 = vpack.c.b16 %v6854, %v6838
      %v7639 = vpack.c.b16 %v6855, %v6839
      %v7640 = vpack.c.b16 %v6856, %v6840
      %v7641 = vpack.c.b16 %v6857, %v6841
      %v7642 = vpack.c.b16 %v6858, %v6842
      %v7643 = vpack.c.b16 %v6859, %v6843
      %v7644 = vpack.c.b16 %v6860, %v6844
      %v7645 = vpack.c.b16 %v6861, %v6845
      %v7646 = vpack.c.b16 %v6862, %v6846
      %v7647 = vpack.c.b16 %v6863, %v6847
      %v7648 = vpack.c.b16 %v6864, %v6848
      %v7649 = vpack.c.b16 %v6865, %v6849
      %v7650 = vpack.c.b16 %v6866, %v6850
      %v7651 = vpack.c.b16 %v6867, %v6851
      %v7652 = vpack.c.b16 %v6868, %v6852
      %v7653 = vpack.c.b16 %v6869, %v6853
      %v7654 = vpack.c.b16 %v6886, %v6870
      %v7655 = vpack.c.b16 %v6887, %v6871
      %v7656 = vpack.c.b16 %v6888, %v6872
      %v7657 = vpack.c.b16 %v6889, %v6873
      %v7658 = vpack.c.b16 %v6890, %v6874
      %v7659 = vpack.c.b16 %v6891, %v6875
      %v7660 = vpack.c.b16 %v6892, %v6876
      %v7661 = vpack.c.b16 %v6893, %v6877
      %v7662 = vpack.c.b16 %v6894, %v6878
      %v7663 = vpack.c.b16 %v6895, %v6879
      %v7664 = vpack.c.b16 %v6896, %v6880
      %v7665 = vpack.c.b16 %v6897, %v6881
      %v7666 = vpack.c.b16 %v6898, %v6882
      %v7667 = vpack.c.b16 %v6899, %v6883
      %v7668 = vpack.c.b16 %v6900, %v6884
      %v7669 = vpack.c.b16 %v6901, %v6885
      %v7670 = vpack.c.b16 %v6918, %v6902
      %v7671 = vpack.c.b16 %v6919, %v6903
      %v7672 = vpack.c.b16 %v6920, %v6904
      %v7673 = vpack.c.b16 %v6921, %v6905
      %v7674 = vpack.c.b16 %v6922, %v6906
      %v7675 = vpack.c.b16 %v6923, %v6907
      %v7676 = vpack.c.b16 %v6924, %v6908
      %v7677 = vpack.c.b16 %v6925, %v6909
      %v7678 = vpack.c.b16 %v6926, %v6910
      %v7679 = vpack.c.b16 %v6927, %v6911
      %v7680 = vpack.c.b16 %v6928, %v6912
      %v7681 = vpack.c.b16 %v6929, %v6913
      %v7682 = vpack.c.b16 %v6930, %v6914
      %v7683 = vpack.c.b16 %v6931, %v6915
      %v7684 = vpack.c.b16 %v6932, %v6916
      %v7685 = vpack.c.b16 %v6933, %v6917
      %v7686 = vpack.c.b16 %v6950, %v6934
      %v7687 = vpack.c.b16 %v6951, %v6935
      %v7688 = vpack.c.b16 %v6952, %v6936
      %v7689 = vpack.c.b16 %v6953, %v6937
      %v7690 = vpack.c.b16 %v6954, %v6938
      %v7691 = vpack.c.b16 %v6955, %v6939
      %v7692 = vpack.c.b16 %v6956, %v6940
      %v7693 = vpack.c.b16 %v6957, %v6941
      %v7694 = vpack.c.b16 %v6958, %v6942
      %v7695 = vpack.c.b16 %v6959, %v6943
      %v7696 = vpack.c.b16 %v6960, %v6944
      %v7697 = vpack.c.b16 %v6961, %v6945
      %v7698 = vpack.c.b16 %v6962, %v6946
      %v7699 = vpack.c.b16 %v6963, %v6947
      %v7700 = vpack.c.b16 %v6964, %v6948
      %v7701 = vpack.c.b16 %v6965, %v6949
      %v7702 = vpack.c.b16 %v6982, %v6966
      %v7703 = vpack.c.b16 %v6983, %v6967
      %v7704 = vpack.c.b16 %v6984, %v6968
      %v7705 = vpack.c.b16 %v6985, %v6969
      %v7706 = vpack.c.b16 %v6986, %v6970
      %v7707 = vpack.c.b16 %v6987, %v6971
      %v7708 = vpack.c.b16 %v6988, %v6972
      %v7709 = vpack.c.b16 %v6989, %v6973
      %v7710 = vpack.c.b16 %v6990, %v6974
      %v7711 = vpack.c.b16 %v6991, %v6975
      %v7712 = vpack.c.b16 %v6992, %v6976
      %v7713 = vpack.c.b16 %v6993, %v6977
      %v7714 = vpack.c.b16 %v6994, %v6978
      %v7715 = vpack.c.b16 %v6995, %v6979
      %v7716 = vpack.c.b16 %v6996, %v6980
      %v7717 = vpack.c.b16 %v6997, %v6981
      %v7718 = vpack.c.b16 %v7014, %v6998
      %v7719 = vpack.c.b16 %v7015, %v6999
      %v7720 = vpack.c.b16 %v7016, %v7000
      %v7721 = vpack.c.b16 %v7017, %v7001
      %v7722 = vpack.c.b16 %v7018, %v7002
      %v7723 = vpack.c.b16 %v7019, %v7003
      %v7724 = vpack.c.b16 %v7020, %v7004
      %v7725 = vpack.c.b16 %v7021, %v7005
      %v7726 = vpack.c.b16 %v7022, %v7006
      %v7727 = vpack.c.b16 %v7023, %v7007
      %v7728 = vpack.c.b16 %v7024, %v7008
      %v7729 = vpack.c.b16 %v7025, %v7009
      %v7730 = vpack.c.b16 %v7026, %v7010
      %v7731 = vpack.c.b16 %v7027, %v7011
      %v7732 = vpack.c.b16 %v7028, %v7012
      %v7733 = vpack.c.b16 %v7029, %v7013
      %v7734 = vpack.c.b16 %v7046, %v7030
      %v7735 = vpack.c.b16 %v7047, %v7031
      %v7736 = vpack.c.b16 %v7048, %v7032
      %v7737 = vpack.c.b16 %v7049, %v7033
      %v7738 = vpack.c.b16 %v7050, %v7034
      %v7739 = vpack.c.b16 %v7051, %v7035
      %v7740 = vpack.c.b16 %v7052, %v7036
      %v7741 = vpack.c.b16 %v7053, %v7037
      %v7742 = vpack.c.b16 %v7054, %v7038
      %v7743 = vpack.c.b16 %v7055, %v7039
      %v7744 = vpack.c.b16 %v7056, %v7040
      %v7745 = vpack.c.b16 %v7057, %v7041
      %v7746 = vpack.c.b16 %v7058, %v7042
      %v7747 = vpack.c.b16 %v7059, %v7043
      %v7748 = vpack.c.b16 %v7060, %v7044
      %v7749 = vpack.c.b16 %v7061, %v7045
      %v7750 = vpack.c.b16 %v7078, %v7062
      %v7751 = vpack.c.b16 %v7079, %v7063
      %v7752 = vpack.c.b16 %v7080, %v7064
      %v7753 = vpack.c.b16 %v7081, %v7065
      %v7754 = vpack.c.b16 %v7082, %v7066
      %v7755 = vpack.c.b16 %v7083, %v7067
      %v7756 = vpack.c.b16 %v7084, %v7068
      %v7757 = vpack.c.b16 %v7085, %v7069
      %v7758 = vpack.c.b16 %v7086, %v7070
      %v7759 = vpack.c.b16 %v7087, %v7071
      %v7760 = vpack.c.b16 %v7088, %v7072
      %v7761 = vpack.c.b16 %v7089, %v7073
      %v7762 = vpack.c.b16 %v7090, %v7074
      %v7763 = vpack.c.b16 %v7091, %v7075
      %v7764 = vpack.c.b16 %v7092, %v7076
      %v7765 = vpack.c.b16 %v7093, %v7077
      %v7766 = vpack.c.b16 %v7110, %v7094
      %v7767 = vpack.c.b16 %v7111, %v7095
      %v7768 = vpack.c.b16 %v7112, %v7096
      %v7769 = vpack.c.b16 %v7113, %v7097
      %v7770 = vpack.c.b16 %v7114, %v7098
      %v7771 = vpack.c.b16 %v7115, %v7099
      %v7772 = vpack.c.b16 %v7116, %v7100
      %v7773 = vpack.c.b16 %v7117, %v7101
      %v7774 = vpack.c.b16 %v7118, %v7102
      %v7775 = vpack.c.b16 %v7119, %v7103
      %v7776 = vpack.c.b16 %v7120, %v7104
      %v7777 = vpack.c.b16 %v7121, %v7105
      %v7778 = vpack.c.b16 %v7122, %v7106
      %v7779 = vpack.c.b16 %v7123, %v7107
      %v7780 = vpack.c.b16 %v7124, %v7108
      %v7781 = vpack.c.b16 %v7125, %v7109
      %v7782 = vpack.c.b16 %v7142, %v7126
      %v7783 = vpack.c.b16 %v7143, %v7127
      %v7784 = vpack.c.b16 %v7144, %v7128
      %v7785 = vpack.c.b16 %v7145, %v7129
      %v7786 = vpack.c.b16 %v7146, %v7130
      %v7787 = vpack.c.b16 %v7147, %v7131
      %v7788 = vpack.c.b16 %v7148, %v7132
      %v7789 = vpack.c.b16 %v7149, %v7133
      %v7790 = vpack.c.b16 %v7150, %v7134
      %v7791 = vpack.c.b16 %v7151, %v7135
      %v7792 = vpack.c.b16 %v7152, %v7136
      %v7793 = vpack.c.b16 %v7153, %v7137
      %v7794 = vpack.c.b16 %v7154, %v7138
      %v7795 = vpack.c.b16 %v7155, %v7139
      %v7796 = vpack.c.b16 %v7156, %v7140
      %v7797 = vpack.c.b16 %v7157, %v7141
      %v7798 = vpack.c.b16 %v7174, %v7158
      %v7799 = vpack.c.b16 %v7175, %v7159
      %v7800 = vpack.c.b16 %v7176, %v7160
      %v7801 = vpack.c.b16 %v7177, %v7161
      %v7802 = vpack.c.b16 %v7178, %v7162
      %v7803 = vpack.c.b16 %v7179, %v7163
      %v7804 = vpack.c.b16 %v7180, %v7164
      %v7805 = vpack.c.b16 %v7181, %v7165
      %v7806 = vpack.c.b16 %v7182, %v7166
      %v7807 = vpack.c.b16 %v7183, %v7167
      %v7808 = vpack.c.b16 %v7184, %v7168
      %v7809 = vpack.c.b16 %v7185, %v7169
      %v7810 = vpack.c.b16 %v7186, %v7170
      %v7811 = vpack.c.b16 %v7187, %v7171
      %v7812 = vpack.c.b16 %v7188, %v7172
      %v7813 = vpack.c.b16 %v7189, %v7173
      %v7814 = vpack.c.b16 %v7206, %v7190
      %v7815 = vpack.c.b16 %v7207, %v7191
      %v7816 = vpack.c.b16 %v7208, %v7192
      %v7817 = vpack.c.b16 %v7209, %v7193
      %v7818 = vpack.c.b16 %v7210, %v7194
      %v7819 = vpack.c.b16 %v7211, %v7195
      %v7820 = vpack.c.b16 %v7212, %v7196
      %v7821 = vpack.c.b16 %v7213, %v7197
      %v7822 = vpack.c.b16 %v7214, %v7198
      %v7823 = vpack.c.b16 %v7215, %v7199
      %v7824 = vpack.c.b16 %v7216, %v7200
      %v7825 = vpack.c.b16 %v7217, %v7201
      %v7826 = vpack.c.b16 %v7218, %v7202
      %v7827 = vpack.c.b16 %v7219, %v7203
      %v7828 = vpack.c.b16 %v7220, %v7204
      %v7829 = vpack.c.b16 %v7221, %v7205
      %v7830 = vpack.c.b16 %v7238, %v7222
      %v7831 = vpack.c.b16 %v7239, %v7223
      %v7832 = vpack.c.b16 %v7240, %v7224
      %v7833 = vpack.c.b16 %v7241, %v7225
      %v7834 = vpack.c.b16 %v7242, %v7226
      %v7835 = vpack.c.b16 %v7243, %v7227
      %v7836 = vpack.c.b16 %v7244, %v7228
      %v7837 = vpack.c.b16 %v7245, %v7229
      %v7838 = vpack.c.b16 %v7246, %v7230
      %v7839 = vpack.c.b16 %v7247, %v7231
      %v7840 = vpack.c.b16 %v7248, %v7232
      %v7841 = vpack.c.b16 %v7249, %v7233
      %v7842 = vpack.c.b16 %v7250, %v7234
      %v7843 = vpack.c.b16 %v7251, %v7235
      %v7844 = vpack.c.b16 %v7252, %v7236
      %v7845 = vpack.c.b16 %v7253, %v7237
      %v7846 = vpack.c.b16 %v7270, %v7254
      %v7847 = vpack.c.b16 %v7271, %v7255
      %v7848 = vpack.c.b16 %v7272, %v7256
      %v7849 = vpack.c.b16 %v7273, %v7257
      %v7850 = vpack.c.b16 %v7274, %v7258
      %v7851 = vpack.c.b16 %v7275, %v7259
      %v7852 = vpack.c.b16 %v7276, %v7260
      %v7853 = vpack.c.b16 %v7277, %v7261
      %v7854 = vpack.c.b16 %v7278, %v7262
      %v7855 = vpack.c.b16 %v7279, %v7263
      %v7856 = vpack.c.b16 %v7280, %v7264
      %v7857 = vpack.c.b16 %v7281, %v7265
      %v7858 = vpack.c.b16 %v7282, %v7266
      %v7859 = vpack.c.b16 %v7283, %v7267
      %v7860 = vpack.c.b16 %v7284, %v7268
      %v7861 = vpack.c.b16 %v7285, %v7269
      %v7862 = vpack.c.b16 %v7302, %v7286
      %v7863 = vpack.c.b16 %v7303, %v7287
      %v7864 = vpack.c.b16 %v7304, %v7288
      %v7865 = vpack.c.b16 %v7305, %v7289
      %v7866 = vpack.c.b16 %v7306, %v7290
      %v7867 = vpack.c.b16 %v7307, %v7291
      %v7868 = vpack.c.b16 %v7308, %v7292
      %v7869 = vpack.c.b16 %v7309, %v7293
      %v7870 = vpack.c.b16 %v7310, %v7294
      %v7871 = vpack.c.b16 %v7311, %v7295
      %v7872 = vpack.c.b16 %v7312, %v7296
      %v7873 = vpack.c.b16 %v7313, %v7297
      %v7874 = vpack.c.b16 %v7314, %v7298
      %v7875 = vpack.c.b16 %v7315, %v7299
      %v7876 = vpack.c.b16 %v7316, %v7300
      %v7877 = vpack.c.b16 %v7317, %v7301
      %v7878 = vpack.c.b16 %v7334, %v7318
      %v7879 = vpack.c.b16 %v7335, %v7319
      %v7880 = vpack.c.b16 %v7336, %v7320
      %v7881 = vpack.c.b16 %v7337, %v7321
      %v7882 = vpack.c.b16 %v7338, %v7322
      %v7883 = vpack.c.b16 %v7339, %v7323
      %v7884 = vpack.c.b16 %v7340, %v7324
      %v7885 = vpack.c.b16 %v7341, %v7325
      %v7886 = vpack.c.b16 %v7342, %v7326
      %v7887 = vpack.c.b16 %v7343, %v7327
      %v7888 = vpack.c.b16 %v7344, %v7328
      %v7889 = vpack.c.b16 %v7345, %v7329
      %v7890 = vpack.c.b16 %v7346, %v7330
      %v7891 = vpack.c.b16 %v7347, %v7331
      %v7892 = vpack.c.b16 %v7348, %v7332
      %v7893 = vpack.c.b16 %v7349, %v7333
      %v7894 = vpack.c.b16 %v7366, %v7350
      %v7895 = vpack.c.b16 %v7367, %v7351
      %v7896 = vpack.c.b16 %v7368, %v7352
      %v7897 = vpack.c.b16 %v7369, %v7353
      %v7898 = vpack.c.b16 %v7370, %v7354
      %v7899 = vpack.c.b16 %v7371, %v7355
      %v7900 = vpack.c.b16 %v7372, %v7356
      %v7901 = vpack.c.b16 %v7373, %v7357
      %v7902 = vpack.c.b16 %v7374, %v7358
      %v7903 = vpack.c.b16 %v7375, %v7359
      %v7904 = vpack.c.b16 %v7376, %v7360
      %v7905 = vpack.c.b16 %v7377, %v7361
      %v7906 = vpack.c.b16 %v7378, %v7362
      %v7907 = vpack.c.b16 %v7379, %v7363
      %v7908 = vpack.c.b16 %v7380, %v7364
      %v7909 = vpack.c.b16 %v7381, %v7365
      %v7910 = vpack.c.b16 %v7398, %v7382
      %v7911 = vpack.c.b16 %v7399, %v7383
      %v7912 = vpack.c.b16 %v7400, %v7384
      %v7913 = vpack.c.b16 %v7401, %v7385
      %v7914 = vpack.c.b16 %v7402, %v7386
      %v7915 = vpack.c.b16 %v7403, %v7387
      %v7916 = vpack.c.b16 %v7404, %v7388
      %v7917 = vpack.c.b16 %v7405, %v7389
      %v7918 = vpack.c.b16 %v7406, %v7390
      %v7919 = vpack.c.b16 %v7407, %v7391
      %v7920 = vpack.c.b16 %v7408, %v7392
      %v7921 = vpack.c.b16 %v7409, %v7393
      %v7922 = vpack.c.b16 %v7410, %v7394
      %v7923 = vpack.c.b16 %v7411, %v7395
      %v7924 = vpack.c.b16 %v7412, %v7396
      %v7925 = vpack.c.b16 %v7413, %v7397
      %8438 = vmatprep.subr.bf16.mxu0 %v7527
      %8439 = vmatpush1.bf16.msra.mxu0 %v7526
      %8440 = vmatprep.subr.bf16.mxu0 %v7511
      %8441 = vmatpush1.bf16.msra.mxu0 %v7510
      %8442 = vmatprep.subr.bf16.mxu0 %v7495
      %8443 = vmatpush1.bf16.msra.mxu0 %v7494
      %8444 = vmatprep.subr.bf16.mxu0 %v7479
      %8445 = vmatpush1.bf16.msra.mxu0 %v7478
      %8446 = vmatprep.subr.bf16.mxu0 %v7463
      %8447 = vmatpush1.bf16.msra.mxu0 %v7462
      %8448 = vmatprep.subr.bf16.mxu0 %v7447
      %8449 = vmatpush1.bf16.msra.mxu0 %v7446
      %8450 = vmatprep.subr.bf16.mxu0 %v7431
      %8451 = vmatpush1.bf16.msra.mxu0 %v7430
      %8452 = vmatprep.subr.bf16.mxu0 %v7415
      %8453 = vmatpush1.bf16.msra.mxu0 %v7414
      %8454 = vmatprep.subr.bf16.mxu0 %v7655
      %8455 = vmatpush2.bf16.msra.mxu0 %v7654
      %8456 = vmatprep.subr.bf16.mxu0 %v7639
      %8457 = vmatpush2.bf16.msra.mxu0 %v7638
      %8458 = vmatprep.subr.bf16.mxu0 %v7623
      %8459 = vmatpush2.bf16.msra.mxu0 %v7622
      %8460 = vmatprep.subr.bf16.mxu0 %v7607
      %8461 = vmatpush2.bf16.msra.mxu0 %v7606
      %8462 = vmatprep.subr.bf16.mxu0 %v7591
      %8463 = vmatpush2.bf16.msra.mxu0 %v7590
      %8464 = vmatprep.subr.bf16.mxu0 %v7575
      %8465 = vmatpush2.bf16.msra.mxu0 %v7574
      %8466 = vmatprep.subr.bf16.mxu0 %v7559
      %8467 = vmatpush2.bf16.msra.mxu0 %v7558
      %8468 = vmatprep.subr.bf16.mxu0 %v7543
      %8469 = vmatpush2.bf16.msra.mxu0 %v7542
      %8470 = vmatprep.mubr.bf16.mxu0 %v5279
      %8471 = vmatmul.mubr.bf16.gmra.mxu0 %v5278
      %v8472 = vpop.f32.mrf.mxu0
      %v8473 = vadd.f32 %v5801, %v8472
      %v8474 = vpop.f32.mrf.mxu0
      %v8475 = vadd.f32 %v5805, %v8474
      %v8476 = vpop.f32.mrf.mxu0
      %v8477 = vpop.f32.mrf.mxu0
      %8478 = vdwg.mxu0
      %8479 = vmatprep.subr.bf16.mxu0 %v7783
      %8480 = vmatpush1.bf16.msra.mxu0 %v7782
      %8481 = vmatprep.subr.bf16.mxu0 %v7767
      %8482 = vmatpush1.bf16.msra.mxu0 %v7766
      %8483 = vmatprep.subr.bf16.mxu0 %v7751
      %8484 = vmatpush1.bf16.msra.mxu0 %v7750
      %8485 = vmatprep.subr.bf16.mxu0 %v7735
      %8486 = vmatpush1.bf16.msra.mxu0 %v7734
      %8487 = vmatprep.subr.bf16.mxu0 %v7719
      %8488 = vmatpush1.bf16.msra.mxu0 %v7718
      %8489 = vmatprep.subr.bf16.mxu0 %v7703
      %8490 = vmatpush1.bf16.msra.mxu0 %v7702
      %8491 = vmatprep.subr.bf16.mxu0 %v7687
      %8492 = vmatpush1.bf16.msra.mxu0 %v7686
      %8493 = vmatprep.subr.bf16.mxu0 %v7671
      %8494 = vmatpush1.bf16.msra.mxu0 %v7670
      %8495 = vmatprep.subr.bf16.mxu0 %v7911
      %8496 = vmatpush2.bf16.msra.mxu0 %v7910
      %8497 = vmatprep.subr.bf16.mxu0 %v7895
      %8498 = vmatpush2.bf16.msra.mxu0 %v7894
      %8499 = vmatprep.subr.bf16.mxu0 %v7879
      %8500 = vmatpush2.bf16.msra.mxu0 %v7878
      %8501 = vmatprep.subr.bf16.mxu0 %v7863
      %8502 = vmatpush2.bf16.msra.mxu0 %v7862
      %8503 = vmatprep.subr.bf16.mxu0 %v7847
      %8504 = vmatpush2.bf16.msra.mxu0 %v7846
      %8505 = vmatprep.subr.bf16.mxu0 %v7831
      %8506 = vmatpush2.bf16.msra.mxu0 %v7830
      %8507 = vmatprep.subr.bf16.mxu0 %v7815
      %8508 = vmatpush2.bf16.msra.mxu0 %v7814
      %8509 = vmatprep.subr.bf16.mxu0 %v7799
      %8510 = vmatpush2.bf16.msra.mxu0 %v7798
      %8511 = vmatprep.mubr.bf16.mxu0 %v5281
      %8512 = vmatmul.mubr.bf16.gmra.mxu0 %v5280
      %v8513 = vpop.f32.mrf.mxu0
      %v8514 = vadd.f32 %v8473, %v8513
      %v8515 = vpop.f32.mrf.mxu0
      %v8516 = vadd.f32 %v8475, %v8515
      %v8517 = vpop.f32.mrf.mxu0
      %v8518 = vpop.f32.mrf.mxu0
      %8519 = vdwg.mxu0
      %8520 = vmatprep.subr.bf16.mxu0 %v7529
      %8521 = vmatpush1.bf16.msra.mxu0 %v7528
      %8522 = vmatprep.subr.bf16.mxu0 %v7513
      %8523 = vmatpush1.bf16.msra.mxu0 %v7512
      %8524 = vmatprep.subr.bf16.mxu0 %v7497
      %8525 = vmatpush1.bf16.msra.mxu0 %v7496
      %8526 = vmatprep.subr.bf16.mxu0 %v7481
      %8527 = vmatpush1.bf16.msra.mxu0 %v7480
      %8528 = vmatprep.subr.bf16.mxu0 %v7465
      %8529 = vmatpush1.bf16.msra.mxu0 %v7464
      %8530 = vmatprep.subr.bf16.mxu0 %v7449
      %8531 = vmatpush1.bf16.msra.mxu0 %v7448
      %8532 = vmatprep.subr.bf16.mxu0 %v7433
      %8533 = vmatpush1.bf16.msra.mxu0 %v7432
      %8534 = vmatprep.subr.bf16.mxu0 %v7417
      %8535 = vmatpush1.bf16.msra.mxu0 %v7416
      %8536 = vmatprep.subr.bf16.mxu0 %v7657
      %8537 = vmatpush2.bf16.msra.mxu0 %v7656
      %8538 = vmatprep.subr.bf16.mxu0 %v7641
      %8539 = vmatpush2.bf16.msra.mxu0 %v7640
      %8540 = vmatprep.subr.bf16.mxu0 %v7625
      %8541 = vmatpush2.bf16.msra.mxu0 %v7624
      %8542 = vmatprep.subr.bf16.mxu0 %v7609
      %8543 = vmatpush2.bf16.msra.mxu0 %v7608
      %8544 = vmatprep.subr.bf16.mxu0 %v7593
      %8545 = vmatpush2.bf16.msra.mxu0 %v7592
      %8546 = vmatprep.subr.bf16.mxu0 %v7577
      %8547 = vmatpush2.bf16.msra.mxu0 %v7576
      %8548 = vmatprep.subr.bf16.mxu0 %v7561
      %8549 = vmatpush2.bf16.msra.mxu0 %v7560
      %8550 = vmatprep.subr.bf16.mxu0 %v7545
      %8551 = vmatpush2.bf16.msra.mxu0 %v7544
      %8552 = vmatprep.mubr.bf16.mxu0 %v5279
      %8553 = vmatmul.mubr.bf16.gmra.mxu0 %v5278
      %v8554 = vpop.f32.mrf.mxu0
      %v8555 = vadd.f32 %v5809, %v8554
      %v8556 = vpop.f32.mrf.mxu0
      %v8557 = vadd.f32 %v5813, %v8556
      %v8558 = vpop.f32.mrf.mxu0
      %v8559 = vpop.f32.mrf.mxu0
      %8560 = vdwg.mxu0
      %8561 = vmatprep.subr.bf16.mxu0 %v7785
      %8562 = vmatpush1.bf16.msra.mxu0 %v7784
      %8563 = vmatprep.subr.bf16.mxu0 %v7769
      %8564 = vmatpush1.bf16.msra.mxu0 %v7768
      %8565 = vmatprep.subr.bf16.mxu0 %v7753
      %8566 = vmatpush1.bf16.msra.mxu0 %v7752
      %8567 = vmatprep.subr.bf16.mxu0 %v7737
      %8568 = vmatpush1.bf16.msra.mxu0 %v7736
      %8569 = vmatprep.subr.bf16.mxu0 %v7721
      %8570 = vmatpush1.bf16.msra.mxu0 %v7720
      %8571 = vmatprep.subr.bf16.mxu0 %v7705
      %8572 = vmatpush1.bf16.msra.mxu0 %v7704
      %8573 = vmatprep.subr.bf16.mxu0 %v7689
      %8574 = vmatpush1.bf16.msra.mxu0 %v7688
      %8575 = vmatprep.subr.bf16.mxu0 %v7673
      %8576 = vmatpush1.bf16.msra.mxu0 %v7672
      %8577 = vmatprep.subr.bf16.mxu0 %v7913
      %8578 = vmatpush2.bf16.msra.mxu0 %v7912
      %8579 = vmatprep.subr.bf16.mxu0 %v7897
      %8580 = vmatpush2.bf16.msra.mxu0 %v7896
      %8581 = vmatprep.subr.bf16.mxu0 %v7881
      %8582 = vmatpush2.bf16.msra.mxu0 %v7880
      %8583 = vmatprep.subr.bf16.mxu0 %v7865
      %8584 = vmatpush2.bf16.msra.mxu0 %v7864
      %8585 = vmatprep.subr.bf16.mxu0 %v7849
      %8586 = vmatpush2.bf16.msra.mxu0 %v7848
      %8587 = vmatprep.subr.bf16.mxu0 %v7833
      %8588 = vmatpush2.bf16.msra.mxu0 %v7832
      %8589 = vmatprep.subr.bf16.mxu0 %v7817
      %8590 = vmatpush2.bf16.msra.mxu0 %v7816
      %8591 = vmatprep.subr.bf16.mxu0 %v7801
      %8592 = vmatpush2.bf16.msra.mxu0 %v7800
      %8593 = vmatprep.mubr.bf16.mxu0 %v5281
      %8594 = vmatmul.mubr.bf16.gmra.mxu0 %v5280
      %v8595 = vpop.f32.mrf.mxu0
      %v8596 = vadd.f32 %v8555, %v8595
      %v8597 = vpop.f32.mrf.mxu0
      %v8598 = vadd.f32 %v8557, %v8597
      %v8599 = vpop.f32.mrf.mxu0
      %v8600 = vpop.f32.mrf.mxu0
      %8601 = vdwg.mxu0
      %8602 = vmatprep.subr.bf16.mxu0 %v7531
      %8603 = vmatpush1.bf16.msra.mxu0 %v7530
      %8604 = vmatprep.subr.bf16.mxu0 %v7515
      %8605 = vmatpush1.bf16.msra.mxu0 %v7514
      %8606 = vmatprep.subr.bf16.mxu0 %v7499
      %8607 = vmatpush1.bf16.msra.mxu0 %v7498
      %8608 = vmatprep.subr.bf16.mxu0 %v7483
      %8609 = vmatpush1.bf16.msra.mxu0 %v7482
      %8610 = vmatprep.subr.bf16.mxu0 %v7467
      %8611 = vmatpush1.bf16.msra.mxu0 %v7466
      %8612 = vmatprep.subr.bf16.mxu0 %v7451
      %8613 = vmatpush1.bf16.msra.mxu0 %v7450
      %8614 = vmatprep.subr.bf16.mxu0 %v7435
      %8615 = vmatpush1.bf16.msra.mxu0 %v7434
      %8616 = vmatprep.subr.bf16.mxu0 %v7419
      %8617 = vmatpush1.bf16.msra.mxu0 %v7418
      %8618 = vmatprep.subr.bf16.mxu0 %v7659
      %8619 = vmatpush2.bf16.msra.mxu0 %v7658
      %8620 = vmatprep.subr.bf16.mxu0 %v7643
      %8621 = vmatpush2.bf16.msra.mxu0 %v7642
      %8622 = vmatprep.subr.bf16.mxu0 %v7627
      %8623 = vmatpush2.bf16.msra.mxu0 %v7626
      %8624 = vmatprep.subr.bf16.mxu0 %v7611
      %8625 = vmatpush2.bf16.msra.mxu0 %v7610
      %8626 = vmatprep.subr.bf16.mxu0 %v7595
      %8627 = vmatpush2.bf16.msra.mxu0 %v7594
      %8628 = vmatprep.subr.bf16.mxu0 %v7579
      %8629 = vmatpush2.bf16.msra.mxu0 %v7578
      %8630 = vmatprep.subr.bf16.mxu0 %v7563
      %8631 = vmatpush2.bf16.msra.mxu0 %v7562
      %8632 = vmatprep.subr.bf16.mxu0 %v7547
      %8633 = vmatpush2.bf16.msra.mxu0 %v7546
      %8634 = vmatprep.mubr.bf16.mxu0 %v5279
      %8635 = vmatmul.mubr.bf16.gmra.mxu0 %v5278
      %v8636 = vpop.f32.mrf.mxu0
      %v8637 = vadd.f32 %v5817, %v8636
      %v8638 = vpop.f32.mrf.mxu0
      %v8639 = vadd.f32 %v5821, %v8638
      %v8640 = vpop.f32.mrf.mxu0
      %v8641 = vpop.f32.mrf.mxu0
      %8642 = vdwg.mxu0
      %8643 = vmatprep.subr.bf16.mxu0 %v7787
      %8644 = vmatpush1.bf16.msra.mxu0 %v7786
      %8645 = vmatprep.subr.bf16.mxu0 %v7771
      %8646 = vmatpush1.bf16.msra.mxu0 %v7770
      %8647 = vmatprep.subr.bf16.mxu0 %v7755
      %8648 = vmatpush1.bf16.msra.mxu0 %v7754
      %8649 = vmatprep.subr.bf16.mxu0 %v7739
      %8650 = vmatpush1.bf16.msra.mxu0 %v7738
      %8651 = vmatprep.subr.bf16.mxu0 %v7723
      %8652 = vmatpush1.bf16.msra.mxu0 %v7722
      %8653 = vmatprep.subr.bf16.mxu0 %v7707
      %8654 = vmatpush1.bf16.msra.mxu0 %v7706
      %8655 = vmatprep.subr.bf16.mxu0 %v7691
      %8656 = vmatpush1.bf16.msra.mxu0 %v7690
      %8657 = vmatprep.subr.bf16.mxu0 %v7675
      %8658 = vmatpush1.bf16.msra.mxu0 %v7674
      %8659 = vmatprep.subr.bf16.mxu0 %v7915
      %8660 = vmatpush2.bf16.msra.mxu0 %v7914
      %8661 = vmatprep.subr.bf16.mxu0 %v7899
      %8662 = vmatpush2.bf16.msra.mxu0 %v7898
      %8663 = vmatprep.subr.bf16.mxu0 %v7883
      %8664 = vmatpush2.bf16.msra.mxu0 %v7882
      %8665 = vmatprep.subr.bf16.mxu0 %v7867
      %8666 = vmatpush2.bf16.msra.mxu0 %v7866
      %8667 = vmatprep.subr.bf16.mxu0 %v7851
      %8668 = vmatpush2.bf16.msra.mxu0 %v7850
      %8669 = vmatprep.subr.bf16.mxu0 %v7835
      %8670 = vmatpush2.bf16.msra.mxu0 %v7834
      %8671 = vmatprep.subr.bf16.mxu0 %v7819
      %8672 = vmatpush2.bf16.msra.mxu0 %v7818
      %8673 = vmatprep.subr.bf16.mxu0 %v7803
      %8674 = vmatpush2.bf16.msra.mxu0 %v7802
      %8675 = vmatprep.mubr.bf16.mxu0 %v5281
      %8676 = vmatmul.mubr.bf16.gmra.mxu0 %v5280
      %v8677 = vpop.f32.mrf.mxu0
      %v8678 = vadd.f32 %v8637, %v8677
      %v8679 = vpop.f32.mrf.mxu0
      %v8680 = vadd.f32 %v8639, %v8679
      %v8681 = vpop.f32.mrf.mxu0
      %v8682 = vpop.f32.mrf.mxu0
      %8683 = vdwg.mxu0
      %8684 = vmatprep.subr.bf16.mxu0 %v7533
      %8685 = vmatpush1.bf16.msra.mxu0 %v7532
      %8686 = vmatprep.subr.bf16.mxu0 %v7517
      %8687 = vmatpush1.bf16.msra.mxu0 %v7516
      %8688 = vmatprep.subr.bf16.mxu0 %v7501
      %8689 = vmatpush1.bf16.msra.mxu0 %v7500
      %8690 = vmatprep.subr.bf16.mxu0 %v7485
      %8691 = vmatpush1.bf16.msra.mxu0 %v7484
      %8692 = vmatprep.subr.bf16.mxu0 %v7469
      %8693 = vmatpush1.bf16.msra.mxu0 %v7468
      %8694 = vmatprep.subr.bf16.mxu0 %v7453
      %8695 = vmatpush1.bf16.msra.mxu0 %v7452
      %8696 = vmatprep.subr.bf16.mxu0 %v7437
      %8697 = vmatpush1.bf16.msra.mxu0 %v7436
      %8698 = vmatprep.subr.bf16.mxu0 %v7421
      %8699 = vmatpush1.bf16.msra.mxu0 %v7420
      %8700 = vmatprep.subr.bf16.mxu0 %v7661
      %8701 = vmatpush2.bf16.msra.mxu0 %v7660
      %8702 = vmatprep.subr.bf16.mxu0 %v7645
      %8703 = vmatpush2.bf16.msra.mxu0 %v7644
      %8704 = vmatprep.subr.bf16.mxu0 %v7629
      %8705 = vmatpush2.bf16.msra.mxu0 %v7628
      %8706 = vmatprep.subr.bf16.mxu0 %v7613
      %8707 = vmatpush2.bf16.msra.mxu0 %v7612
      %8708 = vmatprep.subr.bf16.mxu0 %v7597
      %8709 = vmatpush2.bf16.msra.mxu0 %v7596
      %8710 = vmatprep.subr.bf16.mxu0 %v7581
      %8711 = vmatpush2.bf16.msra.mxu0 %v7580
      %8712 = vmatprep.subr.bf16.mxu0 %v7565
      %8713 = vmatpush2.bf16.msra.mxu0 %v7564
      %8714 = vmatprep.subr.bf16.mxu0 %v7549
      %8715 = vmatpush2.bf16.msra.mxu0 %v7548
      %8716 = vmatprep.mubr.bf16.mxu0 %v5279
      %8717 = vmatmul.mubr.bf16.gmra.mxu0 %v5278
      %v8718 = vpop.f32.mrf.mxu0
      %v8719 = vadd.f32 %v5825, %v8718
      %v8720 = vpop.f32.mrf.mxu0
      %v8721 = vadd.f32 %v5829, %v8720
      %v8722 = vpop.f32.mrf.mxu0
      %v8723 = vpop.f32.mrf.mxu0
      %8724 = vdwg.mxu0
      %8725 = vmatprep.subr.bf16.mxu0 %v7789
      %8726 = vmatpush1.bf16.msra.mxu0 %v7788
      %8727 = vmatprep.subr.bf16.mxu0 %v7773
      %8728 = vmatpush1.bf16.msra.mxu0 %v7772
      %8729 = vmatprep.subr.bf16.mxu0 %v7757
      %8730 = vmatpush1.bf16.msra.mxu0 %v7756
      %8731 = vmatprep.subr.bf16.mxu0 %v7741
      %8732 = vmatpush1.bf16.msra.mxu0 %v7740
      %8733 = vmatprep.subr.bf16.mxu0 %v7725
      %8734 = vmatpush1.bf16.msra.mxu0 %v7724
      %8735 = vmatprep.subr.bf16.mxu0 %v7709
      %8736 = vmatpush1.bf16.msra.mxu0 %v7708
      %8737 = vmatprep.subr.bf16.mxu0 %v7693
      %8738 = vmatpush1.bf16.msra.mxu0 %v7692
      %8739 = vmatprep.subr.bf16.mxu0 %v7677
      %8740 = vmatpush1.bf16.msra.mxu0 %v7676
      %8741 = vmatprep.subr.bf16.mxu0 %v7917
      %8742 = vmatpush2.bf16.msra.mxu0 %v7916
      %8743 = vmatprep.subr.bf16.mxu0 %v7901
      %8744 = vmatpush2.bf16.msra.mxu0 %v7900
      %8745 = vmatprep.subr.bf16.mxu0 %v7885
      %8746 = vmatpush2.bf16.msra.mxu0 %v7884
      %8747 = vmatprep.subr.bf16.mxu0 %v7869
      %8748 = vmatpush2.bf16.msra.mxu0 %v7868
      %8749 = vmatprep.subr.bf16.mxu0 %v7853
      %8750 = vmatpush2.bf16.msra.mxu0 %v7852
      %8751 = vmatprep.subr.bf16.mxu0 %v7837
      %8752 = vmatpush2.bf16.msra.mxu0 %v7836
      %8753 = vmatprep.subr.bf16.mxu0 %v7821
      %8754 = vmatpush2.bf16.msra.mxu0 %v7820
      %8755 = vmatprep.subr.bf16.mxu0 %v7805
      %8756 = vmatpush2.bf16.msra.mxu0 %v7804
      %8757 = vmatprep.mubr.bf16.mxu0 %v5281
      %8758 = vmatmul.mubr.bf16.gmra.mxu0 %v5280
      %v8759 = vpop.f32.mrf.mxu0
      %v8760 = vadd.f32 %v8719, %v8759
      %v8761 = vpop.f32.mrf.mxu0
      %v8762 = vadd.f32 %v8721, %v8761
      %v8763 = vpop.f32.mrf.mxu0
      %v8764 = vpop.f32.mrf.mxu0
      %8765 = vdwg.mxu0
      %8766 = vmatprep.subr.bf16.mxu0 %v7535
      %8767 = vmatpush1.bf16.msra.mxu0 %v7534
      %8768 = vmatprep.subr.bf16.mxu0 %v7519
      %8769 = vmatpush1.bf16.msra.mxu0 %v7518
      %8770 = vmatprep.subr.bf16.mxu0 %v7503
      %8771 = vmatpush1.bf16.msra.mxu0 %v7502
      %8772 = vmatprep.subr.bf16.mxu0 %v7487
      %8773 = vmatpush1.bf16.msra.mxu0 %v7486
      %8774 = vmatprep.subr.bf16.mxu0 %v7471
      %8775 = vmatpush1.bf16.msra.mxu0 %v7470
      %8776 = vmatprep.subr.bf16.mxu0 %v7455
      %8777 = vmatpush1.bf16.msra.mxu0 %v7454
      %8778 = vmatprep.subr.bf16.mxu0 %v7439
      %8779 = vmatpush1.bf16.msra.mxu0 %v7438
      %8780 = vmatprep.subr.bf16.mxu0 %v7423
      %8781 = vmatpush1.bf16.msra.mxu0 %v7422
      %8782 = vmatprep.subr.bf16.mxu0 %v7663
      %8783 = vmatpush2.bf16.msra.mxu0 %v7662
      %8784 = vmatprep.subr.bf16.mxu0 %v7647
      %8785 = vmatpush2.bf16.msra.mxu0 %v7646
      %8786 = vmatprep.subr.bf16.mxu0 %v7631
      %8787 = vmatpush2.bf16.msra.mxu0 %v7630
      %8788 = vmatprep.subr.bf16.mxu0 %v7615
      %8789 = vmatpush2.bf16.msra.mxu0 %v7614
      %8790 = vmatprep.subr.bf16.mxu0 %v7599
      %8791 = vmatpush2.bf16.msra.mxu0 %v7598
      %8792 = vmatprep.subr.bf16.mxu0 %v7583
      %8793 = vmatpush2.bf16.msra.mxu0 %v7582
      %8794 = vmatprep.subr.bf16.mxu0 %v7567
      %8795 = vmatpush2.bf16.msra.mxu0 %v7566
      %8796 = vmatprep.subr.bf16.mxu0 %v7551
      %8797 = vmatpush2.bf16.msra.mxu0 %v7550
      %8798 = vmatprep.mubr.bf16.mxu0 %v5279
      %8799 = vmatmul.mubr.bf16.gmra.mxu0 %v5278
      %v8800 = vpop.f32.mrf.mxu0
      %v8801 = vadd.f32 %v5833, %v8800
      %v8802 = vpop.f32.mrf.mxu0
      %v8803 = vadd.f32 %v5837, %v8802
      %v8804 = vpop.f32.mrf.mxu0
      %v8805 = vpop.f32.mrf.mxu0
      %8806 = vdwg.mxu0
      %8807 = vmatprep.subr.bf16.mxu0 %v7791
      %8808 = vmatpush1.bf16.msra.mxu0 %v7790
      %8809 = vmatprep.subr.bf16.mxu0 %v7775
      %8810 = vmatpush1.bf16.msra.mxu0 %v7774
      %8811 = vmatprep.subr.bf16.mxu0 %v7759
      %8812 = vmatpush1.bf16.msra.mxu0 %v7758
      %8813 = vmatprep.subr.bf16.mxu0 %v7743
      %8814 = vmatpush1.bf16.msra.mxu0 %v7742
      %8815 = vmatprep.subr.bf16.mxu0 %v7727
      %8816 = vmatpush1.bf16.msra.mxu0 %v7726
      %8817 = vmatprep.subr.bf16.mxu0 %v7711
      %8818 = vmatpush1.bf16.msra.mxu0 %v7710
      %8819 = vmatprep.subr.bf16.mxu0 %v7695
      %8820 = vmatpush1.bf16.msra.mxu0 %v7694
      %8821 = vmatprep.subr.bf16.mxu0 %v7679
      %8822 = vmatpush1.bf16.msra.mxu0 %v7678
      %8823 = vmatprep.subr.bf16.mxu0 %v7919
      %8824 = vmatpush2.bf16.msra.mxu0 %v7918
      %8825 = vmatprep.subr.bf16.mxu0 %v7903
      %8826 = vmatpush2.bf16.msra.mxu0 %v7902
      %8827 = vmatprep.subr.bf16.mxu0 %v7887
      %8828 = vmatpush2.bf16.msra.mxu0 %v7886
      %8829 = vmatprep.subr.bf16.mxu0 %v7871
      %8830 = vmatpush2.bf16.msra.mxu0 %v7870
      %8831 = vmatprep.subr.bf16.mxu0 %v7855
      %8832 = vmatpush2.bf16.msra.mxu0 %v7854
      %8833 = vmatprep.subr.bf16.mxu0 %v7839
      %8834 = vmatpush2.bf16.msra.mxu0 %v7838
      %8835 = vmatprep.subr.bf16.mxu0 %v7823
      %8836 = vmatpush2.bf16.msra.mxu0 %v7822
      %8837 = vmatprep.subr.bf16.mxu0 %v7807
      %8838 = vmatpush2.bf16.msra.mxu0 %v7806
      %8839 = vmatprep.mubr.bf16.mxu0 %v5281
      %8840 = vmatmul.mubr.bf16.gmra.mxu0 %v5280
      %v8841 = vpop.f32.mrf.mxu0
      %v8842 = vadd.f32 %v8801, %v8841
      %v8843 = vpop.f32.mrf.mxu0
      %v8844 = vadd.f32 %v8803, %v8843
      %v8845 = vpop.f32.mrf.mxu0
      %v8846 = vpop.f32.mrf.mxu0
      %8847 = vdwg.mxu0
      %8848 = vmatprep.subr.bf16.mxu0 %v7537
      %8849 = vmatpush1.bf16.msra.mxu0 %v7536
      %8850 = vmatprep.subr.bf16.mxu0 %v7521
      %8851 = vmatpush1.bf16.msra.mxu0 %v7520
      %8852 = vmatprep.subr.bf16.mxu0 %v7505
      %8853 = vmatpush1.bf16.msra.mxu0 %v7504
      %8854 = vmatprep.subr.bf16.mxu0 %v7489
      %8855 = vmatpush1.bf16.msra.mxu0 %v7488
      %8856 = vmatprep.subr.bf16.mxu0 %v7473
      %8857 = vmatpush1.bf16.msra.mxu0 %v7472
      %8858 = vmatprep.subr.bf16.mxu0 %v7457
      %8859 = vmatpush1.bf16.msra.mxu0 %v7456
      %8860 = vmatprep.subr.bf16.mxu0 %v7441
      %8861 = vmatpush1.bf16.msra.mxu0 %v7440
      %8862 = vmatprep.subr.bf16.mxu0 %v7425
      %8863 = vmatpush1.bf16.msra.mxu0 %v7424
      %8864 = vmatprep.subr.bf16.mxu0 %v7665
      %8865 = vmatpush2.bf16.msra.mxu0 %v7664
      %8866 = vmatprep.subr.bf16.mxu0 %v7649
      %8867 = vmatpush2.bf16.msra.mxu0 %v7648
      %8868 = vmatprep.subr.bf16.mxu0 %v7633
      %8869 = vmatpush2.bf16.msra.mxu0 %v7632
      %8870 = vmatprep.subr.bf16.mxu0 %v7617
      %8871 = vmatpush2.bf16.msra.mxu0 %v7616
      %8872 = vmatprep.subr.bf16.mxu0 %v7601
      %8873 = vmatpush2.bf16.msra.mxu0 %v7600
      %8874 = vmatprep.subr.bf16.mxu0 %v7585
      %8875 = vmatpush2.bf16.msra.mxu0 %v7584
      %8876 = vmatprep.subr.bf16.mxu0 %v7569
      %8877 = vmatpush2.bf16.msra.mxu0 %v7568
      %8878 = vmatprep.subr.bf16.mxu0 %v7553
      %8879 = vmatpush2.bf16.msra.mxu0 %v7552
      %8880 = vmatprep.mubr.bf16.mxu0 %v5279
      %8881 = vmatmul.mubr.bf16.gmra.mxu0 %v5278
      %v8882 = vpop.f32.mrf.mxu0
      %v8883 = vadd.f32 %v5841, %v8882
      %v8884 = vpop.f32.mrf.mxu0
      %v8885 = vadd.f32 %v5845, %v8884
      %v8886 = vpop.f32.mrf.mxu0
      %v8887 = vpop.f32.mrf.mxu0
      %8888 = vdwg.mxu0
      %8889 = vmatprep.subr.bf16.mxu0 %v7793
      %8890 = vmatpush1.bf16.msra.mxu0 %v7792
      %8891 = vmatprep.subr.bf16.mxu0 %v7777
      %8892 = vmatpush1.bf16.msra.mxu0 %v7776
      %8893 = vmatprep.subr.bf16.mxu0 %v7761
      %8894 = vmatpush1.bf16.msra.mxu0 %v7760
      %8895 = vmatprep.subr.bf16.mxu0 %v7745
      %8896 = vmatpush1.bf16.msra.mxu0 %v7744
      %8897 = vmatprep.subr.bf16.mxu0 %v7729
      %8898 = vmatpush1.bf16.msra.mxu0 %v7728
      %8899 = vmatprep.subr.bf16.mxu0 %v7713
      %8900 = vmatpush1.bf16.msra.mxu0 %v7712
      %8901 = vmatprep.subr.bf16.mxu0 %v7697
      %8902 = vmatpush1.bf16.msra.mxu0 %v7696
      %8903 = vmatprep.subr.bf16.mxu0 %v7681
      %8904 = vmatpush1.bf16.msra.mxu0 %v7680
      %8905 = vmatprep.subr.bf16.mxu0 %v7921
      %8906 = vmatpush2.bf16.msra.mxu0 %v7920
      %8907 = vmatprep.subr.bf16.mxu0 %v7905
      %8908 = vmatpush2.bf16.msra.mxu0 %v7904
      %8909 = vmatprep.subr.bf16.mxu0 %v7889
      %8910 = vmatpush2.bf16.msra.mxu0 %v7888
      %8911 = vmatprep.subr.bf16.mxu0 %v7873
      %8912 = vmatpush2.bf16.msra.mxu0 %v7872
      %8913 = vmatprep.subr.bf16.mxu0 %v7857
      %8914 = vmatpush2.bf16.msra.mxu0 %v7856
      %8915 = vmatprep.subr.bf16.mxu0 %v7841
      %8916 = vmatpush2.bf16.msra.mxu0 %v7840
      %8917 = vmatprep.subr.bf16.mxu0 %v7825
      %8918 = vmatpush2.bf16.msra.mxu0 %v7824
      %8919 = vmatprep.subr.bf16.mxu0 %v7809
      %8920 = vmatpush2.bf16.msra.mxu0 %v7808
      %8921 = vmatprep.mubr.bf16.mxu0 %v5281
      %8922 = vmatmul.mubr.bf16.gmra.mxu0 %v5280
      %v8923 = vpop.f32.mrf.mxu0
      %v8924 = vadd.f32 %v8883, %v8923
      %v8925 = vpop.f32.mrf.mxu0
      %v8926 = vadd.f32 %v8885, %v8925
      %v8927 = vpop.f32.mrf.mxu0
      %v8928 = vpop.f32.mrf.mxu0
      %8929 = vdwg.mxu0
      %8930 = vmatprep.subr.bf16.mxu0 %v7539
      %8931 = vmatpush1.bf16.msra.mxu0 %v7538
      %8932 = vmatprep.subr.bf16.mxu0 %v7523
      %8933 = vmatpush1.bf16.msra.mxu0 %v7522
      %8934 = vmatprep.subr.bf16.mxu0 %v7507
      %8935 = vmatpush1.bf16.msra.mxu0 %v7506
      %8936 = vmatprep.subr.bf16.mxu0 %v7491
      %8937 = vmatpush1.bf16.msra.mxu0 %v7490
      %8938 = vmatprep.subr.bf16.mxu0 %v7475
      %8939 = vmatpush1.bf16.msra.mxu0 %v7474
      %8940 = vmatprep.subr.bf16.mxu0 %v7459
      %8941 = vmatpush1.bf16.msra.mxu0 %v7458
      %8942 = vmatprep.subr.bf16.mxu0 %v7443
      %8943 = vmatpush1.bf16.msra.mxu0 %v7442
      %8944 = vmatprep.subr.bf16.mxu0 %v7427
      %8945 = vmatpush1.bf16.msra.mxu0 %v7426
      %8946 = vmatprep.subr.bf16.mxu0 %v7667
      %8947 = vmatpush2.bf16.msra.mxu0 %v7666
      %8948 = vmatprep.subr.bf16.mxu0 %v7651
      %8949 = vmatpush2.bf16.msra.mxu0 %v7650
      %8950 = vmatprep.subr.bf16.mxu0 %v7635
      %8951 = vmatpush2.bf16.msra.mxu0 %v7634
      %8952 = vmatprep.subr.bf16.mxu0 %v7619
      %8953 = vmatpush2.bf16.msra.mxu0 %v7618
      %8954 = vmatprep.subr.bf16.mxu0 %v7603
      %8955 = vmatpush2.bf16.msra.mxu0 %v7602
      %8956 = vmatprep.subr.bf16.mxu0 %v7587
      %8957 = vmatpush2.bf16.msra.mxu0 %v7586
      %8958 = vmatprep.subr.bf16.mxu0 %v7571
      %8959 = vmatpush2.bf16.msra.mxu0 %v7570
      %8960 = vmatprep.subr.bf16.mxu0 %v7555
      %8961 = vmatpush2.bf16.msra.mxu0 %v7554
      %8962 = vmatprep.mubr.bf16.mxu0 %v5279
      %8963 = vmatmul.mubr.bf16.gmra.mxu0 %v5278
      %v8964 = vpop.f32.mrf.mxu0
      %v8965 = vadd.f32 %v5849, %v8964
      %v8966 = vpop.f32.mrf.mxu0
      %v8967 = vadd.f32 %v5853, %v8966
      %v8968 = vpop.f32.mrf.mxu0
      %v8969 = vpop.f32.mrf.mxu0
      %8970 = vdwg.mxu0
      %8971 = vmatprep.subr.bf16.mxu0 %v7795
      %8972 = vmatpush1.bf16.msra.mxu0 %v7794
      %8973 = vmatprep.subr.bf16.mxu0 %v7779
      %8974 = vmatpush1.bf16.msra.mxu0 %v7778
      %8975 = vmatprep.subr.bf16.mxu0 %v7763
      %8976 = vmatpush1.bf16.msra.mxu0 %v7762
      %8977 = vmatprep.subr.bf16.mxu0 %v7747
      %8978 = vmatpush1.bf16.msra.mxu0 %v7746
      %8979 = vmatprep.subr.bf16.mxu0 %v7731
      %8980 = vmatpush1.bf16.msra.mxu0 %v7730
      %8981 = vmatprep.subr.bf16.mxu0 %v7715
      %8982 = vmatpush1.bf16.msra.mxu0 %v7714
      %8983 = vmatprep.subr.bf16.mxu0 %v7699
      %8984 = vmatpush1.bf16.msra.mxu0 %v7698
      %8985 = vmatprep.subr.bf16.mxu0 %v7683
      %8986 = vmatpush1.bf16.msra.mxu0 %v7682
      %8987 = vmatprep.subr.bf16.mxu0 %v7923
      %8988 = vmatpush2.bf16.msra.mxu0 %v7922
      %8989 = vmatprep.subr.bf16.mxu0 %v7907
      %8990 = vmatpush2.bf16.msra.mxu0 %v7906
      %8991 = vmatprep.subr.bf16.mxu0 %v7891
      %8992 = vmatpush2.bf16.msra.mxu0 %v7890
      %8993 = vmatprep.subr.bf16.mxu0 %v7875
      %8994 = vmatpush2.bf16.msra.mxu0 %v7874
      %8995 = vmatprep.subr.bf16.mxu0 %v7859
      %8996 = vmatpush2.bf16.msra.mxu0 %v7858
      %8997 = vmatprep.subr.bf16.mxu0 %v7843
      %8998 = vmatpush2.bf16.msra.mxu0 %v7842
      %8999 = vmatprep.subr.bf16.mxu0 %v7827
      %9000 = vmatpush2.bf16.msra.mxu0 %v7826
      %9001 = vmatprep.subr.bf16.mxu0 %v7811
      %9002 = vmatpush2.bf16.msra.mxu0 %v7810
      %9003 = vmatprep.mubr.bf16.mxu0 %v5281
      %9004 = vmatmul.mubr.bf16.gmra.mxu0 %v5280
      %v9005 = vpop.f32.mrf.mxu0
      %v9006 = vadd.f32 %v8965, %v9005
      %v9007 = vpop.f32.mrf.mxu0
      %v9008 = vadd.f32 %v8967, %v9007
      %v9009 = vpop.f32.mrf.mxu0
      %v9010 = vpop.f32.mrf.mxu0
      %9011 = vdwg.mxu0
      %9012 = vmatprep.subr.bf16.mxu0 %v7541
      %9013 = vmatpush1.bf16.msra.mxu0 %v7540
      %9014 = vmatprep.subr.bf16.mxu0 %v7525
      %9015 = vmatpush1.bf16.msra.mxu0 %v7524
      %9016 = vmatprep.subr.bf16.mxu0 %v7509
      %9017 = vmatpush1.bf16.msra.mxu0 %v7508
      %9018 = vmatprep.subr.bf16.mxu0 %v7493
      %9019 = vmatpush1.bf16.msra.mxu0 %v7492
      %9020 = vmatprep.subr.bf16.mxu0 %v7477
      %9021 = vmatpush1.bf16.msra.mxu0 %v7476
      %9022 = vmatprep.subr.bf16.mxu0 %v7461
      %9023 = vmatpush1.bf16.msra.mxu0 %v7460
      %9024 = vmatprep.subr.bf16.mxu0 %v7445
      %9025 = vmatpush1.bf16.msra.mxu0 %v7444
      %9026 = vmatprep.subr.bf16.mxu0 %v7429
      %9027 = vmatpush1.bf16.msra.mxu0 %v7428
      %9028 = vmatprep.subr.bf16.mxu0 %v7669
      %9029 = vmatpush2.bf16.msra.mxu0 %v7668
      %9030 = vmatprep.subr.bf16.mxu0 %v7653
      %9031 = vmatpush2.bf16.msra.mxu0 %v7652
      %9032 = vmatprep.subr.bf16.mxu0 %v7637
      %9033 = vmatpush2.bf16.msra.mxu0 %v7636
      %9034 = vmatprep.subr.bf16.mxu0 %v7621
      %9035 = vmatpush2.bf16.msra.mxu0 %v7620
      %9036 = vmatprep.subr.bf16.mxu0 %v7605
      %9037 = vmatpush2.bf16.msra.mxu0 %v7604
      %9038 = vmatprep.subr.bf16.mxu0 %v7589
      %9039 = vmatpush2.bf16.msra.mxu0 %v7588
      %9040 = vmatprep.subr.bf16.mxu0 %v7573
      %9041 = vmatpush2.bf16.msra.mxu0 %v7572
      %9042 = vmatprep.subr.bf16.mxu0 %v7557
      %9043 = vmatpush2.bf16.msra.mxu0 %v7556
      %9044 = vmatprep.mubr.bf16.mxu0 %v5279
      %9045 = vmatmul.mubr.bf16.gmra.mxu0 %v5278
      %v9046 = vpop.f32.mrf.mxu0
      %v9047 = vadd.f32 %v5857, %v9046
      %v9048 = vpop.f32.mrf.mxu0
      %v9049 = vadd.f32 %v5861, %v9048
      %v9050 = vpop.f32.mrf.mxu0
      %v9051 = vpop.f32.mrf.mxu0
      %9052 = vdwg.mxu0
      %9053 = vmatprep.subr.bf16.mxu0 %v7797
      %9054 = vmatpush1.bf16.msra.mxu0 %v7796
      %9055 = vmatprep.subr.bf16.mxu0 %v7781
      %9056 = vmatpush1.bf16.msra.mxu0 %v7780
      %9057 = vmatprep.subr.bf16.mxu0 %v7765
      %9058 = vmatpush1.bf16.msra.mxu0 %v7764
      %9059 = vmatprep.subr.bf16.mxu0 %v7749
      %9060 = vmatpush1.bf16.msra.mxu0 %v7748
      %9061 = vmatprep.subr.bf16.mxu0 %v7733
      %9062 = vmatpush1.bf16.msra.mxu0 %v7732
      %9063 = vmatprep.subr.bf16.mxu0 %v7717
      %9064 = vmatpush1.bf16.msra.mxu0 %v7716
      %9065 = vmatprep.subr.bf16.mxu0 %v7701
      %9066 = vmatpush1.bf16.msra.mxu0 %v7700
      %9067 = vmatprep.subr.bf16.mxu0 %v7685
      %9068 = vmatpush1.bf16.msra.mxu0 %v7684
      %9069 = vmatprep.subr.bf16.mxu0 %v7925
      %9070 = vmatpush2.bf16.msra.mxu0 %v7924
      %9071 = vmatprep.subr.bf16.mxu0 %v7909
      %9072 = vmatpush2.bf16.msra.mxu0 %v7908
      %9073 = vmatprep.subr.bf16.mxu0 %v7893
      %9074 = vmatpush2.bf16.msra.mxu0 %v7892
      %9075 = vmatprep.subr.bf16.mxu0 %v7877
      %9076 = vmatpush2.bf16.msra.mxu0 %v7876
      %9077 = vmatprep.subr.bf16.mxu0 %v7861
      %9078 = vmatpush2.bf16.msra.mxu0 %v7860
      %9079 = vmatprep.subr.bf16.mxu0 %v7845
      %9080 = vmatpush2.bf16.msra.mxu0 %v7844
      %9081 = vmatprep.subr.bf16.mxu0 %v7829
      %9082 = vmatpush2.bf16.msra.mxu0 %v7828
      %9083 = vmatprep.subr.bf16.mxu0 %v7813
      %9084 = vmatpush2.bf16.msra.mxu0 %v7812
      %9085 = vmatprep.mubr.bf16.mxu0 %v5281
      %9086 = vmatmul.mubr.bf16.gmra.mxu0 %v5280
      %v9087 = vpop.f32.mrf.mxu0
      %v9088 = vadd.f32 %v9047, %v9087
      %v9089 = vpop.f32.mrf.mxu0
      %v9090 = vadd.f32 %v9049, %v9089
      %v9091 = vpop.f32.mrf.mxu0
      %v9092 = vpop.f32.mrf.mxu0
      %9093 = vdwg.mxu0
      %v9094 = vmax.f32 %v8514, 0.0
      %v9095 = vmax.f32 %v8516, 0.0
      %v9096 = vmax.f32 %v8596, 0.0
      %v9097 = vmax.f32 %v8598, 0.0
      %v9098 = vmax.f32 %v8678, 0.0
      %v9099 = vmax.f32 %v8680, 0.0
      %v9100 = vmax.f32 %v8760, 0.0
      %v9101 = vmax.f32 %v8762, 0.0
      %v9102 = vmax.f32 %v8842, 0.0
      %v9103 = vmax.f32 %v8844, 0.0
      %v9104 = vmax.f32 %v8924, 0.0
      %v9105 = vmax.f32 %v8926, 0.0
      %v9106 = vmax.f32 %v9006, 0.0
      %v9107 = vmax.f32 %v9008, 0.0
      %v9108 = vmax.f32 %v9088, 0.0
      %v9109 = vmax.f32 %v9090, 0.0
      %v9110 = vpack.c.bf16 %v9094, %v9094
      %v9111 = vpack.c.bf16 %v9095, %v9095
      %v9112 = vpack.c.bf16 %v9096, %v9096
      %v9113 = vpack.c.bf16 %v9097, %v9097
      %v9114 = vpack.c.bf16 %v9098, %v9098
      %v9115 = vpack.c.bf16 %v9099, %v9099
      %v9116 = vpack.c.bf16 %v9100, %v9100
      %v9117 = vpack.c.bf16 %v9101, %v9101
      %v9118 = vpack.c.bf16 %v9102, %v9102
      %v9119 = vpack.c.bf16 %v9103, %v9103
      %v9120 = vpack.c.bf16 %v9104, %v9104
      %v9121 = vpack.c.bf16 %v9105, %v9105
      %v9122 = vpack.c.bf16 %v9106, %v9106
      %v9123 = vpack.c.bf16 %v9107, %v9107
      %v9124 = vpack.c.bf16 %v9108, %v9108
      %v9125 = vpack.c.bf16 %v9109, %v9109
      %v9126 = vld [vmem:[%s9] sm:$0xff]
      %v9127 = vld [vmem:[%s9 + $0x8] sm:$0xff]
      %v9128 = vld [vmem:[%s9 + $0x10] sm:$0xff]
      %v9129 = vld [vmem:[%s9 + $0x18] sm:$0xff]
      %v9130 = vld [vmem:[%s9 + $0x20] sm:$0xff]
      %v9131 = vld [vmem:[%s9 + $0x28] sm:$0xff]
      %v9132 = vld [vmem:[%s9 + $0x30] sm:$0xff]
      %v9133 = vld [vmem:[%s9 + $0x38] sm:$0xff]
      %v9134 = vld [vmem:[%s9 + $0x40] sm:$0xff]
      %v9135 = vld [vmem:[%s9 + $0x48] sm:$0xff]
      %v9136 = vld [vmem:[%s9 + $0x50] sm:$0xff]
      %v9137 = vld [vmem:[%s9 + $0x58] sm:$0xff]
      %v9138 = vld [vmem:[%s9 + $0x60] sm:$0xff]
      %v9139 = vld [vmem:[%s9 + $0x68] sm:$0xff]
      %v9140 = vld [vmem:[%s9 + $0x70] sm:$0xff]
      %v9141 = vld [vmem:[%s9 + $0x78] sm:$0xff]
      %v9142 = vld [vmem:[%s9 + $0x80] sm:$0xff]
      %v9143 = vld [vmem:[%s9 + $0x88] sm:$0xff]
      %v9144 = vld [vmem:[%s9 + $0x90] sm:$0xff]
      %v9145 = vld [vmem:[%s9 + $0x98] sm:$0xff]
      %v9146 = vld [vmem:[%s9 + $0xa0] sm:$0xff]
      %v9147 = vld [vmem:[%s9 + $0xa8] sm:$0xff]
      %v9148 = vld [vmem:[%s9 + $0xb0] sm:$0xff]
      %v9149 = vld [vmem:[%s9 + $0xb8] sm:$0xff]
      %v9150 = vld [vmem:[%s9 + $0xc0] sm:$0xff]
      %v9151 = vld [vmem:[%s9 + $0xc8] sm:$0xff]
      %v9152 = vld [vmem:[%s9 + $0xd0] sm:$0xff]
      %v9153 = vld [vmem:[%s9 + $0xd8] sm:$0xff]
      %v9154 = vld [vmem:[%s9 + $0xe0] sm:$0xff]
      %v9155 = vld [vmem:[%s9 + $0xe8] sm:$0xff]
      %v9156 = vld [vmem:[%s9 + $0xf0] sm:$0xff]
      %v9157 = vld [vmem:[%s9 + $0xf8] sm:$0xff]
      %v9158 = vld [vmem:[%s9 + $0x100] sm:$0xff]
      %v9159 = vld [vmem:[%s9 + $0x108] sm:$0xff]
      %v9160 = vld [vmem:[%s9 + $0x110] sm:$0xff]
      %v9161 = vld [vmem:[%s9 + $0x118] sm:$0xff]
      %v9162 = vld [vmem:[%s9 + $0x120] sm:$0xff]
      %v9163 = vld [vmem:[%s9 + $0x128] sm:$0xff]
      %v9164 = vld [vmem:[%s9 + $0x130] sm:$0xff]
      %v9165 = vld [vmem:[%s9 + $0x138] sm:$0xff]
      %v9166 = vld [vmem:[%s9 + $0x140] sm:$0xff]
      %v9167 = vld [vmem:[%s9 + $0x148] sm:$0xff]
      %v9168 = vld [vmem:[%s9 + $0x150] sm:$0xff]
      %v9169 = vld [vmem:[%s9 + $0x158] sm:$0xff]
      %v9170 = vld [vmem:[%s9 + $0x160] sm:$0xff]
      %v9171 = vld [vmem:[%s9 + $0x168] sm:$0xff]
      %v9172 = vld [vmem:[%s9 + $0x170] sm:$0xff]
      %v9173 = vld [vmem:[%s9 + $0x178] sm:$0xff]
      %v9174 = vld [vmem:[%s9 + $0x180] sm:$0xff]
      %v9175 = vld [vmem:[%s9 + $0x188] sm:$0xff]
      %v9176 = vld [vmem:[%s9 + $0x190] sm:$0xff]
      %v9177 = vld [vmem:[%s9 + $0x198] sm:$0xff]
      %v9178 = vld [vmem:[%s9 + $0x1a0] sm:$0xff]
      %v9179 = vld [vmem:[%s9 + $0x1a8] sm:$0xff]
      %v9180 = vld [vmem:[%s9 + $0x1b0] sm:$0xff]
      %v9181 = vld [vmem:[%s9 + $0x1b8] sm:$0xff]
      %v9182 = vld [vmem:[%s9 + $0x1c0] sm:$0xff]
      %v9183 = vld [vmem:[%s9 + $0x1c8] sm:$0xff]
      %v9184 = vld [vmem:[%s9 + $0x1d0] sm:$0xff]
      %v9185 = vld [vmem:[%s9 + $0x1d8] sm:$0xff]
      %v9186 = vld [vmem:[%s9 + $0x1e0] sm:$0xff]
      %v9187 = vld [vmem:[%s9 + $0x1e8] sm:$0xff]
      %v9188 = vld [vmem:[%s9 + $0x1f0] sm:$0xff]
      %v9189 = vld [vmem:[%s9 + $0x1f8] sm:$0xff]
      %v9190 = vld [vmem:[%s9 + $0x200] sm:$0xff]
      %v9191 = vld [vmem:[%s9 + $0x208] sm:$0xff]
      %v9192 = vld [vmem:[%s9 + $0x210] sm:$0xff]
      %v9193 = vld [vmem:[%s9 + $0x218] sm:$0xff]
      %v9194 = vld [vmem:[%s9 + $0x220] sm:$0xff]
      %v9195 = vld [vmem:[%s9 + $0x228] sm:$0xff]
      %v9196 = vld [vmem:[%s9 + $0x230] sm:$0xff]
      %v9197 = vld [vmem:[%s9 + $0x238] sm:$0xff]
      %v9198 = vld [vmem:[%s9 + $0x240] sm:$0xff]
      %v9199 = vld [vmem:[%s9 + $0x248] sm:$0xff]
      %v9200 = vld [vmem:[%s9 + $0x250] sm:$0xff]
      %v9201 = vld [vmem:[%s9 + $0x258] sm:$0xff]
      %v9202 = vld [vmem:[%s9 + $0x260] sm:$0xff]
      %v9203 = vld [vmem:[%s9 + $0x268] sm:$0xff]
      %v9204 = vld [vmem:[%s9 + $0x270] sm:$0xff]
      %v9205 = vld [vmem:[%s9 + $0x278] sm:$0xff]
      %v9206 = vld [vmem:[%s9 + $0x280] sm:$0xff]
      %v9207 = vld [vmem:[%s9 + $0x288] sm:$0xff]
      %v9208 = vld [vmem:[%s9 + $0x290] sm:$0xff]
      %v9209 = vld [vmem:[%s9 + $0x298] sm:$0xff]
      %v9210 = vld [vmem:[%s9 + $0x2a0] sm:$0xff]
      %v9211 = vld [vmem:[%s9 + $0x2a8] sm:$0xff]
      %v9212 = vld [vmem:[%s9 + $0x2b0] sm:$0xff]
      %v9213 = vld [vmem:[%s9 + $0x2b8] sm:$0xff]
      %v9214 = vld [vmem:[%s9 + $0x2c0] sm:$0xff]
      %v9215 = vld [vmem:[%s9 + $0x2c8] sm:$0xff]
      %v9216 = vld [vmem:[%s9 + $0x2d0] sm:$0xff]
      %v9217 = vld [vmem:[%s9 + $0x2d8] sm:$0xff]
      %v9218 = vld [vmem:[%s9 + $0x2e0] sm:$0xff]
      %v9219 = vld [vmem:[%s9 + $0x2e8] sm:$0xff]
      %v9220 = vld [vmem:[%s9 + $0x2f0] sm:$0xff]
      %v9221 = vld [vmem:[%s9 + $0x2f8] sm:$0xff]
      %v9222 = vld [vmem:[%s9 + $0x300] sm:$0xff]
      %v9223 = vld [vmem:[%s9 + $0x308] sm:$0xff]
      %v9224 = vld [vmem:[%s9 + $0x310] sm:$0xff]
      %v9225 = vld [vmem:[%s9 + $0x318] sm:$0xff]
      %v9226 = vld [vmem:[%s9 + $0x320] sm:$0xff]
      %v9227 = vld [vmem:[%s9 + $0x328] sm:$0xff]
      %v9228 = vld [vmem:[%s9 + $0x330] sm:$0xff]
      %v9229 = vld [vmem:[%s9 + $0x338] sm:$0xff]
      %v9230 = vld [vmem:[%s9 + $0x340] sm:$0xff]
      %v9231 = vld [vmem:[%s9 + $0x348] sm:$0xff]
      %v9232 = vld [vmem:[%s9 + $0x350] sm:$0xff]
      %v9233 = vld [vmem:[%s9 + $0x358] sm:$0xff]
      %v9234 = vld [vmem:[%s9 + $0x360] sm:$0xff]
      %v9235 = vld [vmem:[%s9 + $0x368] sm:$0xff]
      %v9236 = vld [vmem:[%s9 + $0x370] sm:$0xff]
      %v9237 = vld [vmem:[%s9 + $0x378] sm:$0xff]
      %v9238 = vld [vmem:[%s9 + $0x380] sm:$0xff]
      %v9239 = vld [vmem:[%s9 + $0x388] sm:$0xff]
      %v9240 = vld [vmem:[%s9 + $0x390] sm:$0xff]
      %v9241 = vld [vmem:[%s9 + $0x398] sm:$0xff]
      %v9242 = vld [vmem:[%s9 + $0x3a0] sm:$0xff]
      %v9243 = vld [vmem:[%s9 + $0x3a8] sm:$0xff]
      %v9244 = vld [vmem:[%s9 + $0x3b0] sm:$0xff]
      %v9245 = vld [vmem:[%s9 + $0x3b8] sm:$0xff]
      %v9246 = vld [vmem:[%s9 + $0x3c0] sm:$0xff]
      %v9247 = vld [vmem:[%s9 + $0x3c8] sm:$0xff]
      %v9248 = vld [vmem:[%s9 + $0x3d0] sm:$0xff]
      %v9249 = vld [vmem:[%s9 + $0x3d8] sm:$0xff]
      %v9250 = vld [vmem:[%s9 + $0x3e0] sm:$0xff]
      %v9251 = vld [vmem:[%s9 + $0x3e8] sm:$0xff]
      %v9252 = vld [vmem:[%s9 + $0x3f0] sm:$0xff]
      %v9253 = vld [vmem:[%s9 + $0x3f8] sm:$0xff]
      %v9254 = vld [vmem:[%s9 + $0x400] sm:$0xff]
      %v9255 = vld [vmem:[%s9 + $0x408] sm:$0xff]
      %v9256 = vld [vmem:[%s9 + $0x410] sm:$0xff]
      %v9257 = vld [vmem:[%s9 + $0x418] sm:$0xff]
      %v9258 = vld [vmem:[%s9 + $0x420] sm:$0xff]
      %v9259 = vld [vmem:[%s9 + $0x428] sm:$0xff]
      %v9260 = vld [vmem:[%s9 + $0x430] sm:$0xff]
      %v9261 = vld [vmem:[%s9 + $0x438] sm:$0xff]
      %v9262 = vld [vmem:[%s9 + $0x440] sm:$0xff]
      %v9263 = vld [vmem:[%s9 + $0x448] sm:$0xff]
      %v9264 = vld [vmem:[%s9 + $0x450] sm:$0xff]
      %v9265 = vld [vmem:[%s9 + $0x458] sm:$0xff]
      %v9266 = vld [vmem:[%s9 + $0x460] sm:$0xff]
      %v9267 = vld [vmem:[%s9 + $0x468] sm:$0xff]
      %v9268 = vld [vmem:[%s9 + $0x470] sm:$0xff]
      %v9269 = vld [vmem:[%s9 + $0x478] sm:$0xff]
      %v9270 = vld [vmem:[%s9 + $0x480] sm:$0xff]
      %v9271 = vld [vmem:[%s9 + $0x488] sm:$0xff]
      %v9272 = vld [vmem:[%s9 + $0x490] sm:$0xff]
      %v9273 = vld [vmem:[%s9 + $0x498] sm:$0xff]
      %v9274 = vld [vmem:[%s9 + $0x4a0] sm:$0xff]
      %v9275 = vld [vmem:[%s9 + $0x4a8] sm:$0xff]
      %v9276 = vld [vmem:[%s9 + $0x4b0] sm:$0xff]
      %v9277 = vld [vmem:[%s9 + $0x4b8] sm:$0xff]
      %v9278 = vld [vmem:[%s9 + $0x4c0] sm:$0xff]
      %v9279 = vld [vmem:[%s9 + $0x4c8] sm:$0xff]
      %v9280 = vld [vmem:[%s9 + $0x4d0] sm:$0xff]
      %v9281 = vld [vmem:[%s9 + $0x4d8] sm:$0xff]
      %v9282 = vld [vmem:[%s9 + $0x4e0] sm:$0xff]
      %v9283 = vld [vmem:[%s9 + $0x4e8] sm:$0xff]
      %v9284 = vld [vmem:[%s9 + $0x4f0] sm:$0xff]
      %v9285 = vld [vmem:[%s9 + $0x4f8] sm:$0xff]
      %v9286 = vld [vmem:[%s9 + $0x500] sm:$0xff]
      %v9287 = vld [vmem:[%s9 + $0x508] sm:$0xff]
      %v9288 = vld [vmem:[%s9 + $0x510] sm:$0xff]
      %v9289 = vld [vmem:[%s9 + $0x518] sm:$0xff]
      %v9290 = vld [vmem:[%s9 + $0x520] sm:$0xff]
      %v9291 = vld [vmem:[%s9 + $0x528] sm:$0xff]
      %v9292 = vld [vmem:[%s9 + $0x530] sm:$0xff]
      %v9293 = vld [vmem:[%s9 + $0x538] sm:$0xff]
      %v9294 = vld [vmem:[%s9 + $0x540] sm:$0xff]
      %v9295 = vld [vmem:[%s9 + $0x548] sm:$0xff]
      %v9296 = vld [vmem:[%s9 + $0x550] sm:$0xff]
      %v9297 = vld [vmem:[%s9 + $0x558] sm:$0xff]
      %v9298 = vld [vmem:[%s9 + $0x560] sm:$0xff]
      %v9299 = vld [vmem:[%s9 + $0x568] sm:$0xff]
      %v9300 = vld [vmem:[%s9 + $0x570] sm:$0xff]
      %v9301 = vld [vmem:[%s9 + $0x578] sm:$0xff]
      %v9302 = vld [vmem:[%s9 + $0x580] sm:$0xff]
      %v9303 = vld [vmem:[%s9 + $0x588] sm:$0xff]
      %v9304 = vld [vmem:[%s9 + $0x590] sm:$0xff]
      %v9305 = vld [vmem:[%s9 + $0x598] sm:$0xff]
      %v9306 = vld [vmem:[%s9 + $0x5a0] sm:$0xff]
      %v9307 = vld [vmem:[%s9 + $0x5a8] sm:$0xff]
      %v9308 = vld [vmem:[%s9 + $0x5b0] sm:$0xff]
      %v9309 = vld [vmem:[%s9 + $0x5b8] sm:$0xff]
      %v9310 = vld [vmem:[%s9 + $0x5c0] sm:$0xff]
      %v9311 = vld [vmem:[%s9 + $0x5c8] sm:$0xff]
      %v9312 = vld [vmem:[%s9 + $0x5d0] sm:$0xff]
      %v9313 = vld [vmem:[%s9 + $0x5d8] sm:$0xff]
      %v9314 = vld [vmem:[%s9 + $0x5e0] sm:$0xff]
      %v9315 = vld [vmem:[%s9 + $0x5e8] sm:$0xff]
      %v9316 = vld [vmem:[%s9 + $0x5f0] sm:$0xff]
      %v9317 = vld [vmem:[%s9 + $0x5f8] sm:$0xff]
      %v9318 = vld [vmem:[%s9 + $0x600] sm:$0xff]
      %v9319 = vld [vmem:[%s9 + $0x608] sm:$0xff]
      %v9320 = vld [vmem:[%s9 + $0x610] sm:$0xff]
      %v9321 = vld [vmem:[%s9 + $0x618] sm:$0xff]
      %v9322 = vld [vmem:[%s9 + $0x620] sm:$0xff]
      %v9323 = vld [vmem:[%s9 + $0x628] sm:$0xff]
      %v9324 = vld [vmem:[%s9 + $0x630] sm:$0xff]
      %v9325 = vld [vmem:[%s9 + $0x638] sm:$0xff]
      %v9326 = vld [vmem:[%s9 + $0x640] sm:$0xff]
      %v9327 = vld [vmem:[%s9 + $0x648] sm:$0xff]
      %v9328 = vld [vmem:[%s9 + $0x650] sm:$0xff]
      %v9329 = vld [vmem:[%s9 + $0x658] sm:$0xff]
      %v9330 = vld [vmem:[%s9 + $0x660] sm:$0xff]
      %v9331 = vld [vmem:[%s9 + $0x668] sm:$0xff]
      %v9332 = vld [vmem:[%s9 + $0x670] sm:$0xff]
      %v9333 = vld [vmem:[%s9 + $0x678] sm:$0xff]
      %v9334 = vld [vmem:[%s9 + $0x680] sm:$0xff]
      %v9335 = vld [vmem:[%s9 + $0x688] sm:$0xff]
      %v9336 = vld [vmem:[%s9 + $0x690] sm:$0xff]
      %v9337 = vld [vmem:[%s9 + $0x698] sm:$0xff]
      %v9338 = vld [vmem:[%s9 + $0x6a0] sm:$0xff]
      %v9339 = vld [vmem:[%s9 + $0x6a8] sm:$0xff]
      %v9340 = vld [vmem:[%s9 + $0x6b0] sm:$0xff]
      %v9341 = vld [vmem:[%s9 + $0x6b8] sm:$0xff]
      %v9342 = vld [vmem:[%s9 + $0x6c0] sm:$0xff]
      %v9343 = vld [vmem:[%s9 + $0x6c8] sm:$0xff]
      %v9344 = vld [vmem:[%s9 + $0x6d0] sm:$0xff]
      %v9345 = vld [vmem:[%s9 + $0x6d8] sm:$0xff]
      %v9346 = vld [vmem:[%s9 + $0x6e0] sm:$0xff]
      %v9347 = vld [vmem:[%s9 + $0x6e8] sm:$0xff]
      %v9348 = vld [vmem:[%s9 + $0x6f0] sm:$0xff]
      %v9349 = vld [vmem:[%s9 + $0x6f8] sm:$0xff]
      %v9350 = vld [vmem:[%s9 + $0x700] sm:$0xff]
      %v9351 = vld [vmem:[%s9 + $0x708] sm:$0xff]
      %v9352 = vld [vmem:[%s9 + $0x710] sm:$0xff]
      %v9353 = vld [vmem:[%s9 + $0x718] sm:$0xff]
      %v9354 = vld [vmem:[%s9 + $0x720] sm:$0xff]
      %v9355 = vld [vmem:[%s9 + $0x728] sm:$0xff]
      %v9356 = vld [vmem:[%s9 + $0x730] sm:$0xff]
      %v9357 = vld [vmem:[%s9 + $0x738] sm:$0xff]
      %v9358 = vld [vmem:[%s9 + $0x740] sm:$0xff]
      %v9359 = vld [vmem:[%s9 + $0x748] sm:$0xff]
      %v9360 = vld [vmem:[%s9 + $0x750] sm:$0xff]
      %v9361 = vld [vmem:[%s9 + $0x758] sm:$0xff]
      %v9362 = vld [vmem:[%s9 + $0x760] sm:$0xff]
      %v9363 = vld [vmem:[%s9 + $0x768] sm:$0xff]
      %v9364 = vld [vmem:[%s9 + $0x770] sm:$0xff]
      %v9365 = vld [vmem:[%s9 + $0x778] sm:$0xff]
      %v9366 = vld [vmem:[%s9 + $0x780] sm:$0xff]
      %v9367 = vld [vmem:[%s9 + $0x788] sm:$0xff]
      %v9368 = vld [vmem:[%s9 + $0x790] sm:$0xff]
      %v9369 = vld [vmem:[%s9 + $0x798] sm:$0xff]
      %v9370 = vld [vmem:[%s9 + $0x7a0] sm:$0xff]
      %v9371 = vld [vmem:[%s9 + $0x7a8] sm:$0xff]
      %v9372 = vld [vmem:[%s9 + $0x7b0] sm:$0xff]
      %v9373 = vld [vmem:[%s9 + $0x7b8] sm:$0xff]
      %v9374 = vld [vmem:[%s9 + $0x7c0] sm:$0xff]
      %v9375 = vld [vmem:[%s9 + $0x7c8] sm:$0xff]
      %v9376 = vld [vmem:[%s9 + $0x7d0] sm:$0xff]
      %v9377 = vld [vmem:[%s9 + $0x7d8] sm:$0xff]
      %v9378 = vld [vmem:[%s9 + $0x7e0] sm:$0xff]
      %v9379 = vld [vmem:[%s9 + $0x7e8] sm:$0xff]
      %v9380 = vld [vmem:[%s9 + $0x7f0] sm:$0xff]
      %v9381 = vld [vmem:[%s9 + $0x7f8] sm:$0xff]
      %v9382 = vld [vmem:[%s9 + $0x800] sm:$0xff]
      %v9383 = vld [vmem:[%s9 + $0x808] sm:$0xff]
      %v9384 = vld [vmem:[%s9 + $0x810] sm:$0xff]
      %v9385 = vld [vmem:[%s9 + $0x818] sm:$0xff]
      %v9386 = vld [vmem:[%s9 + $0x820] sm:$0xff]
      %v9387 = vld [vmem:[%s9 + $0x828] sm:$0xff]
      %v9388 = vld [vmem:[%s9 + $0x830] sm:$0xff]
      %v9389 = vld [vmem:[%s9 + $0x838] sm:$0xff]
      %v9390 = vld [vmem:[%s9 + $0x840] sm:$0xff]
      %v9391 = vld [vmem:[%s9 + $0x848] sm:$0xff]
      %v9392 = vld [vmem:[%s9 + $0x850] sm:$0xff]
      %v9393 = vld [vmem:[%s9 + $0x858] sm:$0xff]
      %v9394 = vld [vmem:[%s9 + $0x860] sm:$0xff]
      %v9395 = vld [vmem:[%s9 + $0x868] sm:$0xff]
      %v9396 = vld [vmem:[%s9 + $0x870] sm:$0xff]
      %v9397 = vld [vmem:[%s9 + $0x878] sm:$0xff]
      %v9398 = vld [vmem:[%s9 + $0x880] sm:$0xff]
      %v9399 = vld [vmem:[%s9 + $0x888] sm:$0xff]
      %v9400 = vld [vmem:[%s9 + $0x890] sm:$0xff]
      %v9401 = vld [vmem:[%s9 + $0x898] sm:$0xff]
      %v9402 = vld [vmem:[%s9 + $0x8a0] sm:$0xff]
      %v9403 = vld [vmem:[%s9 + $0x8a8] sm:$0xff]
      %v9404 = vld [vmem:[%s9 + $0x8b0] sm:$0xff]
      %v9405 = vld [vmem:[%s9 + $0x8b8] sm:$0xff]
      %v9406 = vld [vmem:[%s9 + $0x8c0] sm:$0xff]
      %v9407 = vld [vmem:[%s9 + $0x8c8] sm:$0xff]
      %v9408 = vld [vmem:[%s9 + $0x8d0] sm:$0xff]
      %v9409 = vld [vmem:[%s9 + $0x8d8] sm:$0xff]
      %v9410 = vld [vmem:[%s9 + $0x8e0] sm:$0xff]
      %v9411 = vld [vmem:[%s9 + $0x8e8] sm:$0xff]
      %v9412 = vld [vmem:[%s9 + $0x8f0] sm:$0xff]
      %v9413 = vld [vmem:[%s9 + $0x8f8] sm:$0xff]
      %v9414 = vld [vmem:[%s9 + $0x900] sm:$0xff]
      %v9415 = vld [vmem:[%s9 + $0x908] sm:$0xff]
      %v9416 = vld [vmem:[%s9 + $0x910] sm:$0xff]
      %v9417 = vld [vmem:[%s9 + $0x918] sm:$0xff]
      %v9418 = vld [vmem:[%s9 + $0x920] sm:$0xff]
      %v9419 = vld [vmem:[%s9 + $0x928] sm:$0xff]
      %v9420 = vld [vmem:[%s9 + $0x930] sm:$0xff]
      %v9421 = vld [vmem:[%s9 + $0x938] sm:$0xff]
      %v9422 = vld [vmem:[%s9 + $0x940] sm:$0xff]
      %v9423 = vld [vmem:[%s9 + $0x948] sm:$0xff]
      %v9424 = vld [vmem:[%s9 + $0x950] sm:$0xff]
      %v9425 = vld [vmem:[%s9 + $0x958] sm:$0xff]
      %v9426 = vld [vmem:[%s9 + $0x960] sm:$0xff]
      %v9427 = vld [vmem:[%s9 + $0x968] sm:$0xff]
      %v9428 = vld [vmem:[%s9 + $0x970] sm:$0xff]
      %v9429 = vld [vmem:[%s9 + $0x978] sm:$0xff]
      %v9430 = vld [vmem:[%s9 + $0x980] sm:$0xff]
      %v9431 = vld [vmem:[%s9 + $0x988] sm:$0xff]
      %v9432 = vld [vmem:[%s9 + $0x990] sm:$0xff]
      %v9433 = vld [vmem:[%s9 + $0x998] sm:$0xff]
      %v9434 = vld [vmem:[%s9 + $0x9a0] sm:$0xff]
      %v9435 = vld [vmem:[%s9 + $0x9a8] sm:$0xff]
      %v9436 = vld [vmem:[%s9 + $0x9b0] sm:$0xff]
      %v9437 = vld [vmem:[%s9 + $0x9b8] sm:$0xff]
      %v9438 = vld [vmem:[%s9 + $0x9c0] sm:$0xff]
      %v9439 = vld [vmem:[%s9 + $0x9c8] sm:$0xff]
      %v9440 = vld [vmem:[%s9 + $0x9d0] sm:$0xff]
      %v9441 = vld [vmem:[%s9 + $0x9d8] sm:$0xff]
      %v9442 = vld [vmem:[%s9 + $0x9e0] sm:$0xff]
      %v9443 = vld [vmem:[%s9 + $0x9e8] sm:$0xff]
      %v9444 = vld [vmem:[%s9 + $0x9f0] sm:$0xff]
      %v9445 = vld [vmem:[%s9 + $0x9f8] sm:$0xff]
      %v9446 = vld [vmem:[%s9 + $0xa00] sm:$0xff]
      %v9447 = vld [vmem:[%s9 + $0xa08] sm:$0xff]
      %v9448 = vld [vmem:[%s9 + $0xa10] sm:$0xff]
      %v9449 = vld [vmem:[%s9 + $0xa18] sm:$0xff]
      %v9450 = vld [vmem:[%s9 + $0xa20] sm:$0xff]
      %v9451 = vld [vmem:[%s9 + $0xa28] sm:$0xff]
      %v9452 = vld [vmem:[%s9 + $0xa30] sm:$0xff]
      %v9453 = vld [vmem:[%s9 + $0xa38] sm:$0xff]
      %v9454 = vld [vmem:[%s9 + $0xa40] sm:$0xff]
      %v9455 = vld [vmem:[%s9 + $0xa48] sm:$0xff]
      %v9456 = vld [vmem:[%s9 + $0xa50] sm:$0xff]
      %v9457 = vld [vmem:[%s9 + $0xa58] sm:$0xff]
      %v9458 = vld [vmem:[%s9 + $0xa60] sm:$0xff]
      %v9459 = vld [vmem:[%s9 + $0xa68] sm:$0xff]
      %v9460 = vld [vmem:[%s9 + $0xa70] sm:$0xff]
      %v9461 = vld [vmem:[%s9 + $0xa78] sm:$0xff]
      %v9462 = vld [vmem:[%s9 + $0xa80] sm:$0xff]
      %v9463 = vld [vmem:[%s9 + $0xa88] sm:$0xff]
      %v9464 = vld [vmem:[%s9 + $0xa90] sm:$0xff]
      %v9465 = vld [vmem:[%s9 + $0xa98] sm:$0xff]
      %v9466 = vld [vmem:[%s9 + $0xaa0] sm:$0xff]
      %v9467 = vld [vmem:[%s9 + $0xaa8] sm:$0xff]
      %v9468 = vld [vmem:[%s9 + $0xab0] sm:$0xff]
      %v9469 = vld [vmem:[%s9 + $0xab8] sm:$0xff]
      %v9470 = vld [vmem:[%s9 + $0xac0] sm:$0xff]
      %v9471 = vld [vmem:[%s9 + $0xac8] sm:$0xff]
      %v9472 = vld [vmem:[%s9 + $0xad0] sm:$0xff]
      %v9473 = vld [vmem:[%s9 + $0xad8] sm:$0xff]
      %v9474 = vld [vmem:[%s9 + $0xae0] sm:$0xff]
      %v9475 = vld [vmem:[%s9 + $0xae8] sm:$0xff]
      %v9476 = vld [vmem:[%s9 + $0xaf0] sm:$0xff]
      %v9477 = vld [vmem:[%s9 + $0xaf8] sm:$0xff]
      %v9478 = vld [vmem:[%s9 + $0xb00] sm:$0xff]
      %v9479 = vld [vmem:[%s9 + $0xb08] sm:$0xff]
      %v9480 = vld [vmem:[%s9 + $0xb10] sm:$0xff]
      %v9481 = vld [vmem:[%s9 + $0xb18] sm:$0xff]
      %v9482 = vld [vmem:[%s9 + $0xb20] sm:$0xff]
      %v9483 = vld [vmem:[%s9 + $0xb28] sm:$0xff]
      %v9484 = vld [vmem:[%s9 + $0xb30] sm:$0xff]
      %v9485 = vld [vmem:[%s9 + $0xb38] sm:$0xff]
      %v9486 = vld [vmem:[%s9 + $0xb40] sm:$0xff]
      %v9487 = vld [vmem:[%s9 + $0xb48] sm:$0xff]
      %v9488 = vld [vmem:[%s9 + $0xb50] sm:$0xff]
      %v9489 = vld [vmem:[%s9 + $0xb58] sm:$0xff]
      %v9490 = vld [vmem:[%s9 + $0xb60] sm:$0xff]
      %v9491 = vld [vmem:[%s9 + $0xb68] sm:$0xff]
      %v9492 = vld [vmem:[%s9 + $0xb70] sm:$0xff]
      %v9493 = vld [vmem:[%s9 + $0xb78] sm:$0xff]
      %v9494 = vld [vmem:[%s9 + $0xb80] sm:$0xff]
      %v9495 = vld [vmem:[%s9 + $0xb88] sm:$0xff]
      %v9496 = vld [vmem:[%s9 + $0xb90] sm:$0xff]
      %v9497 = vld [vmem:[%s9 + $0xb98] sm:$0xff]
      %v9498 = vld [vmem:[%s9 + $0xba0] sm:$0xff]
      %v9499 = vld [vmem:[%s9 + $0xba8] sm:$0xff]
      %v9500 = vld [vmem:[%s9 + $0xbb0] sm:$0xff]
      %v9501 = vld [vmem:[%s9 + $0xbb8] sm:$0xff]
      %v9502 = vld [vmem:[%s9 + $0xbc0] sm:$0xff]
      %v9503 = vld [vmem:[%s9 + $0xbc8] sm:$0xff]
      %v9504 = vld [vmem:[%s9 + $0xbd0] sm:$0xff]
      %v9505 = vld [vmem:[%s9 + $0xbd8] sm:$0xff]
      %v9506 = vld [vmem:[%s9 + $0xbe0] sm:$0xff]
      %v9507 = vld [vmem:[%s9 + $0xbe8] sm:$0xff]
      %v9508 = vld [vmem:[%s9 + $0xbf0] sm:$0xff]
      %v9509 = vld [vmem:[%s9 + $0xbf8] sm:$0xff]
      %v9510 = vld [vmem:[%s9 + $0xc00] sm:$0xff]
      %v9511 = vld [vmem:[%s9 + $0xc08] sm:$0xff]
      %v9512 = vld [vmem:[%s9 + $0xc10] sm:$0xff]
      %v9513 = vld [vmem:[%s9 + $0xc18] sm:$0xff]
      %v9514 = vld [vmem:[%s9 + $0xc20] sm:$0xff]
      %v9515 = vld [vmem:[%s9 + $0xc28] sm:$0xff]
      %v9516 = vld [vmem:[%s9 + $0xc30] sm:$0xff]
      %v9517 = vld [vmem:[%s9 + $0xc38] sm:$0xff]
      %v9518 = vld [vmem:[%s9 + $0xc40] sm:$0xff]
      %v9519 = vld [vmem:[%s9 + $0xc48] sm:$0xff]
      %v9520 = vld [vmem:[%s9 + $0xc50] sm:$0xff]
      %v9521 = vld [vmem:[%s9 + $0xc58] sm:$0xff]
      %v9522 = vld [vmem:[%s9 + $0xc60] sm:$0xff]
      %v9523 = vld [vmem:[%s9 + $0xc68] sm:$0xff]
      %v9524 = vld [vmem:[%s9 + $0xc70] sm:$0xff]
      %v9525 = vld [vmem:[%s9 + $0xc78] sm:$0xff]
      %v9526 = vld [vmem:[%s9 + $0xc80] sm:$0xff]
      %v9527 = vld [vmem:[%s9 + $0xc88] sm:$0xff]
      %v9528 = vld [vmem:[%s9 + $0xc90] sm:$0xff]
      %v9529 = vld [vmem:[%s9 + $0xc98] sm:$0xff]
      %v9530 = vld [vmem:[%s9 + $0xca0] sm:$0xff]
      %v9531 = vld [vmem:[%s9 + $0xca8] sm:$0xff]
      %v9532 = vld [vmem:[%s9 + $0xcb0] sm:$0xff]
      %v9533 = vld [vmem:[%s9 + $0xcb8] sm:$0xff]
      %v9534 = vld [vmem:[%s9 + $0xcc0] sm:$0xff]
      %v9535 = vld [vmem:[%s9 + $0xcc8] sm:$0xff]
      %v9536 = vld [vmem:[%s9 + $0xcd0] sm:$0xff]
      %v9537 = vld [vmem:[%s9 + $0xcd8] sm:$0xff]
      %v9538 = vld [vmem:[%s9 + $0xce0] sm:$0xff]
      %v9539 = vld [vmem:[%s9 + $0xce8] sm:$0xff]
      %v9540 = vld [vmem:[%s9 + $0xcf0] sm:$0xff]
      %v9541 = vld [vmem:[%s9 + $0xcf8] sm:$0xff]
      %v9542 = vld [vmem:[%s9 + $0xd00] sm:$0xff]
      %v9543 = vld [vmem:[%s9 + $0xd08] sm:$0xff]
      %v9544 = vld [vmem:[%s9 + $0xd10] sm:$0xff]
      %v9545 = vld [vmem:[%s9 + $0xd18] sm:$0xff]
      %v9546 = vld [vmem:[%s9 + $0xd20] sm:$0xff]
      %v9547 = vld [vmem:[%s9 + $0xd28] sm:$0xff]
      %v9548 = vld [vmem:[%s9 + $0xd30] sm:$0xff]
      %v9549 = vld [vmem:[%s9 + $0xd38] sm:$0xff]
      %v9550 = vld [vmem:[%s9 + $0xd40] sm:$0xff]
      %v9551 = vld [vmem:[%s9 + $0xd48] sm:$0xff]
      %v9552 = vld [vmem:[%s9 + $0xd50] sm:$0xff]
      %v9553 = vld [vmem:[%s9 + $0xd58] sm:$0xff]
      %v9554 = vld [vmem:[%s9 + $0xd60] sm:$0xff]
      %v9555 = vld [vmem:[%s9 + $0xd68] sm:$0xff]
      %v9556 = vld [vmem:[%s9 + $0xd70] sm:$0xff]
      %v9557 = vld [vmem:[%s9 + $0xd78] sm:$0xff]
      %v9558 = vld [vmem:[%s9 + $0xd80] sm:$0xff]
      %v9559 = vld [vmem:[%s9 + $0xd88] sm:$0xff]
      %v9560 = vld [vmem:[%s9 + $0xd90] sm:$0xff]
      %v9561 = vld [vmem:[%s9 + $0xd98] sm:$0xff]
      %v9562 = vld [vmem:[%s9 + $0xda0] sm:$0xff]
      %v9563 = vld [vmem:[%s9 + $0xda8] sm:$0xff]
      %v9564 = vld [vmem:[%s9 + $0xdb0] sm:$0xff]
      %v9565 = vld [vmem:[%s9 + $0xdb8] sm:$0xff]
      %v9566 = vld [vmem:[%s9 + $0xdc0] sm:$0xff]
      %v9567 = vld [vmem:[%s9 + $0xdc8] sm:$0xff]
      %v9568 = vld [vmem:[%s9 + $0xdd0] sm:$0xff]
      %v9569 = vld [vmem:[%s9 + $0xdd8] sm:$0xff]
      %v9570 = vld [vmem:[%s9 + $0xde0] sm:$0xff]
      %v9571 = vld [vmem:[%s9 + $0xde8] sm:$0xff]
      %v9572 = vld [vmem:[%s9 + $0xdf0] sm:$0xff]
      %v9573 = vld [vmem:[%s9 + $0xdf8] sm:$0xff]
      %v9574 = vld [vmem:[%s9 + $0xe00] sm:$0xff]
      %v9575 = vld [vmem:[%s9 + $0xe08] sm:$0xff]
      %v9576 = vld [vmem:[%s9 + $0xe10] sm:$0xff]
      %v9577 = vld [vmem:[%s9 + $0xe18] sm:$0xff]
      %v9578 = vld [vmem:[%s9 + $0xe20] sm:$0xff]
      %v9579 = vld [vmem:[%s9 + $0xe28] sm:$0xff]
      %v9580 = vld [vmem:[%s9 + $0xe30] sm:$0xff]
      %v9581 = vld [vmem:[%s9 + $0xe38] sm:$0xff]
      %v9582 = vld [vmem:[%s9 + $0xe40] sm:$0xff]
      %v9583 = vld [vmem:[%s9 + $0xe48] sm:$0xff]
      %v9584 = vld [vmem:[%s9 + $0xe50] sm:$0xff]
      %v9585 = vld [vmem:[%s9 + $0xe58] sm:$0xff]
      %v9586 = vld [vmem:[%s9 + $0xe60] sm:$0xff]
      %v9587 = vld [vmem:[%s9 + $0xe68] sm:$0xff]
      %v9588 = vld [vmem:[%s9 + $0xe70] sm:$0xff]
      %v9589 = vld [vmem:[%s9 + $0xe78] sm:$0xff]
      %v9590 = vld [vmem:[%s9 + $0xe80] sm:$0xff]
      %v9591 = vld [vmem:[%s9 + $0xe88] sm:$0xff]
      %v9592 = vld [vmem:[%s9 + $0xe90] sm:$0xff]
      %v9593 = vld [vmem:[%s9 + $0xe98] sm:$0xff]
      %v9594 = vld [vmem:[%s9 + $0xea0] sm:$0xff]
      %v9595 = vld [vmem:[%s9 + $0xea8] sm:$0xff]
      %v9596 = vld [vmem:[%s9 + $0xeb0] sm:$0xff]
      %v9597 = vld [vmem:[%s9 + $0xeb8] sm:$0xff]
      %v9598 = vld [vmem:[%s9 + $0xec0] sm:$0xff]
      %v9599 = vld [vmem:[%s9 + $0xec8] sm:$0xff]
      %v9600 = vld [vmem:[%s9 + $0xed0] sm:$0xff]
      %v9601 = vld [vmem:[%s9 + $0xed8] sm:$0xff]
      %v9602 = vld [vmem:[%s9 + $0xee0] sm:$0xff]
      %v9603 = vld [vmem:[%s9 + $0xee8] sm:$0xff]
      %v9604 = vld [vmem:[%s9 + $0xef0] sm:$0xff]
      %v9605 = vld [vmem:[%s9 + $0xef8] sm:$0xff]
      %v9606 = vld [vmem:[%s9 + $0xf00] sm:$0xff]
      %v9607 = vld [vmem:[%s9 + $0xf08] sm:$0xff]
      %v9608 = vld [vmem:[%s9 + $0xf10] sm:$0xff]
      %v9609 = vld [vmem:[%s9 + $0xf18] sm:$0xff]
      %v9610 = vld [vmem:[%s9 + $0xf20] sm:$0xff]
      %v9611 = vld [vmem:[%s9 + $0xf28] sm:$0xff]
      %v9612 = vld [vmem:[%s9 + $0xf30] sm:$0xff]
      %v9613 = vld [vmem:[%s9 + $0xf38] sm:$0xff]
      %v9614 = vld [vmem:[%s9 + $0xf40] sm:$0xff]
      %v9615 = vld [vmem:[%s9 + $0xf48] sm:$0xff]
      %v9616 = vld [vmem:[%s9 + $0xf50] sm:$0xff]
      %v9617 = vld [vmem:[%s9 + $0xf58] sm:$0xff]
      %v9618 = vld [vmem:[%s9 + $0xf60] sm:$0xff]
      %v9619 = vld [vmem:[%s9 + $0xf68] sm:$0xff]
      %v9620 = vld [vmem:[%s9 + $0xf70] sm:$0xff]
      %v9621 = vld [vmem:[%s9 + $0xf78] sm:$0xff]
      %v9622 = vld [vmem:[%s9 + $0xf80] sm:$0xff]
      %v9623 = vld [vmem:[%s9 + $0xf88] sm:$0xff]
      %v9624 = vld [vmem:[%s9 + $0xf90] sm:$0xff]
      %v9625 = vld [vmem:[%s9 + $0xf98] sm:$0xff]
      %v9626 = vld [vmem:[%s9 + $0xfa0] sm:$0xff]
      %v9627 = vld [vmem:[%s9 + $0xfa8] sm:$0xff]
      %v9628 = vld [vmem:[%s9 + $0xfb0] sm:$0xff]
      %v9629 = vld [vmem:[%s9 + $0xfb8] sm:$0xff]
      %v9630 = vld [vmem:[%s9 + $0xfc0] sm:$0xff]
      %v9631 = vld [vmem:[%s9 + $0xfc8] sm:$0xff]
      %v9632 = vld [vmem:[%s9 + $0xfd0] sm:$0xff]
      %v9633 = vld [vmem:[%s9 + $0xfd8] sm:$0xff]
      %v9634 = vld [vmem:[%s9 + $0xfe0] sm:$0xff]
      %v9635 = vld [vmem:[%s9 + $0xfe8] sm:$0xff]
      %v9636 = vld [vmem:[%s9 + $0xff0] sm:$0xff]
      %v9637 = vld [vmem:[%s9 + $0xff8] sm:$0xff]
      %v9638 = vld [vmem:[%s10] sm:$0xf]
      %v9640 = vlaneseq
      %v9641 = vshrl.u32 %v9640, 7
      %v9642 = vsub.s32 0, %v9641
      %v9643 = vrot.slane %v9638, %v9642
      %v9644 = vlaneseq
      %v9645 = vshrl.u32 %v9644, 7
      %v9646 = vsub.s32 1, %v9645
      %v9647 = vrot.slane %v9638, %v9646
      %v9648 = vlaneseq
      %v9649 = vshrl.u32 %v9648, 7
      %v9650 = vsub.s32 2, %v9649
      %v9651 = vrot.slane %v9638, %v9650
      %v9652 = vlaneseq
      %v9653 = vshrl.u32 %v9652, 7
      %v9654 = vsub.s32 3, %v9653
      %v9655 = vrot.slane %v9638, %v9654
      %v10172 = vunpack.c.l.b16 %v9126
      %v10173 = vunpack.c.h.b16 %v9126
      %v10174 = vunpack.c.l.b16 %v9127
      %v10175 = vunpack.c.h.b16 %v9127
      %v10176 = vunpack.c.l.b16 %v9128
      %v10177 = vunpack.c.h.b16 %v9128
      %v10178 = vunpack.c.l.b16 %v9129
      %v10179 = vunpack.c.h.b16 %v9129
      %v10180 = vunpack.c.l.b16 %v9130
      %v10181 = vunpack.c.h.b16 %v9130
      %v10182 = vunpack.c.l.b16 %v9131
      %v10183 = vunpack.c.h.b16 %v9131
      %v10184 = vunpack.c.l.b16 %v9132
      %v10185 = vunpack.c.h.b16 %v9132
      %v10186 = vunpack.c.l.b16 %v9133
      %v10187 = vunpack.c.h.b16 %v9133
      %v10188 = vunpack.c.l.b16 %v9134
      %v10189 = vunpack.c.h.b16 %v9134
      %v10190 = vunpack.c.l.b16 %v9135
      %v10191 = vunpack.c.h.b16 %v9135
      %v10192 = vunpack.c.l.b16 %v9136
      %v10193 = vunpack.c.h.b16 %v9136
      %v10194 = vunpack.c.l.b16 %v9137
      %v10195 = vunpack.c.h.b16 %v9137
      %v10196 = vunpack.c.l.b16 %v9138
      %v10197 = vunpack.c.h.b16 %v9138
      %v10198 = vunpack.c.l.b16 %v9139
      %v10199 = vunpack.c.h.b16 %v9139
      %v10200 = vunpack.c.l.b16 %v9140
      %v10201 = vunpack.c.h.b16 %v9140
      %v10202 = vunpack.c.l.b16 %v9141
      %v10203 = vunpack.c.h.b16 %v9141
      %v10204 = vunpack.c.l.b16 %v9142
      %v10205 = vunpack.c.h.b16 %v9142
      %v10206 = vunpack.c.l.b16 %v9143
      %v10207 = vunpack.c.h.b16 %v9143
      %v10208 = vunpack.c.l.b16 %v9144
      %v10209 = vunpack.c.h.b16 %v9144
      %v10210 = vunpack.c.l.b16 %v9145
      %v10211 = vunpack.c.h.b16 %v9145
      %v10212 = vunpack.c.l.b16 %v9146
      %v10213 = vunpack.c.h.b16 %v9146
      %v10214 = vunpack.c.l.b16 %v9147
      %v10215 = vunpack.c.h.b16 %v9147
      %v10216 = vunpack.c.l.b16 %v9148
      %v10217 = vunpack.c.h.b16 %v9148
      %v10218 = vunpack.c.l.b16 %v9149
      %v10219 = vunpack.c.h.b16 %v9149
      %v10220 = vunpack.c.l.b16 %v9150
      %v10221 = vunpack.c.h.b16 %v9150
      %v10222 = vunpack.c.l.b16 %v9151
      %v10223 = vunpack.c.h.b16 %v9151
      %v10224 = vunpack.c.l.b16 %v9152
      %v10225 = vunpack.c.h.b16 %v9152
      %v10226 = vunpack.c.l.b16 %v9153
      %v10227 = vunpack.c.h.b16 %v9153
      %v10228 = vunpack.c.l.b16 %v9154
      %v10229 = vunpack.c.h.b16 %v9154
      %v10230 = vunpack.c.l.b16 %v9155
      %v10231 = vunpack.c.h.b16 %v9155
      %v10232 = vunpack.c.l.b16 %v9156
      %v10233 = vunpack.c.h.b16 %v9156
      %v10234 = vunpack.c.l.b16 %v9157
      %v10235 = vunpack.c.h.b16 %v9157
      %v10236 = vunpack.c.l.b16 %v9158
      %v10237 = vunpack.c.h.b16 %v9158
      %v10238 = vunpack.c.l.b16 %v9159
      %v10239 = vunpack.c.h.b16 %v9159
      %v10240 = vunpack.c.l.b16 %v9160
      %v10241 = vunpack.c.h.b16 %v9160
      %v10242 = vunpack.c.l.b16 %v9161
      %v10243 = vunpack.c.h.b16 %v9161
      %v10244 = vunpack.c.l.b16 %v9162
      %v10245 = vunpack.c.h.b16 %v9162
      %v10246 = vunpack.c.l.b16 %v9163
      %v10247 = vunpack.c.h.b16 %v9163
      %v10248 = vunpack.c.l.b16 %v9164
      %v10249 = vunpack.c.h.b16 %v9164
      %v10250 = vunpack.c.l.b16 %v9165
      %v10251 = vunpack.c.h.b16 %v9165
      %v10252 = vunpack.c.l.b16 %v9166
      %v10253 = vunpack.c.h.b16 %v9166
      %v10254 = vunpack.c.l.b16 %v9167
      %v10255 = vunpack.c.h.b16 %v9167
      %v10256 = vunpack.c.l.b16 %v9168
      %v10257 = vunpack.c.h.b16 %v9168
      %v10258 = vunpack.c.l.b16 %v9169
      %v10259 = vunpack.c.h.b16 %v9169
      %v10260 = vunpack.c.l.b16 %v9170
      %v10261 = vunpack.c.h.b16 %v9170
      %v10262 = vunpack.c.l.b16 %v9171
      %v10263 = vunpack.c.h.b16 %v9171
      %v10264 = vunpack.c.l.b16 %v9172
      %v10265 = vunpack.c.h.b16 %v9172
      %v10266 = vunpack.c.l.b16 %v9173
      %v10267 = vunpack.c.h.b16 %v9173
      %v10268 = vunpack.c.l.b16 %v9174
      %v10269 = vunpack.c.h.b16 %v9174
      %v10270 = vunpack.c.l.b16 %v9175
      %v10271 = vunpack.c.h.b16 %v9175
      %v10272 = vunpack.c.l.b16 %v9176
      %v10273 = vunpack.c.h.b16 %v9176
      %v10274 = vunpack.c.l.b16 %v9177
      %v10275 = vunpack.c.h.b16 %v9177
      %v10276 = vunpack.c.l.b16 %v9178
      %v10277 = vunpack.c.h.b16 %v9178
      %v10278 = vunpack.c.l.b16 %v9179
      %v10279 = vunpack.c.h.b16 %v9179
      %v10280 = vunpack.c.l.b16 %v9180
      %v10281 = vunpack.c.h.b16 %v9180
      %v10282 = vunpack.c.l.b16 %v9181
      %v10283 = vunpack.c.h.b16 %v9181
      %v10284 = vunpack.c.l.b16 %v9182
      %v10285 = vunpack.c.h.b16 %v9182
      %v10286 = vunpack.c.l.b16 %v9183
      %v10287 = vunpack.c.h.b16 %v9183
      %v10288 = vunpack.c.l.b16 %v9184
      %v10289 = vunpack.c.h.b16 %v9184
      %v10290 = vunpack.c.l.b16 %v9185
      %v10291 = vunpack.c.h.b16 %v9185
      %v10292 = vunpack.c.l.b16 %v9186
      %v10293 = vunpack.c.h.b16 %v9186
      %v10294 = vunpack.c.l.b16 %v9187
      %v10295 = vunpack.c.h.b16 %v9187
      %v10296 = vunpack.c.l.b16 %v9188
      %v10297 = vunpack.c.h.b16 %v9188
      %v10298 = vunpack.c.l.b16 %v9189
      %v10299 = vunpack.c.h.b16 %v9189
      %v10300 = vunpack.c.l.b16 %v9190
      %v10301 = vunpack.c.h.b16 %v9190
      %v10302 = vunpack.c.l.b16 %v9191
      %v10303 = vunpack.c.h.b16 %v9191
      %v10304 = vunpack.c.l.b16 %v9192
      %v10305 = vunpack.c.h.b16 %v9192
      %v10306 = vunpack.c.l.b16 %v9193
      %v10307 = vunpack.c.h.b16 %v9193
      %v10308 = vunpack.c.l.b16 %v9194
      %v10309 = vunpack.c.h.b16 %v9194
      %v10310 = vunpack.c.l.b16 %v9195
      %v10311 = vunpack.c.h.b16 %v9195
      %v10312 = vunpack.c.l.b16 %v9196
      %v10313 = vunpack.c.h.b16 %v9196
      %v10314 = vunpack.c.l.b16 %v9197
      %v10315 = vunpack.c.h.b16 %v9197
      %v10316 = vunpack.c.l.b16 %v9198
      %v10317 = vunpack.c.h.b16 %v9198
      %v10318 = vunpack.c.l.b16 %v9199
      %v10319 = vunpack.c.h.b16 %v9199
      %v10320 = vunpack.c.l.b16 %v9200
      %v10321 = vunpack.c.h.b16 %v9200
      %v10322 = vunpack.c.l.b16 %v9201
      %v10323 = vunpack.c.h.b16 %v9201
      %v10324 = vunpack.c.l.b16 %v9202
      %v10325 = vunpack.c.h.b16 %v9202
      %v10326 = vunpack.c.l.b16 %v9203
      %v10327 = vunpack.c.h.b16 %v9203
      %v10328 = vunpack.c.l.b16 %v9204
      %v10329 = vunpack.c.h.b16 %v9204
      %v10330 = vunpack.c.l.b16 %v9205
      %v10331 = vunpack.c.h.b16 %v9205
      %v10332 = vunpack.c.l.b16 %v9206
      %v10333 = vunpack.c.h.b16 %v9206
      %v10334 = vunpack.c.l.b16 %v9207
      %v10335 = vunpack.c.h.b16 %v9207
      %v10336 = vunpack.c.l.b16 %v9208
      %v10337 = vunpack.c.h.b16 %v9208
      %v10338 = vunpack.c.l.b16 %v9209
      %v10339 = vunpack.c.h.b16 %v9209
      %v10340 = vunpack.c.l.b16 %v9210
      %v10341 = vunpack.c.h.b16 %v9210
      %v10342 = vunpack.c.l.b16 %v9211
      %v10343 = vunpack.c.h.b16 %v9211
      %v10344 = vunpack.c.l.b16 %v9212
      %v10345 = vunpack.c.h.b16 %v9212
      %v10346 = vunpack.c.l.b16 %v9213
      %v10347 = vunpack.c.h.b16 %v9213
      %v10348 = vunpack.c.l.b16 %v9214
      %v10349 = vunpack.c.h.b16 %v9214
      %v10350 = vunpack.c.l.b16 %v9215
      %v10351 = vunpack.c.h.b16 %v9215
      %v10352 = vunpack.c.l.b16 %v9216
      %v10353 = vunpack.c.h.b16 %v9216
      %v10354 = vunpack.c.l.b16 %v9217
      %v10355 = vunpack.c.h.b16 %v9217
      %v10356 = vunpack.c.l.b16 %v9218
      %v10357 = vunpack.c.h.b16 %v9218
      %v10358 = vunpack.c.l.b16 %v9219
      %v10359 = vunpack.c.h.b16 %v9219
      %v10360 = vunpack.c.l.b16 %v9220
      %v10361 = vunpack.c.h.b16 %v9220
      %v10362 = vunpack.c.l.b16 %v9221
      %v10363 = vunpack.c.h.b16 %v9221
      %v10364 = vunpack.c.l.b16 %v9222
      %v10365 = vunpack.c.h.b16 %v9222
      %v10366 = vunpack.c.l.b16 %v9223
      %v10367 = vunpack.c.h.b16 %v9223
      %v10368 = vunpack.c.l.b16 %v9224
      %v10369 = vunpack.c.h.b16 %v9224
      %v10370 = vunpack.c.l.b16 %v9225
      %v10371 = vunpack.c.h.b16 %v9225
      %v10372 = vunpack.c.l.b16 %v9226
      %v10373 = vunpack.c.h.b16 %v9226
      %v10374 = vunpack.c.l.b16 %v9227
      %v10375 = vunpack.c.h.b16 %v9227
      %v10376 = vunpack.c.l.b16 %v9228
      %v10377 = vunpack.c.h.b16 %v9228
      %v10378 = vunpack.c.l.b16 %v9229
      %v10379 = vunpack.c.h.b16 %v9229
      %v10380 = vunpack.c.l.b16 %v9230
      %v10381 = vunpack.c.h.b16 %v9230
      %v10382 = vunpack.c.l.b16 %v9231
      %v10383 = vunpack.c.h.b16 %v9231
      %v10384 = vunpack.c.l.b16 %v9232
      %v10385 = vunpack.c.h.b16 %v9232
      %v10386 = vunpack.c.l.b16 %v9233
      %v10387 = vunpack.c.h.b16 %v9233
      %v10388 = vunpack.c.l.b16 %v9234
      %v10389 = vunpack.c.h.b16 %v9234
      %v10390 = vunpack.c.l.b16 %v9235
      %v10391 = vunpack.c.h.b16 %v9235
      %v10392 = vunpack.c.l.b16 %v9236
      %v10393 = vunpack.c.h.b16 %v9236
      %v10394 = vunpack.c.l.b16 %v9237
      %v10395 = vunpack.c.h.b16 %v9237
      %v10396 = vunpack.c.l.b16 %v9238
      %v10397 = vunpack.c.h.b16 %v9238
      %v10398 = vunpack.c.l.b16 %v9239
      %v10399 = vunpack.c.h.b16 %v9239
      %v10400 = vunpack.c.l.b16 %v9240
      %v10401 = vunpack.c.h.b16 %v9240
      %v10402 = vunpack.c.l.b16 %v9241
      %v10403 = vunpack.c.h.b16 %v9241
      %v10404 = vunpack.c.l.b16 %v9242
      %v10405 = vunpack.c.h.b16 %v9242
      %v10406 = vunpack.c.l.b16 %v9243
      %v10407 = vunpack.c.h.b16 %v9243
      %v10408 = vunpack.c.l.b16 %v9244
      %v10409 = vunpack.c.h.b16 %v9244
      %v10410 = vunpack.c.l.b16 %v9245
      %v10411 = vunpack.c.h.b16 %v9245
      %v10412 = vunpack.c.l.b16 %v9246
      %v10413 = vunpack.c.h.b16 %v9246
      %v10414 = vunpack.c.l.b16 %v9247
      %v10415 = vunpack.c.h.b16 %v9247
      %v10416 = vunpack.c.l.b16 %v9248
      %v10417 = vunpack.c.h.b16 %v9248
      %v10418 = vunpack.c.l.b16 %v9249
      %v10419 = vunpack.c.h.b16 %v9249
      %v10420 = vunpack.c.l.b16 %v9250
      %v10421 = vunpack.c.h.b16 %v9250
      %v10422 = vunpack.c.l.b16 %v9251
      %v10423 = vunpack.c.h.b16 %v9251
      %v10424 = vunpack.c.l.b16 %v9252
      %v10425 = vunpack.c.h.b16 %v9252
      %v10426 = vunpack.c.l.b16 %v9253
      %v10427 = vunpack.c.h.b16 %v9253
      %v10428 = vunpack.c.l.b16 %v9254
      %v10429 = vunpack.c.h.b16 %v9254
      %v10430 = vunpack.c.l.b16 %v9255
      %v10431 = vunpack.c.h.b16 %v9255
      %v10432 = vunpack.c.l.b16 %v9256
      %v10433 = vunpack.c.h.b16 %v9256
      %v10434 = vunpack.c.l.b16 %v9257
      %v10435 = vunpack.c.h.b16 %v9257
      %v10436 = vunpack.c.l.b16 %v9258
      %v10437 = vunpack.c.h.b16 %v9258
      %v10438 = vunpack.c.l.b16 %v9259
      %v10439 = vunpack.c.h.b16 %v9259
      %v10440 = vunpack.c.l.b16 %v9260
      %v10441 = vunpack.c.h.b16 %v9260
      %v10442 = vunpack.c.l.b16 %v9261
      %v10443 = vunpack.c.h.b16 %v9261
      %v10444 = vunpack.c.l.b16 %v9262
      %v10445 = vunpack.c.h.b16 %v9262
      %v10446 = vunpack.c.l.b16 %v9263
      %v10447 = vunpack.c.h.b16 %v9263
      %v10448 = vunpack.c.l.b16 %v9264
      %v10449 = vunpack.c.h.b16 %v9264
      %v10450 = vunpack.c.l.b16 %v9265
      %v10451 = vunpack.c.h.b16 %v9265
      %v10452 = vunpack.c.l.b16 %v9266
      %v10453 = vunpack.c.h.b16 %v9266
      %v10454 = vunpack.c.l.b16 %v9267
      %v10455 = vunpack.c.h.b16 %v9267
      %v10456 = vunpack.c.l.b16 %v9268
      %v10457 = vunpack.c.h.b16 %v9268
      %v10458 = vunpack.c.l.b16 %v9269
      %v10459 = vunpack.c.h.b16 %v9269
      %v10460 = vunpack.c.l.b16 %v9270
      %v10461 = vunpack.c.h.b16 %v9270
      %v10462 = vunpack.c.l.b16 %v9271
      %v10463 = vunpack.c.h.b16 %v9271
      %v10464 = vunpack.c.l.b16 %v9272
      %v10465 = vunpack.c.h.b16 %v9272
      %v10466 = vunpack.c.l.b16 %v9273
      %v10467 = vunpack.c.h.b16 %v9273
      %v10468 = vunpack.c.l.b16 %v9274
      %v10469 = vunpack.c.h.b16 %v9274
      %v10470 = vunpack.c.l.b16 %v9275
      %v10471 = vunpack.c.h.b16 %v9275
      %v10472 = vunpack.c.l.b16 %v9276
      %v10473 = vunpack.c.h.b16 %v9276
      %v10474 = vunpack.c.l.b16 %v9277
      %v10475 = vunpack.c.h.b16 %v9277
      %v10476 = vunpack.c.l.b16 %v9278
      %v10477 = vunpack.c.h.b16 %v9278
      %v10478 = vunpack.c.l.b16 %v9279
      %v10479 = vunpack.c.h.b16 %v9279
      %v10480 = vunpack.c.l.b16 %v9280
      %v10481 = vunpack.c.h.b16 %v9280
      %v10482 = vunpack.c.l.b16 %v9281
      %v10483 = vunpack.c.h.b16 %v9281
      %v10484 = vunpack.c.l.b16 %v9282
      %v10485 = vunpack.c.h.b16 %v9282
      %v10486 = vunpack.c.l.b16 %v9283
      %v10487 = vunpack.c.h.b16 %v9283
      %v10488 = vunpack.c.l.b16 %v9284
      %v10489 = vunpack.c.h.b16 %v9284
      %v10490 = vunpack.c.l.b16 %v9285
      %v10491 = vunpack.c.h.b16 %v9285
      %v10492 = vunpack.c.l.b16 %v9286
      %v10493 = vunpack.c.h.b16 %v9286
      %v10494 = vunpack.c.l.b16 %v9287
      %v10495 = vunpack.c.h.b16 %v9287
      %v10496 = vunpack.c.l.b16 %v9288
      %v10497 = vunpack.c.h.b16 %v9288
      %v10498 = vunpack.c.l.b16 %v9289
      %v10499 = vunpack.c.h.b16 %v9289
      %v10500 = vunpack.c.l.b16 %v9290
      %v10501 = vunpack.c.h.b16 %v9290
      %v10502 = vunpack.c.l.b16 %v9291
      %v10503 = vunpack.c.h.b16 %v9291
      %v10504 = vunpack.c.l.b16 %v9292
      %v10505 = vunpack.c.h.b16 %v9292
      %v10506 = vunpack.c.l.b16 %v9293
      %v10507 = vunpack.c.h.b16 %v9293
      %v10508 = vunpack.c.l.b16 %v9294
      %v10509 = vunpack.c.h.b16 %v9294
      %v10510 = vunpack.c.l.b16 %v9295
      %v10511 = vunpack.c.h.b16 %v9295
      %v10512 = vunpack.c.l.b16 %v9296
      %v10513 = vunpack.c.h.b16 %v9296
      %v10514 = vunpack.c.l.b16 %v9297
      %v10515 = vunpack.c.h.b16 %v9297
      %v10516 = vunpack.c.l.b16 %v9298
      %v10517 = vunpack.c.h.b16 %v9298
      %v10518 = vunpack.c.l.b16 %v9299
      %v10519 = vunpack.c.h.b16 %v9299
      %v10520 = vunpack.c.l.b16 %v9300
      %v10521 = vunpack.c.h.b16 %v9300
      %v10522 = vunpack.c.l.b16 %v9301
      %v10523 = vunpack.c.h.b16 %v9301
      %v10524 = vunpack.c.l.b16 %v9302
      %v10525 = vunpack.c.h.b16 %v9302
      %v10526 = vunpack.c.l.b16 %v9303
      %v10527 = vunpack.c.h.b16 %v9303
      %v10528 = vunpack.c.l.b16 %v9304
      %v10529 = vunpack.c.h.b16 %v9304
      %v10530 = vunpack.c.l.b16 %v9305
      %v10531 = vunpack.c.h.b16 %v9305
      %v10532 = vunpack.c.l.b16 %v9306
      %v10533 = vunpack.c.h.b16 %v9306
      %v10534 = vunpack.c.l.b16 %v9307
      %v10535 = vunpack.c.h.b16 %v9307
      %v10536 = vunpack.c.l.b16 %v9308
      %v10537 = vunpack.c.h.b16 %v9308
      %v10538 = vunpack.c.l.b16 %v9309
      %v10539 = vunpack.c.h.b16 %v9309
      %v10540 = vunpack.c.l.b16 %v9310
      %v10541 = vunpack.c.h.b16 %v9310
      %v10542 = vunpack.c.l.b16 %v9311
      %v10543 = vunpack.c.h.b16 %v9311
      %v10544 = vunpack.c.l.b16 %v9312
      %v10545 = vunpack.c.h.b16 %v9312
      %v10546 = vunpack.c.l.b16 %v9313
      %v10547 = vunpack.c.h.b16 %v9313
      %v10548 = vunpack.c.l.b16 %v9314
      %v10549 = vunpack.c.h.b16 %v9314
      %v10550 = vunpack.c.l.b16 %v9315
      %v10551 = vunpack.c.h.b16 %v9315
      %v10552 = vunpack.c.l.b16 %v9316
      %v10553 = vunpack.c.h.b16 %v9316
      %v10554 = vunpack.c.l.b16 %v9317
      %v10555 = vunpack.c.h.b16 %v9317
      %v10556 = vunpack.c.l.b16 %v9318
      %v10557 = vunpack.c.h.b16 %v9318
      %v10558 = vunpack.c.l.b16 %v9319
      %v10559 = vunpack.c.h.b16 %v9319
      %v10560 = vunpack.c.l.b16 %v9320
      %v10561 = vunpack.c.h.b16 %v9320
      %v10562 = vunpack.c.l.b16 %v9321
      %v10563 = vunpack.c.h.b16 %v9321
      %v10564 = vunpack.c.l.b16 %v9322
      %v10565 = vunpack.c.h.b16 %v9322
      %v10566 = vunpack.c.l.b16 %v9323
      %v10567 = vunpack.c.h.b16 %v9323
      %v10568 = vunpack.c.l.b16 %v9324
      %v10569 = vunpack.c.h.b16 %v9324
      %v10570 = vunpack.c.l.b16 %v9325
      %v10571 = vunpack.c.h.b16 %v9325
      %v10572 = vunpack.c.l.b16 %v9326
      %v10573 = vunpack.c.h.b16 %v9326
      %v10574 = vunpack.c.l.b16 %v9327
      %v10575 = vunpack.c.h.b16 %v9327
      %v10576 = vunpack.c.l.b16 %v9328
      %v10577 = vunpack.c.h.b16 %v9328
      %v10578 = vunpack.c.l.b16 %v9329
      %v10579 = vunpack.c.h.b16 %v9329
      %v10580 = vunpack.c.l.b16 %v9330
      %v10581 = vunpack.c.h.b16 %v9330
      %v10582 = vunpack.c.l.b16 %v9331
      %v10583 = vunpack.c.h.b16 %v9331
      %v10584 = vunpack.c.l.b16 %v9332
      %v10585 = vunpack.c.h.b16 %v9332
      %v10586 = vunpack.c.l.b16 %v9333
      %v10587 = vunpack.c.h.b16 %v9333
      %v10588 = vunpack.c.l.b16 %v9334
      %v10589 = vunpack.c.h.b16 %v9334
      %v10590 = vunpack.c.l.b16 %v9335
      %v10591 = vunpack.c.h.b16 %v9335
      %v10592 = vunpack.c.l.b16 %v9336
      %v10593 = vunpack.c.h.b16 %v9336
      %v10594 = vunpack.c.l.b16 %v9337
      %v10595 = vunpack.c.h.b16 %v9337
      %v10596 = vunpack.c.l.b16 %v9338
      %v10597 = vunpack.c.h.b16 %v9338
      %v10598 = vunpack.c.l.b16 %v9339
      %v10599 = vunpack.c.h.b16 %v9339
      %v10600 = vunpack.c.l.b16 %v9340
      %v10601 = vunpack.c.h.b16 %v9340
      %v10602 = vunpack.c.l.b16 %v9341
      %v10603 = vunpack.c.h.b16 %v9341
      %v10604 = vunpack.c.l.b16 %v9342
      %v10605 = vunpack.c.h.b16 %v9342
      %v10606 = vunpack.c.l.b16 %v9343
      %v10607 = vunpack.c.h.b16 %v9343
      %v10608 = vunpack.c.l.b16 %v9344
      %v10609 = vunpack.c.h.b16 %v9344
      %v10610 = vunpack.c.l.b16 %v9345
      %v10611 = vunpack.c.h.b16 %v9345
      %v10612 = vunpack.c.l.b16 %v9346
      %v10613 = vunpack.c.h.b16 %v9346
      %v10614 = vunpack.c.l.b16 %v9347
      %v10615 = vunpack.c.h.b16 %v9347
      %v10616 = vunpack.c.l.b16 %v9348
      %v10617 = vunpack.c.h.b16 %v9348
      %v10618 = vunpack.c.l.b16 %v9349
      %v10619 = vunpack.c.h.b16 %v9349
      %v10620 = vunpack.c.l.b16 %v9350
      %v10621 = vunpack.c.h.b16 %v9350
      %v10622 = vunpack.c.l.b16 %v9351
      %v10623 = vunpack.c.h.b16 %v9351
      %v10624 = vunpack.c.l.b16 %v9352
      %v10625 = vunpack.c.h.b16 %v9352
      %v10626 = vunpack.c.l.b16 %v9353
      %v10627 = vunpack.c.h.b16 %v9353
      %v10628 = vunpack.c.l.b16 %v9354
      %v10629 = vunpack.c.h.b16 %v9354
      %v10630 = vunpack.c.l.b16 %v9355
      %v10631 = vunpack.c.h.b16 %v9355
      %v10632 = vunpack.c.l.b16 %v9356
      %v10633 = vunpack.c.h.b16 %v9356
      %v10634 = vunpack.c.l.b16 %v9357
      %v10635 = vunpack.c.h.b16 %v9357
      %v10636 = vunpack.c.l.b16 %v9358
      %v10637 = vunpack.c.h.b16 %v9358
      %v10638 = vunpack.c.l.b16 %v9359
      %v10639 = vunpack.c.h.b16 %v9359
      %v10640 = vunpack.c.l.b16 %v9360
      %v10641 = vunpack.c.h.b16 %v9360
      %v10642 = vunpack.c.l.b16 %v9361
      %v10643 = vunpack.c.h.b16 %v9361
      %v10644 = vunpack.c.l.b16 %v9362
      %v10645 = vunpack.c.h.b16 %v9362
      %v10646 = vunpack.c.l.b16 %v9363
      %v10647 = vunpack.c.h.b16 %v9363
      %v10648 = vunpack.c.l.b16 %v9364
      %v10649 = vunpack.c.h.b16 %v9364
      %v10650 = vunpack.c.l.b16 %v9365
      %v10651 = vunpack.c.h.b16 %v9365
      %v10652 = vunpack.c.l.b16 %v9366
      %v10653 = vunpack.c.h.b16 %v9366
      %v10654 = vunpack.c.l.b16 %v9367
      %v10655 = vunpack.c.h.b16 %v9367
      %v10656 = vunpack.c.l.b16 %v9368
      %v10657 = vunpack.c.h.b16 %v9368
      %v10658 = vunpack.c.l.b16 %v9369
      %v10659 = vunpack.c.h.b16 %v9369
      %v10660 = vunpack.c.l.b16 %v9370
      %v10661 = vunpack.c.h.b16 %v9370
      %v10662 = vunpack.c.l.b16 %v9371
      %v10663 = vunpack.c.h.b16 %v9371
      %v10664 = vunpack.c.l.b16 %v9372
      %v10665 = vunpack.c.h.b16 %v9372
      %v10666 = vunpack.c.l.b16 %v9373
      %v10667 = vunpack.c.h.b16 %v9373
      %v10668 = vunpack.c.l.b16 %v9374
      %v10669 = vunpack.c.h.b16 %v9374
      %v10670 = vunpack.c.l.b16 %v9375
      %v10671 = vunpack.c.h.b16 %v9375
      %v10672 = vunpack.c.l.b16 %v9376
      %v10673 = vunpack.c.h.b16 %v9376
      %v10674 = vunpack.c.l.b16 %v9377
      %v10675 = vunpack.c.h.b16 %v9377
      %v10676 = vunpack.c.l.b16 %v9378
      %v10677 = vunpack.c.h.b16 %v9378
      %v10678 = vunpack.c.l.b16 %v9379
      %v10679 = vunpack.c.h.b16 %v9379
      %v10680 = vunpack.c.l.b16 %v9380
      %v10681 = vunpack.c.h.b16 %v9380
      %v10682 = vunpack.c.l.b16 %v9381
      %v10683 = vunpack.c.h.b16 %v9381
      %v10684 = vunpack.c.l.b16 %v9382
      %v10685 = vunpack.c.h.b16 %v9382
      %v10686 = vunpack.c.l.b16 %v9383
      %v10687 = vunpack.c.h.b16 %v9383
      %v10688 = vunpack.c.l.b16 %v9384
      %v10689 = vunpack.c.h.b16 %v9384
      %v10690 = vunpack.c.l.b16 %v9385
      %v10691 = vunpack.c.h.b16 %v9385
      %v10692 = vunpack.c.l.b16 %v9386
      %v10693 = vunpack.c.h.b16 %v9386
      %v10694 = vunpack.c.l.b16 %v9387
      %v10695 = vunpack.c.h.b16 %v9387
      %v10696 = vunpack.c.l.b16 %v9388
      %v10697 = vunpack.c.h.b16 %v9388
      %v10698 = vunpack.c.l.b16 %v9389
      %v10699 = vunpack.c.h.b16 %v9389
      %v10700 = vunpack.c.l.b16 %v9390
      %v10701 = vunpack.c.h.b16 %v9390
      %v10702 = vunpack.c.l.b16 %v9391
      %v10703 = vunpack.c.h.b16 %v9391
      %v10704 = vunpack.c.l.b16 %v9392
      %v10705 = vunpack.c.h.b16 %v9392
      %v10706 = vunpack.c.l.b16 %v9393
      %v10707 = vunpack.c.h.b16 %v9393
      %v10708 = vunpack.c.l.b16 %v9394
      %v10709 = vunpack.c.h.b16 %v9394
      %v10710 = vunpack.c.l.b16 %v9395
      %v10711 = vunpack.c.h.b16 %v9395
      %v10712 = vunpack.c.l.b16 %v9396
      %v10713 = vunpack.c.h.b16 %v9396
      %v10714 = vunpack.c.l.b16 %v9397
      %v10715 = vunpack.c.h.b16 %v9397
      %v10716 = vunpack.c.l.b16 %v9398
      %v10717 = vunpack.c.h.b16 %v9398
      %v10718 = vunpack.c.l.b16 %v9399
      %v10719 = vunpack.c.h.b16 %v9399
      %v10720 = vunpack.c.l.b16 %v9400
      %v10721 = vunpack.c.h.b16 %v9400
      %v10722 = vunpack.c.l.b16 %v9401
      %v10723 = vunpack.c.h.b16 %v9401
      %v10724 = vunpack.c.l.b16 %v9402
      %v10725 = vunpack.c.h.b16 %v9402
      %v10726 = vunpack.c.l.b16 %v9403
      %v10727 = vunpack.c.h.b16 %v9403
      %v10728 = vunpack.c.l.b16 %v9404
      %v10729 = vunpack.c.h.b16 %v9404
      %v10730 = vunpack.c.l.b16 %v9405
      %v10731 = vunpack.c.h.b16 %v9405
      %v10732 = vunpack.c.l.b16 %v9406
      %v10733 = vunpack.c.h.b16 %v9406
      %v10734 = vunpack.c.l.b16 %v9407
      %v10735 = vunpack.c.h.b16 %v9407
      %v10736 = vunpack.c.l.b16 %v9408
      %v10737 = vunpack.c.h.b16 %v9408
      %v10738 = vunpack.c.l.b16 %v9409
      %v10739 = vunpack.c.h.b16 %v9409
      %v10740 = vunpack.c.l.b16 %v9410
      %v10741 = vunpack.c.h.b16 %v9410
      %v10742 = vunpack.c.l.b16 %v9411
      %v10743 = vunpack.c.h.b16 %v9411
      %v10744 = vunpack.c.l.b16 %v9412
      %v10745 = vunpack.c.h.b16 %v9412
      %v10746 = vunpack.c.l.b16 %v9413
      %v10747 = vunpack.c.h.b16 %v9413
      %v10748 = vunpack.c.l.b16 %v9414
      %v10749 = vunpack.c.h.b16 %v9414
      %v10750 = vunpack.c.l.b16 %v9415
      %v10751 = vunpack.c.h.b16 %v9415
      %v10752 = vunpack.c.l.b16 %v9416
      %v10753 = vunpack.c.h.b16 %v9416
      %v10754 = vunpack.c.l.b16 %v9417
      %v10755 = vunpack.c.h.b16 %v9417
      %v10756 = vunpack.c.l.b16 %v9418
      %v10757 = vunpack.c.h.b16 %v9418
      %v10758 = vunpack.c.l.b16 %v9419
      %v10759 = vunpack.c.h.b16 %v9419
      %v10760 = vunpack.c.l.b16 %v9420
      %v10761 = vunpack.c.h.b16 %v9420
      %v10762 = vunpack.c.l.b16 %v9421
      %v10763 = vunpack.c.h.b16 %v9421
      %v10764 = vunpack.c.l.b16 %v9422
      %v10765 = vunpack.c.h.b16 %v9422
      %v10766 = vunpack.c.l.b16 %v9423
      %v10767 = vunpack.c.h.b16 %v9423
      %v10768 = vunpack.c.l.b16 %v9424
      %v10769 = vunpack.c.h.b16 %v9424
      %v10770 = vunpack.c.l.b16 %v9425
      %v10771 = vunpack.c.h.b16 %v9425
      %v10772 = vunpack.c.l.b16 %v9426
      %v10773 = vunpack.c.h.b16 %v9426
      %v10774 = vunpack.c.l.b16 %v9427
      %v10775 = vunpack.c.h.b16 %v9427
      %v10776 = vunpack.c.l.b16 %v9428
      %v10777 = vunpack.c.h.b16 %v9428
      %v10778 = vunpack.c.l.b16 %v9429
      %v10779 = vunpack.c.h.b16 %v9429
      %v10780 = vunpack.c.l.b16 %v9430
      %v10781 = vunpack.c.h.b16 %v9430
      %v10782 = vunpack.c.l.b16 %v9431
      %v10783 = vunpack.c.h.b16 %v9431
      %v10784 = vunpack.c.l.b16 %v9432
      %v10785 = vunpack.c.h.b16 %v9432
      %v10786 = vunpack.c.l.b16 %v9433
      %v10787 = vunpack.c.h.b16 %v9433
      %v10788 = vunpack.c.l.b16 %v9434
      %v10789 = vunpack.c.h.b16 %v9434
      %v10790 = vunpack.c.l.b16 %v9435
      %v10791 = vunpack.c.h.b16 %v9435
      %v10792 = vunpack.c.l.b16 %v9436
      %v10793 = vunpack.c.h.b16 %v9436
      %v10794 = vunpack.c.l.b16 %v9437
      %v10795 = vunpack.c.h.b16 %v9437
      %v10796 = vunpack.c.l.b16 %v9438
      %v10797 = vunpack.c.h.b16 %v9438
      %v10798 = vunpack.c.l.b16 %v9439
      %v10799 = vunpack.c.h.b16 %v9439
      %v10800 = vunpack.c.l.b16 %v9440
      %v10801 = vunpack.c.h.b16 %v9440
      %v10802 = vunpack.c.l.b16 %v9441
      %v10803 = vunpack.c.h.b16 %v9441
      %v10804 = vunpack.c.l.b16 %v9442
      %v10805 = vunpack.c.h.b16 %v9442
      %v10806 = vunpack.c.l.b16 %v9443
      %v10807 = vunpack.c.h.b16 %v9443
      %v10808 = vunpack.c.l.b16 %v9444
      %v10809 = vunpack.c.h.b16 %v9444
      %v10810 = vunpack.c.l.b16 %v9445
      %v10811 = vunpack.c.h.b16 %v9445
      %v10812 = vunpack.c.l.b16 %v9446
      %v10813 = vunpack.c.h.b16 %v9446
      %v10814 = vunpack.c.l.b16 %v9447
      %v10815 = vunpack.c.h.b16 %v9447
      %v10816 = vunpack.c.l.b16 %v9448
      %v10817 = vunpack.c.h.b16 %v9448
      %v10818 = vunpack.c.l.b16 %v9449
      %v10819 = vunpack.c.h.b16 %v9449
      %v10820 = vunpack.c.l.b16 %v9450
      %v10821 = vunpack.c.h.b16 %v9450
      %v10822 = vunpack.c.l.b16 %v9451
      %v10823 = vunpack.c.h.b16 %v9451
      %v10824 = vunpack.c.l.b16 %v9452
      %v10825 = vunpack.c.h.b16 %v9452
      %v10826 = vunpack.c.l.b16 %v9453
      %v10827 = vunpack.c.h.b16 %v9453
      %v10828 = vunpack.c.l.b16 %v9454
      %v10829 = vunpack.c.h.b16 %v9454
      %v10830 = vunpack.c.l.b16 %v9455
      %v10831 = vunpack.c.h.b16 %v9455
      %v10832 = vunpack.c.l.b16 %v9456
      %v10833 = vunpack.c.h.b16 %v9456
      %v10834 = vunpack.c.l.b16 %v9457
      %v10835 = vunpack.c.h.b16 %v9457
      %v10836 = vunpack.c.l.b16 %v9458
      %v10837 = vunpack.c.h.b16 %v9458
      %v10838 = vunpack.c.l.b16 %v9459
      %v10839 = vunpack.c.h.b16 %v9459
      %v10840 = vunpack.c.l.b16 %v9460
      %v10841 = vunpack.c.h.b16 %v9460
      %v10842 = vunpack.c.l.b16 %v9461
      %v10843 = vunpack.c.h.b16 %v9461
      %v10844 = vunpack.c.l.b16 %v9462
      %v10845 = vunpack.c.h.b16 %v9462
      %v10846 = vunpack.c.l.b16 %v9463
      %v10847 = vunpack.c.h.b16 %v9463
      %v10848 = vunpack.c.l.b16 %v9464
      %v10849 = vunpack.c.h.b16 %v9464
      %v10850 = vunpack.c.l.b16 %v9465
      %v10851 = vunpack.c.h.b16 %v9465
      %v10852 = vunpack.c.l.b16 %v9466
      %v10853 = vunpack.c.h.b16 %v9466
      %v10854 = vunpack.c.l.b16 %v9467
      %v10855 = vunpack.c.h.b16 %v9467
      %v10856 = vunpack.c.l.b16 %v9468
      %v10857 = vunpack.c.h.b16 %v9468
      %v10858 = vunpack.c.l.b16 %v9469
      %v10859 = vunpack.c.h.b16 %v9469
      %v10860 = vunpack.c.l.b16 %v9470
      %v10861 = vunpack.c.h.b16 %v9470
      %v10862 = vunpack.c.l.b16 %v9471
      %v10863 = vunpack.c.h.b16 %v9471
      %v10864 = vunpack.c.l.b16 %v9472
      %v10865 = vunpack.c.h.b16 %v9472
      %v10866 = vunpack.c.l.b16 %v9473
      %v10867 = vunpack.c.h.b16 %v9473
      %v10868 = vunpack.c.l.b16 %v9474
      %v10869 = vunpack.c.h.b16 %v9474
      %v10870 = vunpack.c.l.b16 %v9475
      %v10871 = vunpack.c.h.b16 %v9475
      %v10872 = vunpack.c.l.b16 %v9476
      %v10873 = vunpack.c.h.b16 %v9476
      %v10874 = vunpack.c.l.b16 %v9477
      %v10875 = vunpack.c.h.b16 %v9477
      %v10876 = vunpack.c.l.b16 %v9478
      %v10877 = vunpack.c.h.b16 %v9478
      %v10878 = vunpack.c.l.b16 %v9479
      %v10879 = vunpack.c.h.b16 %v9479
      %v10880 = vunpack.c.l.b16 %v9480
      %v10881 = vunpack.c.h.b16 %v9480
      %v10882 = vunpack.c.l.b16 %v9481
      %v10883 = vunpack.c.h.b16 %v9481
      %v10884 = vunpack.c.l.b16 %v9482
      %v10885 = vunpack.c.h.b16 %v9482
      %v10886 = vunpack.c.l.b16 %v9483
      %v10887 = vunpack.c.h.b16 %v9483
      %v10888 = vunpack.c.l.b16 %v9484
      %v10889 = vunpack.c.h.b16 %v9484
      %v10890 = vunpack.c.l.b16 %v9485
      %v10891 = vunpack.c.h.b16 %v9485
      %v10892 = vunpack.c.l.b16 %v9486
      %v10893 = vunpack.c.h.b16 %v9486
      %v10894 = vunpack.c.l.b16 %v9487
      %v10895 = vunpack.c.h.b16 %v9487
      %v10896 = vunpack.c.l.b16 %v9488
      %v10897 = vunpack.c.h.b16 %v9488
      %v10898 = vunpack.c.l.b16 %v9489
      %v10899 = vunpack.c.h.b16 %v9489
      %v10900 = vunpack.c.l.b16 %v9490
      %v10901 = vunpack.c.h.b16 %v9490
      %v10902 = vunpack.c.l.b16 %v9491
      %v10903 = vunpack.c.h.b16 %v9491
      %v10904 = vunpack.c.l.b16 %v9492
      %v10905 = vunpack.c.h.b16 %v9492
      %v10906 = vunpack.c.l.b16 %v9493
      %v10907 = vunpack.c.h.b16 %v9493
      %v10908 = vunpack.c.l.b16 %v9494
      %v10909 = vunpack.c.h.b16 %v9494
      %v10910 = vunpack.c.l.b16 %v9495
      %v10911 = vunpack.c.h.b16 %v9495
      %v10912 = vunpack.c.l.b16 %v9496
      %v10913 = vunpack.c.h.b16 %v9496
      %v10914 = vunpack.c.l.b16 %v9497
      %v10915 = vunpack.c.h.b16 %v9497
      %v10916 = vunpack.c.l.b16 %v9498
      %v10917 = vunpack.c.h.b16 %v9498
      %v10918 = vunpack.c.l.b16 %v9499
      %v10919 = vunpack.c.h.b16 %v9499
      %v10920 = vunpack.c.l.b16 %v9500
      %v10921 = vunpack.c.h.b16 %v9500
      %v10922 = vunpack.c.l.b16 %v9501
      %v10923 = vunpack.c.h.b16 %v9501
      %v10924 = vunpack.c.l.b16 %v9502
      %v10925 = vunpack.c.h.b16 %v9502
      %v10926 = vunpack.c.l.b16 %v9503
      %v10927 = vunpack.c.h.b16 %v9503
      %v10928 = vunpack.c.l.b16 %v9504
      %v10929 = vunpack.c.h.b16 %v9504
      %v10930 = vunpack.c.l.b16 %v9505
      %v10931 = vunpack.c.h.b16 %v9505
      %v10932 = vunpack.c.l.b16 %v9506
      %v10933 = vunpack.c.h.b16 %v9506
      %v10934 = vunpack.c.l.b16 %v9507
      %v10935 = vunpack.c.h.b16 %v9507
      %v10936 = vunpack.c.l.b16 %v9508
      %v10937 = vunpack.c.h.b16 %v9508
      %v10938 = vunpack.c.l.b16 %v9509
      %v10939 = vunpack.c.h.b16 %v9509
      %v10940 = vunpack.c.l.b16 %v9510
      %v10941 = vunpack.c.h.b16 %v9510
      %v10942 = vunpack.c.l.b16 %v9511
      %v10943 = vunpack.c.h.b16 %v9511
      %v10944 = vunpack.c.l.b16 %v9512
      %v10945 = vunpack.c.h.b16 %v9512
      %v10946 = vunpack.c.l.b16 %v9513
      %v10947 = vunpack.c.h.b16 %v9513
      %v10948 = vunpack.c.l.b16 %v9514
      %v10949 = vunpack.c.h.b16 %v9514
      %v10950 = vunpack.c.l.b16 %v9515
      %v10951 = vunpack.c.h.b16 %v9515
      %v10952 = vunpack.c.l.b16 %v9516
      %v10953 = vunpack.c.h.b16 %v9516
      %v10954 = vunpack.c.l.b16 %v9517
      %v10955 = vunpack.c.h.b16 %v9517
      %v10956 = vunpack.c.l.b16 %v9518
      %v10957 = vunpack.c.h.b16 %v9518
      %v10958 = vunpack.c.l.b16 %v9519
      %v10959 = vunpack.c.h.b16 %v9519
      %v10960 = vunpack.c.l.b16 %v9520
      %v10961 = vunpack.c.h.b16 %v9520
      %v10962 = vunpack.c.l.b16 %v9521
      %v10963 = vunpack.c.h.b16 %v9521
      %v10964 = vunpack.c.l.b16 %v9522
      %v10965 = vunpack.c.h.b16 %v9522
      %v10966 = vunpack.c.l.b16 %v9523
      %v10967 = vunpack.c.h.b16 %v9523
      %v10968 = vunpack.c.l.b16 %v9524
      %v10969 = vunpack.c.h.b16 %v9524
      %v10970 = vunpack.c.l.b16 %v9525
      %v10971 = vunpack.c.h.b16 %v9525
      %v10972 = vunpack.c.l.b16 %v9526
      %v10973 = vunpack.c.h.b16 %v9526
      %v10974 = vunpack.c.l.b16 %v9527
      %v10975 = vunpack.c.h.b16 %v9527
      %v10976 = vunpack.c.l.b16 %v9528
      %v10977 = vunpack.c.h.b16 %v9528
      %v10978 = vunpack.c.l.b16 %v9529
      %v10979 = vunpack.c.h.b16 %v9529
      %v10980 = vunpack.c.l.b16 %v9530
      %v10981 = vunpack.c.h.b16 %v9530
      %v10982 = vunpack.c.l.b16 %v9531
      %v10983 = vunpack.c.h.b16 %v9531
      %v10984 = vunpack.c.l.b16 %v9532
      %v10985 = vunpack.c.h.b16 %v9532
      %v10986 = vunpack.c.l.b16 %v9533
      %v10987 = vunpack.c.h.b16 %v9533
      %v10988 = vunpack.c.l.b16 %v9534
      %v10989 = vunpack.c.h.b16 %v9534
      %v10990 = vunpack.c.l.b16 %v9535
      %v10991 = vunpack.c.h.b16 %v9535
      %v10992 = vunpack.c.l.b16 %v9536
      %v10993 = vunpack.c.h.b16 %v9536
      %v10994 = vunpack.c.l.b16 %v9537
      %v10995 = vunpack.c.h.b16 %v9537
      %v10996 = vunpack.c.l.b16 %v9538
      %v10997 = vunpack.c.h.b16 %v9538
      %v10998 = vunpack.c.l.b16 %v9539
      %v10999 = vunpack.c.h.b16 %v9539
      %v11000 = vunpack.c.l.b16 %v9540
      %v11001 = vunpack.c.h.b16 %v9540
      %v11002 = vunpack.c.l.b16 %v9541
      %v11003 = vunpack.c.h.b16 %v9541
      %v11004 = vunpack.c.l.b16 %v9542
      %v11005 = vunpack.c.h.b16 %v9542
      %v11006 = vunpack.c.l.b16 %v9543
      %v11007 = vunpack.c.h.b16 %v9543
      %v11008 = vunpack.c.l.b16 %v9544
      %v11009 = vunpack.c.h.b16 %v9544
      %v11010 = vunpack.c.l.b16 %v9545
      %v11011 = vunpack.c.h.b16 %v9545
      %v11012 = vunpack.c.l.b16 %v9546
      %v11013 = vunpack.c.h.b16 %v9546
      %v11014 = vunpack.c.l.b16 %v9547
      %v11015 = vunpack.c.h.b16 %v9547
      %v11016 = vunpack.c.l.b16 %v9548
      %v11017 = vunpack.c.h.b16 %v9548
      %v11018 = vunpack.c.l.b16 %v9549
      %v11019 = vunpack.c.h.b16 %v9549
      %v11020 = vunpack.c.l.b16 %v9550
      %v11021 = vunpack.c.h.b16 %v9550
      %v11022 = vunpack.c.l.b16 %v9551
      %v11023 = vunpack.c.h.b16 %v9551
      %v11024 = vunpack.c.l.b16 %v9552
      %v11025 = vunpack.c.h.b16 %v9552
      %v11026 = vunpack.c.l.b16 %v9553
      %v11027 = vunpack.c.h.b16 %v9553
      %v11028 = vunpack.c.l.b16 %v9554
      %v11029 = vunpack.c.h.b16 %v9554
      %v11030 = vunpack.c.l.b16 %v9555
      %v11031 = vunpack.c.h.b16 %v9555
      %v11032 = vunpack.c.l.b16 %v9556
      %v11033 = vunpack.c.h.b16 %v9556
      %v11034 = vunpack.c.l.b16 %v9557
      %v11035 = vunpack.c.h.b16 %v9557
      %v11036 = vunpack.c.l.b16 %v9558
      %v11037 = vunpack.c.h.b16 %v9558
      %v11038 = vunpack.c.l.b16 %v9559
      %v11039 = vunpack.c.h.b16 %v9559
      %v11040 = vunpack.c.l.b16 %v9560
      %v11041 = vunpack.c.h.b16 %v9560
      %v11042 = vunpack.c.l.b16 %v9561
      %v11043 = vunpack.c.h.b16 %v9561
      %v11044 = vunpack.c.l.b16 %v9562
      %v11045 = vunpack.c.h.b16 %v9562
      %v11046 = vunpack.c.l.b16 %v9563
      %v11047 = vunpack.c.h.b16 %v9563
      %v11048 = vunpack.c.l.b16 %v9564
      %v11049 = vunpack.c.h.b16 %v9564
      %v11050 = vunpack.c.l.b16 %v9565
      %v11051 = vunpack.c.h.b16 %v9565
      %v11052 = vunpack.c.l.b16 %v9566
      %v11053 = vunpack.c.h.b16 %v9566
      %v11054 = vunpack.c.l.b16 %v9567
      %v11055 = vunpack.c.h.b16 %v9567
      %v11056 = vunpack.c.l.b16 %v9568
      %v11057 = vunpack.c.h.b16 %v9568
      %v11058 = vunpack.c.l.b16 %v9569
      %v11059 = vunpack.c.h.b16 %v9569
      %v11060 = vunpack.c.l.b16 %v9570
      %v11061 = vunpack.c.h.b16 %v9570
      %v11062 = vunpack.c.l.b16 %v9571
      %v11063 = vunpack.c.h.b16 %v9571
      %v11064 = vunpack.c.l.b16 %v9572
      %v11065 = vunpack.c.h.b16 %v9572
      %v11066 = vunpack.c.l.b16 %v9573
      %v11067 = vunpack.c.h.b16 %v9573
      %v11068 = vunpack.c.l.b16 %v9574
      %v11069 = vunpack.c.h.b16 %v9574
      %v11070 = vunpack.c.l.b16 %v9575
      %v11071 = vunpack.c.h.b16 %v9575
      %v11072 = vunpack.c.l.b16 %v9576
      %v11073 = vunpack.c.h.b16 %v9576
      %v11074 = vunpack.c.l.b16 %v9577
      %v11075 = vunpack.c.h.b16 %v9577
      %v11076 = vunpack.c.l.b16 %v9578
      %v11077 = vunpack.c.h.b16 %v9578
      %v11078 = vunpack.c.l.b16 %v9579
      %v11079 = vunpack.c.h.b16 %v9579
      %v11080 = vunpack.c.l.b16 %v9580
      %v11081 = vunpack.c.h.b16 %v9580
      %v11082 = vunpack.c.l.b16 %v9581
      %v11083 = vunpack.c.h.b16 %v9581
      %v11084 = vunpack.c.l.b16 %v9582
      %v11085 = vunpack.c.h.b16 %v9582
      %v11086 = vunpack.c.l.b16 %v9583
      %v11087 = vunpack.c.h.b16 %v9583
      %v11088 = vunpack.c.l.b16 %v9584
      %v11089 = vunpack.c.h.b16 %v9584
      %v11090 = vunpack.c.l.b16 %v9585
      %v11091 = vunpack.c.h.b16 %v9585
      %v11092 = vunpack.c.l.b16 %v9586
      %v11093 = vunpack.c.h.b16 %v9586
      %v11094 = vunpack.c.l.b16 %v9587
      %v11095 = vunpack.c.h.b16 %v9587
      %v11096 = vunpack.c.l.b16 %v9588
      %v11097 = vunpack.c.h.b16 %v9588
      %v11098 = vunpack.c.l.b16 %v9589
      %v11099 = vunpack.c.h.b16 %v9589
      %v11100 = vunpack.c.l.b16 %v9590
      %v11101 = vunpack.c.h.b16 %v9590
      %v11102 = vunpack.c.l.b16 %v9591
      %v11103 = vunpack.c.h.b16 %v9591
      %v11104 = vunpack.c.l.b16 %v9592
      %v11105 = vunpack.c.h.b16 %v9592
      %v11106 = vunpack.c.l.b16 %v9593
      %v11107 = vunpack.c.h.b16 %v9593
      %v11108 = vunpack.c.l.b16 %v9594
      %v11109 = vunpack.c.h.b16 %v9594
      %v11110 = vunpack.c.l.b16 %v9595
      %v11111 = vunpack.c.h.b16 %v9595
      %v11112 = vunpack.c.l.b16 %v9596
      %v11113 = vunpack.c.h.b16 %v9596
      %v11114 = vunpack.c.l.b16 %v9597
      %v11115 = vunpack.c.h.b16 %v9597
      %v11116 = vunpack.c.l.b16 %v9598
      %v11117 = vunpack.c.h.b16 %v9598
      %v11118 = vunpack.c.l.b16 %v9599
      %v11119 = vunpack.c.h.b16 %v9599
      %v11120 = vunpack.c.l.b16 %v9600
      %v11121 = vunpack.c.h.b16 %v9600
      %v11122 = vunpack.c.l.b16 %v9601
      %v11123 = vunpack.c.h.b16 %v9601
      %v11124 = vunpack.c.l.b16 %v9602
      %v11125 = vunpack.c.h.b16 %v9602
      %v11126 = vunpack.c.l.b16 %v9603
      %v11127 = vunpack.c.h.b16 %v9603
      %v11128 = vunpack.c.l.b16 %v9604
      %v11129 = vunpack.c.h.b16 %v9604
      %v11130 = vunpack.c.l.b16 %v9605
      %v11131 = vunpack.c.h.b16 %v9605
      %v11132 = vunpack.c.l.b16 %v9606
      %v11133 = vunpack.c.h.b16 %v9606
      %v11134 = vunpack.c.l.b16 %v9607
      %v11135 = vunpack.c.h.b16 %v9607
      %v11136 = vunpack.c.l.b16 %v9608
      %v11137 = vunpack.c.h.b16 %v9608
      %v11138 = vunpack.c.l.b16 %v9609
      %v11139 = vunpack.c.h.b16 %v9609
      %v11140 = vunpack.c.l.b16 %v9610
      %v11141 = vunpack.c.h.b16 %v9610
      %v11142 = vunpack.c.l.b16 %v9611
      %v11143 = vunpack.c.h.b16 %v9611
      %v11144 = vunpack.c.l.b16 %v9612
      %v11145 = vunpack.c.h.b16 %v9612
      %v11146 = vunpack.c.l.b16 %v9613
      %v11147 = vunpack.c.h.b16 %v9613
      %v11148 = vunpack.c.l.b16 %v9614
      %v11149 = vunpack.c.h.b16 %v9614
      %v11150 = vunpack.c.l.b16 %v9615
      %v11151 = vunpack.c.h.b16 %v9615
      %v11152 = vunpack.c.l.b16 %v9616
      %v11153 = vunpack.c.h.b16 %v9616
      %v11154 = vunpack.c.l.b16 %v9617
      %v11155 = vunpack.c.h.b16 %v9617
      %v11156 = vunpack.c.l.b16 %v9618
      %v11157 = vunpack.c.h.b16 %v9618
      %v11158 = vunpack.c.l.b16 %v9619
      %v11159 = vunpack.c.h.b16 %v9619
      %v11160 = vunpack.c.l.b16 %v9620
      %v11161 = vunpack.c.h.b16 %v9620
      %v11162 = vunpack.c.l.b16 %v9621
      %v11163 = vunpack.c.h.b16 %v9621
      %v11164 = vunpack.c.l.b16 %v9622
      %v11165 = vunpack.c.h.b16 %v9622
      %v11166 = vunpack.c.l.b16 %v9623
      %v11167 = vunpack.c.h.b16 %v9623
      %v11168 = vunpack.c.l.b16 %v9624
      %v11169 = vunpack.c.h.b16 %v9624
      %v11170 = vunpack.c.l.b16 %v9625
      %v11171 = vunpack.c.h.b16 %v9625
      %v11172 = vunpack.c.l.b16 %v9626
      %v11173 = vunpack.c.h.b16 %v9626
      %v11174 = vunpack.c.l.b16 %v9627
      %v11175 = vunpack.c.h.b16 %v9627
      %v11176 = vunpack.c.l.b16 %v9628
      %v11177 = vunpack.c.h.b16 %v9628
      %v11178 = vunpack.c.l.b16 %v9629
      %v11179 = vunpack.c.h.b16 %v9629
      %v11180 = vunpack.c.l.b16 %v9630
      %v11181 = vunpack.c.h.b16 %v9630
      %v11182 = vunpack.c.l.b16 %v9631
      %v11183 = vunpack.c.h.b16 %v9631
      %v11184 = vunpack.c.l.b16 %v9632
      %v11185 = vunpack.c.h.b16 %v9632
      %v11186 = vunpack.c.l.b16 %v9633
      %v11187 = vunpack.c.h.b16 %v9633
      %v11188 = vunpack.c.l.b16 %v9634
      %v11189 = vunpack.c.h.b16 %v9634
      %v11190 = vunpack.c.l.b16 %v9635
      %v11191 = vunpack.c.h.b16 %v9635
      %v11192 = vunpack.c.l.b16 %v9636
      %v11193 = vunpack.c.h.b16 %v9636
      %v11194 = vunpack.c.l.b16 %v9637
      %v11195 = vunpack.c.h.b16 %v9637
      %v11196 = vpack.c.b16 %v10176, %v10172
      %v11197 = vpack.c.b16 %v10177, %v10173
      %v11198 = vpack.c.b16 %v10178, %v10174
      %v11199 = vpack.c.b16 %v10179, %v10175
      %v11200 = vpack.c.b16 %v10184, %v10180
      %v11201 = vpack.c.b16 %v10185, %v10181
      %v11202 = vpack.c.b16 %v10186, %v10182
      %v11203 = vpack.c.b16 %v10187, %v10183
      %v11204 = vpack.c.b16 %v10192, %v10188
      %v11205 = vpack.c.b16 %v10193, %v10189
      %v11206 = vpack.c.b16 %v10194, %v10190
      %v11207 = vpack.c.b16 %v10195, %v10191
      %v11208 = vpack.c.b16 %v10200, %v10196
      %v11209 = vpack.c.b16 %v10201, %v10197
      %v11210 = vpack.c.b16 %v10202, %v10198
      %v11211 = vpack.c.b16 %v10203, %v10199
      %v11212 = vpack.c.b16 %v10208, %v10204
      %v11213 = vpack.c.b16 %v10209, %v10205
      %v11214 = vpack.c.b16 %v10210, %v10206
      %v11215 = vpack.c.b16 %v10211, %v10207
      %v11216 = vpack.c.b16 %v10216, %v10212
      %v11217 = vpack.c.b16 %v10217, %v10213
      %v11218 = vpack.c.b16 %v10218, %v10214
      %v11219 = vpack.c.b16 %v10219, %v10215
      %v11220 = vpack.c.b16 %v10224, %v10220
      %v11221 = vpack.c.b16 %v10225, %v10221
      %v11222 = vpack.c.b16 %v10226, %v10222
      %v11223 = vpack.c.b16 %v10227, %v10223
      %v11224 = vpack.c.b16 %v10232, %v10228
      %v11225 = vpack.c.b16 %v10233, %v10229
      %v11226 = vpack.c.b16 %v10234, %v10230
      %v11227 = vpack.c.b16 %v10235, %v10231
      %v11228 = vpack.c.b16 %v10240, %v10236
      %v11229 = vpack.c.b16 %v10241, %v10237
      %v11230 = vpack.c.b16 %v10242, %v10238
      %v11231 = vpack.c.b16 %v10243, %v10239
      %v11232 = vpack.c.b16 %v10248, %v10244
      %v11233 = vpack.c.b16 %v10249, %v10245
      %v11234 = vpack.c.b16 %v10250, %v10246
      %v11235 = vpack.c.b16 %v10251, %v10247
      %v11236 = vpack.c.b16 %v10256, %v10252
      %v11237 = vpack.c.b16 %v10257, %v10253
      %v11238 = vpack.c.b16 %v10258, %v10254
      %v11239 = vpack.c.b16 %v10259, %v10255
      %v11240 = vpack.c.b16 %v10264, %v10260
      %v11241 = vpack.c.b16 %v10265, %v10261
      %v11242 = vpack.c.b16 %v10266, %v10262
      %v11243 = vpack.c.b16 %v10267, %v10263
      %v11244 = vpack.c.b16 %v10272, %v10268
      %v11245 = vpack.c.b16 %v10273, %v10269
      %v11246 = vpack.c.b16 %v10274, %v10270
      %v11247 = vpack.c.b16 %v10275, %v10271
      %v11248 = vpack.c.b16 %v10280, %v10276
      %v11249 = vpack.c.b16 %v10281, %v10277
      %v11250 = vpack.c.b16 %v10282, %v10278
      %v11251 = vpack.c.b16 %v10283, %v10279
      %v11252 = vpack.c.b16 %v10288, %v10284
      %v11253 = vpack.c.b16 %v10289, %v10285
      %v11254 = vpack.c.b16 %v10290, %v10286
      %v11255 = vpack.c.b16 %v10291, %v10287
      %v11256 = vpack.c.b16 %v10296, %v10292
      %v11257 = vpack.c.b16 %v10297, %v10293
      %v11258 = vpack.c.b16 %v10298, %v10294
      %v11259 = vpack.c.b16 %v10299, %v10295
      %v11260 = vpack.c.b16 %v10304, %v10300
      %v11261 = vpack.c.b16 %v10305, %v10301
      %v11262 = vpack.c.b16 %v10306, %v10302
      %v11263 = vpack.c.b16 %v10307, %v10303
      %v11264 = vpack.c.b16 %v10312, %v10308
      %v11265 = vpack.c.b16 %v10313, %v10309
      %v11266 = vpack.c.b16 %v10314, %v10310
      %v11267 = vpack.c.b16 %v10315, %v10311
      %v11268 = vpack.c.b16 %v10320, %v10316
      %v11269 = vpack.c.b16 %v10321, %v10317
      %v11270 = vpack.c.b16 %v10322, %v10318
      %v11271 = vpack.c.b16 %v10323, %v10319
      %v11272 = vpack.c.b16 %v10328, %v10324
      %v11273 = vpack.c.b16 %v10329, %v10325
      %v11274 = vpack.c.b16 %v10330, %v10326
      %v11275 = vpack.c.b16 %v10331, %v10327
      %v11276 = vpack.c.b16 %v10336, %v10332
      %v11277 = vpack.c.b16 %v10337, %v10333
      %v11278 = vpack.c.b16 %v10338, %v10334
      %v11279 = vpack.c.b16 %v10339, %v10335
      %v11280 = vpack.c.b16 %v10344, %v10340
      %v11281 = vpack.c.b16 %v10345, %v10341
      %v11282 = vpack.c.b16 %v10346, %v10342
      %v11283 = vpack.c.b16 %v10347, %v10343
      %v11284 = vpack.c.b16 %v10352, %v10348
      %v11285 = vpack.c.b16 %v10353, %v10349
      %v11286 = vpack.c.b16 %v10354, %v10350
      %v11287 = vpack.c.b16 %v10355, %v10351
      %v11288 = vpack.c.b16 %v10360, %v10356
      %v11289 = vpack.c.b16 %v10361, %v10357
      %v11290 = vpack.c.b16 %v10362, %v10358
      %v11291 = vpack.c.b16 %v10363, %v10359
      %v11292 = vpack.c.b16 %v10368, %v10364
      %v11293 = vpack.c.b16 %v10369, %v10365
      %v11294 = vpack.c.b16 %v10370, %v10366
      %v11295 = vpack.c.b16 %v10371, %v10367
      %v11296 = vpack.c.b16 %v10376, %v10372
      %v11297 = vpack.c.b16 %v10377, %v10373
      %v11298 = vpack.c.b16 %v10378, %v10374
      %v11299 = vpack.c.b16 %v10379, %v10375
      %v11300 = vpack.c.b16 %v10384, %v10380
      %v11301 = vpack.c.b16 %v10385, %v10381
      %v11302 = vpack.c.b16 %v10386, %v10382
      %v11303 = vpack.c.b16 %v10387, %v10383
      %v11304 = vpack.c.b16 %v10392, %v10388
      %v11305 = vpack.c.b16 %v10393, %v10389
      %v11306 = vpack.c.b16 %v10394, %v10390
      %v11307 = vpack.c.b16 %v10395, %v10391
      %v11308 = vpack.c.b16 %v10400, %v10396
      %v11309 = vpack.c.b16 %v10401, %v10397
      %v11310 = vpack.c.b16 %v10402, %v10398
      %v11311 = vpack.c.b16 %v10403, %v10399
      %v11312 = vpack.c.b16 %v10408, %v10404
      %v11313 = vpack.c.b16 %v10409, %v10405
      %v11314 = vpack.c.b16 %v10410, %v10406
      %v11315 = vpack.c.b16 %v10411, %v10407
      %v11316 = vpack.c.b16 %v10416, %v10412
      %v11317 = vpack.c.b16 %v10417, %v10413
      %v11318 = vpack.c.b16 %v10418, %v10414
      %v11319 = vpack.c.b16 %v10419, %v10415
      %v11320 = vpack.c.b16 %v10424, %v10420
      %v11321 = vpack.c.b16 %v10425, %v10421
      %v11322 = vpack.c.b16 %v10426, %v10422
      %v11323 = vpack.c.b16 %v10427, %v10423
      %v11324 = vpack.c.b16 %v10432, %v10428
      %v11325 = vpack.c.b16 %v10433, %v10429
      %v11326 = vpack.c.b16 %v10434, %v10430
      %v11327 = vpack.c.b16 %v10435, %v10431
      %v11328 = vpack.c.b16 %v10440, %v10436
      %v11329 = vpack.c.b16 %v10441, %v10437
      %v11330 = vpack.c.b16 %v10442, %v10438
      %v11331 = vpack.c.b16 %v10443, %v10439
      %v11332 = vpack.c.b16 %v10448, %v10444
      %v11333 = vpack.c.b16 %v10449, %v10445
      %v11334 = vpack.c.b16 %v10450, %v10446
      %v11335 = vpack.c.b16 %v10451, %v10447
      %v11336 = vpack.c.b16 %v10456, %v10452
      %v11337 = vpack.c.b16 %v10457, %v10453
      %v11338 = vpack.c.b16 %v10458, %v10454
      %v11339 = vpack.c.b16 %v10459, %v10455
      %v11340 = vpack.c.b16 %v10464, %v10460
      %v11341 = vpack.c.b16 %v10465, %v10461
      %v11342 = vpack.c.b16 %v10466, %v10462
      %v11343 = vpack.c.b16 %v10467, %v10463
      %v11344 = vpack.c.b16 %v10472, %v10468
      %v11345 = vpack.c.b16 %v10473, %v10469
      %v11346 = vpack.c.b16 %v10474, %v10470
      %v11347 = vpack.c.b16 %v10475, %v10471
      %v11348 = vpack.c.b16 %v10480, %v10476
      %v11349 = vpack.c.b16 %v10481, %v10477
      %v11350 = vpack.c.b16 %v10482, %v10478
      %v11351 = vpack.c.b16 %v10483, %v10479
      %v11352 = vpack.c.b16 %v10488, %v10484
      %v11353 = vpack.c.b16 %v10489, %v10485
      %v11354 = vpack.c.b16 %v10490, %v10486
      %v11355 = vpack.c.b16 %v10491, %v10487
      %v11356 = vpack.c.b16 %v10496, %v10492
      %v11357 = vpack.c.b16 %v10497, %v10493
      %v11358 = vpack.c.b16 %v10498, %v10494
      %v11359 = vpack.c.b16 %v10499, %v10495
      %v11360 = vpack.c.b16 %v10504, %v10500
      %v11361 = vpack.c.b16 %v10505, %v10501
      %v11362 = vpack.c.b16 %v10506, %v10502
      %v11363 = vpack.c.b16 %v10507, %v10503
      %v11364 = vpack.c.b16 %v10512, %v10508
      %v11365 = vpack.c.b16 %v10513, %v10509
      %v11366 = vpack.c.b16 %v10514, %v10510
      %v11367 = vpack.c.b16 %v10515, %v10511
      %v11368 = vpack.c.b16 %v10520, %v10516
      %v11369 = vpack.c.b16 %v10521, %v10517
      %v11370 = vpack.c.b16 %v10522, %v10518
      %v11371 = vpack.c.b16 %v10523, %v10519
      %v11372 = vpack.c.b16 %v10528, %v10524
      %v11373 = vpack.c.b16 %v10529, %v10525
      %v11374 = vpack.c.b16 %v10530, %v10526
      %v11375 = vpack.c.b16 %v10531, %v10527
      %v11376 = vpack.c.b16 %v10536, %v10532
      %v11377 = vpack.c.b16 %v10537, %v10533
      %v11378 = vpack.c.b16 %v10538, %v10534
      %v11379 = vpack.c.b16 %v10539, %v10535
      %v11380 = vpack.c.b16 %v10544, %v10540
      %v11381 = vpack.c.b16 %v10545, %v10541
      %v11382 = vpack.c.b16 %v10546, %v10542
      %v11383 = vpack.c.b16 %v10547, %v10543
      %v11384 = vpack.c.b16 %v10552, %v10548
      %v11385 = vpack.c.b16 %v10553, %v10549
      %v11386 = vpack.c.b16 %v10554, %v10550
      %v11387 = vpack.c.b16 %v10555, %v10551
      %v11388 = vpack.c.b16 %v10560, %v10556
      %v11389 = vpack.c.b16 %v10561, %v10557
      %v11390 = vpack.c.b16 %v10562, %v10558
      %v11391 = vpack.c.b16 %v10563, %v10559
      %v11392 = vpack.c.b16 %v10568, %v10564
      %v11393 = vpack.c.b16 %v10569, %v10565
      %v11394 = vpack.c.b16 %v10570, %v10566
      %v11395 = vpack.c.b16 %v10571, %v10567
      %v11396 = vpack.c.b16 %v10576, %v10572
      %v11397 = vpack.c.b16 %v10577, %v10573
      %v11398 = vpack.c.b16 %v10578, %v10574
      %v11399 = vpack.c.b16 %v10579, %v10575
      %v11400 = vpack.c.b16 %v10584, %v10580
      %v11401 = vpack.c.b16 %v10585, %v10581
      %v11402 = vpack.c.b16 %v10586, %v10582
      %v11403 = vpack.c.b16 %v10587, %v10583
      %v11404 = vpack.c.b16 %v10592, %v10588
      %v11405 = vpack.c.b16 %v10593, %v10589
      %v11406 = vpack.c.b16 %v10594, %v10590
      %v11407 = vpack.c.b16 %v10595, %v10591
      %v11408 = vpack.c.b16 %v10600, %v10596
      %v11409 = vpack.c.b16 %v10601, %v10597
      %v11410 = vpack.c.b16 %v10602, %v10598
      %v11411 = vpack.c.b16 %v10603, %v10599
      %v11412 = vpack.c.b16 %v10608, %v10604
      %v11413 = vpack.c.b16 %v10609, %v10605
      %v11414 = vpack.c.b16 %v10610, %v10606
      %v11415 = vpack.c.b16 %v10611, %v10607
      %v11416 = vpack.c.b16 %v10616, %v10612
      %v11417 = vpack.c.b16 %v10617, %v10613
      %v11418 = vpack.c.b16 %v10618, %v10614
      %v11419 = vpack.c.b16 %v10619, %v10615
      %v11420 = vpack.c.b16 %v10624, %v10620
      %v11421 = vpack.c.b16 %v10625, %v10621
      %v11422 = vpack.c.b16 %v10626, %v10622
      %v11423 = vpack.c.b16 %v10627, %v10623
      %v11424 = vpack.c.b16 %v10632, %v10628
      %v11425 = vpack.c.b16 %v10633, %v10629
      %v11426 = vpack.c.b16 %v10634, %v10630
      %v11427 = vpack.c.b16 %v10635, %v10631
      %v11428 = vpack.c.b16 %v10640, %v10636
      %v11429 = vpack.c.b16 %v10641, %v10637
      %v11430 = vpack.c.b16 %v10642, %v10638
      %v11431 = vpack.c.b16 %v10643, %v10639
      %v11432 = vpack.c.b16 %v10648, %v10644
      %v11433 = vpack.c.b16 %v10649, %v10645
      %v11434 = vpack.c.b16 %v10650, %v10646
      %v11435 = vpack.c.b16 %v10651, %v10647
      %v11436 = vpack.c.b16 %v10656, %v10652
      %v11437 = vpack.c.b16 %v10657, %v10653
      %v11438 = vpack.c.b16 %v10658, %v10654
      %v11439 = vpack.c.b16 %v10659, %v10655
      %v11440 = vpack.c.b16 %v10664, %v10660
      %v11441 = vpack.c.b16 %v10665, %v10661
      %v11442 = vpack.c.b16 %v10666, %v10662
      %v11443 = vpack.c.b16 %v10667, %v10663
      %v11444 = vpack.c.b16 %v10672, %v10668
      %v11445 = vpack.c.b16 %v10673, %v10669
      %v11446 = vpack.c.b16 %v10674, %v10670
      %v11447 = vpack.c.b16 %v10675, %v10671
      %v11448 = vpack.c.b16 %v10680, %v10676
      %v11449 = vpack.c.b16 %v10681, %v10677
      %v11450 = vpack.c.b16 %v10682, %v10678
      %v11451 = vpack.c.b16 %v10683, %v10679
      %v11452 = vpack.c.b16 %v10688, %v10684
      %v11453 = vpack.c.b16 %v10689, %v10685
      %v11454 = vpack.c.b16 %v10690, %v10686
      %v11455 = vpack.c.b16 %v10691, %v10687
      %v11456 = vpack.c.b16 %v10696, %v10692
      %v11457 = vpack.c.b16 %v10697, %v10693
      %v11458 = vpack.c.b16 %v10698, %v10694
      %v11459 = vpack.c.b16 %v10699, %v10695
      %v11460 = vpack.c.b16 %v10704, %v10700
      %v11461 = vpack.c.b16 %v10705, %v10701
      %v11462 = vpack.c.b16 %v10706, %v10702
      %v11463 = vpack.c.b16 %v10707, %v10703
      %v11464 = vpack.c.b16 %v10712, %v10708
      %v11465 = vpack.c.b16 %v10713, %v10709
      %v11466 = vpack.c.b16 %v10714, %v10710
      %v11467 = vpack.c.b16 %v10715, %v10711
      %v11468 = vpack.c.b16 %v10720, %v10716
      %v11469 = vpack.c.b16 %v10721, %v10717
      %v11470 = vpack.c.b16 %v10722, %v10718
      %v11471 = vpack.c.b16 %v10723, %v10719
      %v11472 = vpack.c.b16 %v10728, %v10724
      %v11473 = vpack.c.b16 %v10729, %v10725
      %v11474 = vpack.c.b16 %v10730, %v10726
      %v11475 = vpack.c.b16 %v10731, %v10727
      %v11476 = vpack.c.b16 %v10736, %v10732
      %v11477 = vpack.c.b16 %v10737, %v10733
      %v11478 = vpack.c.b16 %v10738, %v10734
      %v11479 = vpack.c.b16 %v10739, %v10735
      %v11480 = vpack.c.b16 %v10744, %v10740
      %v11481 = vpack.c.b16 %v10745, %v10741
      %v11482 = vpack.c.b16 %v10746, %v10742
      %v11483 = vpack.c.b16 %v10747, %v10743
      %v11484 = vpack.c.b16 %v10752, %v10748
      %v11485 = vpack.c.b16 %v10753, %v10749
      %v11486 = vpack.c.b16 %v10754, %v10750
      %v11487 = vpack.c.b16 %v10755, %v10751
      %v11488 = vpack.c.b16 %v10760, %v10756
      %v11489 = vpack.c.b16 %v10761, %v10757
      %v11490 = vpack.c.b16 %v10762, %v10758
      %v11491 = vpack.c.b16 %v10763, %v10759
      %v11492 = vpack.c.b16 %v10768, %v10764
      %v11493 = vpack.c.b16 %v10769, %v10765
      %v11494 = vpack.c.b16 %v10770, %v10766
      %v11495 = vpack.c.b16 %v10771, %v10767
      %v11496 = vpack.c.b16 %v10776, %v10772
      %v11497 = vpack.c.b16 %v10777, %v10773
      %v11498 = vpack.c.b16 %v10778, %v10774
      %v11499 = vpack.c.b16 %v10779, %v10775
      %v11500 = vpack.c.b16 %v10784, %v10780
      %v11501 = vpack.c.b16 %v10785, %v10781
      %v11502 = vpack.c.b16 %v10786, %v10782
      %v11503 = vpack.c.b16 %v10787, %v10783
      %v11504 = vpack.c.b16 %v10792, %v10788
      %v11505 = vpack.c.b16 %v10793, %v10789
      %v11506 = vpack.c.b16 %v10794, %v10790
      %v11507 = vpack.c.b16 %v10795, %v10791
      %v11508 = vpack.c.b16 %v10800, %v10796
      %v11509 = vpack.c.b16 %v10801, %v10797
      %v11510 = vpack.c.b16 %v10802, %v10798
      %v11511 = vpack.c.b16 %v10803, %v10799
      %v11512 = vpack.c.b16 %v10808, %v10804
      %v11513 = vpack.c.b16 %v10809, %v10805
      %v11514 = vpack.c.b16 %v10810, %v10806
      %v11515 = vpack.c.b16 %v10811, %v10807
      %v11516 = vpack.c.b16 %v10816, %v10812
      %v11517 = vpack.c.b16 %v10817, %v10813
      %v11518 = vpack.c.b16 %v10818, %v10814
      %v11519 = vpack.c.b16 %v10819, %v10815
      %v11520 = vpack.c.b16 %v10824, %v10820
      %v11521 = vpack.c.b16 %v10825, %v10821
      %v11522 = vpack.c.b16 %v10826, %v10822
      %v11523 = vpack.c.b16 %v10827, %v10823
      %v11524 = vpack.c.b16 %v10832, %v10828
      %v11525 = vpack.c.b16 %v10833, %v10829
      %v11526 = vpack.c.b16 %v10834, %v10830
      %v11527 = vpack.c.b16 %v10835, %v10831
      %v11528 = vpack.c.b16 %v10840, %v10836
      %v11529 = vpack.c.b16 %v10841, %v10837
      %v11530 = vpack.c.b16 %v10842, %v10838
      %v11531 = vpack.c.b16 %v10843, %v10839
      %v11532 = vpack.c.b16 %v10848, %v10844
      %v11533 = vpack.c.b16 %v10849, %v10845
      %v11534 = vpack.c.b16 %v10850, %v10846
      %v11535 = vpack.c.b16 %v10851, %v10847
      %v11536 = vpack.c.b16 %v10856, %v10852
      %v11537 = vpack.c.b16 %v10857, %v10853
      %v11538 = vpack.c.b16 %v10858, %v10854
      %v11539 = vpack.c.b16 %v10859, %v10855
      %v11540 = vpack.c.b16 %v10864, %v10860
      %v11541 = vpack.c.b16 %v10865, %v10861
      %v11542 = vpack.c.b16 %v10866, %v10862
      %v11543 = vpack.c.b16 %v10867, %v10863
      %v11544 = vpack.c.b16 %v10872, %v10868
      %v11545 = vpack.c.b16 %v10873, %v10869
      %v11546 = vpack.c.b16 %v10874, %v10870
      %v11547 = vpack.c.b16 %v10875, %v10871
      %v11548 = vpack.c.b16 %v10880, %v10876
      %v11549 = vpack.c.b16 %v10881, %v10877
      %v11550 = vpack.c.b16 %v10882, %v10878
      %v11551 = vpack.c.b16 %v10883, %v10879
      %v11552 = vpack.c.b16 %v10888, %v10884
      %v11553 = vpack.c.b16 %v10889, %v10885
      %v11554 = vpack.c.b16 %v10890, %v10886
      %v11555 = vpack.c.b16 %v10891, %v10887
      %v11556 = vpack.c.b16 %v10896, %v10892
      %v11557 = vpack.c.b16 %v10897, %v10893
      %v11558 = vpack.c.b16 %v10898, %v10894
      %v11559 = vpack.c.b16 %v10899, %v10895
      %v11560 = vpack.c.b16 %v10904, %v10900
      %v11561 = vpack.c.b16 %v10905, %v10901
      %v11562 = vpack.c.b16 %v10906, %v10902
      %v11563 = vpack.c.b16 %v10907, %v10903
      %v11564 = vpack.c.b16 %v10912, %v10908
      %v11565 = vpack.c.b16 %v10913, %v10909
      %v11566 = vpack.c.b16 %v10914, %v10910
      %v11567 = vpack.c.b16 %v10915, %v10911
      %v11568 = vpack.c.b16 %v10920, %v10916
      %v11569 = vpack.c.b16 %v10921, %v10917
      %v11570 = vpack.c.b16 %v10922, %v10918
      %v11571 = vpack.c.b16 %v10923, %v10919
      %v11572 = vpack.c.b16 %v10928, %v10924
      %v11573 = vpack.c.b16 %v10929, %v10925
      %v11574 = vpack.c.b16 %v10930, %v10926
      %v11575 = vpack.c.b16 %v10931, %v10927
      %v11576 = vpack.c.b16 %v10936, %v10932
      %v11577 = vpack.c.b16 %v10937, %v10933
      %v11578 = vpack.c.b16 %v10938, %v10934
      %v11579 = vpack.c.b16 %v10939, %v10935
      %v11580 = vpack.c.b16 %v10944, %v10940
      %v11581 = vpack.c.b16 %v10945, %v10941
      %v11582 = vpack.c.b16 %v10946, %v10942
      %v11583 = vpack.c.b16 %v10947, %v10943
      %v11584 = vpack.c.b16 %v10952, %v10948
      %v11585 = vpack.c.b16 %v10953, %v10949
      %v11586 = vpack.c.b16 %v10954, %v10950
      %v11587 = vpack.c.b16 %v10955, %v10951
      %v11588 = vpack.c.b16 %v10960, %v10956
      %v11589 = vpack.c.b16 %v10961, %v10957
      %v11590 = vpack.c.b16 %v10962, %v10958
      %v11591 = vpack.c.b16 %v10963, %v10959
      %v11592 = vpack.c.b16 %v10968, %v10964
      %v11593 = vpack.c.b16 %v10969, %v10965
      %v11594 = vpack.c.b16 %v10970, %v10966
      %v11595 = vpack.c.b16 %v10971, %v10967
      %v11596 = vpack.c.b16 %v10976, %v10972
      %v11597 = vpack.c.b16 %v10977, %v10973
      %v11598 = vpack.c.b16 %v10978, %v10974
      %v11599 = vpack.c.b16 %v10979, %v10975
      %v11600 = vpack.c.b16 %v10984, %v10980
      %v11601 = vpack.c.b16 %v10985, %v10981
      %v11602 = vpack.c.b16 %v10986, %v10982
      %v11603 = vpack.c.b16 %v10987, %v10983
      %v11604 = vpack.c.b16 %v10992, %v10988
      %v11605 = vpack.c.b16 %v10993, %v10989
      %v11606 = vpack.c.b16 %v10994, %v10990
      %v11607 = vpack.c.b16 %v10995, %v10991
      %v11608 = vpack.c.b16 %v11000, %v10996
      %v11609 = vpack.c.b16 %v11001, %v10997
      %v11610 = vpack.c.b16 %v11002, %v10998
      %v11611 = vpack.c.b16 %v11003, %v10999
      %v11612 = vpack.c.b16 %v11008, %v11004
      %v11613 = vpack.c.b16 %v11009, %v11005
      %v11614 = vpack.c.b16 %v11010, %v11006
      %v11615 = vpack.c.b16 %v11011, %v11007
      %v11616 = vpack.c.b16 %v11016, %v11012
      %v11617 = vpack.c.b16 %v11017, %v11013
      %v11618 = vpack.c.b16 %v11018, %v11014
      %v11619 = vpack.c.b16 %v11019, %v11015
      %v11620 = vpack.c.b16 %v11024, %v11020
      %v11621 = vpack.c.b16 %v11025, %v11021
      %v11622 = vpack.c.b16 %v11026, %v11022
      %v11623 = vpack.c.b16 %v11027, %v11023
      %v11624 = vpack.c.b16 %v11032, %v11028
      %v11625 = vpack.c.b16 %v11033, %v11029
      %v11626 = vpack.c.b16 %v11034, %v11030
      %v11627 = vpack.c.b16 %v11035, %v11031
      %v11628 = vpack.c.b16 %v11040, %v11036
      %v11629 = vpack.c.b16 %v11041, %v11037
      %v11630 = vpack.c.b16 %v11042, %v11038
      %v11631 = vpack.c.b16 %v11043, %v11039
      %v11632 = vpack.c.b16 %v11048, %v11044
      %v11633 = vpack.c.b16 %v11049, %v11045
      %v11634 = vpack.c.b16 %v11050, %v11046
      %v11635 = vpack.c.b16 %v11051, %v11047
      %v11636 = vpack.c.b16 %v11056, %v11052
      %v11637 = vpack.c.b16 %v11057, %v11053
      %v11638 = vpack.c.b16 %v11058, %v11054
      %v11639 = vpack.c.b16 %v11059, %v11055
      %v11640 = vpack.c.b16 %v11064, %v11060
      %v11641 = vpack.c.b16 %v11065, %v11061
      %v11642 = vpack.c.b16 %v11066, %v11062
      %v11643 = vpack.c.b16 %v11067, %v11063
      %v11644 = vpack.c.b16 %v11072, %v11068
      %v11645 = vpack.c.b16 %v11073, %v11069
      %v11646 = vpack.c.b16 %v11074, %v11070
      %v11647 = vpack.c.b16 %v11075, %v11071
      %v11648 = vpack.c.b16 %v11080, %v11076
      %v11649 = vpack.c.b16 %v11081, %v11077
      %v11650 = vpack.c.b16 %v11082, %v11078
      %v11651 = vpack.c.b16 %v11083, %v11079
      %v11652 = vpack.c.b16 %v11088, %v11084
      %v11653 = vpack.c.b16 %v11089, %v11085
      %v11654 = vpack.c.b16 %v11090, %v11086
      %v11655 = vpack.c.b16 %v11091, %v11087
      %v11656 = vpack.c.b16 %v11096, %v11092
      %v11657 = vpack.c.b16 %v11097, %v11093
      %v11658 = vpack.c.b16 %v11098, %v11094
      %v11659 = vpack.c.b16 %v11099, %v11095
      %v11660 = vpack.c.b16 %v11104, %v11100
      %v11661 = vpack.c.b16 %v11105, %v11101
      %v11662 = vpack.c.b16 %v11106, %v11102
      %v11663 = vpack.c.b16 %v11107, %v11103
      %v11664 = vpack.c.b16 %v11112, %v11108
      %v11665 = vpack.c.b16 %v11113, %v11109
      %v11666 = vpack.c.b16 %v11114, %v11110
      %v11667 = vpack.c.b16 %v11115, %v11111
      %v11668 = vpack.c.b16 %v11120, %v11116
      %v11669 = vpack.c.b16 %v11121, %v11117
      %v11670 = vpack.c.b16 %v11122, %v11118
      %v11671 = vpack.c.b16 %v11123, %v11119
      %v11672 = vpack.c.b16 %v11128, %v11124
      %v11673 = vpack.c.b16 %v11129, %v11125
      %v11674 = vpack.c.b16 %v11130, %v11126
      %v11675 = vpack.c.b16 %v11131, %v11127
      %v11676 = vpack.c.b16 %v11136, %v11132
      %v11677 = vpack.c.b16 %v11137, %v11133
      %v11678 = vpack.c.b16 %v11138, %v11134
      %v11679 = vpack.c.b16 %v11139, %v11135
      %v11680 = vpack.c.b16 %v11144, %v11140
      %v11681 = vpack.c.b16 %v11145, %v11141
      %v11682 = vpack.c.b16 %v11146, %v11142
      %v11683 = vpack.c.b16 %v11147, %v11143
      %v11684 = vpack.c.b16 %v11152, %v11148
      %v11685 = vpack.c.b16 %v11153, %v11149
      %v11686 = vpack.c.b16 %v11154, %v11150
      %v11687 = vpack.c.b16 %v11155, %v11151
      %v11688 = vpack.c.b16 %v11160, %v11156
      %v11689 = vpack.c.b16 %v11161, %v11157
      %v11690 = vpack.c.b16 %v11162, %v11158
      %v11691 = vpack.c.b16 %v11163, %v11159
      %v11692 = vpack.c.b16 %v11168, %v11164
      %v11693 = vpack.c.b16 %v11169, %v11165
      %v11694 = vpack.c.b16 %v11170, %v11166
      %v11695 = vpack.c.b16 %v11171, %v11167
      %v11696 = vpack.c.b16 %v11176, %v11172
      %v11697 = vpack.c.b16 %v11177, %v11173
      %v11698 = vpack.c.b16 %v11178, %v11174
      %v11699 = vpack.c.b16 %v11179, %v11175
      %v11700 = vpack.c.b16 %v11184, %v11180
      %v11701 = vpack.c.b16 %v11185, %v11181
      %v11702 = vpack.c.b16 %v11186, %v11182
      %v11703 = vpack.c.b16 %v11187, %v11183
      %v11704 = vpack.c.b16 %v11192, %v11188
      %v11705 = vpack.c.b16 %v11193, %v11189
      %v11706 = vpack.c.b16 %v11194, %v11190
      %v11707 = vpack.c.b16 %v11195, %v11191
      %12220 = vmatprep.subr.bf16.mxu0 %v11225
      %12221 = vmatpush1.bf16.msra.mxu0 %v11224
      %12222 = vmatprep.subr.bf16.mxu0 %v11221
      %12223 = vmatpush1.bf16.msra.mxu0 %v11220
      %12224 = vmatprep.subr.bf16.mxu0 %v11217
      %12225 = vmatpush1.bf16.msra.mxu0 %v11216
      %12226 = vmatprep.subr.bf16.mxu0 %v11213
      %12227 = vmatpush1.bf16.msra.mxu0 %v11212
      %12228 = vmatprep.subr.bf16.mxu0 %v11209
      %12229 = vmatpush1.bf16.msra.mxu0 %v11208
      %12230 = vmatprep.subr.bf16.mxu0 %v11205
      %12231 = vmatpush1.bf16.msra.mxu0 %v11204
      %12232 = vmatprep.subr.bf16.mxu0 %v11201
      %12233 = vmatpush1.bf16.msra.mxu0 %v11200
      %12234 = vmatprep.subr.bf16.mxu0 %v11197
      %12235 = vmatpush1.bf16.msra.mxu0 %v11196
      %12236 = vmatprep.subr.bf16.mxu0 %v11257
      %12237 = vmatpush2.bf16.msra.mxu0 %v11256
      %12238 = vmatprep.subr.bf16.mxu0 %v11253
      %12239 = vmatpush2.bf16.msra.mxu0 %v11252
      %12240 = vmatprep.subr.bf16.mxu0 %v11249
      %12241 = vmatpush2.bf16.msra.mxu0 %v11248
      %12242 = vmatprep.subr.bf16.mxu0 %v11245
      %12243 = vmatpush2.bf16.msra.mxu0 %v11244
      %12244 = vmatprep.subr.bf16.mxu0 %v11241
      %12245 = vmatpush2.bf16.msra.mxu0 %v11240
      %12246 = vmatprep.subr.bf16.mxu0 %v11237
      %12247 = vmatpush2.bf16.msra.mxu0 %v11236
      %12248 = vmatprep.subr.bf16.mxu0 %v11233
      %12249 = vmatpush2.bf16.msra.mxu0 %v11232
      %12250 = vmatprep.subr.bf16.mxu0 %v11229
      %12251 = vmatpush2.bf16.msra.mxu0 %v11228
      %12252 = vmatprep.mubr.bf16.mxu0 %v9111
      %12253 = vmatmul.mubr.bf16.gmra.mxu0 %v9110
      %v12254 = vpop.f32.mrf.mxu0
      %v12255 = vadd.f32 %v9643, %v12254
      %v12256 = vpop.f32.mrf.mxu0
      %v12257 = vadd.f32 %v9647, %v12256
      %v12258 = vpop.f32.mrf.mxu0
      %v12259 = vpop.f32.mrf.mxu0
      %12260 = vdwg.mxu0
      %12261 = vmatprep.subr.bf16.mxu0 %v11289
      %12262 = vmatpush1.bf16.msra.mxu0 %v11288
      %12263 = vmatprep.subr.bf16.mxu0 %v11285
      %12264 = vmatpush1.bf16.msra.mxu0 %v11284
      %12265 = vmatprep.subr.bf16.mxu0 %v11281
      %12266 = vmatpush1.bf16.msra.mxu0 %v11280
      %12267 = vmatprep.subr.bf16.mxu0 %v11277
      %12268 = vmatpush1.bf16.msra.mxu0 %v11276
      %12269 = vmatprep.subr.bf16.mxu0 %v11273
      %12270 = vmatpush1.bf16.msra.mxu0 %v11272
      %12271 = vmatprep.subr.bf16.mxu0 %v11269
      %12272 = vmatpush1.bf16.msra.mxu0 %v11268
      %12273 = vmatprep.subr.bf16.mxu0 %v11265
      %12274 = vmatpush1.bf16.msra.mxu0 %v11264
      %12275 = vmatprep.subr.bf16.mxu0 %v11261
      %12276 = vmatpush1.bf16.msra.mxu0 %v11260
      %12277 = vmatprep.subr.bf16.mxu0 %v11321
      %12278 = vmatpush2.bf16.msra.mxu0 %v11320
      %12279 = vmatprep.subr.bf16.mxu0 %v11317
      %12280 = vmatpush2.bf16.msra.mxu0 %v11316
      %12281 = vmatprep.subr.bf16.mxu0 %v11313
      %12282 = vmatpush2.bf16.msra.mxu0 %v11312
      %12283 = vmatprep.subr.bf16.mxu0 %v11309
      %12284 = vmatpush2.bf16.msra.mxu0 %v11308
      %12285 = vmatprep.subr.bf16.mxu0 %v11305
      %12286 = vmatpush2.bf16.msra.mxu0 %v11304
      %12287 = vmatprep.subr.bf16.mxu0 %v11301
      %12288 = vmatpush2.bf16.msra.mxu0 %v11300
      %12289 = vmatprep.subr.bf16.mxu0 %v11297
      %12290 = vmatpush2.bf16.msra.mxu0 %v11296
      %12291 = vmatprep.subr.bf16.mxu0 %v11293
      %12292 = vmatpush2.bf16.msra.mxu0 %v11292
      %12293 = vmatprep.mubr.bf16.mxu0 %v9113
      %12294 = vmatmul.mubr.bf16.gmra.mxu0 %v9112
      %v12295 = vpop.f32.mrf.mxu0
      %v12296 = vadd.f32 %v12255, %v12295
      %v12297 = vpop.f32.mrf.mxu0
      %v12298 = vadd.f32 %v12257, %v12297
      %v12299 = vpop.f32.mrf.mxu0
      %v12300 = vpop.f32.mrf.mxu0
      %12301 = vdwg.mxu0
      %12302 = vmatprep.subr.bf16.mxu0 %v11353
      %12303 = vmatpush1.bf16.msra.mxu0 %v11352
      %12304 = vmatprep.subr.bf16.mxu0 %v11349
      %12305 = vmatpush1.bf16.msra.mxu0 %v11348
      %12306 = vmatprep.subr.bf16.mxu0 %v11345
      %12307 = vmatpush1.bf16.msra.mxu0 %v11344
      %12308 = vmatprep.subr.bf16.mxu0 %v11341
      %12309 = vmatpush1.bf16.msra.mxu0 %v11340
      %12310 = vmatprep.subr.bf16.mxu0 %v11337
      %12311 = vmatpush1.bf16.msra.mxu0 %v11336
      %12312 = vmatprep.subr.bf16.mxu0 %v11333
      %12313 = vmatpush1.bf16.msra.mxu0 %v11332
      %12314 = vmatprep.subr.bf16.mxu0 %v11329
      %12315 = vmatpush1.bf16.msra.mxu0 %v11328
      %12316 = vmatprep.subr.bf16.mxu0 %v11325
      %12317 = vmatpush1.bf16.msra.mxu0 %v11324
      %12318 = vmatprep.subr.bf16.mxu0 %v11385
      %12319 = vmatpush2.bf16.msra.mxu0 %v11384
      %12320 = vmatprep.subr.bf16.mxu0 %v11381
      %12321 = vmatpush2.bf16.msra.mxu0 %v11380
      %12322 = vmatprep.subr.bf16.mxu0 %v11377
      %12323 = vmatpush2.bf16.msra.mxu0 %v11376
      %12324 = vmatprep.subr.bf16.mxu0 %v11373
      %12325 = vmatpush2.bf16.msra.mxu0 %v11372
      %12326 = vmatprep.subr.bf16.mxu0 %v11369
      %12327 = vmatpush2.bf16.msra.mxu0 %v11368
      %12328 = vmatprep.subr.bf16.mxu0 %v11365
      %12329 = vmatpush2.bf16.msra.mxu0 %v11364
      %12330 = vmatprep.subr.bf16.mxu0 %v11361
      %12331 = vmatpush2.bf16.msra.mxu0 %v11360
      %12332 = vmatprep.subr.bf16.mxu0 %v11357
      %12333 = vmatpush2.bf16.msra.mxu0 %v11356
      %12334 = vmatprep.mubr.bf16.mxu0 %v9115
      %12335 = vmatmul.mubr.bf16.gmra.mxu0 %v9114
      %v12336 = vpop.f32.mrf.mxu0
      %v12337 = vadd.f32 %v12296, %v12336
      %v12338 = vpop.f32.mrf.mxu0
      %v12339 = vadd.f32 %v12298, %v12338
      %v12340 = vpop.f32.mrf.mxu0
      %v12341 = vpop.f32.mrf.mxu0
      %12342 = vdwg.mxu0
      %12343 = vmatprep.subr.bf16.mxu0 %v11417
      %12344 = vmatpush1.bf16.msra.mxu0 %v11416
      %12345 = vmatprep.subr.bf16.mxu0 %v11413
      %12346 = vmatpush1.bf16.msra.mxu0 %v11412
      %12347 = vmatprep.subr.bf16.mxu0 %v11409
      %12348 = vmatpush1.bf16.msra.mxu0 %v11408
      %12349 = vmatprep.subr.bf16.mxu0 %v11405
      %12350 = vmatpush1.bf16.msra.mxu0 %v11404
      %12351 = vmatprep.subr.bf16.mxu0 %v11401
      %12352 = vmatpush1.bf16.msra.mxu0 %v11400
      %12353 = vmatprep.subr.bf16.mxu0 %v11397
      %12354 = vmatpush1.bf16.msra.mxu0 %v11396
      %12355 = vmatprep.subr.bf16.mxu0 %v11393
      %12356 = vmatpush1.bf16.msra.mxu0 %v11392
      %12357 = vmatprep.subr.bf16.mxu0 %v11389
      %12358 = vmatpush1.bf16.msra.mxu0 %v11388
      %12359 = vmatprep.subr.bf16.mxu0 %v11449
      %12360 = vmatpush2.bf16.msra.mxu0 %v11448
      %12361 = vmatprep.subr.bf16.mxu0 %v11445
      %12362 = vmatpush2.bf16.msra.mxu0 %v11444
      %12363 = vmatprep.subr.bf16.mxu0 %v11441
      %12364 = vmatpush2.bf16.msra.mxu0 %v11440
      %12365 = vmatprep.subr.bf16.mxu0 %v11437
      %12366 = vmatpush2.bf16.msra.mxu0 %v11436
      %12367 = vmatprep.subr.bf16.mxu0 %v11433
      %12368 = vmatpush2.bf16.msra.mxu0 %v11432
      %12369 = vmatprep.subr.bf16.mxu0 %v11429
      %12370 = vmatpush2.bf16.msra.mxu0 %v11428
      %12371 = vmatprep.subr.bf16.mxu0 %v11425
      %12372 = vmatpush2.bf16.msra.mxu0 %v11424
      %12373 = vmatprep.subr.bf16.mxu0 %v11421
      %12374 = vmatpush2.bf16.msra.mxu0 %v11420
      %12375 = vmatprep.mubr.bf16.mxu0 %v9117
      %12376 = vmatmul.mubr.bf16.gmra.mxu0 %v9116
      %v12377 = vpop.f32.mrf.mxu0
      %v12378 = vadd.f32 %v12337, %v12377
      %v12379 = vpop.f32.mrf.mxu0
      %v12380 = vadd.f32 %v12339, %v12379
      %v12381 = vpop.f32.mrf.mxu0
      %v12382 = vpop.f32.mrf.mxu0
      %12383 = vdwg.mxu0
      %12384 = vmatprep.subr.bf16.mxu0 %v11481
      %12385 = vmatpush1.bf16.msra.mxu0 %v11480
      %12386 = vmatprep.subr.bf16.mxu0 %v11477
      %12387 = vmatpush1.bf16.msra.mxu0 %v11476
      %12388 = vmatprep.subr.bf16.mxu0 %v11473
      %12389 = vmatpush1.bf16.msra.mxu0 %v11472
      %12390 = vmatprep.subr.bf16.mxu0 %v11469
      %12391 = vmatpush1.bf16.msra.mxu0 %v11468
      %12392 = vmatprep.subr.bf16.mxu0 %v11465
      %12393 = vmatpush1.bf16.msra.mxu0 %v11464
      %12394 = vmatprep.subr.bf16.mxu0 %v11461
      %12395 = vmatpush1.bf16.msra.mxu0 %v11460
      %12396 = vmatprep.subr.bf16.mxu0 %v11457
      %12397 = vmatpush1.bf16.msra.mxu0 %v11456
      %12398 = vmatprep.subr.bf16.mxu0 %v11453
      %12399 = vmatpush1.bf16.msra.mxu0 %v11452
      %12400 = vmatprep.subr.bf16.mxu0 %v11513
      %12401 = vmatpush2.bf16.msra.mxu0 %v11512
      %12402 = vmatprep.subr.bf16.mxu0 %v11509
      %12403 = vmatpush2.bf16.msra.mxu0 %v11508
      %12404 = vmatprep.subr.bf16.mxu0 %v11505
      %12405 = vmatpush2.bf16.msra.mxu0 %v11504
      %12406 = vmatprep.subr.bf16.mxu0 %v11501
      %12407 = vmatpush2.bf16.msra.mxu0 %v11500
      %12408 = vmatprep.subr.bf16.mxu0 %v11497
      %12409 = vmatpush2.bf16.msra.mxu0 %v11496
      %12410 = vmatprep.subr.bf16.mxu0 %v11493
      %12411 = vmatpush2.bf16.msra.mxu0 %v11492
      %12412 = vmatprep.subr.bf16.mxu0 %v11489
      %12413 = vmatpush2.bf16.msra.mxu0 %v11488
      %12414 = vmatprep.subr.bf16.mxu0 %v11485
      %12415 = vmatpush2.bf16.msra.mxu0 %v11484
      %12416 = vmatprep.mubr.bf16.mxu0 %v9119
      %12417 = vmatmul.mubr.bf16.gmra.mxu0 %v9118
      %v12418 = vpop.f32.mrf.mxu0
      %v12419 = vadd.f32 %v12378, %v12418
      %v12420 = vpop.f32.mrf.mxu0
      %v12421 = vadd.f32 %v12380, %v12420
      %v12422 = vpop.f32.mrf.mxu0
      %v12423 = vpop.f32.mrf.mxu0
      %12424 = vdwg.mxu0
      %12425 = vmatprep.subr.bf16.mxu0 %v11545
      %12426 = vmatpush1.bf16.msra.mxu0 %v11544
      %12427 = vmatprep.subr.bf16.mxu0 %v11541
      %12428 = vmatpush1.bf16.msra.mxu0 %v11540
      %12429 = vmatprep.subr.bf16.mxu0 %v11537
      %12430 = vmatpush1.bf16.msra.mxu0 %v11536
      %12431 = vmatprep.subr.bf16.mxu0 %v11533
      %12432 = vmatpush1.bf16.msra.mxu0 %v11532
      %12433 = vmatprep.subr.bf16.mxu0 %v11529
      %12434 = vmatpush1.bf16.msra.mxu0 %v11528
      %12435 = vmatprep.subr.bf16.mxu0 %v11525
      %12436 = vmatpush1.bf16.msra.mxu0 %v11524
      %12437 = vmatprep.subr.bf16.mxu0 %v11521
      %12438 = vmatpush1.bf16.msra.mxu0 %v11520
      %12439 = vmatprep.subr.bf16.mxu0 %v11517
      %12440 = vmatpush1.bf16.msra.mxu0 %v11516
      %12441 = vmatprep.subr.bf16.mxu0 %v11577
      %12442 = vmatpush2.bf16.msra.mxu0 %v11576
      %12443 = vmatprep.subr.bf16.mxu0 %v11573
      %12444 = vmatpush2.bf16.msra.mxu0 %v11572
      %12445 = vmatprep.subr.bf16.mxu0 %v11569
      %12446 = vmatpush2.bf16.msra.mxu0 %v11568
      %12447 = vmatprep.subr.bf16.mxu0 %v11565
      %12448 = vmatpush2.bf16.msra.mxu0 %v11564
      %12449 = vmatprep.subr.bf16.mxu0 %v11561
      %12450 = vmatpush2.bf16.msra.mxu0 %v11560
      %12451 = vmatprep.subr.bf16.mxu0 %v11557
      %12452 = vmatpush2.bf16.msra.mxu0 %v11556
      %12453 = vmatprep.subr.bf16.mxu0 %v11553
      %12454 = vmatpush2.bf16.msra.mxu0 %v11552
      %12455 = vmatprep.subr.bf16.mxu0 %v11549
      %12456 = vmatpush2.bf16.msra.mxu0 %v11548
      %12457 = vmatprep.mubr.bf16.mxu0 %v9121
      %12458 = vmatmul.mubr.bf16.gmra.mxu0 %v9120
      %v12459 = vpop.f32.mrf.mxu0
      %v12460 = vadd.f32 %v12419, %v12459
      %v12461 = vpop.f32.mrf.mxu0
      %v12462 = vadd.f32 %v12421, %v12461
      %v12463 = vpop.f32.mrf.mxu0
      %v12464 = vpop.f32.mrf.mxu0
      %12465 = vdwg.mxu0
      %12466 = vmatprep.subr.bf16.mxu0 %v11609
      %12467 = vmatpush1.bf16.msra.mxu0 %v11608
      %12468 = vmatprep.subr.bf16.mxu0 %v11605
      %12469 = vmatpush1.bf16.msra.mxu0 %v11604
      %12470 = vmatprep.subr.bf16.mxu0 %v11601
      %12471 = vmatpush1.bf16.msra.mxu0 %v11600
      %12472 = vmatprep.subr.bf16.mxu0 %v11597
      %12473 = vmatpush1.bf16.msra.mxu0 %v11596
      %12474 = vmatprep.subr.bf16.mxu0 %v11593
      %12475 = vmatpush1.bf16.msra.mxu0 %v11592
      %12476 = vmatprep.subr.bf16.mxu0 %v11589
      %12477 = vmatpush1.bf16.msra.mxu0 %v11588
      %12478 = vmatprep.subr.bf16.mxu0 %v11585
      %12479 = vmatpush1.bf16.msra.mxu0 %v11584
      %12480 = vmatprep.subr.bf16.mxu0 %v11581
      %12481 = vmatpush1.bf16.msra.mxu0 %v11580
      %12482 = vmatprep.subr.bf16.mxu0 %v11641
      %12483 = vmatpush2.bf16.msra.mxu0 %v11640
      %12484 = vmatprep.subr.bf16.mxu0 %v11637
      %12485 = vmatpush2.bf16.msra.mxu0 %v11636
      %12486 = vmatprep.subr.bf16.mxu0 %v11633
      %12487 = vmatpush2.bf16.msra.mxu0 %v11632
      %12488 = vmatprep.subr.bf16.mxu0 %v11629
      %12489 = vmatpush2.bf16.msra.mxu0 %v11628
      %12490 = vmatprep.subr.bf16.mxu0 %v11625
      %12491 = vmatpush2.bf16.msra.mxu0 %v11624
      %12492 = vmatprep.subr.bf16.mxu0 %v11621
      %12493 = vmatpush2.bf16.msra.mxu0 %v11620
      %12494 = vmatprep.subr.bf16.mxu0 %v11617
      %12495 = vmatpush2.bf16.msra.mxu0 %v11616
      %12496 = vmatprep.subr.bf16.mxu0 %v11613
      %12497 = vmatpush2.bf16.msra.mxu0 %v11612
      %12498 = vmatprep.mubr.bf16.mxu0 %v9123
      %12499 = vmatmul.mubr.bf16.gmra.mxu0 %v9122
      %v12500 = vpop.f32.mrf.mxu0
      %v12501 = vadd.f32 %v12460, %v12500
      %v12502 = vpop.f32.mrf.mxu0
      %v12503 = vadd.f32 %v12462, %v12502
      %v12504 = vpop.f32.mrf.mxu0
      %v12505 = vpop.f32.mrf.mxu0
      %12506 = vdwg.mxu0
      %12507 = vmatprep.subr.bf16.mxu0 %v11673
      %12508 = vmatpush1.bf16.msra.mxu0 %v11672
      %12509 = vmatprep.subr.bf16.mxu0 %v11669
      %12510 = vmatpush1.bf16.msra.mxu0 %v11668
      %12511 = vmatprep.subr.bf16.mxu0 %v11665
      %12512 = vmatpush1.bf16.msra.mxu0 %v11664
      %12513 = vmatprep.subr.bf16.mxu0 %v11661
      %12514 = vmatpush1.bf16.msra.mxu0 %v11660
      %12515 = vmatprep.subr.bf16.mxu0 %v11657
      %12516 = vmatpush1.bf16.msra.mxu0 %v11656
      %12517 = vmatprep.subr.bf16.mxu0 %v11653
      %12518 = vmatpush1.bf16.msra.mxu0 %v11652
      %12519 = vmatprep.subr.bf16.mxu0 %v11649
      %12520 = vmatpush1.bf16.msra.mxu0 %v11648
      %12521 = vmatprep.subr.bf16.mxu0 %v11645
      %12522 = vmatpush1.bf16.msra.mxu0 %v11644
      %12523 = vmatprep.subr.bf16.mxu0 %v11705
      %12524 = vmatpush2.bf16.msra.mxu0 %v11704
      %12525 = vmatprep.subr.bf16.mxu0 %v11701
      %12526 = vmatpush2.bf16.msra.mxu0 %v11700
      %12527 = vmatprep.subr.bf16.mxu0 %v11697
      %12528 = vmatpush2.bf16.msra.mxu0 %v11696
      %12529 = vmatprep.subr.bf16.mxu0 %v11693
      %12530 = vmatpush2.bf16.msra.mxu0 %v11692
      %12531 = vmatprep.subr.bf16.mxu0 %v11689
      %12532 = vmatpush2.bf16.msra.mxu0 %v11688
      %12533 = vmatprep.subr.bf16.mxu0 %v11685
      %12534 = vmatpush2.bf16.msra.mxu0 %v11684
      %12535 = vmatprep.subr.bf16.mxu0 %v11681
      %12536 = vmatpush2.bf16.msra.mxu0 %v11680
      %12537 = vmatprep.subr.bf16.mxu0 %v11677
      %12538 = vmatpush2.bf16.msra.mxu0 %v11676
      %12539 = vmatprep.mubr.bf16.mxu0 %v9125
      %12540 = vmatmul.mubr.bf16.gmra.mxu0 %v9124
      %v12541 = vpop.f32.mrf.mxu0
      %v12542 = vadd.f32 %v12501, %v12541
      %v12543 = vpop.f32.mrf.mxu0
      %v12544 = vadd.f32 %v12503, %v12543
      %v12545 = vpop.f32.mrf.mxu0
      %v12546 = vpop.f32.mrf.mxu0
      %12547 = vdwg.mxu0
      %12548 = vmatprep.subr.bf16.mxu0 %v11227
      %12549 = vmatpush1.bf16.msra.mxu0 %v11226
      %12550 = vmatprep.subr.bf16.mxu0 %v11223
      %12551 = vmatpush1.bf16.msra.mxu0 %v11222
      %12552 = vmatprep.subr.bf16.mxu0 %v11219
      %12553 = vmatpush1.bf16.msra.mxu0 %v11218
      %12554 = vmatprep.subr.bf16.mxu0 %v11215
      %12555 = vmatpush1.bf16.msra.mxu0 %v11214
      %12556 = vmatprep.subr.bf16.mxu0 %v11211
      %12557 = vmatpush1.bf16.msra.mxu0 %v11210
      %12558 = vmatprep.subr.bf16.mxu0 %v11207
      %12559 = vmatpush1.bf16.msra.mxu0 %v11206
      %12560 = vmatprep.subr.bf16.mxu0 %v11203
      %12561 = vmatpush1.bf16.msra.mxu0 %v11202
      %12562 = vmatprep.subr.bf16.mxu0 %v11199
      %12563 = vmatpush1.bf16.msra.mxu0 %v11198
      %12564 = vmatprep.subr.bf16.mxu0 %v11259
      %12565 = vmatpush2.bf16.msra.mxu0 %v11258
      %12566 = vmatprep.subr.bf16.mxu0 %v11255
      %12567 = vmatpush2.bf16.msra.mxu0 %v11254
      %12568 = vmatprep.subr.bf16.mxu0 %v11251
      %12569 = vmatpush2.bf16.msra.mxu0 %v11250
      %12570 = vmatprep.subr.bf16.mxu0 %v11247
      %12571 = vmatpush2.bf16.msra.mxu0 %v11246
      %12572 = vmatprep.subr.bf16.mxu0 %v11243
      %12573 = vmatpush2.bf16.msra.mxu0 %v11242
      %12574 = vmatprep.subr.bf16.mxu0 %v11239
      %12575 = vmatpush2.bf16.msra.mxu0 %v11238
      %12576 = vmatprep.subr.bf16.mxu0 %v11235
      %12577 = vmatpush2.bf16.msra.mxu0 %v11234
      %12578 = vmatprep.subr.bf16.mxu0 %v11231
      %12579 = vmatpush2.bf16.msra.mxu0 %v11230
      %12580 = vmatprep.mubr.bf16.mxu0 %v9111
      %12581 = vmatmul.mubr.bf16.gmra.mxu0 %v9110
      %v12582 = vpop.f32.mrf.mxu0
      %v12583 = vadd.f32 %v9651, %v12582
      %v12584 = vpop.f32.mrf.mxu0
      %v12585 = vadd.f32 %v9655, %v12584
      %v12586 = vpop.f32.mrf.mxu0
      %v12587 = vpop.f32.mrf.mxu0
      %12588 = vdwg.mxu0
      %12589 = vmatprep.subr.bf16.mxu0 %v11291
      %12590 = vmatpush1.bf16.msra.mxu0 %v11290
      %12591 = vmatprep.subr.bf16.mxu0 %v11287
      %12592 = vmatpush1.bf16.msra.mxu0 %v11286
      %12593 = vmatprep.subr.bf16.mxu0 %v11283
      %12594 = vmatpush1.bf16.msra.mxu0 %v11282
      %12595 = vmatprep.subr.bf16.mxu0 %v11279
      %12596 = vmatpush1.bf16.msra.mxu0 %v11278
      %12597 = vmatprep.subr.bf16.mxu0 %v11275
      %12598 = vmatpush1.bf16.msra.mxu0 %v11274
      %12599 = vmatprep.subr.bf16.mxu0 %v11271
      %12600 = vmatpush1.bf16.msra.mxu0 %v11270
      %12601 = vmatprep.subr.bf16.mxu0 %v11267
      %12602 = vmatpush1.bf16.msra.mxu0 %v11266
      %12603 = vmatprep.subr.bf16.mxu0 %v11263
      %12604 = vmatpush1.bf16.msra.mxu0 %v11262
      %12605 = vmatprep.subr.bf16.mxu0 %v11323
      %12606 = vmatpush2.bf16.msra.mxu0 %v11322
      %12607 = vmatprep.subr.bf16.mxu0 %v11319
      %12608 = vmatpush2.bf16.msra.mxu0 %v11318
      %12609 = vmatprep.subr.bf16.mxu0 %v11315
      %12610 = vmatpush2.bf16.msra.mxu0 %v11314
      %12611 = vmatprep.subr.bf16.mxu0 %v11311
      %12612 = vmatpush2.bf16.msra.mxu0 %v11310
      %12613 = vmatprep.subr.bf16.mxu0 %v11307
      %12614 = vmatpush2.bf16.msra.mxu0 %v11306
      %12615 = vmatprep.subr.bf16.mxu0 %v11303
      %12616 = vmatpush2.bf16.msra.mxu0 %v11302
      %12617 = vmatprep.subr.bf16.mxu0 %v11299
      %12618 = vmatpush2.bf16.msra.mxu0 %v11298
      %12619 = vmatprep.subr.bf16.mxu0 %v11295
      %12620 = vmatpush2.bf16.msra.mxu0 %v11294
      %12621 = vmatprep.mubr.bf16.mxu0 %v9113
      %12622 = vmatmul.mubr.bf16.gmra.mxu0 %v9112
      %v12623 = vpop.f32.mrf.mxu0
      %v12624 = vadd.f32 %v12583, %v12623
      %v12625 = vpop.f32.mrf.mxu0
      %v12626 = vadd.f32 %v12585, %v12625
      %v12627 = vpop.f32.mrf.mxu0
      %v12628 = vpop.f32.mrf.mxu0
      %12629 = vdwg.mxu0
      %12630 = vmatprep.subr.bf16.mxu0 %v11355
      %12631 = vmatpush1.bf16.msra.mxu0 %v11354
      %12632 = vmatprep.subr.bf16.mxu0 %v11351
      %12633 = vmatpush1.bf16.msra.mxu0 %v11350
      %12634 = vmatprep.subr.bf16.mxu0 %v11347
      %12635 = vmatpush1.bf16.msra.mxu0 %v11346
      %12636 = vmatprep.subr.bf16.mxu0 %v11343
      %12637 = vmatpush1.bf16.msra.mxu0 %v11342
      %12638 = vmatprep.subr.bf16.mxu0 %v11339
      %12639 = vmatpush1.bf16.msra.mxu0 %v11338
      %12640 = vmatprep.subr.bf16.mxu0 %v11335
      %12641 = vmatpush1.bf16.msra.mxu0 %v11334
      %12642 = vmatprep.subr.bf16.mxu0 %v11331
      %12643 = vmatpush1.bf16.msra.mxu0 %v11330
      %12644 = vmatprep.subr.bf16.mxu0 %v11327
      %12645 = vmatpush1.bf16.msra.mxu0 %v11326
      %12646 = vmatprep.subr.bf16.mxu0 %v11387
      %12647 = vmatpush2.bf16.msra.mxu0 %v11386
      %12648 = vmatprep.subr.bf16.mxu0 %v11383
      %12649 = vmatpush2.bf16.msra.mxu0 %v11382
      %12650 = vmatprep.subr.bf16.mxu0 %v11379
      %12651 = vmatpush2.bf16.msra.mxu0 %v11378
      %12652 = vmatprep.subr.bf16.mxu0 %v11375
      %12653 = vmatpush2.bf16.msra.mxu0 %v11374
      %12654 = vmatprep.subr.bf16.mxu0 %v11371
      %12655 = vmatpush2.bf16.msra.mxu0 %v11370
      %12656 = vmatprep.subr.bf16.mxu0 %v11367
      %12657 = vmatpush2.bf16.msra.mxu0 %v11366
      %12658 = vmatprep.subr.bf16.mxu0 %v11363
      %12659 = vmatpush2.bf16.msra.mxu0 %v11362
      %12660 = vmatprep.subr.bf16.mxu0 %v11359
      %12661 = vmatpush2.bf16.msra.mxu0 %v11358
      %12662 = vmatprep.mubr.bf16.mxu0 %v9115
      %12663 = vmatmul.mubr.bf16.gmra.mxu0 %v9114
      %v12664 = vpop.f32.mrf.mxu0
      %v12665 = vadd.f32 %v12624, %v12664
      %v12666 = vpop.f32.mrf.mxu0
      %v12667 = vadd.f32 %v12626, %v12666
      %v12668 = vpop.f32.mrf.mxu0
      %v12669 = vpop.f32.mrf.mxu0
      %12670 = vdwg.mxu0
      %12671 = vmatprep.subr.bf16.mxu0 %v11419
      %12672 = vmatpush1.bf16.msra.mxu0 %v11418
      %12673 = vmatprep.subr.bf16.mxu0 %v11415
      %12674 = vmatpush1.bf16.msra.mxu0 %v11414
      %12675 = vmatprep.subr.bf16.mxu0 %v11411
      %12676 = vmatpush1.bf16.msra.mxu0 %v11410
      %12677 = vmatprep.subr.bf16.mxu0 %v11407
      %12678 = vmatpush1.bf16.msra.mxu0 %v11406
      %12679 = vmatprep.subr.bf16.mxu0 %v11403
      %12680 = vmatpush1.bf16.msra.mxu0 %v11402
      %12681 = vmatprep.subr.bf16.mxu0 %v11399
      %12682 = vmatpush1.bf16.msra.mxu0 %v11398
      %12683 = vmatprep.subr.bf16.mxu0 %v11395
      %12684 = vmatpush1.bf16.msra.mxu0 %v11394
      %12685 = vmatprep.subr.bf16.mxu0 %v11391
      %12686 = vmatpush1.bf16.msra.mxu0 %v11390
      %12687 = vmatprep.subr.bf16.mxu0 %v11451
      %12688 = vmatpush2.bf16.msra.mxu0 %v11450
      %12689 = vmatprep.subr.bf16.mxu0 %v11447
      %12690 = vmatpush2.bf16.msra.mxu0 %v11446
      %12691 = vmatprep.subr.bf16.mxu0 %v11443
      %12692 = vmatpush2.bf16.msra.mxu0 %v11442
      %12693 = vmatprep.subr.bf16.mxu0 %v11439
      %12694 = vmatpush2.bf16.msra.mxu0 %v11438
      %12695 = vmatprep.subr.bf16.mxu0 %v11435
      %12696 = vmatpush2.bf16.msra.mxu0 %v11434
      %12697 = vmatprep.subr.bf16.mxu0 %v11431
      %12698 = vmatpush2.bf16.msra.mxu0 %v11430
      %12699 = vmatprep.subr.bf16.mxu0 %v11427
      %12700 = vmatpush2.bf16.msra.mxu0 %v11426
      %12701 = vmatprep.subr.bf16.mxu0 %v11423
      %12702 = vmatpush2.bf16.msra.mxu0 %v11422
      %12703 = vmatprep.mubr.bf16.mxu0 %v9117
      %12704 = vmatmul.mubr.bf16.gmra.mxu0 %v9116
      %v12705 = vpop.f32.mrf.mxu0
      %v12706 = vadd.f32 %v12665, %v12705
      %v12707 = vpop.f32.mrf.mxu0
      %v12708 = vadd.f32 %v12667, %v12707
      %v12709 = vpop.f32.mrf.mxu0
      %v12710 = vpop.f32.mrf.mxu0
      %12711 = vdwg.mxu0
      %12712 = vmatprep.subr.bf16.mxu0 %v11483
      %12713 = vmatpush1.bf16.msra.mxu0 %v11482
      %12714 = vmatprep.subr.bf16.mxu0 %v11479
      %12715 = vmatpush1.bf16.msra.mxu0 %v11478
      %12716 = vmatprep.subr.bf16.mxu0 %v11475
      %12717 = vmatpush1.bf16.msra.mxu0 %v11474
      %12718 = vmatprep.subr.bf16.mxu0 %v11471
      %12719 = vmatpush1.bf16.msra.mxu0 %v11470
      %12720 = vmatprep.subr.bf16.mxu0 %v11467
      %12721 = vmatpush1.bf16.msra.mxu0 %v11466
      %12722 = vmatprep.subr.bf16.mxu0 %v11463
      %12723 = vmatpush1.bf16.msra.mxu0 %v11462
      %12724 = vmatprep.subr.bf16.mxu0 %v11459
      %12725 = vmatpush1.bf16.msra.mxu0 %v11458
      %12726 = vmatprep.subr.bf16.mxu0 %v11455
      %12727 = vmatpush1.bf16.msra.mxu0 %v11454
      %12728 = vmatprep.subr.bf16.mxu0 %v11515
      %12729 = vmatpush2.bf16.msra.mxu0 %v11514
      %12730 = vmatprep.subr.bf16.mxu0 %v11511
      %12731 = vmatpush2.bf16.msra.mxu0 %v11510
      %12732 = vmatprep.subr.bf16.mxu0 %v11507
      %12733 = vmatpush2.bf16.msra.mxu0 %v11506
      %12734 = vmatprep.subr.bf16.mxu0 %v11503
      %12735 = vmatpush2.bf16.msra.mxu0 %v11502
      %12736 = vmatprep.subr.bf16.mxu0 %v11499
      %12737 = vmatpush2.bf16.msra.mxu0 %v11498
      %12738 = vmatprep.subr.bf16.mxu0 %v11495
      %12739 = vmatpush2.bf16.msra.mxu0 %v11494
      %12740 = vmatprep.subr.bf16.mxu0 %v11491
      %12741 = vmatpush2.bf16.msra.mxu0 %v11490
      %12742 = vmatprep.subr.bf16.mxu0 %v11487
      %12743 = vmatpush2.bf16.msra.mxu0 %v11486
      %12744 = vmatprep.mubr.bf16.mxu0 %v9119
      %12745 = vmatmul.mubr.bf16.gmra.mxu0 %v9118
      %v12746 = vpop.f32.mrf.mxu0
      %v12747 = vadd.f32 %v12706, %v12746
      %v12748 = vpop.f32.mrf.mxu0
      %v12749 = vadd.f32 %v12708, %v12748
      %v12750 = vpop.f32.mrf.mxu0
      %v12751 = vpop.f32.mrf.mxu0
      %12752 = vdwg.mxu0
      %12753 = vmatprep.subr.bf16.mxu0 %v11547
      %12754 = vmatpush1.bf16.msra.mxu0 %v11546
      %12755 = vmatprep.subr.bf16.mxu0 %v11543
      %12756 = vmatpush1.bf16.msra.mxu0 %v11542
      %12757 = vmatprep.subr.bf16.mxu0 %v11539
      %12758 = vmatpush1.bf16.msra.mxu0 %v11538
      %12759 = vmatprep.subr.bf16.mxu0 %v11535
      %12760 = vmatpush1.bf16.msra.mxu0 %v11534
      %12761 = vmatprep.subr.bf16.mxu0 %v11531
      %12762 = vmatpush1.bf16.msra.mxu0 %v11530
      %12763 = vmatprep.subr.bf16.mxu0 %v11527
      %12764 = vmatpush1.bf16.msra.mxu0 %v11526
      %12765 = vmatprep.subr.bf16.mxu0 %v11523
      %12766 = vmatpush1.bf16.msra.mxu0 %v11522
      %12767 = vmatprep.subr.bf16.mxu0 %v11519
      %12768 = vmatpush1.bf16.msra.mxu0 %v11518
      %12769 = vmatprep.subr.bf16.mxu0 %v11579
      %12770 = vmatpush2.bf16.msra.mxu0 %v11578
      %12771 = vmatprep.subr.bf16.mxu0 %v11575
      %12772 = vmatpush2.bf16.msra.mxu0 %v11574
      %12773 = vmatprep.subr.bf16.mxu0 %v11571
      %12774 = vmatpush2.bf16.msra.mxu0 %v11570
      %12775 = vmatprep.subr.bf16.mxu0 %v11567
      %12776 = vmatpush2.bf16.msra.mxu0 %v11566
      %12777 = vmatprep.subr.bf16.mxu0 %v11563
      %12778 = vmatpush2.bf16.msra.mxu0 %v11562
      %12779 = vmatprep.subr.bf16.mxu0 %v11559
      %12780 = vmatpush2.bf16.msra.mxu0 %v11558
      %12781 = vmatprep.subr.bf16.mxu0 %v11555
      %12782 = vmatpush2.bf16.msra.mxu0 %v11554
      %12783 = vmatprep.subr.bf16.mxu0 %v11551
      %12784 = vmatpush2.bf16.msra.mxu0 %v11550
      %12785 = vmatprep.mubr.bf16.mxu0 %v9121
      %12786 = vmatmul.mubr.bf16.gmra.mxu0 %v9120
      %v12787 = vpop.f32.mrf.mxu0
      %v12788 = vadd.f32 %v12747, %v12787
      %v12789 = vpop.f32.mrf.mxu0
      %v12790 = vadd.f32 %v12749, %v12789
      %v12791 = vpop.f32.mrf.mxu0
      %v12792 = vpop.f32.mrf.mxu0
      %12793 = vdwg.mxu0
      %12794 = vmatprep.subr.bf16.mxu0 %v11611
      %12795 = vmatpush1.bf16.msra.mxu0 %v11610
      %12796 = vmatprep.subr.bf16.mxu0 %v11607
      %12797 = vmatpush1.bf16.msra.mxu0 %v11606
      %12798 = vmatprep.subr.bf16.mxu0 %v11603
      %12799 = vmatpush1.bf16.msra.mxu0 %v11602
      %12800 = vmatprep.subr.bf16.mxu0 %v11599
      %12801 = vmatpush1.bf16.msra.mxu0 %v11598
      %12802 = vmatprep.subr.bf16.mxu0 %v11595
      %12803 = vmatpush1.bf16.msra.mxu0 %v11594
      %12804 = vmatprep.subr.bf16.mxu0 %v11591
      %12805 = vmatpush1.bf16.msra.mxu0 %v11590
      %12806 = vmatprep.subr.bf16.mxu0 %v11587
      %12807 = vmatpush1.bf16.msra.mxu0 %v11586
      %12808 = vmatprep.subr.bf16.mxu0 %v11583
      %12809 = vmatpush1.bf16.msra.mxu0 %v11582
      %12810 = vmatprep.subr.bf16.mxu0 %v11643
      %12811 = vmatpush2.bf16.msra.mxu0 %v11642
      %12812 = vmatprep.subr.bf16.mxu0 %v11639
      %12813 = vmatpush2.bf16.msra.mxu0 %v11638
      %12814 = vmatprep.subr.bf16.mxu0 %v11635
      %12815 = vmatpush2.bf16.msra.mxu0 %v11634
      %12816 = vmatprep.subr.bf16.mxu0 %v11631
      %12817 = vmatpush2.bf16.msra.mxu0 %v11630
      %12818 = vmatprep.subr.bf16.mxu0 %v11627
      %12819 = vmatpush2.bf16.msra.mxu0 %v11626
      %12820 = vmatprep.subr.bf16.mxu0 %v11623
      %12821 = vmatpush2.bf16.msra.mxu0 %v11622
      %12822 = vmatprep.subr.bf16.mxu0 %v11619
      %12823 = vmatpush2.bf16.msra.mxu0 %v11618
      %12824 = vmatprep.subr.bf16.mxu0 %v11615
      %12825 = vmatpush2.bf16.msra.mxu0 %v11614
      %12826 = vmatprep.mubr.bf16.mxu0 %v9123
      %12827 = vmatmul.mubr.bf16.gmra.mxu0 %v9122
      %v12828 = vpop.f32.mrf.mxu0
      %v12829 = vadd.f32 %v12788, %v12828
      %v12830 = vpop.f32.mrf.mxu0
      %v12831 = vadd.f32 %v12790, %v12830
      %v12832 = vpop.f32.mrf.mxu0
      %v12833 = vpop.f32.mrf.mxu0
      %12834 = vdwg.mxu0
      %12835 = vmatprep.subr.bf16.mxu0 %v11675
      %12836 = vmatpush1.bf16.msra.mxu0 %v11674
      %12837 = vmatprep.subr.bf16.mxu0 %v11671
      %12838 = vmatpush1.bf16.msra.mxu0 %v11670
      %12839 = vmatprep.subr.bf16.mxu0 %v11667
      %12840 = vmatpush1.bf16.msra.mxu0 %v11666
      %12841 = vmatprep.subr.bf16.mxu0 %v11663
      %12842 = vmatpush1.bf16.msra.mxu0 %v11662
      %12843 = vmatprep.subr.bf16.mxu0 %v11659
      %12844 = vmatpush1.bf16.msra.mxu0 %v11658
      %12845 = vmatprep.subr.bf16.mxu0 %v11655
      %12846 = vmatpush1.bf16.msra.mxu0 %v11654
      %12847 = vmatprep.subr.bf16.mxu0 %v11651
      %12848 = vmatpush1.bf16.msra.mxu0 %v11650
      %12849 = vmatprep.subr.bf16.mxu0 %v11647
      %12850 = vmatpush1.bf16.msra.mxu0 %v11646
      %12851 = vmatprep.subr.bf16.mxu0 %v11707
      %12852 = vmatpush2.bf16.msra.mxu0 %v11706
      %12853 = vmatprep.subr.bf16.mxu0 %v11703
      %12854 = vmatpush2.bf16.msra.mxu0 %v11702
      %12855 = vmatprep.subr.bf16.mxu0 %v11699
      %12856 = vmatpush2.bf16.msra.mxu0 %v11698
      %12857 = vmatprep.subr.bf16.mxu0 %v11695
      %12858 = vmatpush2.bf16.msra.mxu0 %v11694
      %12859 = vmatprep.subr.bf16.mxu0 %v11691
      %12860 = vmatpush2.bf16.msra.mxu0 %v11690
      %12861 = vmatprep.subr.bf16.mxu0 %v11687
      %12862 = vmatpush2.bf16.msra.mxu0 %v11686
      %12863 = vmatprep.subr.bf16.mxu0 %v11683
      %12864 = vmatpush2.bf16.msra.mxu0 %v11682
      %12865 = vmatprep.subr.bf16.mxu0 %v11679
      %12866 = vmatpush2.bf16.msra.mxu0 %v11678
      %12867 = vmatprep.mubr.bf16.mxu0 %v9125
      %12868 = vmatmul.mubr.bf16.gmra.mxu0 %v9124
      %v12869 = vpop.f32.mrf.mxu0
      %v12870 = vadd.f32 %v12829, %v12869
      %v12871 = vpop.f32.mrf.mxu0
      %v12872 = vadd.f32 %v12831, %v12871
      %v12873 = vpop.f32.mrf.mxu0
      %v12874 = vpop.f32.mrf.mxu0
      %12875 = vdwg.mxu0
      %v12876 = vadd.f32 %v5274, %v12542
      %v12877 = vadd.f32 %v5275, %v12544
      %v12878 = vadd.f32 %v5276, %v12870
      %v12879 = vadd.f32 %v5277, %v12872
      %v12880 = vld [vmem:[%s11] sm:$0xf]
      %v12881 = vld [vmem:[%s12] sm:$0xf]
      %v12882 = vadd.f32 %v12876, %v12877
      %v12883 = vadd.f32 %v12882, %v12878
      %v12884 = vadd.f32 %v12883, %v12879
      %12885 = vadd.xlane.f32.xlu0 %v12884
      %v12886 = vpop.xlane.xlu0 %12885
      %v12887 = vmul.f32 %v12886, %v5206
      %v12888 = vsub.f32 %v12876, %v12887
      %v12889 = vsub.f32 %v12877, %v12887
      %v12890 = vsub.f32 %v12878, %v12887
      %v12891 = vsub.f32 %v12879, %v12887
      %v12892 = vmul.f32 %v12888, %v12888
      %v12893 = vmul.f32 %v12889, %v12889
      %v12894 = vmul.f32 %v12890, %v12890
      %v12895 = vmul.f32 %v12891, %v12891
      %v12896 = vadd.f32 %v12892, %v12893
      %v12897 = vadd.f32 %v12896, %v12894
      %v12898 = vadd.f32 %v12897, %v12895
      %12899 = vadd.xlane.f32.xlu0 %v12898
      %v12900 = vpop.xlane.xlu0 %12899
      %v12901 = vmul.f32 %v12900, %v5206
      %v12902 = vadd.f32 %v12901, 1e-05
      %v12903 = vrsqrt.pop %v12902
      %v12904 = vmul.f32 %v12888, %v12903
      %v12905 = vmul.f32 %v12889, %v12903
      %v12906 = vmul.f32 %v12890, %v12903
      %v12907 = vmul.f32 %v12891, %v12903
      %v12909 = vlaneseq
      %v12910 = vshrl.u32 %v12909, 7
      %v12911 = vsub.s32 0, %v12910
      %v12912 = vrot.slane %v12880, %v12911
      %v12913 = vlaneseq
      %v12914 = vshrl.u32 %v12913, 7
      %v12915 = vsub.s32 1, %v12914
      %v12916 = vrot.slane %v12880, %v12915
      %v12917 = vlaneseq
      %v12918 = vshrl.u32 %v12917, 7
      %v12919 = vsub.s32 2, %v12918
      %v12920 = vrot.slane %v12880, %v12919
      %v12921 = vlaneseq
      %v12922 = vshrl.u32 %v12921, 7
      %v12923 = vsub.s32 3, %v12922
      %v12924 = vrot.slane %v12880, %v12923
      %v12929 = vmul.f32 %v12904, %v12912
      %v12930 = vmul.f32 %v12905, %v12916
      %v12931 = vmul.f32 %v12906, %v12920
      %v12932 = vmul.f32 %v12907, %v12924
      %v12934 = vlaneseq
      %v12935 = vshrl.u32 %v12934, 7
      %v12936 = vsub.s32 0, %v12935
      %v12937 = vrot.slane %v12881, %v12936
      %v12938 = vlaneseq
      %v12939 = vshrl.u32 %v12938, 7
      %v12940 = vsub.s32 1, %v12939
      %v12941 = vrot.slane %v12881, %v12940
      %v12942 = vlaneseq
      %v12943 = vshrl.u32 %v12942, 7
      %v12944 = vsub.s32 2, %v12943
      %v12945 = vrot.slane %v12881, %v12944
      %v12946 = vlaneseq
      %v12947 = vshrl.u32 %v12946, 7
      %v12948 = vsub.s32 3, %v12947
      %v12949 = vrot.slane %v12881, %v12948
      %v12954 = vadd.f32 %v12929, %v12937
      %v12955 = vadd.f32 %v12930, %v12941
      %v12956 = vadd.f32 %v12931, %v12945
      %v12957 = vadd.f32 %v12932, %v12949
      %12958 = vst [vmem:[%s440] sm:$0xff] %v12954
      %12959 = vst [vmem:[%s440 + $0x8] sm:$0xff] %v12955
      %12960 = vst [vmem:[%s440 + $0x10] sm:$0xff] %v12956
      %12961 = vst [vmem:[%s440 + $0x18] sm:$0xff] %v12957
      %p12962 = scmp.lt.s32.totalorder %s24, 1
      %s12963 = scalar_select %p12962, %s24, 1
      %s12964 = smul.addr %s12963, 4
      %s12965 = smul.addr %s12964, 8
      %s12966 = scalar_lea.vmem %s13, %s12965
      // Predicated region
      $region73: #{transformer_block.1} parent=71 // pred_check
        %p12967 = pneg %p320
      $region74: #{transformer_block.1} parent=71 // pred_check_branch
        %12969 = sbr.rel (%p12967) target = $region76
      $region75: #{transformer_block.1} parent=71 // pred_region
        _
      $region76: #{transformer_block.1} parent=71 // pred_fallthru
        _
    $region72: #{transformer_block.1} parent=5 // pred_fallthru
      _
    %p12970 = scmp.le.s32.totalorder 2, %s19
    // Predicated region
    $region77: #{transformer_block.1} parent=5 // pred_check
      %p12971 = pneg %p12970
    $region78: #{transformer_block.1} parent=5 // pred_check_branch
      %12973 = sbr.rel (%p12971) target = $region80
    $region79: #{transformer_block.1} parent=5 // pred_region
      %s12974 = ssub.s32 %s19, 2
      // Predicated region
      $region81: #{transformer_block.1} parent=79 // pred_check
        %p12975 = pneg %p326
      $region82: #{transformer_block.1} parent=79 // pred_check_branch
        %12977 = sbr.rel (%p12975) target = $region84
      $region83: #{transformer_block.1} parent=79 // pred_region
        %p12978 = scmp.lt.s32.totalorder %s25, 1
        %s12979 = scalar_select %p12978, %s25, 1
        %s12980 = smul.addr %s12979, 4
        %s12981 = smul.addr %s12980, 8
        %s12982 = scalar_lea.vmem %s13, %s12981
      $region84: #{transformer_block.1} parent=79 // pred_fallthru
        _
    $region80: #{transformer_block.1} parent=5 // pred_fallthru
      _
  $region6: #{transformer_block.1} parent=0 // loop_footer
    %s23 = sadd.s32 1, %s19
  $region7: #{transformer_block.1} parent=0 // loop_footer_branch
    %18 = sbr.rel target = $region3
  $region8: #{transformer_block.1} parent=0 // loop_exit
    _

</llo_original>
